<compile_context>
chip_gen: v7x
topology: tpu7x:2x2x1
jax: 0.10.0
libtpu: 0.0.40
codegen_flags: <defaults>
</compile_context>

<pallas_src>
import functools

import jax
import jax.numpy as jnp
from jax.experimental import pallas as pl
from jax.experimental.pallas import tpu as pltpu


def _round_up(v, m):
    return ((v + m - 1) // m) * m


def _fold_bn(gamma, beta, mean, var, eps):
    scale = gamma / jnp.sqrt(var + eps)
    shift = beta - mean * scale
    return scale, shift


def _vmem_capacity_bytes():
    """Per-core VMEM capacity; conservative fallback = v7x (smallest chip)."""
    try:
        info = pltpu.get_tpu_info()
        cap = getattr(info, "vmem_capacity_bytes", None)
        if cap:
            return int(cap)
    except Exception:
        pass
    return 64 * 1024 * 1024


def _estimate_step_vmem(th, wp, cin, p, cout, in_isz, out_isz):
    """Rough per-grid-step VMEM footprint (double-buffered blocks + temporaries)."""
    span = th * wp
    window = (th + 2) * wp
    blk_in = cin * span * in_isz
    blk_halo = 2 * cin * wp * in_isz
    blk_out = cout * span * out_isz
    weights = (9 * p * cin + cout * p) * in_isz + (p + cout) * 4
    temps = (3 * cin * window * in_isz      # haloed window + rolled copies
             + 2 * p * span * 4             # f32 accumulator + activation
             + cout * span * 4)             # f32 result before the final cast
    return 2 * (blk_in + blk_halo + blk_out + weights) + temps


def _choose_tile_rows(h, wp, cin, p, cout, in_isz, out_isz, vmem_cap):
    """Largest multiple-of-8 row tile whose pipeline footprint fits ~40% of VMEM."""
    budget = int(0.4 * vmem_cap)
    max_th = max(8, min(1024, _round_up(h, 8)))
    best = 8
    th = 8
    while th <= max_th:
        if _estimate_step_vmem(th, wp, cin, p, cout, in_isz, out_isz) <= budget:
            best = th
        th += 8
    return best


# --------------------------------------------------------------------------
# Pallas kernel: one (image, row-tile) per grid step.
# --------------------------------------------------------------------------
def _domain_encoder_kernel(x_ref, top_ref, bot_ref, wa_ref, ba_ref, wb_ref,
                           bb_ref, o_ref, *, negative_slope):
    # x_ref  : (Cin, TH*Wp)     TH image rows, lane-flattened (Wp lanes per row)
    # top_ref: (1, Cin, Wp)     row above the tile (zeros at image border)
    # bot_ref: (1, Cin, Wp)     row below the tile
    # wa_ref : (9, P, Cin)      BN1-folded 3x3 taps; 1x1 identity merged at centre
    # ba_ref : (P, 1)           folded BN1+BN2 shift
    # wb_ref : (Cout, P)        conv3 1x1 weight
    # bb_ref : (Cout, 1)        conv3 bias
    # o_ref  : (Cout, TH*Wp)
    wp = top_ref.shape[2]
    span = x_ref.shape[1]
    p = wa_ref.shape[1]

    # Haloed window: (Cin, (TH+2)*Wp) = [top row | TH rows | bottom row].
    xwin = jnp.concatenate([top_ref[0], x_ref[...], bot_ref[0]], axis=1)
    window = xwin.shape[1]

    acc = jnp.zeros((p, span), dtype=jnp.float32)
    for dx in range(3):
        # Horizontal tap: shift columns by (dx - 1).  The circular wrap only
        # lands on zero padding / discarded border columns.
        xs = xwin if dx == 1 else pltpu.roll(xwin, shift=(1 - dx) % window, axis=1)
        for dy in range(3):
            slab = xs[:, dy * wp: dy * wp + span]      # lane-aligned vertical tap
            acc = acc + jnp.dot(wa_ref[dy * 3 + dx], slab,
                                preferred_element_type=jnp.float32)

    acc = acc + ba_ref[...]                             # (P, 1) broadcast
    h = jnp.where(acc >= 0, acc, negative_slope * acc)  # LeakyReLU(0.01) in f32
    y = jnp.dot(wb_ref[...], h.astype(wb_ref.dtype),
                preferred_element_type=jnp.float32)
    y = y + bb_ref[...]
    o_ref[...] = y.astype(o_ref.dtype)


# --------------------------------------------------------------------------
# Wrapper: BN folding, lane-dense layout, halo extraction, pallas_call.
# --------------------------------------------------------------------------
def domain_encoder(x, params, *, negative_slope=0.01, eps=1e-5, compute_dtype=None):
    """x: (B, Cin, H, W) NCHW (PyTorch layout). Returns (B, Cin, H, W)."""
    B, Cin, H, W = x.shape
    w1 = params["conv1_w"]                       # (P, Cin, 3, 3)
    w2 = params["conv2_w"]                       # (P, Cin, 1, 1)
    w3 = params["conv3_w"]                       # (Cout=Cin, P, 1, 1)
    b3 = params["conv3_b"]                       # (Cout,)
    P = w1.shape[0]
    Cout = w3.shape[0]
    cdt = jnp.dtype(compute_dtype) if compute_dtype is not None else x.dtype

    # ---- fold inference-mode BN into the conv filters ----------------------
    s1, t1 = _fold_bn(params["bn1_gamma"], params["bn1_beta"],
                      params["bn1_mean"], params["bn1_var"], eps)
    s2, t2 = _fold_bn(params["bn2_gamma"], params["bn2_beta"],
                      params["bn2_mean"], params["bn2_var"], eps)

    Cin_p = _round_up(Cin, 8)
    P_p = _round_up(P, 8)
    Cout_p = _round_up(Cout, 8)

    wa = jnp.transpose(w1 * s1[:, None, None, None], (2, 3, 0, 1))   # (3,3,P,Cin)
    wa = wa.at[1, 1].add(w2[:, :, 0, 0] * s2[:, None])               # merge 1x1 branch
    wa = jnp.pad(wa, ((0, 0), (0, 0), (0, P_p - P), (0, Cin_p - Cin)))
    wa = wa.reshape(9, P_p, Cin_p).astype(cdt)
    ba = jnp.pad(t1 + t2, ((0, P_p - P),)).astype(jnp.float32)[:, None]        # (P_p,1)
    wb = jnp.pad(w3[:, :, 0, 0],
                 ((0, Cout_p - Cout), (0, P_p - P))).astype(cdt)               # (Cout_p,P_p)
    bb = jnp.pad(b3, ((0, Cout_p - Cout),)).astype(jnp.float32)[:, None]       # (Cout_p,1)

    # ---- spatial layout: lane-dense rows + per-tile halo rows --------------
    Wp = _round_up(W + 2, 128)                    # 1 left pad + W + right/lane pad
    in_isz = jnp.dtype(cdt).itemsize
    out_isz = jnp.dtype(x.dtype).itemsize
    vmem_cap = _vmem_capacity_bytes()
    TH = _choose_tile_rows(H, Wp, Cin_p, P_p, Cout_p, in_isz, out_isz, vmem_cap)
    Hp = _round_up(H, TH)
    n_t = Hp // TH
    NT = B * n_t
    span = TH * Wp

    # (Cin_p, B, Hp+2, Wp); row r of this buffer is original row r-1, so the
    # zero rows at both ends double as the conv zero padding at image borders.
    xt = jnp.transpose(x, (1, 0, 2, 3)).astype(cdt)
    xt = jnp.pad(xt, ((0, Cin_p - Cin), (0, 0), (1, Hp - H + 1), (1, Wp - W - 1)))

    main = xt[:, :, 1:Hp + 1, :].reshape(Cin_p, B * Hp * Wp)
    top = xt[:, :, 0:Hp - TH + 1:TH, :]           # row t*TH - 1 of each tile
    bot = xt[:, :, TH + 1:Hp + 2:TH, :]           # row t*TH + TH of each tile
    top = jnp.transpose(top, (1, 2, 0, 3)).reshape(NT, Cin_p, Wp)
    bot = jnp.transpose(bot, (1, 2, 0, 3)).reshape(NT, Cin_p, Wp)

    flops = 2 * NT * span * (9 * Cin_p * P_p + P_p * Cout_p)
    bytes_accessed = ((main.size + top.size + bot.size) * in_isz
                      + Cout_p * B * Hp * Wp * out_isz
                      + (wa.size + wb.size) * in_isz)
    vmem_limit = int(min(max(0.9 * vmem_cap, 32 * 1024 * 1024),
                         120 * 1024 * 1024))

    # NOTE: the four weight/bias operands have constant index_maps and stay
    # VMEM-resident; on v7x they could additionally be single-buffered via
    # pipeline_mode=pl.Buffered(1) to reclaim VMEM.
    out_flat = pl.pallas_call(
        functools.partial(_domain_encoder_kernel, negative_slope=negative_slope),
        out_shape=jax.ShapeDtypeStruct((Cout_p, B * Hp * Wp), x.dtype),
        grid_spec=pltpu.PrefetchScalarGridSpec(
            num_scalar_prefetch=0,
            grid=(NT,),
            in_specs=[
                pl.BlockSpec((Cin_p, span), lambda i: (0, i)),
                pl.BlockSpec((1, Cin_p, Wp), lambda i: (i, 0, 0)),
                pl.BlockSpec((1, Cin_p, Wp), lambda i: (i, 0, 0)),
                pl.BlockSpec((9, P_p, Cin_p), lambda i: (0, 0, 0)),
                pl.BlockSpec((P_p, 1), lambda i: (0, 0)),
                pl.BlockSpec((Cout_p, P_p), lambda i: (0, 0)),
                pl.BlockSpec((Cout_p, 1), lambda i: (0, 0)),
            ],
            out_specs=pl.BlockSpec((Cout_p, span), lambda i: (0, i)),
        ),
        compiler_params=pltpu.CompilerParams(
            dimension_semantics=("parallel",),
            vmem_limit_bytes=vmem_limit,
        ),
        cost_estimate=pl.CostEstimate(
            flops=int(flops), transcendentals=0,
            bytes_accessed=int(bytes_accessed)),
    )(main, top, bot, wa, ba, wb, bb)

    out = out_flat[:Cout].reshape(Cout, B, Hp, Wp)
    out = jnp.transpose(out, (1, 0, 2, 3))[:, :, :H, 1:W + 1]
    return out


# --------------------------------------------------------------------------
# Pure-JAX reference mirroring the PyTorch forward (eval-mode BN).
# --------------------------------------------------------------------------
def _reference(x, params, *, negative_slope=0.01, eps=1e-5):
    def conv(inp, w, pad):
        return jax.lax.conv_general_dilated(
            inp, w, window_strides=(1, 1), padding=pad,
            dimension_numbers=("NCHW", "OIHW", "NCHW"))

    def bn(inp, gamma, beta, mean, var):
        s = gamma / jnp.sqrt(var + eps)
        t = beta - mean * s
        return inp * s[None, :, None, None] + t[None, :, None, None]

    out = bn(conv(x, params["conv1_w"], ((1, 1), (1, 1))),
             params["bn1_gamma"], params["bn1_beta"],
             params["bn1_mean"], params["bn1_var"])
    identity = bn(conv(x, params["conv2_w"], ((0, 0), (0, 0))),
                  params["bn2_gamma"], params["bn2_beta"],
                  params["bn2_mean"], params["bn2_var"])
    out = out + identity
    out = jnp.where(out >= 0, out, negative_slope * out)
    out = conv(out, params["conv3_w"], ((0, 0), (0, 0)))
    out = out + params["conv3_b"][None, :, None, None]
    return out


if __name__ == "__main__":
    # Small shapes consistent with the module: batch=2, inplanes=4, planes=8,
    # spatial 16x16.
    B, Cin, P, H, W = 2, 4, 8, 16, 16

    root = jax.random.PRNGKey(0)
    ks = jax.random.split(root, 13)
    params = {
        "conv1_w": 0.1 * jax.random.normal(ks[0], (P, Cin, 3, 3), jnp.float32),
        "conv2_w": 0.1 * jax.random.normal(ks[1], (P, Cin, 1, 1), jnp.float32),
        "conv3_w": 0.1 * jax.random.normal(ks[2], (Cin, P, 1, 1), jnp.float32),
        "conv3_b": 0.1 * jax.random.normal(ks[3], (Cin,), jnp.float32),
        "bn1_gamma": 1.0 + 0.1 * jax.random.normal(ks[4], (P,), jnp.float32),
        "bn1_beta": 0.1 * jax.random.normal(ks[5], (P,), jnp.float32),
        "bn1_mean": 0.1 * jax.random.normal(ks[6], (P,), jnp.float32),
        "bn1_var": 0.5 + jnp.abs(jax.random.normal(ks[7], (P,), jnp.float32)),
        "bn2_gamma": 1.0 + 0.1 * jax.random.normal(ks[8], (P,), jnp.float32),
        "bn2_beta": 0.1 * jax.random.normal(ks[9], (P,), jnp.float32),
        "bn2_mean": 0.1 * jax.random.normal(ks[10], (P,), jnp.float32),
        "bn2_var": 0.5 + jnp.abs(jax.random.normal(ks[11], (P,), jnp.float32)),
    }
    x = jax.random.normal(ks[12], (B, Cin, H, W), dtype=jnp.float32)

    out = domain_encoder(x, params)
    out = jax.block_until_ready(out)

    ref = _reference(x, params)
    assert out.shape == (B, Cin, H, W)
    assert jnp.allclose(out, ref, atol=1e-4, rtol=1e-4), "mismatch vs reference"

    print("KERNEL_OK")
</pallas_src>

<mosaic_0001>
module attributes {stable_mosaic.version = 11 : i64} {
  func.func @_domain_encoder_kernel(%arg0: i32, %arg1: memref<8x2048xf32, #tpu.memory_space<vmem>>, %arg2: memref<1x8x128xf32, #tpu.memory_space<vmem>>, %arg3: memref<1x8x128xf32, #tpu.memory_space<vmem>>, %arg4: memref<9x8x8xf32, #tpu.memory_space<vmem>>, %arg5: memref<8x1xf32, #tpu.memory_space<vmem>>, %arg6: memref<8x8xf32, #tpu.memory_space<vmem>>, %arg7: memref<8x1xf32, #tpu.memory_space<vmem>>, %arg8: memref<8x2048xf32, #tpu.memory_space<vmem>>) attributes {dimension_semantics = [#tpu.dimension_semantics<parallel>], iteration_bounds = array<i64: 2>, scalar_prefetch = 0 : i64, scratch_operands = 0 : i64, tpu.core_type = #tpu.core_type<tc>, window_params = [{transform_indices = @transform_0, window_bounds = array<i64: 8, 2048>}, {transform_indices = @transform_1, window_bounds = array<i64: 1, 8, 128>}, {transform_indices = @transform_2, window_bounds = array<i64: 1, 8, 128>}, {pipeline_mode = #tpu.pipeline_mode<synchronous>, transform_indices = @transform_3, window_bounds = array<i64: 9, 8, 8>}, {pipeline_mode = #tpu.pipeline_mode<synchronous>, transform_indices = @transform_4, window_bounds = array<i64: 8, 1>}, {pipeline_mode = #tpu.pipeline_mode<synchronous>, transform_indices = @transform_5, window_bounds = array<i64: 8, 8>}, {pipeline_mode = #tpu.pipeline_mode<synchronous>, transform_indices = @transform_6, window_bounds = array<i64: 8, 1>}, {transform_indices = @transform_7, window_bounds = array<i64: 8, 2048>}]} {
    %c0 = arith.constant 0 : index
    %c0_0 = arith.constant 0 : index
    %c0_1 = arith.constant 0 : index
    %0 = vector.load %arg2[%c0, %c0_0, %c0_1] : memref<1x8x128xf32, #tpu.memory_space<vmem>>, vector<1x8x128xf32>
    %1 = vector.shape_cast %0 : vector<1x8x128xf32> to vector<8x128xf32>
    %c0_2 = arith.constant 0 : index
    %c0_3 = arith.constant 0 : index
    %2 = vector.load %arg1[%c0_2, %c0_3] : memref<8x2048xf32, #tpu.memory_space<vmem>>, vector<8x2048xf32>
    %c0_4 = arith.constant 0 : index
    %c0_5 = arith.constant 0 : index
    %c0_6 = arith.constant 0 : index
    %3 = vector.load %arg3[%c0_4, %c0_5, %c0_6] : memref<1x8x128xf32, #tpu.memory_space<vmem>>, vector<1x8x128xf32>
    %4 = vector.shape_cast %3 : vector<1x8x128xf32> to vector<8x128xf32>
    %5 = tpu.concatenate %1, %2, %4 in 1 : vector<8x128xf32>, vector<8x2048xf32>, vector<8x128xf32> -> vector<8x2304xf32>
    %cst = arith.constant 0.000000e+00 : f32
    %6 = vector.broadcast %cst : f32 to vector<8x2048xf32>
    %c1_i32 = arith.constant 1 : i32
    %7 = tpu.dynamic_rotate %5 by %c1_i32 dim 1 : vector<8x2304xf32>, i32 -> vector<8x2304xf32>
    %8 = vector.extract_strided_slice %7 {offsets = [0, 0], sizes = [8, 2048], strides = [1, 1]} : vector<8x2304xf32> to vector<8x2048xf32>
    %c0_7 = arith.constant 0 : index
    %c0_8 = arith.constant 0 : index
    %c0_9 = arith.constant 0 : index
    %9 = vector.load %arg4[%c0_7, %c0_8, %c0_9] : memref<9x8x8xf32, #tpu.memory_space<vmem>>, vector<1x8x8xf32>
    %10 = vector.shape_cast %9 : vector<1x8x8xf32> to vector<8x8xf32>
    %cst_10 = arith.constant dense<0.000000e+00> : vector<8x2048xf32>
    %11 = tpu.matmul %10, %8, %cst_10 {dimension_numbers = #tpu.dot_dimension_numbers<[1], [0], [0], [1], [0, 0, 1, 1], [], []>} : vector<8x8xf32>, vector<8x2048xf32>, vector<8x2048xf32> -> vector<8x2048xf32>
    %12 = arith.addf %6, %11 : vector<8x2048xf32>
    %13 = vector.extract_strided_slice %7 {offsets = [0, 128], sizes = [8, 2048], strides = [1, 1]} : vector<8x2304xf32> to vector<8x2048xf32>
    %c3 = arith.constant 3 : index
    %c0_11 = arith.constant 0 : index
    %c0_12 = arith.constant 0 : index
    %14 = vector.load %arg4[%c3, %c0_11, %c0_12] : memref<9x8x8xf32, #tpu.memory_space<vmem>>, vector<1x8x8xf32>
    %15 = vector.shape_cast %14 : vector<1x8x8xf32> to vector<8x8xf32>
    %cst_13 = arith.constant dense<0.000000e+00> : vector<8x2048xf32>
    %16 = tpu.matmul %15, %13, %cst_13 {dimension_numbers = #tpu.dot_dimension_numbers<[1], [0], [0], [1], [0, 0, 1, 1], [], []>} : vector<8x8xf32>, vector<8x2048xf32>, vector<8x2048xf32> -> vector<8x2048xf32>
    %17 = arith.addf %12, %16 : vector<8x2048xf32>
    %18 = vector.extract_strided_slice %7 {offsets = [0, 256], sizes = [8, 2048], strides = [1, 1]} : vector<8x2304xf32> to vector<8x2048xf32>
    %c6 = arith.constant 6 : index
    %c0_14 = arith.constant 0 : index
    %c0_15 = arith.constant 0 : index
    %19 = vector.load %arg4[%c6, %c0_14, %c0_15] : memref<9x8x8xf32, #tpu.memory_space<vmem>>, vector<1x8x8xf32>
    %20 = vector.shape_cast %19 : vector<1x8x8xf32> to vector<8x8xf32>
    %cst_16 = arith.constant dense<0.000000e+00> : vector<8x2048xf32>
    %21 = tpu.matmul %20, %18, %cst_16 {dimension_numbers = #tpu.dot_dimension_numbers<[1], [0], [0], [1], [0, 0, 1, 1], [], []>} : vector<8x8xf32>, vector<8x2048xf32>, vector<8x2048xf32> -> vector<8x2048xf32>
    %22 = arith.addf %17, %21 : vector<8x2048xf32>
    %23 = vector.extract_strided_slice %5 {offsets = [0, 0], sizes = [8, 2048], strides = [1, 1]} : vector<8x2304xf32> to vector<8x2048xf32>
    %c1 = arith.constant 1 : index
    %c0_17 = arith.constant 0 : index
    %c0_18 = arith.constant 0 : index
    %24 = vector.load %arg4[%c1, %c0_17, %c0_18] : memref<9x8x8xf32, #tpu.memory_space<vmem>>, vector<1x8x8xf32>
    %25 = vector.shape_cast %24 : vector<1x8x8xf32> to vector<8x8xf32>
    %cst_19 = arith.constant dense<0.000000e+00> : vector<8x2048xf32>
    %26 = tpu.matmul %25, %23, %cst_19 {dimension_numbers = #tpu.dot_dimension_numbers<[1], [0], [0], [1], [0, 0, 1, 1], [], []>} : vector<8x8xf32>, vector<8x2048xf32>, vector<8x2048xf32> -> vector<8x2048xf32>
    %27 = arith.addf %22, %26 : vector<8x2048xf32>
    %28 = vector.extract_strided_slice %5 {offsets = [0, 128], sizes = [8, 2048], strides = [1, 1]} : vector<8x2304xf32> to vector<8x2048xf32>
    %c4 = arith.constant 4 : index
    %c0_20 = arith.constant 0 : index
    %c0_21 = arith.constant 0 : index
    %29 = vector.load %arg4[%c4, %c0_20, %c0_21] : memref<9x8x8xf32, #tpu.memory_space<vmem>>, vector<1x8x8xf32>
    %30 = vector.shape_cast %29 : vector<1x8x8xf32> to vector<8x8xf32>
    %cst_22 = arith.constant dense<0.000000e+00> : vector<8x2048xf32>
    %31 = tpu.matmul %30, %28, %cst_22 {dimension_numbers = #tpu.dot_dimension_numbers<[1], [0], [0], [1], [0, 0, 1, 1], [], []>} : vector<8x8xf32>, vector<8x2048xf32>, vector<8x2048xf32> -> vector<8x2048xf32>
    %32 = arith.addf %27, %31 : vector<8x2048xf32>
    %33 = vector.extract_strided_slice %5 {offsets = [0, 256], sizes = [8, 2048], strides = [1, 1]} : vector<8x2304xf32> to vector<8x2048xf32>
    %c7 = arith.constant 7 : index
    %c0_23 = arith.constant 0 : index
    %c0_24 = arith.constant 0 : index
    %34 = vector.load %arg4[%c7, %c0_23, %c0_24] : memref<9x8x8xf32, #tpu.memory_space<vmem>>, vector<1x8x8xf32>
    %35 = vector.shape_cast %34 : vector<1x8x8xf32> to vector<8x8xf32>
    %cst_25 = arith.constant dense<0.000000e+00> : vector<8x2048xf32>
    %36 = tpu.matmul %35, %33, %cst_25 {dimension_numbers = #tpu.dot_dimension_numbers<[1], [0], [0], [1], [0, 0, 1, 1], [], []>} : vector<8x8xf32>, vector<8x2048xf32>, vector<8x2048xf32> -> vector<8x2048xf32>
    %37 = arith.addf %32, %36 : vector<8x2048xf32>
    %c2303_i32 = arith.constant 2303 : i32
    %38 = tpu.dynamic_rotate %5 by %c2303_i32 dim 1 : vector<8x2304xf32>, i32 -> vector<8x2304xf32>
    %39 = vector.extract_strided_slice %38 {offsets = [0, 0], sizes = [8, 2048], strides = [1, 1]} : vector<8x2304xf32> to vector<8x2048xf32>
    %c2 = arith.constant 2 : index
    %c0_26 = arith.constant 0 : index
    %c0_27 = arith.constant 0 : index
    %40 = vector.load %arg4[%c2, %c0_26, %c0_27] : memref<9x8x8xf32, #tpu.memory_space<vmem>>, vector<1x8x8xf32>
    %41 = vector.shape_cast %40 : vector<1x8x8xf32> to vector<8x8xf32>
    %cst_28 = arith.constant dense<0.000000e+00> : vector<8x2048xf32>
    %42 = tpu.matmul %41, %39, %cst_28 {dimension_numbers = #tpu.dot_dimension_numbers<[1], [0], [0], [1], [0, 0, 1, 1], [], []>} : vector<8x8xf32>, vector<8x2048xf32>, vector<8x2048xf32> -> vector<8x2048xf32>
    %43 = arith.addf %37, %42 : vector<8x2048xf32>
    %44 = vector.extract_strided_slice %38 {offsets = [0, 128], sizes = [8, 2048], strides = [1, 1]} : vector<8x2304xf32> to vector<8x2048xf32>
    %c5 = arith.constant 5 : index
    %c0_29 = arith.constant 0 : index
    %c0_30 = arith.constant 0 : index
    %45 = vector.load %arg4[%c5, %c0_29, %c0_30] : memref<9x8x8xf32, #tpu.memory_space<vmem>>, vector<1x8x8xf32>
    %46 = vector.shape_cast %45 : vector<1x8x8xf32> to vector<8x8xf32>
    %cst_31 = arith.constant dense<0.000000e+00> : vector<8x2048xf32>
    %47 = tpu.matmul %46, %44, %cst_31 {dimension_numbers = #tpu.dot_dimension_numbers<[1], [0], [0], [1], [0, 0, 1, 1], [], []>} : vector<8x8xf32>, vector<8x2048xf32>, vector<8x2048xf32> -> vector<8x2048xf32>
    %48 = arith.addf %43, %47 : vector<8x2048xf32>
    %49 = vector.extract_strided_slice %38 {offsets = [0, 256], sizes = [8, 2048], strides = [1, 1]} : vector<8x2304xf32> to vector<8x2048xf32>
    %c8 = arith.constant 8 : index
    %c0_32 = arith.constant 0 : index
    %c0_33 = arith.constant 0 : index
    %50 = vector.load %arg4[%c8, %c0_32, %c0_33] : memref<9x8x8xf32, #tpu.memory_space<vmem>>, vector<1x8x8xf32>
    %51 = vector.shape_cast %50 : vector<1x8x8xf32> to vector<8x8xf32>
    %cst_34 = arith.constant dense<0.000000e+00> : vector<8x2048xf32>
    %52 = tpu.matmul %51, %49, %cst_34 {dimension_numbers = #tpu.dot_dimension_numbers<[1], [0], [0], [1], [0, 0, 1, 1], [], []>} : vector<8x8xf32>, vector<8x2048xf32>, vector<8x2048xf32> -> vector<8x2048xf32>
    %53 = arith.addf %48, %52 : vector<8x2048xf32>
    %c0_35 = arith.constant 0 : index
    %c0_36 = arith.constant 0 : index
    %54 = vector.load %arg5[%c0_35, %c0_36] : memref<8x1xf32, #tpu.memory_space<vmem>>, vector<8x1xf32>
    %55 = vector.broadcast %54 : vector<8x1xf32> to vector<8x2048xf32>
    %56 = arith.addf %53, %55 : vector<8x2048xf32>
    %cst_37 = arith.constant 0.000000e+00 : f32
    %57 = vector.broadcast %cst_37 : f32 to vector<8x2048xf32>
    %58 = arith.cmpf oge, %56, %57 : vector<8x2048xf32>
    %cst_38 = arith.constant 0.00999999977 : f32
    %59 = vector.broadcast %cst_38 : f32 to vector<8x2048xf32>
    %60 = arith.mulf %59, %56 : vector<8x2048xf32>
    %61 = arith.select %58, %56, %60 : vector<8x2048xi1>, vector<8x2048xf32>
    %c0_39 = arith.constant 0 : index
    %c0_40 = arith.constant 0 : index
    %62 = vector.load %arg6[%c0_39, %c0_40] : memref<8x8xf32, #tpu.memory_space<vmem>>, vector<8x8xf32>
    %cst_41 = arith.constant dense<0.000000e+00> : vector<8x2048xf32>
    %63 = tpu.matmul %62, %61, %cst_41 {dimension_numbers = #tpu.dot_dimension_numbers<[1], [0], [0], [1], [0, 0, 1, 1], [], []>} : vector<8x8xf32>, vector<8x2048xf32>, vector<8x2048xf32> -> vector<8x2048xf32>
    %c0_42 = arith.constant 0 : index
    %c0_43 = arith.constant 0 : index
    %64 = vector.load %arg7[%c0_42, %c0_43] : memref<8x1xf32, #tpu.memory_space<vmem>>, vector<8x1xf32>
    %65 = vector.broadcast %64 : vector<8x1xf32> to vector<8x2048xf32>
    %66 = arith.addf %63, %65 : vector<8x2048xf32>
    %c0_44 = arith.constant 0 : index
    %c0_45 = arith.constant 0 : index
    %67 = vector.load %arg8[%c0_44, %c0_45] : memref<8x2048xf32, #tpu.memory_space<vmem>>, vector<8x2048xf32>
    tpu.vector_store %arg8[%c0_44, %c0_45], %66 {strides = array<i32>} : memref<8x2048xf32, #tpu.memory_space<vmem>>, vector<8x2048xf32>,
    return
  }
  func.func @transform_0(%arg0: i32) -> (i32, i32) {
    %c0_i32 = arith.constant 0 : i32
    %c0_i32_0 = arith.constant 0 : i32
    return %c0_i32, %arg0 : i32, i32
  }
  func.func @transform_1(%arg0: i32) -> (i32, i32, i32) {
    %c0_i32 = arith.constant 0 : i32
    %c0_i32_0 = arith.constant 0 : i32
    %c0_i32_1 = arith.constant 0 : i32
    return %arg0, %c0_i32, %c0_i32_0 : i32, i32, i32
  }
  func.func @transform_2(%arg0: i32) -> (i32, i32, i32) {
    %c0_i32 = arith.constant 0 : i32
    %c0_i32_0 = arith.constant 0 : i32
    %c0_i32_1 = arith.constant 0 : i32
    return %arg0, %c0_i32, %c0_i32_0 : i32, i32, i32
  }
  func.func @transform_3(%arg0: i32) -> (i32, i32, i32) {
    %c0_i32 = arith.constant 0 : i32
    %c0_i32_0 = arith.constant 0 : i32
    %c0_i32_1 = arith.constant 0 : i32
    %c0_i32_2 = arith.constant 0 : i32
    return %c0_i32, %c0_i32_0, %c0_i32_1 : i32, i32, i32
  }
  func.func @transform_4(%arg0: i32) -> (i32, i32) {
    %c0_i32 = arith.constant 0 : i32
    %c0_i32_0 = arith.constant 0 : i32
    %c0_i32_1 = arith.constant 0 : i32
    return %c0_i32, %c0_i32_0 : i32, i32
  }
  func.func @transform_5(%arg0: i32) -> (i32, i32) {
    %c0_i32 = arith.constant 0 : i32
    %c0_i32_0 = arith.constant 0 : i32
    %c0_i32_1 = arith.constant 0 : i32
    return %c0_i32, %c0_i32_0 : i32, i32
  }
  func.func @transform_6(%arg0: i32) -> (i32, i32) {
    %c0_i32 = arith.constant 0 : i32
    %c0_i32_0 = arith.constant 0 : i32
    %c0_i32_1 = arith.constant 0 : i32
    return %c0_i32, %c0_i32_0 : i32, i32
  }
  func.func @transform_7(%arg0: i32) -> (i32, i32) {
    %c0_i32 = arith.constant 0 : i32
    %c0_i32_0 = arith.constant 0 : i32
    return %c0_i32, %arg0 : i32, i32
  }
}

</mosaic_0001>

<llo_original>
// kernel: tpu_custom_call.1
$region0: #{tpu_custom_call.1}
  #allocation0 [shape = 'u32[]', space=smem, size = 0x4, offset = 0x4, fixed_abs, tag = 'smem constant byte address 0x4 - core index']
  #allocation1 [shape = 'u32[144,128]{1,0:T(1,128)}', space=vmem, size = 0x12000, scoped, tag = 'internal scratch']
  %s0 = inlined_call_operand.hbm [shape: f32[8,4096], index: 0, kind: input, shape index: {}]
  %s1 = inlined_call_operand.vmem [shape: f32[2,8,128], index: 1, kind: input, shape index: {}]
  %s2 = inlined_call_operand.vmem [shape: f32[2,8,128], index: 2, kind: input, shape index: {}]
  %s3 = inlined_call_operand.vmem [shape: f32[9,8,8], index: 3, kind: input, shape index: {}]
  %s4 = inlined_call_operand.vmem [shape: f32[8,1], index: 4, kind: input, shape index: {}]
  %s5 = inlined_call_operand.vmem [shape: f32[8,8], index: 5, kind: input, shape index: {}]
  %s6 = inlined_call_operand.vmem [shape: f32[8,1], index: 6, kind: input, shape index: {}]
  %s7 = inlined_call_operand.hbm [shape: f32[8,4096], index: 7, kind: output, shape index: {}]
  %s8 = sld [smem:[#allocation0]]
  $region65: #{tpu_custom_call.1} parent=0
    _
  %s10 = ssub.s32 1, %s8
  %s11 = scalar_select 0, %s10, %s8
  $region1: #{tpu_custom_call.1} parent=0
    #allocation2 [shape = 'u8[131072]{0}', space=vmem, size = 0x20000, scoped, tag = 'input window, operand 0']
    #allocation3 [shape = 's32[2]{0}', space=sflag, size = 0x8, scoped, tag = 'scoped memory for tpu_custom_call.1']
    #allocation4 [shape = 's32[2]{0}', space=sflag, size = 0x8, scoped, tag = 'scoped memory for tpu_custom_call.1']
    #allocation5 [shape = 'u8[131072]{0}', space=vmem, size = 0x20000, scoped, tag = 'output window, operand 0']
    %12 = vsyncpa [#allocation3], 0
    %s13 = scalar_lea.sflag [#allocation3], 1
    %14 = vsyncpa %s13, 0
    %15 = vsyncpa [#allocation4], 0
    %s16 = scalar_lea.sflag [#allocation4], 1
    %17 = vsyncpa %s16, 0
    loop: start=0, step=1, limit=4
    $region2: #{tpu_custom_call.1} parent=1 // loop_pre_header
      _
    $region3: #{tpu_custom_call.1} parent=1 // loop_header
      %s19 = sphi 0, %s23
      %p20 = scmp.ge.s32.totalorder %s19, 4
      %s29 = sphi 0, %s31
      %s32 = sphi 0, %s29
      %s33 = sphi 0, %s32
      %s49 = sphi 0, %s33
      %s55 = sphi 0, %s57
      %s58 = sphi 0, %s55
      %s59 = sphi 0, %s58
      %s75 = sphi 0, %s59
      %s81 = sphi 0, %s83
      %s84 = sphi 0, %s81
      %s85 = sphi 0, %s84
      %s101 = sphi 0, %s85
      %s105 = sphi 0, %s105
      %s107 = sphi 0, %s105
      %s108 = sphi 0, %s107
      %s122 = sphi 0, %s108
      %s126 = sphi 0, %s126
      %s128 = sphi 0, %s126
      %s129 = sphi 0, %s128
      %s143 = sphi 0, %s129
      %s147 = sphi 0, %s147
      %s149 = sphi 0, %s147
      %s150 = sphi 0, %s149
      %s164 = sphi 0, %s150
      %s168 = sphi 0, %s168
      %s170 = sphi 0, %s168
      %s171 = sphi 0, %s170
      %s185 = sphi 0, %s171
      %s191 = sphi 0, %s193
      %s194 = sphi 0, %s191
      %s195 = sphi 0, %s194
      %s211 = sphi 0, %s195
    $region4: #{tpu_custom_call.1} parent=1 // loop_header_branch
      %22 = sbr.rel (%p20) target = $region8
    $region5: #{tpu_custom_call.1} parent=1 // loop_body
      %s24 = ssub.s32 %s19, 1
      %s25 = ssub.s32 %s19, 2
      %s26 = sadd.s32 %s19, 1
      %s27 = ssub.s32 %s19, %s26
      %p28 = scmp.eq.s32.totalorder %s27, 0
      %s30 = sadd.s32 %s29, 1
      %s31 = scalar_select %p28, %s29, %s30
      %p34 = pneg %p28
      %p35 = scmp.eq.s32.totalorder %s19, 1
      %p36 = por %p34, %p35
      %p37 = scmp.ne.s32.totalorder %s29, %s32
      %p38 = scmp.eq.s32.totalorder %s19, 0
      %p39 = por %p37, %p38
      %p40 = scmp.ne.s32.totalorder %s29, %s32
      %p41 = scmp.eq.s32.totalorder %s24, 1
      %p42 = por %p40, %p41
      %p43 = scmp.ne.s32.totalorder %s32, %s33
      %p44 = scmp.eq.s32.totalorder %s24, 0
      %p45 = por %p43, %p44
      %p46 = scmp.ne.s32.totalorder %s32, %s33
      %p47 = scmp.eq.s32.totalorder %s25, 1
      %p48 = por %p46, %p47
      %p50 = scmp.ne.s32.totalorder %s33, %s49
      %p51 = scmp.eq.s32.totalorder %s25, 0
      %p52 = por %p50, %p51
      %s53 = ssub.s32 %s19, %s26
      %p54 = scmp.eq.s32.totalorder %s53, 0
      %s56 = sadd.s32 %s55, 1
      %s57 = scalar_select %p54, %s55, %s56
      %p60 = pneg %p54
      %p61 = scmp.eq.s32.totalorder %s19, 1
      %p62 = por %p60, %p61
      %p63 = scmp.ne.s32.totalorder %s55, %s58
      %p64 = scmp.eq.s32.totalorder %s19, 0
      %p65 = por %p63, %p64
      %p66 = scmp.ne.s32.totalorder %s55, %s58
      %p67 = scmp.eq.s32.totalorder %s24, 1
      %p68 = por %p66, %p67
      %p69 = scmp.ne.s32.totalorder %s58, %s59
      %p70 = scmp.eq.s32.totalorder %s24, 0
      %p71 = por %p69, %p70
      %p72 = scmp.ne.s32.totalorder %s58, %s59
      %p73 = scmp.eq.s32.totalorder %s25, 1
      %p74 = por %p72, %p73
      %p76 = scmp.ne.s32.totalorder %s59, %s75
      %p77 = scmp.eq.s32.totalorder %s25, 0
      %p78 = por %p76, %p77
      %s79 = ssub.s32 %s19, %s26
      %p80 = scmp.eq.s32.totalorder %s79, 0
      %s82 = sadd.s32 %s81, 1
      %s83 = scalar_select %p80, %s81, %s82
      %p86 = pneg %p80
      %p87 = scmp.eq.s32.totalorder %s19, 1
      %p88 = por %p86, %p87
      %p89 = scmp.ne.s32.totalorder %s81, %s84
      %p90 = scmp.eq.s32.totalorder %s19, 0
      %p91 = por %p89, %p90
      %p92 = scmp.ne.s32.totalorder %s81, %s84
      %p93 = scmp.eq.s32.totalorder %s24, 1
      %p94 = por %p92, %p93
      %p95 = scmp.ne.s32.totalorder %s84, %s85
      %p96 = scmp.eq.s32.totalorder %s24, 0
      %p97 = por %p95, %p96
      %p98 = scmp.ne.s32.totalorder %s84, %s85
      %p99 = scmp.eq.s32.totalorder %s25, 1
      %p100 = por %p98, %p99
      %p102 = scmp.ne.s32.totalorder %s85, %s101
      %p103 = scmp.eq.s32.totalorder %s25, 0
      %p104 = por %p102, %p103
      %s106 = sadd.s32 %s105, 1
      %p109 = scmp.eq.s32.totalorder %s19, 1
      %p110 = scmp.ne.s32.totalorder %s105, %s107
      %p111 = scmp.eq.s32.totalorder %s19, 0
      %p112 = por %p110, %p111
      %p113 = scmp.ne.s32.totalorder %s105, %s107
      %p114 = scmp.eq.s32.totalorder %s24, 1
      %p115 = por %p113, %p114
      %p116 = scmp.ne.s32.totalorder %s107, %s108
      %p117 = scmp.eq.s32.totalorder %s24, 0
      %p118 = por %p116, %p117
      %p119 = scmp.ne.s32.totalorder %s107, %s108
      %p120 = scmp.eq.s32.totalorder %s25, 1
      %p121 = por %p119, %p120
      %p123 = scmp.ne.s32.totalorder %s108, %s122
      %p124 = scmp.eq.s32.totalorder %s25, 0
      %p125 = por %p123, %p124
      %s127 = sadd.s32 %s126, 1
      %p130 = scmp.eq.s32.totalorder %s19, 1
      %p131 = scmp.ne.s32.totalorder %s126, %s128
      %p132 = scmp.eq.s32.totalorder %s19, 0
      %p133 = por %p131, %p132
      %p134 = scmp.ne.s32.totalorder %s126, %s128
      %p135 = scmp.eq.s32.totalorder %s24, 1
      %p136 = por %p134, %p135
      %p137 = scmp.ne.s32.totalorder %s128, %s129
      %p138 = scmp.eq.s32.totalorder %s24, 0
      %p139 = por %p137, %p138
      %p140 = scmp.ne.s32.totalorder %s128, %s129
      %p141 = scmp.eq.s32.totalorder %s25, 1
      %p142 = por %p140, %p141
      %p144 = scmp.ne.s32.totalorder %s129, %s143
      %p145 = scmp.eq.s32.totalorder %s25, 0
      %p146 = por %p144, %p145
      %s148 = sadd.s32 %s147, 1
      %p151 = scmp.eq.s32.totalorder %s19, 1
      %p152 = scmp.ne.s32.totalorder %s147, %s149
      %p153 = scmp.eq.s32.totalorder %s19, 0
      %p154 = por %p152, %p153
      %p155 = scmp.ne.s32.totalorder %s147, %s149
      %p156 = scmp.eq.s32.totalorder %s24, 1
      %p157 = por %p155, %p156
      %p158 = scmp.ne.s32.totalorder %s149, %s150
      %p159 = scmp.eq.s32.totalorder %s24, 0
      %p160 = por %p158, %p159
      %p161 = scmp.ne.s32.totalorder %s149, %s150
      %p162 = scmp.eq.s32.totalorder %s25, 1
      %p163 = por %p161, %p162
      %p165 = scmp.ne.s32.totalorder %s150, %s164
      %p166 = scmp.eq.s32.totalorder %s25, 0
      %p167 = por %p165, %p166
      %s169 = sadd.s32 %s168, 1
      %p172 = scmp.eq.s32.totalorder %s19, 1
      %p173 = scmp.ne.s32.totalorder %s168, %s170
      %p174 = scmp.eq.s32.totalorder %s19, 0
      %p175 = por %p173, %p174
      %p176 = scmp.ne.s32.totalorder %s168, %s170
      %p177 = scmp.eq.s32.totalorder %s24, 1
      %p178 = por %p176, %p177
      %p179 = scmp.ne.s32.totalorder %s170, %s171
      %p180 = scmp.eq.s32.totalorder %s24, 0
      %p181 = por %p179, %p180
      %p182 = scmp.ne.s32.totalorder %s170, %s171
      %p183 = scmp.eq.s32.totalorder %s25, 1
      %p184 = por %p182, %p183
      %p186 = scmp.ne.s32.totalorder %s171, %s185
      %p187 = scmp.eq.s32.totalorder %s25, 0
      %p188 = por %p186, %p187
      %s189 = ssub.s32 %s19, %s26
      %p190 = scmp.eq.s32.totalorder %s189, 0
      %s192 = sadd.s32 %s191, 1
      %s193 = scalar_select %p190, %s191, %s192
      %p196 = pneg %p190
      %p197 = scmp.eq.s32.totalorder %s19, 1
      %p198 = por %p196, %p197
      %p199 = scmp.ne.s32.totalorder %s191, %s194
      %p200 = scmp.eq.s32.totalorder %s19, 0
      %p201 = por %p199, %p200
      %p202 = scmp.ne.s32.totalorder %s191, %s194
      %p203 = scmp.eq.s32.totalorder %s24, 1
      %p204 = por %p202, %p203
      %p205 = scmp.ne.s32.totalorder %s194, %s195
      %p206 = scmp.eq.s32.totalorder %s24, 0
      %p207 = por %p205, %p206
      %p208 = scmp.ne.s32.totalorder %s194, %s195
      %p209 = scmp.eq.s32.totalorder %s25, 1
      %p210 = por %p208, %p209
      %p212 = scmp.ne.s32.totalorder %s195, %s211
      %p213 = scmp.eq.s32.totalorder %s25, 0
      %p214 = por %p212, %p213
      %p215 = scmp.le.s32.totalorder 1, %s19
      %p216 = scmp.lt.s32.totalorder %s19, 3
      %p217 = pnand %p215, %p216
      %p218 = pneg %p217
      // Predicated region
      $region9: #{tpu_custom_call.1} parent=5 // pred_check
        _
      $region10: #{tpu_custom_call.1} parent=5 // pred_check_branch
        %220 = sbr.rel (%p217) target = $region12
      $region11: #{tpu_custom_call.1} parent=5 // pred_region
        %s221 = ssub.s32 %s19, 1
        // Predicated region
        $region13: #{tpu_custom_call.1} parent=11 // pred_check
          %p222 = pneg %p118
        $region14: #{tpu_custom_call.1} parent=11 // pred_check_branch
          %224 = sbr.rel (%p222) target = $region16
        $region15: #{tpu_custom_call.1} parent=11 // pred_region
          _
        $region16: #{tpu_custom_call.1} parent=11 // pred_fallthru
          _
        // Predicated region
        $region17: #{tpu_custom_call.1} parent=11 // pred_check
          %p225 = pneg %p139
        $region18: #{tpu_custom_call.1} parent=11 // pred_check_branch
          %227 = sbr.rel (%p225) target = $region20
        $region19: #{tpu_custom_call.1} parent=11 // pred_region
          _
        $region20: #{tpu_custom_call.1} parent=11 // pred_fallthru
          _
        // Predicated region
        $region21: #{tpu_custom_call.1} parent=11 // pred_check
          %p228 = pneg %p160
        $region22: #{tpu_custom_call.1} parent=11 // pred_check_branch
          %230 = sbr.rel (%p228) target = $region24
        $region23: #{tpu_custom_call.1} parent=11 // pred_region
          _
        $region24: #{tpu_custom_call.1} parent=11 // pred_fallthru
          _
        // Predicated region
        $region25: #{tpu_custom_call.1} parent=11 // pred_check
          %p231 = pneg %p181
        $region26: #{tpu_custom_call.1} parent=11 // pred_check_branch
          %233 = sbr.rel (%p231) target = $region28
        $region27: #{tpu_custom_call.1} parent=11 // pred_region
          _
        $region28: #{tpu_custom_call.1} parent=11 // pred_fallthru
          _
      $region12: #{tpu_custom_call.1} parent=5 // pred_fallthru
        _
      %p234 = scmp.lt.s32.totalorder %s19, 2
      // Predicated region
      $region29: #{tpu_custom_call.1} parent=5 // pred_check
        %p235 = pneg %p234
      $region30: #{tpu_custom_call.1} parent=5 // pred_check_branch
        %237 = sbr.rel (%p235) target = $region32
      $region31: #{tpu_custom_call.1} parent=5 // pred_region
        // Predicated region
        $region33: #{tpu_custom_call.1} parent=31 // pred_check
          %p238 = pneg %p39
        $region34: #{tpu_custom_call.1} parent=31 // pred_check_branch
          %240 = sbr.rel (%p238) target = $region36
        $region35: #{tpu_custom_call.1} parent=31 // pred_region
          %s241 = sand.u32 %s29, 1
          %s242 = scalar_lea.sflag [#allocation3], %s241
          %s243 = sand.u32 %s29, 1
          %s244 = smul.addr %s243, 128
          %s245 = scalar_lea.vmem [#allocation2], %s244
          %s246 = smul.u32 16, %s19
          %s248 = ssub.s32 2048, 2048
          %249 = vsyncadd %s242, %s248
          %s250 = smul.addr %s246, 128
          %s251 = scalar_lea.hbm %s0, %s250
          %s253 = sshll.u32 %s245, 4
          %s254 = int_to_ptr.vmem [resolvable:$true] %s253
          %256 = dma.hbm_to_vmem [thread:$0]  %s251, 2048, %s254, %s242
        $region36: #{tpu_custom_call.1} parent=31 // pred_fallthru
          _
        // Predicated region
        $region37: #{tpu_custom_call.1} parent=31 // pred_check
          %p257 = pneg %p65
        $region38: #{tpu_custom_call.1} parent=31 // pred_check_branch
          %259 = sbr.rel (%p257) target = $region40
        $region39: #{tpu_custom_call.1} parent=31 // pred_region
          %p260 = scmp.lt.s32.totalorder %s19, 1
          %s261 = scalar_select %p260, %s19, 1
          %s262 = smul.addr %s261, 8
          %s263 = scalar_lea.vmem %s1, %s262
        $region40: #{tpu_custom_call.1} parent=31 // pred_fallthru
          _
        // Predicated region
        $region41: #{tpu_custom_call.1} parent=31 // pred_check
          %p264 = pneg %p91
        $region42: #{tpu_custom_call.1} parent=31 // pred_check_branch
          %266 = sbr.rel (%p264) target = $region44
        $region43: #{tpu_custom_call.1} parent=31 // pred_region
          %p267 = scmp.lt.s32.totalorder %s19, 1
          %s268 = scalar_select %p267, %s19, 1
          %s269 = smul.addr %s268, 8
          %s270 = scalar_lea.vmem %s2, %s269
        $region44: #{tpu_custom_call.1} parent=31 // pred_fallthru
          _
      $region32: #{tpu_custom_call.1} parent=5 // pred_fallthru
        _
      %p271 = scmp.le.s32.totalorder 1, %s19
      %p272 = scmp.lt.s32.totalorder %s19, 3
      %p273 = pnand %p271, %p272
      %p274 = pneg %p273
      // Predicated region
      $region45: #{tpu_custom_call.1} parent=5 // pred_check
        _
      $region46: #{tpu_custom_call.1} parent=5 // pred_check_branch
        %276 = sbr.rel (%p273) target = $region48
      $region47: #{tpu_custom_call.1} parent=5 // pred_region
        %s277 = ssub.s32 %s19, 1
        %s278 = sand.u32 %s32, 1
        %s279 = scalar_lea.sflag [#allocation3], %s278
        %s280 = sand.u32 %s32, 1
        %s281 = smul.addr %s280, 128
        %s282 = scalar_lea.vmem [#allocation2], %s281
        // Predicated region
        $region49: #{tpu_custom_call.1} parent=47 // pred_check
          %p283 = pneg %p45
        $region50: #{tpu_custom_call.1} parent=47 // pred_check_branch
          %285 = sbr.rel (%p283) target = $region52
        $region51: #{tpu_custom_call.1} parent=47 // pred_region
          %286 = dma.done %s279, 2048
        $region52: #{tpu_custom_call.1} parent=47 // pred_fallthru
          _
        %s287 = sand.u32 %s32, 1
        %s288 = scalar_lea.sflag [#allocation3], %s287
        %s289 = sand.u32 %s32, 1
        %s290 = smul.addr %s289, 128
        %s291 = scalar_lea.vmem [#allocation2], %s290
        %p292 = pneg %p45
        %p293 = pneg %p42
        %p294 = scmp.lt.s32.totalorder %s24, 1
        %s295 = scalar_select %p294, %s24, 1
        %s296 = smul.addr %s295, 8
        %s297 = scalar_lea.vmem %s1, %s296
        %p298 = pneg %p71
        %p299 = pneg %p68
        %p300 = scmp.lt.s32.totalorder %s24, 1
        %s301 = scalar_select %p300, %s24, 1
        %s302 = smul.addr %s301, 8
        %s303 = scalar_lea.vmem %s2, %s302
        %p304 = pneg %p97
        %p305 = pneg %p94
        %p306 = pneg %p118
        %p307 = pneg %p115
        %p308 = pneg %p139
        %p309 = pneg %p136
        %p310 = pneg %p160
        %p311 = pneg %p157
        %p312 = pneg %p181
        %p313 = pneg %p178
        %p314 = pneg %p207
        %p315 = pneg %p204
        %s316 = sand.u32 %s194, 1
        %s317 = scalar_lea.sflag [#allocation4], %s316
        %s318 = sand.u32 %s194, 1
        %s319 = smul.addr %s318, 128
        %s320 = scalar_lea.vmem [#allocation5], %s319
        %s321 = smul.u32 16, %s24
        %p322 = scmp.lt.s32.totalorder %s24, 1
        %s323 = scalar_select %p322, %s24, 1
        %s324 = smul.addr %s323, 8
        %s325 = scalar_lea.vmem %s1, %s324
        %p326 = scmp.lt.s32.totalorder %s24, 1
        %s327 = scalar_select %p326, %s24, 1
        %s328 = smul.addr %s327, 8
        %s329 = scalar_lea.vmem %s2, %s328
        %s330 = smul.u32 16, %s24
        %v331 = vld [vmem:[%s325] sm:$0xff]
        %v332 = vld [vmem:[%s282] sm:$0xff]
        %v333 = vld [vmem:[%s282 + $0x8] sm:$0xff]
        %v334 = vld [vmem:[%s282 + $0x10] sm:$0xff]
        %v335 = vld [vmem:[%s282 + $0x18] sm:$0xff]
        %v336 = vld [vmem:[%s282 + $0x20] sm:$0xff]
        %v337 = vld [vmem:[%s282 + $0x28] sm:$0xff]
        %v338 = vld [vmem:[%s282 + $0x30] sm:$0xff]
        %v339 = vld [vmem:[%s282 + $0x38] sm:$0xff]
        %v340 = vld [vmem:[%s282 + $0x40] sm:$0xff]
        %v341 = vld [vmem:[%s282 + $0x48] sm:$0xff]
        %v342 = vld [vmem:[%s282 + $0x50] sm:$0xff]
        %v343 = vld [vmem:[%s282 + $0x58] sm:$0xff]
        %v344 = vld [vmem:[%s282 + $0x60] sm:$0xff]
        %v345 = vld [vmem:[%s282 + $0x68] sm:$0xff]
        %v346 = vld [vmem:[%s282 + $0x70] sm:$0xff]
        %v347 = vld [vmem:[%s282 + $0x78] sm:$0xff]
        %v348 = vld [vmem:[%s329] sm:$0xff]
        %349 = vrot.lane.b32.xlu0 %v331, 1
        %v350 = vpop.permute.xlu0 %349
        %351 = vrot.lane.b32.xlu0 %v332, 1
        %v352 = vpop.permute.xlu0 %351
        %353 = vrot.lane.b32.xlu0 %v333, 1
        %v354 = vpop.permute.xlu0 %353
        %355 = vrot.lane.b32.xlu0 %v334, 1
        %v356 = vpop.permute.xlu0 %355
        %357 = vrot.lane.b32.xlu0 %v335, 1
        %v358 = vpop.permute.xlu0 %357
        %359 = vrot.lane.b32.xlu0 %v336, 1
        %v360 = vpop.permute.xlu0 %359
        %361 = vrot.lane.b32.xlu0 %v337, 1
        %v362 = vpop.permute.xlu0 %361
        %363 = vrot.lane.b32.xlu0 %v338, 1
        %v364 = vpop.permute.xlu0 %363
        %365 = vrot.lane.b32.xlu0 %v339, 1
        %v366 = vpop.permute.xlu0 %365
        %367 = vrot.lane.b32.xlu0 %v340, 1
        %v368 = vpop.permute.xlu0 %367
        %369 = vrot.lane.b32.xlu0 %v341, 1
        %v370 = vpop.permute.xlu0 %369
        %371 = vrot.lane.b32.xlu0 %v342, 1
        %v372 = vpop.permute.xlu0 %371
        %373 = vrot.lane.b32.xlu0 %v343, 1
        %v374 = vpop.permute.xlu0 %373
        %375 = vrot.lane.b32.xlu0 %v344, 1
        %v376 = vpop.permute.xlu0 %375
        %377 = vrot.lane.b32.xlu0 %v345, 1
        %v378 = vpop.permute.xlu0 %377
        %379 = vrot.lane.b32.xlu0 %v346, 1
        %v380 = vpop.permute.xlu0 %379
        %381 = vrot.lane.b32.xlu0 %v347, 1
        %v382 = vpop.permute.xlu0 %381
        %383 = vrot.lane.b32.xlu0 %v348, 1
        %v384 = vpop.permute.xlu0 %383
        %v385 = vlaneseq
        %v386 = vand.u32 %v385, 127
        %vm387 = vcmp.lt.s32.totalorder %v386, 1
        %v388 = vsel %vm387, %v382, %v384
        %v389 = vsel %vm387, %v380, %v382
        %v390 = vsel %vm387, %v378, %v380
        %v391 = vsel %vm387, %v376, %v378
        %v392 = vsel %vm387, %v374, %v376
        %v393 = vsel %vm387, %v372, %v374
        %v394 = vsel %vm387, %v370, %v372
        %v395 = vsel %vm387, %v368, %v370
        %v396 = vsel %vm387, %v366, %v368
        %v397 = vsel %vm387, %v364, %v366
        %v398 = vsel %vm387, %v362, %v364
        %v399 = vsel %vm387, %v360, %v362
        %v400 = vsel %vm387, %v358, %v360
        %v401 = vsel %vm387, %v356, %v358
        %v402 = vsel %vm387, %v354, %v356
        %v403 = vsel %vm387, %v352, %v354
        %v404 = vsel %vm387, %v350, %v352
        %v405 = vsel %vm387, %v384, %v350
        %v406 = vld [vmem:[%s3] sm:$0xff]
        %s407 = scalar_lea.vmem %s3, 24
        %v408 = vld [vmem:[%s407] sm:$0xff]
        %vm409 = vcmask 64512
        %v411 = vsel %vm409, %v408, 0
        %413 = vmatprep.subr.mxu0 %v403
        %414 = vmatpush1.msra.mxu0 %v404
        %415 = vmatprep.subr.mxu0 0.0
        %416 = vmatpush1.msra.mxu0 0.0
        %417 = vmatprep.subr.mxu0 0.0
        %418 = vmatpush1.msra.mxu0 0.0
        %419 = vmatprep.subr.mxu0 0.0
        %420 = vmatpush1.msra.mxu0 0.0
        %421 = vmatprep.subr.mxu0 0.0
        %422 = vmatpush1.msra.mxu0 0.0
        %423 = vmatprep.subr.mxu0 0.0
        %424 = vmatpush1.msra.mxu0 0.0
        %425 = vmatprep.subr.mxu0 0.0
        %426 = vmatpush1.msra.mxu0 0.0
        %427 = vmatprep.subr.mxu0 0.0
        %428 = vmatpush1.msra.mxu0 0.0
        %429 = vmatprep.subr.mxu0 0.0
        %430 = vmatpush1.msra.mxu0 0.0
        %431 = vmatprep.subr.mxu0 0.0
        %432 = vmatpush1.msra.mxu0 0.0
        %433 = vmatprep.subr.mxu0 0.0
        %434 = vmatpush1.msra.mxu0 0.0
        %435 = vmatprep.subr.mxu0 0.0
        %436 = vmatpush1.msra.mxu0 0.0
        %437 = vmatprep.subr.mxu0 0.0
        %438 = vmatpush1.msra.mxu0 0.0
        %439 = vmatprep.subr.mxu0 0.0
        %440 = vmatpush1.msra.mxu0 0.0
        %441 = vmatprep.subr.mxu0 0.0
        %442 = vmatpush1.msra.mxu0 0.0
        %443 = vmatprep.subr.mxu0 0.0
        %444 = vmatpush1.msra.mxu0 0.0
        %445 = vmatprep.subr.mxu0 0.0
        %446 = vmatpush1.msra.mxu0 0.0
        %447 = vmatprep.subr.mxu0 0.0
        %448 = vmatpush1.msra.mxu0 0.0
        %449 = vmatprep.subr.mxu0 0.0
        %450 = vmatpush1.msra.mxu0 0.0
        %451 = vmatprep.subr.mxu0 0.0
        %452 = vmatpush1.msra.mxu0 0.0
        %453 = vmatprep.subr.mxu0 0.0
        %454 = vmatpush1.msra.mxu0 0.0
        %455 = vmatprep.subr.mxu0 0.0
        %456 = vmatpush1.msra.mxu0 0.0
        %457 = vmatprep.subr.mxu0 0.0
        %458 = vmatpush1.msra.mxu0 0.0
        %459 = vmatprep.subr.mxu0 0.0
        %460 = vmatpush1.msra.mxu0 0.0
        %461 = vmatprep.subr.mxu0 0.0
        %462 = vmatpush1.msra.mxu0 0.0
        %463 = vmatprep.subr.mxu0 0.0
        %464 = vmatpush1.msra.mxu0 0.0
        %465 = vmatprep.subr.mxu0 0.0
        %466 = vmatpush1.msra.mxu0 0.0
        %467 = vmatprep.subr.mxu0 0.0
        %468 = vmatpush1.msra.mxu0 0.0
        %469 = vmatprep.subr.mxu0 0.0
        %470 = vmatpush1.msra.mxu0 0.0
        %471 = vmatprep.subr.mxu0 0.0
        %472 = vmatpush1.msra.mxu0 0.0
        %473 = vmatprep.subr.mxu0 0.0
        %474 = vmatpush1.msra.mxu0 0.0
        %475 = vmatprep.subr.mxu0 0.0
        %476 = vmatpush1.msra.mxu0 0.0
        %477 = vmatprep.mubr.f32.mxu0 0.0
        %478 = vmatmul.mubr.f32.gmra.mrb[0].mxu0 %v411
        %v479 = vpop.f32.mrb[0].mxu0
        %v480 = vadd.f32 0.0, %v479
        %v481 = vpop.f32.mrb[0].mxu0
        %v482 = vadd.f32 0.0, %v481
        %483 = vdwg.mxu0
        %484 = vmatprep.subr.mxu0 %v401
        %485 = vmatpush1.msra.mxu0 %v402
        %486 = vmatprep.subr.mxu0 0.0
        %487 = vmatpush1.msra.mxu0 0.0
        %488 = vmatprep.subr.mxu0 0.0
        %489 = vmatpush1.msra.mxu0 0.0
        %490 = vmatprep.subr.mxu0 0.0
        %491 = vmatpush1.msra.mxu0 0.0
        %492 = vmatprep.subr.mxu0 0.0
        %493 = vmatpush1.msra.mxu0 0.0
        %494 = vmatprep.subr.mxu0 0.0
        %495 = vmatpush1.msra.mxu0 0.0
        %496 = vmatprep.subr.mxu0 0.0
        %497 = vmatpush1.msra.mxu0 0.0
        %498 = vmatprep.subr.mxu0 0.0
        %499 = vmatpush1.msra.mxu0 0.0
        %500 = vmatprep.subr.mxu0 0.0
        %501 = vmatpush1.msra.mxu0 0.0
        %502 = vmatprep.subr.mxu0 0.0
        %503 = vmatpush1.msra.mxu0 0.0
        %504 = vmatprep.subr.mxu0 0.0
        %505 = vmatpush1.msra.mxu0 0.0
        %506 = vmatprep.subr.mxu0 0.0
        %507 = vmatpush1.msra.mxu0 0.0
        %508 = vmatprep.subr.mxu0 0.0
        %509 = vmatpush1.msra.mxu0 0.0
        %510 = vmatprep.subr.mxu0 0.0
        %511 = vmatpush1.msra.mxu0 0.0
        %512 = vmatprep.subr.mxu0 0.0
        %513 = vmatpush1.msra.mxu0 0.0
        %514 = vmatprep.subr.mxu0 0.0
        %515 = vmatpush1.msra.mxu0 0.0
        %516 = vmatprep.subr.mxu0 0.0
        %517 = vmatpush1.msra.mxu0 0.0
        %518 = vmatprep.subr.mxu0 0.0
        %519 = vmatpush1.msra.mxu0 0.0
        %520 = vmatprep.subr.mxu0 0.0
        %521 = vmatpush1.msra.mxu0 0.0
        %522 = vmatprep.subr.mxu0 0.0
        %523 = vmatpush1.msra.mxu0 0.0
        %524 = vmatprep.subr.mxu0 0.0
        %525 = vmatpush1.msra.mxu0 0.0
        %526 = vmatprep.subr.mxu0 0.0
        %527 = vmatpush1.msra.mxu0 0.0
        %528 = vmatprep.subr.mxu0 0.0
        %529 = vmatpush1.msra.mxu0 0.0
        %530 = vmatprep.subr.mxu0 0.0
        %531 = vmatpush1.msra.mxu0 0.0
        %532 = vmatprep.subr.mxu0 0.0
        %533 = vmatpush1.msra.mxu0 0.0
        %534 = vmatprep.subr.mxu0 0.0
        %535 = vmatpush1.msra.mxu0 0.0
        %536 = vmatprep.subr.mxu0 0.0
        %537 = vmatpush1.msra.mxu0 0.0
        %538 = vmatprep.subr.mxu0 0.0
        %539 = vmatpush1.msra.mxu0 0.0
        %540 = vmatprep.subr.mxu0 0.0
        %541 = vmatpush1.msra.mxu0 0.0
        %542 = vmatprep.subr.mxu0 0.0
        %543 = vmatpush1.msra.mxu0 0.0
        %544 = vmatprep.subr.mxu0 0.0
        %545 = vmatpush1.msra.mxu0 0.0
        %546 = vmatprep.subr.mxu0 0.0
        %547 = vmatpush1.msra.mxu0 0.0
        %548 = vmatprep.mubr.f32.mxu0 0.0
        %549 = vmatmul.mubr.f32.gmra.mrb[0].mxu0 %v411
        %v550 = vpop.f32.mrb[0].mxu0
        %v551 = vadd.f32 0.0, %v550
        %v552 = vpop.f32.mrb[0].mxu0
        %v553 = vadd.f32 0.0, %v552
        %554 = vdwg.mxu0
        %555 = vmatprep.subr.mxu0 %v399
        %556 = vmatpush1.msra.mxu0 %v400
        %557 = vmatprep.subr.mxu0 0.0
        %558 = vmatpush1.msra.mxu0 0.0
        %559 = vmatprep.subr.mxu0 0.0
        %560 = vmatpush1.msra.mxu0 0.0
        %561 = vmatprep.subr.mxu0 0.0
        %562 = vmatpush1.msra.mxu0 0.0
        %563 = vmatprep.subr.mxu0 0.0
        %564 = vmatpush1.msra.mxu0 0.0
        %565 = vmatprep.subr.mxu0 0.0
        %566 = vmatpush1.msra.mxu0 0.0
        %567 = vmatprep.subr.mxu0 0.0
        %568 = vmatpush1.msra.mxu0 0.0
        %569 = vmatprep.subr.mxu0 0.0
        %570 = vmatpush1.msra.mxu0 0.0
        %571 = vmatprep.subr.mxu0 0.0
        %572 = vmatpush1.msra.mxu0 0.0
        %573 = vmatprep.subr.mxu0 0.0
        %574 = vmatpush1.msra.mxu0 0.0
        %575 = vmatprep.subr.mxu0 0.0
        %576 = vmatpush1.msra.mxu0 0.0
        %577 = vmatprep.subr.mxu0 0.0
        %578 = vmatpush1.msra.mxu0 0.0
        %579 = vmatprep.subr.mxu0 0.0
        %580 = vmatpush1.msra.mxu0 0.0
        %581 = vmatprep.subr.mxu0 0.0
        %582 = vmatpush1.msra.mxu0 0.0
        %583 = vmatprep.subr.mxu0 0.0
        %584 = vmatpush1.msra.mxu0 0.0
        %585 = vmatprep.subr.mxu0 0.0
        %586 = vmatpush1.msra.mxu0 0.0
        %587 = vmatprep.subr.mxu0 0.0
        %588 = vmatpush1.msra.mxu0 0.0
        %589 = vmatprep.subr.mxu0 0.0
        %590 = vmatpush1.msra.mxu0 0.0
        %591 = vmatprep.subr.mxu0 0.0
        %592 = vmatpush1.msra.mxu0 0.0
        %593 = vmatprep.subr.mxu0 0.0
        %594 = vmatpush1.msra.mxu0 0.0
        %595 = vmatprep.subr.mxu0 0.0
        %596 = vmatpush1.msra.mxu0 0.0
        %597 = vmatprep.subr.mxu0 0.0
        %598 = vmatpush1.msra.mxu0 0.0
        %599 = vmatprep.subr.mxu0 0.0
        %600 = vmatpush1.msra.mxu0 0.0
        %601 = vmatprep.subr.mxu0 0.0
        %602 = vmatpush1.msra.mxu0 0.0
        %603 = vmatprep.subr.mxu0 0.0
        %604 = vmatpush1.msra.mxu0 0.0
        %605 = vmatprep.subr.mxu0 0.0
        %606 = vmatpush1.msra.mxu0 0.0
        %607 = vmatprep.subr.mxu0 0.0
        %608 = vmatpush1.msra.mxu0 0.0
        %609 = vmatprep.subr.mxu0 0.0
        %610 = vmatpush1.msra.mxu0 0.0
        %611 = vmatprep.subr.mxu0 0.0
        %612 = vmatpush1.msra.mxu0 0.0
        %613 = vmatprep.subr.mxu0 0.0
        %614 = vmatpush1.msra.mxu0 0.0
        %615 = vmatprep.subr.mxu0 0.0
        %616 = vmatpush1.msra.mxu0 0.0
        %617 = vmatprep.subr.mxu0 0.0
        %618 = vmatpush1.msra.mxu0 0.0
        %619 = vmatprep.mubr.f32.mxu0 0.0
        %620 = vmatmul.mubr.f32.gmra.mrb[0].mxu0 %v411
        %v621 = vpop.f32.mrb[0].mxu0
        %v622 = vadd.f32 0.0, %v621
        %v623 = vpop.f32.mrb[0].mxu0
        %v624 = vadd.f32 0.0, %v623
        %625 = vdwg.mxu0
        %626 = vmatprep.subr.mxu0 %v397
        %627 = vmatpush1.msra.mxu0 %v398
        %628 = vmatprep.subr.mxu0 0.0
        %629 = vmatpush1.msra.mxu0 0.0
        %630 = vmatprep.subr.mxu0 0.0
        %631 = vmatpush1.msra.mxu0 0.0
        %632 = vmatprep.subr.mxu0 0.0
        %633 = vmatpush1.msra.mxu0 0.0
        %634 = vmatprep.subr.mxu0 0.0
        %635 = vmatpush1.msra.mxu0 0.0
        %636 = vmatprep.subr.mxu0 0.0
        %637 = vmatpush1.msra.mxu0 0.0
        %638 = vmatprep.subr.mxu0 0.0
        %639 = vmatpush1.msra.mxu0 0.0
        %640 = vmatprep.subr.mxu0 0.0
        %641 = vmatpush1.msra.mxu0 0.0
        %642 = vmatprep.subr.mxu0 0.0
        %643 = vmatpush1.msra.mxu0 0.0
        %644 = vmatprep.subr.mxu0 0.0
        %645 = vmatpush1.msra.mxu0 0.0
        %646 = vmatprep.subr.mxu0 0.0
        %647 = vmatpush1.msra.mxu0 0.0
        %648 = vmatprep.subr.mxu0 0.0
        %649 = vmatpush1.msra.mxu0 0.0
        %650 = vmatprep.subr.mxu0 0.0
        %651 = vmatpush1.msra.mxu0 0.0
        %652 = vmatprep.subr.mxu0 0.0
        %653 = vmatpush1.msra.mxu0 0.0
        %654 = vmatprep.subr.mxu0 0.0
        %655 = vmatpush1.msra.mxu0 0.0
        %656 = vmatprep.subr.mxu0 0.0
        %657 = vmatpush1.msra.mxu0 0.0
        %658 = vmatprep.subr.mxu0 0.0
        %659 = vmatpush1.msra.mxu0 0.0
        %660 = vmatprep.subr.mxu0 0.0
        %661 = vmatpush1.msra.mxu0 0.0
        %662 = vmatprep.subr.mxu0 0.0
        %663 = vmatpush1.msra.mxu0 0.0
        %664 = vmatprep.subr.mxu0 0.0
        %665 = vmatpush1.msra.mxu0 0.0
        %666 = vmatprep.subr.mxu0 0.0
        %667 = vmatpush1.msra.mxu0 0.0
        %668 = vmatprep.subr.mxu0 0.0
        %669 = vmatpush1.msra.mxu0 0.0
        %670 = vmatprep.subr.mxu0 0.0
        %671 = vmatpush1.msra.mxu0 0.0
        %672 = vmatprep.subr.mxu0 0.0
        %673 = vmatpush1.msra.mxu0 0.0
        %674 = vmatprep.subr.mxu0 0.0
        %675 = vmatpush1.msra.mxu0 0.0
        %676 = vmatprep.subr.mxu0 0.0
        %677 = vmatpush1.msra.mxu0 0.0
        %678 = vmatprep.subr.mxu0 0.0
        %679 = vmatpush1.msra.mxu0 0.0
        %680 = vmatprep.subr.mxu0 0.0
        %681 = vmatpush1.msra.mxu0 0.0
        %682 = vmatprep.subr.mxu0 0.0
        %683 = vmatpush1.msra.mxu0 0.0
        %684 = vmatprep.subr.mxu0 0.0
        %685 = vmatpush1.msra.mxu0 0.0
        %686 = vmatprep.subr.mxu0 0.0
        %687 = vmatpush1.msra.mxu0 0.0
        %688 = vmatprep.subr.mxu0 0.0
        %689 = vmatpush1.msra.mxu0 0.0
        %690 = vmatprep.mubr.f32.mxu0 0.0
        %691 = vmatmul.mubr.f32.gmra.mrb[0].mxu0 %v411
        %v692 = vpop.f32.mrb[0].mxu0
        %v693 = vadd.f32 0.0, %v692
        %v694 = vpop.f32.mrb[0].mxu0
        %v695 = vadd.f32 0.0, %v694
        %696 = vdwg.mxu0
        %697 = vmatprep.subr.mxu0 %v395
        %698 = vmatpush1.msra.mxu0 %v396
        %699 = vmatprep.subr.mxu0 0.0
        %700 = vmatpush1.msra.mxu0 0.0
        %701 = vmatprep.subr.mxu0 0.0
        %702 = vmatpush1.msra.mxu0 0.0
        %703 = vmatprep.subr.mxu0 0.0
        %704 = vmatpush1.msra.mxu0 0.0
        %705 = vmatprep.subr.mxu0 0.0
        %706 = vmatpush1.msra.mxu0 0.0
        %707 = vmatprep.subr.mxu0 0.0
        %708 = vmatpush1.msra.mxu0 0.0
        %709 = vmatprep.subr.mxu0 0.0
        %710 = vmatpush1.msra.mxu0 0.0
        %711 = vmatprep.subr.mxu0 0.0
        %712 = vmatpush1.msra.mxu0 0.0
        %713 = vmatprep.subr.mxu0 0.0
        %714 = vmatpush1.msra.mxu0 0.0
        %715 = vmatprep.subr.mxu0 0.0
        %716 = vmatpush1.msra.mxu0 0.0
        %717 = vmatprep.subr.mxu0 0.0
        %718 = vmatpush1.msra.mxu0 0.0
        %719 = vmatprep.subr.mxu0 0.0
        %720 = vmatpush1.msra.mxu0 0.0
        %721 = vmatprep.subr.mxu0 0.0
        %722 = vmatpush1.msra.mxu0 0.0
        %723 = vmatprep.subr.mxu0 0.0
        %724 = vmatpush1.msra.mxu0 0.0
        %725 = vmatprep.subr.mxu0 0.0
        %726 = vmatpush1.msra.mxu0 0.0
        %727 = vmatprep.subr.mxu0 0.0
        %728 = vmatpush1.msra.mxu0 0.0
        %729 = vmatprep.subr.mxu0 0.0
        %730 = vmatpush1.msra.mxu0 0.0
        %731 = vmatprep.subr.mxu0 0.0
        %732 = vmatpush1.msra.mxu0 0.0
        %733 = vmatprep.subr.mxu0 0.0
        %734 = vmatpush1.msra.mxu0 0.0
        %735 = vmatprep.subr.mxu0 0.0
        %736 = vmatpush1.msra.mxu0 0.0
        %737 = vmatprep.subr.mxu0 0.0
        %738 = vmatpush1.msra.mxu0 0.0
        %739 = vmatprep.subr.mxu0 0.0
        %740 = vmatpush1.msra.mxu0 0.0
        %741 = vmatprep.subr.mxu0 0.0
        %742 = vmatpush1.msra.mxu0 0.0
        %743 = vmatprep.subr.mxu0 0.0
        %744 = vmatpush1.msra.mxu0 0.0
        %745 = vmatprep.subr.mxu0 0.0
        %746 = vmatpush1.msra.mxu0 0.0
        %747 = vmatprep.subr.mxu0 0.0
        %748 = vmatpush1.msra.mxu0 0.0
        %749 = vmatprep.subr.mxu0 0.0
        %750 = vmatpush1.msra.mxu0 0.0
        %751 = vmatprep.subr.mxu0 0.0
        %752 = vmatpush1.msra.mxu0 0.0
        %753 = vmatprep.subr.mxu0 0.0
        %754 = vmatpush1.msra.mxu0 0.0
        %755 = vmatprep.subr.mxu0 0.0
        %756 = vmatpush1.msra.mxu0 0.0
        %757 = vmatprep.subr.mxu0 0.0
        %758 = vmatpush1.msra.mxu0 0.0
        %759 = vmatprep.subr.mxu0 0.0
        %760 = vmatpush1.msra.mxu0 0.0
        %761 = vmatprep.mubr.f32.mxu0 0.0
        %762 = vmatmul.mubr.f32.gmra.mrb[0].mxu0 %v411
        %v763 = vpop.f32.mrb[0].mxu0
        %v764 = vadd.f32 0.0, %v763
        %v765 = vpop.f32.mrb[0].mxu0
        %v766 = vadd.f32 0.0, %v765
        %767 = vdwg.mxu0
        %768 = vmatprep.subr.mxu0 %v393
        %769 = vmatpush1.msra.mxu0 %v394
        %770 = vmatprep.subr.mxu0 0.0
        %771 = vmatpush1.msra.mxu0 0.0
        %772 = vmatprep.subr.mxu0 0.0
        %773 = vmatpush1.msra.mxu0 0.0
        %774 = vmatprep.subr.mxu0 0.0
        %775 = vmatpush1.msra.mxu0 0.0
        %776 = vmatprep.subr.mxu0 0.0
        %777 = vmatpush1.msra.mxu0 0.0
        %778 = vmatprep.subr.mxu0 0.0
        %779 = vmatpush1.msra.mxu0 0.0
        %780 = vmatprep.subr.mxu0 0.0
        %781 = vmatpush1.msra.mxu0 0.0
        %782 = vmatprep.subr.mxu0 0.0
        %783 = vmatpush1.msra.mxu0 0.0
        %784 = vmatprep.subr.mxu0 0.0
        %785 = vmatpush1.msra.mxu0 0.0
        %786 = vmatprep.subr.mxu0 0.0
        %787 = vmatpush1.msra.mxu0 0.0
        %788 = vmatprep.subr.mxu0 0.0
        %789 = vmatpush1.msra.mxu0 0.0
        %790 = vmatprep.subr.mxu0 0.0
        %791 = vmatpush1.msra.mxu0 0.0
        %792 = vmatprep.subr.mxu0 0.0
        %793 = vmatpush1.msra.mxu0 0.0
        %794 = vmatprep.subr.mxu0 0.0
        %795 = vmatpush1.msra.mxu0 0.0
        %796 = vmatprep.subr.mxu0 0.0
        %797 = vmatpush1.msra.mxu0 0.0
        %798 = vmatprep.subr.mxu0 0.0
        %799 = vmatpush1.msra.mxu0 0.0
        %800 = vmatprep.subr.mxu0 0.0
        %801 = vmatpush1.msra.mxu0 0.0
        %802 = vmatprep.subr.mxu0 0.0
        %803 = vmatpush1.msra.mxu0 0.0
        %804 = vmatprep.subr.mxu0 0.0
        %805 = vmatpush1.msra.mxu0 0.0
        %806 = vmatprep.subr.mxu0 0.0
        %807 = vmatpush1.msra.mxu0 0.0
        %808 = vmatprep.subr.mxu0 0.0
        %809 = vmatpush1.msra.mxu0 0.0
        %810 = vmatprep.subr.mxu0 0.0
        %811 = vmatpush1.msra.mxu0 0.0
        %812 = vmatprep.subr.mxu0 0.0
        %813 = vmatpush1.msra.mxu0 0.0
        %814 = vmatprep.subr.mxu0 0.0
        %815 = vmatpush1.msra.mxu0 0.0
        %816 = vmatprep.subr.mxu0 0.0
        %817 = vmatpush1.msra.mxu0 0.0
        %818 = vmatprep.subr.mxu0 0.0
        %819 = vmatpush1.msra.mxu0 0.0
        %820 = vmatprep.subr.mxu0 0.0
        %821 = vmatpush1.msra.mxu0 0.0
        %822 = vmatprep.subr.mxu0 0.0
        %823 = vmatpush1.msra.mxu0 0.0
        %824 = vmatprep.subr.mxu0 0.0
        %825 = vmatpush1.msra.mxu0 0.0
        %826 = vmatprep.subr.mxu0 0.0
        %827 = vmatpush1.msra.mxu0 0.0
        %828 = vmatprep.subr.mxu0 0.0
        %829 = vmatpush1.msra.mxu0 0.0
        %830 = vmatprep.subr.mxu0 0.0
        %831 = vmatpush1.msra.mxu0 0.0
        %832 = vmatprep.mubr.f32.mxu0 0.0
        %833 = vmatmul.mubr.f32.gmra.mrb[0].mxu0 %v411
        %v834 = vpop.f32.mrb[0].mxu0
        %v835 = vadd.f32 0.0, %v834
        %v836 = vpop.f32.mrb[0].mxu0
        %v837 = vadd.f32 0.0, %v836
        %838 = vdwg.mxu0
        %839 = vmatprep.subr.mxu0 %v391
        %840 = vmatpush1.msra.mxu0 %v392
        %841 = vmatprep.subr.mxu0 0.0
        %842 = vmatpush1.msra.mxu0 0.0
        %843 = vmatprep.subr.mxu0 0.0
        %844 = vmatpush1.msra.mxu0 0.0
        %845 = vmatprep.subr.mxu0 0.0
        %846 = vmatpush1.msra.mxu0 0.0
        %847 = vmatprep.subr.mxu0 0.0
        %848 = vmatpush1.msra.mxu0 0.0
        %849 = vmatprep.subr.mxu0 0.0
        %850 = vmatpush1.msra.mxu0 0.0
        %851 = vmatprep.subr.mxu0 0.0
        %852 = vmatpush1.msra.mxu0 0.0
        %853 = vmatprep.subr.mxu0 0.0
        %854 = vmatpush1.msra.mxu0 0.0
        %855 = vmatprep.subr.mxu0 0.0
        %856 = vmatpush1.msra.mxu0 0.0
        %857 = vmatprep.subr.mxu0 0.0
        %858 = vmatpush1.msra.mxu0 0.0
        %859 = vmatprep.subr.mxu0 0.0
        %860 = vmatpush1.msra.mxu0 0.0
        %861 = vmatprep.subr.mxu0 0.0
        %862 = vmatpush1.msra.mxu0 0.0
        %863 = vmatprep.subr.mxu0 0.0
        %864 = vmatpush1.msra.mxu0 0.0
        %865 = vmatprep.subr.mxu0 0.0
        %866 = vmatpush1.msra.mxu0 0.0
        %867 = vmatprep.subr.mxu0 0.0
        %868 = vmatpush1.msra.mxu0 0.0
        %869 = vmatprep.subr.mxu0 0.0
        %870 = vmatpush1.msra.mxu0 0.0
        %871 = vmatprep.subr.mxu0 0.0
        %872 = vmatpush1.msra.mxu0 0.0
        %873 = vmatprep.subr.mxu0 0.0
        %874 = vmatpush1.msra.mxu0 0.0
        %875 = vmatprep.subr.mxu0 0.0
        %876 = vmatpush1.msra.mxu0 0.0
        %877 = vmatprep.subr.mxu0 0.0
        %878 = vmatpush1.msra.mxu0 0.0
        %879 = vmatprep.subr.mxu0 0.0
        %880 = vmatpush1.msra.mxu0 0.0
        %881 = vmatprep.subr.mxu0 0.0
        %882 = vmatpush1.msra.mxu0 0.0
        %883 = vmatprep.subr.mxu0 0.0
        %884 = vmatpush1.msra.mxu0 0.0
        %885 = vmatprep.subr.mxu0 0.0
        %886 = vmatpush1.msra.mxu0 0.0
        %887 = vmatprep.subr.mxu0 0.0
        %888 = vmatpush1.msra.mxu0 0.0
        %889 = vmatprep.subr.mxu0 0.0
        %890 = vmatpush1.msra.mxu0 0.0
        %891 = vmatprep.subr.mxu0 0.0
        %892 = vmatpush1.msra.mxu0 0.0
        %893 = vmatprep.subr.mxu0 0.0
        %894 = vmatpush1.msra.mxu0 0.0
        %895 = vmatprep.subr.mxu0 0.0
        %896 = vmatpush1.msra.mxu0 0.0
        %897 = vmatprep.subr.mxu0 0.0
        %898 = vmatpush1.msra.mxu0 0.0
        %899 = vmatprep.subr.mxu0 0.0
        %900 = vmatpush1.msra.mxu0 0.0
        %901 = vmatprep.subr.mxu0 0.0
        %902 = vmatpush1.msra.mxu0 0.0
        %903 = vmatprep.mubr.f32.mxu0 0.0
        %904 = vmatmul.mubr.f32.gmra.mrb[0].mxu0 %v411
        %v905 = vpop.f32.mrb[0].mxu0
        %v906 = vadd.f32 0.0, %v905
        %v907 = vpop.f32.mrb[0].mxu0
        %v908 = vadd.f32 0.0, %v907
        %909 = vdwg.mxu0
        %910 = vmatprep.subr.mxu0 %v389
        %911 = vmatpush1.msra.mxu0 %v390
        %912 = vmatprep.subr.mxu0 0.0
        %913 = vmatpush1.msra.mxu0 0.0
        %914 = vmatprep.subr.mxu0 0.0
        %915 = vmatpush1.msra.mxu0 0.0
        %916 = vmatprep.subr.mxu0 0.0
        %917 = vmatpush1.msra.mxu0 0.0
        %918 = vmatprep.subr.mxu0 0.0
        %919 = vmatpush1.msra.mxu0 0.0
        %920 = vmatprep.subr.mxu0 0.0
        %921 = vmatpush1.msra.mxu0 0.0
        %922 = vmatprep.subr.mxu0 0.0
        %923 = vmatpush1.msra.mxu0 0.0
        %924 = vmatprep.subr.mxu0 0.0
        %925 = vmatpush1.msra.mxu0 0.0
        %926 = vmatprep.subr.mxu0 0.0
        %927 = vmatpush1.msra.mxu0 0.0
        %928 = vmatprep.subr.mxu0 0.0
        %929 = vmatpush1.msra.mxu0 0.0
        %930 = vmatprep.subr.mxu0 0.0
        %931 = vmatpush1.msra.mxu0 0.0
        %932 = vmatprep.subr.mxu0 0.0
        %933 = vmatpush1.msra.mxu0 0.0
        %934 = vmatprep.subr.mxu0 0.0
        %935 = vmatpush1.msra.mxu0 0.0
        %936 = vmatprep.subr.mxu0 0.0
        %937 = vmatpush1.msra.mxu0 0.0
        %938 = vmatprep.subr.mxu0 0.0
        %939 = vmatpush1.msra.mxu0 0.0
        %940 = vmatprep.subr.mxu0 0.0
        %941 = vmatpush1.msra.mxu0 0.0
        %942 = vmatprep.subr.mxu0 0.0
        %943 = vmatpush1.msra.mxu0 0.0
        %944 = vmatprep.subr.mxu0 0.0
        %945 = vmatpush1.msra.mxu0 0.0
        %946 = vmatprep.subr.mxu0 0.0
        %947 = vmatpush1.msra.mxu0 0.0
        %948 = vmatprep.subr.mxu0 0.0
        %949 = vmatpush1.msra.mxu0 0.0
        %950 = vmatprep.subr.mxu0 0.0
        %951 = vmatpush1.msra.mxu0 0.0
        %952 = vmatprep.subr.mxu0 0.0
        %953 = vmatpush1.msra.mxu0 0.0
        %954 = vmatprep.subr.mxu0 0.0
        %955 = vmatpush1.msra.mxu0 0.0
        %956 = vmatprep.subr.mxu0 0.0
        %957 = vmatpush1.msra.mxu0 0.0
        %958 = vmatprep.subr.mxu0 0.0
        %959 = vmatpush1.msra.mxu0 0.0
        %960 = vmatprep.subr.mxu0 0.0
        %961 = vmatpush1.msra.mxu0 0.0
        %962 = vmatprep.subr.mxu0 0.0
        %963 = vmatpush1.msra.mxu0 0.0
        %964 = vmatprep.subr.mxu0 0.0
        %965 = vmatpush1.msra.mxu0 0.0
        %966 = vmatprep.subr.mxu0 0.0
        %967 = vmatpush1.msra.mxu0 0.0
        %968 = vmatprep.subr.mxu0 0.0
        %969 = vmatpush1.msra.mxu0 0.0
        %970 = vmatprep.subr.mxu0 0.0
        %971 = vmatpush1.msra.mxu0 0.0
        %972 = vmatprep.subr.mxu0 0.0
        %973 = vmatpush1.msra.mxu0 0.0
        %974 = vmatprep.mubr.f32.mxu0 0.0
        %975 = vmatmul.mubr.f32.gmra.mrb[0].mxu0 %v411
        %v976 = vpop.f32.mrb[0].mxu0
        %v977 = vadd.f32 0.0, %v976
        %v978 = vpop.f32.mrb[0].mxu0
        %v979 = vadd.f32 0.0, %v978
        %980 = vdwg.mxu0
        %v982 = vsel %vm409, %v406, 0
        %984 = vmatprep.subr.mxu0 %v404
        %985 = vmatpush1.msra.mxu0 %v405
        %986 = vmatprep.subr.mxu0 0.0
        %987 = vmatpush1.msra.mxu0 0.0
        %988 = vmatprep.subr.mxu0 0.0
        %989 = vmatpush1.msra.mxu0 0.0
        %990 = vmatprep.subr.mxu0 0.0
        %991 = vmatpush1.msra.mxu0 0.0
        %992 = vmatprep.subr.mxu0 0.0
        %993 = vmatpush1.msra.mxu0 0.0
        %994 = vmatprep.subr.mxu0 0.0
        %995 = vmatpush1.msra.mxu0 0.0
        %996 = vmatprep.subr.mxu0 0.0
        %997 = vmatpush1.msra.mxu0 0.0
        %998 = vmatprep.subr.mxu0 0.0
        %999 = vmatpush1.msra.mxu0 0.0
        %1000 = vmatprep.subr.mxu0 0.0
        %1001 = vmatpush1.msra.mxu0 0.0
        %1002 = vmatprep.subr.mxu0 0.0
        %1003 = vmatpush1.msra.mxu0 0.0
        %1004 = vmatprep.subr.mxu0 0.0
        %1005 = vmatpush1.msra.mxu0 0.0
        %1006 = vmatprep.subr.mxu0 0.0
        %1007 = vmatpush1.msra.mxu0 0.0
        %1008 = vmatprep.subr.mxu0 0.0
        %1009 = vmatpush1.msra.mxu0 0.0
        %1010 = vmatprep.subr.mxu0 0.0
        %1011 = vmatpush1.msra.mxu0 0.0
        %1012 = vmatprep.subr.mxu0 0.0
        %1013 = vmatpush1.msra.mxu0 0.0
        %1014 = vmatprep.subr.mxu0 0.0
        %1015 = vmatpush1.msra.mxu0 0.0
        %1016 = vmatprep.subr.mxu0 0.0
        %1017 = vmatpush1.msra.mxu0 0.0
        %1018 = vmatprep.subr.mxu0 0.0
        %1019 = vmatpush1.msra.mxu0 0.0
        %1020 = vmatprep.subr.mxu0 0.0
        %1021 = vmatpush1.msra.mxu0 0.0
        %1022 = vmatprep.subr.mxu0 0.0
        %1023 = vmatpush1.msra.mxu0 0.0
        %1024 = vmatprep.subr.mxu0 0.0
        %1025 = vmatpush1.msra.mxu0 0.0
        %1026 = vmatprep.subr.mxu0 0.0
        %1027 = vmatpush1.msra.mxu0 0.0
        %1028 = vmatprep.subr.mxu0 0.0
        %1029 = vmatpush1.msra.mxu0 0.0
        %1030 = vmatprep.subr.mxu0 0.0
        %1031 = vmatpush1.msra.mxu0 0.0
        %1032 = vmatprep.subr.mxu0 0.0
        %1033 = vmatpush1.msra.mxu0 0.0
        %1034 = vmatprep.subr.mxu0 0.0
        %1035 = vmatpush1.msra.mxu0 0.0
        %1036 = vmatprep.subr.mxu0 0.0
        %1037 = vmatpush1.msra.mxu0 0.0
        %1038 = vmatprep.subr.mxu0 0.0
        %1039 = vmatpush1.msra.mxu0 0.0
        %1040 = vmatprep.subr.mxu0 0.0
        %1041 = vmatpush1.msra.mxu0 0.0
        %1042 = vmatprep.subr.mxu0 0.0
        %1043 = vmatpush1.msra.mxu0 0.0
        %1044 = vmatprep.subr.mxu0 0.0
        %1045 = vmatpush1.msra.mxu0 0.0
        %1046 = vmatprep.subr.mxu0 0.0
        %1047 = vmatpush1.msra.mxu0 0.0
        %1048 = vmatprep.mubr.f32.mxu0 0.0
        %1049 = vmatmul.mubr.f32.gmra.mrb[0].mxu0 %v982
        %v1050 = vpop.f32.mrb[0].mxu0
        %v1051 = vadd.f32 %v480, %v1050
        %v1052 = vpop.f32.mrb[0].mxu0
        %v1053 = vadd.f32 %v482, %v1052
        %1054 = vdwg.mxu0
        %1055 = vmatprep.subr.mxu0 %v402
        %1056 = vmatpush1.msra.mxu0 %v403
        %1057 = vmatprep.subr.mxu0 0.0
        %1058 = vmatpush1.msra.mxu0 0.0
        %1059 = vmatprep.subr.mxu0 0.0
        %1060 = vmatpush1.msra.mxu0 0.0
        %1061 = vmatprep.subr.mxu0 0.0
        %1062 = vmatpush1.msra.mxu0 0.0
        %1063 = vmatprep.subr.mxu0 0.0
        %1064 = vmatpush1.msra.mxu0 0.0
        %1065 = vmatprep.subr.mxu0 0.0
        %1066 = vmatpush1.msra.mxu0 0.0
        %1067 = vmatprep.subr.mxu0 0.0
        %1068 = vmatpush1.msra.mxu0 0.0
        %1069 = vmatprep.subr.mxu0 0.0
        %1070 = vmatpush1.msra.mxu0 0.0
        %1071 = vmatprep.subr.mxu0 0.0
        %1072 = vmatpush1.msra.mxu0 0.0
        %1073 = vmatprep.subr.mxu0 0.0
        %1074 = vmatpush1.msra.mxu0 0.0
        %1075 = vmatprep.subr.mxu0 0.0
        %1076 = vmatpush1.msra.mxu0 0.0
        %1077 = vmatprep.subr.mxu0 0.0
        %1078 = vmatpush1.msra.mxu0 0.0
        %1079 = vmatprep.subr.mxu0 0.0
        %1080 = vmatpush1.msra.mxu0 0.0
        %1081 = vmatprep.subr.mxu0 0.0
        %1082 = vmatpush1.msra.mxu0 0.0
        %1083 = vmatprep.subr.mxu0 0.0
        %1084 = vmatpush1.msra.mxu0 0.0
        %1085 = vmatprep.subr.mxu0 0.0
        %1086 = vmatpush1.msra.mxu0 0.0
        %1087 = vmatprep.subr.mxu0 0.0
        %1088 = vmatpush1.msra.mxu0 0.0
        %1089 = vmatprep.subr.mxu0 0.0
        %1090 = vmatpush1.msra.mxu0 0.0
        %1091 = vmatprep.subr.mxu0 0.0
        %1092 = vmatpush1.msra.mxu0 0.0
        %1093 = vmatprep.subr.mxu0 0.0
        %1094 = vmatpush1.msra.mxu0 0.0
        %1095 = vmatprep.subr.mxu0 0.0
        %1096 = vmatpush1.msra.mxu0 0.0
        %1097 = vmatprep.subr.mxu0 0.0
        %1098 = vmatpush1.msra.mxu0 0.0
        %1099 = vmatprep.subr.mxu0 0.0
        %1100 = vmatpush1.msra.mxu0 0.0
        %1101 = vmatprep.subr.mxu0 0.0
        %1102 = vmatpush1.msra.mxu0 0.0
        %1103 = vmatprep.subr.mxu0 0.0
        %1104 = vmatpush1.msra.mxu0 0.0
        %1105 = vmatprep.subr.mxu0 0.0
        %1106 = vmatpush1.msra.mxu0 0.0
        %1107 = vmatprep.subr.mxu0 0.0
        %1108 = vmatpush1.msra.mxu0 0.0
        %1109 = vmatprep.subr.mxu0 0.0
        %1110 = vmatpush1.msra.mxu0 0.0
        %1111 = vmatprep.subr.mxu0 0.0
        %1112 = vmatpush1.msra.mxu0 0.0
        %1113 = vmatprep.subr.mxu0 0.0
        %1114 = vmatpush1.msra.mxu0 0.0
        %1115 = vmatprep.subr.mxu0 0.0
        %1116 = vmatpush1.msra.mxu0 0.0
        %1117 = vmatprep.subr.mxu0 0.0
        %1118 = vmatpush1.msra.mxu0 0.0
        %1119 = vmatprep.mubr.f32.mxu0 0.0
        %1120 = vmatmul.mubr.f32.gmra.mrb[0].mxu0 %v982
        %v1121 = vpop.f32.mrb[0].mxu0
        %v1122 = vadd.f32 %v551, %v1121
        %v1123 = vpop.f32.mrb[0].mxu0
        %v1124 = vadd.f32 %v553, %v1123
        %1125 = vdwg.mxu0
        %1126 = vmatprep.subr.mxu0 %v400
        %1127 = vmatpush1.msra.mxu0 %v401
        %1128 = vmatprep.subr.mxu0 0.0
        %1129 = vmatpush1.msra.mxu0 0.0
        %1130 = vmatprep.subr.mxu0 0.0
        %1131 = vmatpush1.msra.mxu0 0.0
        %1132 = vmatprep.subr.mxu0 0.0
        %1133 = vmatpush1.msra.mxu0 0.0
        %1134 = vmatprep.subr.mxu0 0.0
        %1135 = vmatpush1.msra.mxu0 0.0
        %1136 = vmatprep.subr.mxu0 0.0
        %1137 = vmatpush1.msra.mxu0 0.0
        %1138 = vmatprep.subr.mxu0 0.0
        %1139 = vmatpush1.msra.mxu0 0.0
        %1140 = vmatprep.subr.mxu0 0.0
        %1141 = vmatpush1.msra.mxu0 0.0
        %1142 = vmatprep.subr.mxu0 0.0
        %1143 = vmatpush1.msra.mxu0 0.0
        %1144 = vmatprep.subr.mxu0 0.0
        %1145 = vmatpush1.msra.mxu0 0.0
        %1146 = vmatprep.subr.mxu0 0.0
        %1147 = vmatpush1.msra.mxu0 0.0
        %1148 = vmatprep.subr.mxu0 0.0
        %1149 = vmatpush1.msra.mxu0 0.0
        %1150 = vmatprep.subr.mxu0 0.0
        %1151 = vmatpush1.msra.mxu0 0.0
        %1152 = vmatprep.subr.mxu0 0.0
        %1153 = vmatpush1.msra.mxu0 0.0
        %1154 = vmatprep.subr.mxu0 0.0
        %1155 = vmatpush1.msra.mxu0 0.0
        %1156 = vmatprep.subr.mxu0 0.0
        %1157 = vmatpush1.msra.mxu0 0.0
        %1158 = vmatprep.subr.mxu0 0.0
        %1159 = vmatpush1.msra.mxu0 0.0
        %1160 = vmatprep.subr.mxu0 0.0
        %1161 = vmatpush1.msra.mxu0 0.0
        %1162 = vmatprep.subr.mxu0 0.0
        %1163 = vmatpush1.msra.mxu0 0.0
        %1164 = vmatprep.subr.mxu0 0.0
        %1165 = vmatpush1.msra.mxu0 0.0
        %1166 = vmatprep.subr.mxu0 0.0
        %1167 = vmatpush1.msra.mxu0 0.0
        %1168 = vmatprep.subr.mxu0 0.0
        %1169 = vmatpush1.msra.mxu0 0.0
        %1170 = vmatprep.subr.mxu0 0.0
        %1171 = vmatpush1.msra.mxu0 0.0
        %1172 = vmatprep.subr.mxu0 0.0
        %1173 = vmatpush1.msra.mxu0 0.0
        %1174 = vmatprep.subr.mxu0 0.0
        %1175 = vmatpush1.msra.mxu0 0.0
        %1176 = vmatprep.subr.mxu0 0.0
        %1177 = vmatpush1.msra.mxu0 0.0
        %1178 = vmatprep.subr.mxu0 0.0
        %1179 = vmatpush1.msra.mxu0 0.0
        %1180 = vmatprep.subr.mxu0 0.0
        %1181 = vmatpush1.msra.mxu0 0.0
        %1182 = vmatprep.subr.mxu0 0.0
        %1183 = vmatpush1.msra.mxu0 0.0
        %1184 = vmatprep.subr.mxu0 0.0
        %1185 = vmatpush1.msra.mxu0 0.0
        %1186 = vmatprep.subr.mxu0 0.0
        %1187 = vmatpush1.msra.mxu0 0.0
        %1188 = vmatprep.subr.mxu0 0.0
        %1189 = vmatpush1.msra.mxu0 0.0
        %1190 = vmatprep.mubr.f32.mxu0 0.0
        %1191 = vmatmul.mubr.f32.gmra.mrb[0].mxu0 %v982
        %v1192 = vpop.f32.mrb[0].mxu0
        %v1193 = vadd.f32 %v622, %v1192
        %v1194 = vpop.f32.mrb[0].mxu0
        %v1195 = vadd.f32 %v624, %v1194
        %1196 = vdwg.mxu0
        %1197 = vmatprep.subr.mxu0 %v398
        %1198 = vmatpush1.msra.mxu0 %v399
        %1199 = vmatprep.subr.mxu0 0.0
        %1200 = vmatpush1.msra.mxu0 0.0
        %1201 = vmatprep.subr.mxu0 0.0
        %1202 = vmatpush1.msra.mxu0 0.0
        %1203 = vmatprep.subr.mxu0 0.0
        %1204 = vmatpush1.msra.mxu0 0.0
        %1205 = vmatprep.subr.mxu0 0.0
        %1206 = vmatpush1.msra.mxu0 0.0
        %1207 = vmatprep.subr.mxu0 0.0
        %1208 = vmatpush1.msra.mxu0 0.0
        %1209 = vmatprep.subr.mxu0 0.0
        %1210 = vmatpush1.msra.mxu0 0.0
        %1211 = vmatprep.subr.mxu0 0.0
        %1212 = vmatpush1.msra.mxu0 0.0
        %1213 = vmatprep.subr.mxu0 0.0
        %1214 = vmatpush1.msra.mxu0 0.0
        %1215 = vmatprep.subr.mxu0 0.0
        %1216 = vmatpush1.msra.mxu0 0.0
        %1217 = vmatprep.subr.mxu0 0.0
        %1218 = vmatpush1.msra.mxu0 0.0
        %1219 = vmatprep.subr.mxu0 0.0
        %1220 = vmatpush1.msra.mxu0 0.0
        %1221 = vmatprep.subr.mxu0 0.0
        %1222 = vmatpush1.msra.mxu0 0.0
        %1223 = vmatprep.subr.mxu0 0.0
        %1224 = vmatpush1.msra.mxu0 0.0
        %1225 = vmatprep.subr.mxu0 0.0
        %1226 = vmatpush1.msra.mxu0 0.0
        %1227 = vmatprep.subr.mxu0 0.0
        %1228 = vmatpush1.msra.mxu0 0.0
        %1229 = vmatprep.subr.mxu0 0.0
        %1230 = vmatpush1.msra.mxu0 0.0
        %1231 = vmatprep.subr.mxu0 0.0
        %1232 = vmatpush1.msra.mxu0 0.0
        %1233 = vmatprep.subr.mxu0 0.0
        %1234 = vmatpush1.msra.mxu0 0.0
        %1235 = vmatprep.subr.mxu0 0.0
        %1236 = vmatpush1.msra.mxu0 0.0
        %1237 = vmatprep.subr.mxu0 0.0
        %1238 = vmatpush1.msra.mxu0 0.0
        %1239 = vmatprep.subr.mxu0 0.0
        %1240 = vmatpush1.msra.mxu0 0.0
        %1241 = vmatprep.subr.mxu0 0.0
        %1242 = vmatpush1.msra.mxu0 0.0
        %1243 = vmatprep.subr.mxu0 0.0
        %1244 = vmatpush1.msra.mxu0 0.0
        %1245 = vmatprep.subr.mxu0 0.0
        %1246 = vmatpush1.msra.mxu0 0.0
        %1247 = vmatprep.subr.mxu0 0.0
        %1248 = vmatpush1.msra.mxu0 0.0
        %1249 = vmatprep.subr.mxu0 0.0
        %1250 = vmatpush1.msra.mxu0 0.0
        %1251 = vmatprep.subr.mxu0 0.0
        %1252 = vmatpush1.msra.mxu0 0.0
        %1253 = vmatprep.subr.mxu0 0.0
        %1254 = vmatpush1.msra.mxu0 0.0
        %1255 = vmatprep.subr.mxu0 0.0
        %1256 = vmatpush1.msra.mxu0 0.0
        %1257 = vmatprep.subr.mxu0 0.0
        %1258 = vmatpush1.msra.mxu0 0.0
        %1259 = vmatprep.subr.mxu0 0.0
        %1260 = vmatpush1.msra.mxu0 0.0
        %1261 = vmatprep.mubr.f32.mxu0 0.0
        %1262 = vmatmul.mubr.f32.gmra.mrb[0].mxu0 %v982
        %v1263 = vpop.f32.mrb[0].mxu0
        %v1264 = vadd.f32 %v693, %v1263
        %v1265 = vpop.f32.mrb[0].mxu0
        %v1266 = vadd.f32 %v695, %v1265
        %1267 = vdwg.mxu0
        %1268 = vmatprep.subr.mxu0 %v396
        %1269 = vmatpush1.msra.mxu0 %v397
        %1270 = vmatprep.subr.mxu0 0.0
        %1271 = vmatpush1.msra.mxu0 0.0
        %1272 = vmatprep.subr.mxu0 0.0
        %1273 = vmatpush1.msra.mxu0 0.0
        %1274 = vmatprep.subr.mxu0 0.0
        %1275 = vmatpush1.msra.mxu0 0.0
        %1276 = vmatprep.subr.mxu0 0.0
        %1277 = vmatpush1.msra.mxu0 0.0
        %1278 = vmatprep.subr.mxu0 0.0
        %1279 = vmatpush1.msra.mxu0 0.0
        %1280 = vmatprep.subr.mxu0 0.0
        %1281 = vmatpush1.msra.mxu0 0.0
        %1282 = vmatprep.subr.mxu0 0.0
        %1283 = vmatpush1.msra.mxu0 0.0
        %1284 = vmatprep.subr.mxu0 0.0
        %1285 = vmatpush1.msra.mxu0 0.0
        %1286 = vmatprep.subr.mxu0 0.0
        %1287 = vmatpush1.msra.mxu0 0.0
        %1288 = vmatprep.subr.mxu0 0.0
        %1289 = vmatpush1.msra.mxu0 0.0
        %1290 = vmatprep.subr.mxu0 0.0
        %1291 = vmatpush1.msra.mxu0 0.0
        %1292 = vmatprep.subr.mxu0 0.0
        %1293 = vmatpush1.msra.mxu0 0.0
        %1294 = vmatprep.subr.mxu0 0.0
        %1295 = vmatpush1.msra.mxu0 0.0
        %1296 = vmatprep.subr.mxu0 0.0
        %1297 = vmatpush1.msra.mxu0 0.0
        %1298 = vmatprep.subr.mxu0 0.0
        %1299 = vmatpush1.msra.mxu0 0.0
        %1300 = vmatprep.subr.mxu0 0.0
        %1301 = vmatpush1.msra.mxu0 0.0
        %1302 = vmatprep.subr.mxu0 0.0
        %1303 = vmatpush1.msra.mxu0 0.0
        %1304 = vmatprep.subr.mxu0 0.0
        %1305 = vmatpush1.msra.mxu0 0.0
        %1306 = vmatprep.subr.mxu0 0.0
        %1307 = vmatpush1.msra.mxu0 0.0
        %1308 = vmatprep.subr.mxu0 0.0
        %1309 = vmatpush1.msra.mxu0 0.0
        %1310 = vmatprep.subr.mxu0 0.0
        %1311 = vmatpush1.msra.mxu0 0.0
        %1312 = vmatprep.subr.mxu0 0.0
        %1313 = vmatpush1.msra.mxu0 0.0
        %1314 = vmatprep.subr.mxu0 0.0
        %1315 = vmatpush1.msra.mxu0 0.0
        %1316 = vmatprep.subr.mxu0 0.0
        %1317 = vmatpush1.msra.mxu0 0.0
        %1318 = vmatprep.subr.mxu0 0.0
        %1319 = vmatpush1.msra.mxu0 0.0
        %1320 = vmatprep.subr.mxu0 0.0
        %1321 = vmatpush1.msra.mxu0 0.0
        %1322 = vmatprep.subr.mxu0 0.0
        %1323 = vmatpush1.msra.mxu0 0.0
        %1324 = vmatprep.subr.mxu0 0.0
        %1325 = vmatpush1.msra.mxu0 0.0
        %1326 = vmatprep.subr.mxu0 0.0
        %1327 = vmatpush1.msra.mxu0 0.0
        %1328 = vmatprep.subr.mxu0 0.0
        %1329 = vmatpush1.msra.mxu0 0.0
        %1330 = vmatprep.subr.mxu0 0.0
        %1331 = vmatpush1.msra.mxu0 0.0
        %1332 = vmatprep.mubr.f32.mxu0 0.0
        %1333 = vmatmul.mubr.f32.gmra.mrb[0].mxu0 %v982
        %v1334 = vpop.f32.mrb[0].mxu0
        %v1335 = vadd.f32 %v764, %v1334
        %v1336 = vpop.f32.mrb[0].mxu0
        %v1337 = vadd.f32 %v766, %v1336
        %1338 = vdwg.mxu0
        %1339 = vmatprep.subr.mxu0 %v394
        %1340 = vmatpush1.msra.mxu0 %v395
        %1341 = vmatprep.subr.mxu0 0.0
        %1342 = vmatpush1.msra.mxu0 0.0
        %1343 = vmatprep.subr.mxu0 0.0
        %1344 = vmatpush1.msra.mxu0 0.0
        %1345 = vmatprep.subr.mxu0 0.0
        %1346 = vmatpush1.msra.mxu0 0.0
        %1347 = vmatprep.subr.mxu0 0.0
        %1348 = vmatpush1.msra.mxu0 0.0
        %1349 = vmatprep.subr.mxu0 0.0
        %1350 = vmatpush1.msra.mxu0 0.0
        %1351 = vmatprep.subr.mxu0 0.0
        %1352 = vmatpush1.msra.mxu0 0.0
        %1353 = vmatprep.subr.mxu0 0.0
        %1354 = vmatpush1.msra.mxu0 0.0
        %1355 = vmatprep.subr.mxu0 0.0
        %1356 = vmatpush1.msra.mxu0 0.0
        %1357 = vmatprep.subr.mxu0 0.0
        %1358 = vmatpush1.msra.mxu0 0.0
        %1359 = vmatprep.subr.mxu0 0.0
        %1360 = vmatpush1.msra.mxu0 0.0
        %1361 = vmatprep.subr.mxu0 0.0
        %1362 = vmatpush1.msra.mxu0 0.0
        %1363 = vmatprep.subr.mxu0 0.0
        %1364 = vmatpush1.msra.mxu0 0.0
        %1365 = vmatprep.subr.mxu0 0.0
        %1366 = vmatpush1.msra.mxu0 0.0
        %1367 = vmatprep.subr.mxu0 0.0
        %1368 = vmatpush1.msra.mxu0 0.0
        %1369 = vmatprep.subr.mxu0 0.0
        %1370 = vmatpush1.msra.mxu0 0.0
        %1371 = vmatprep.subr.mxu0 0.0
        %1372 = vmatpush1.msra.mxu0 0.0
        %1373 = vmatprep.subr.mxu0 0.0
        %1374 = vmatpush1.msra.mxu0 0.0
        %1375 = vmatprep.subr.mxu0 0.0
        %1376 = vmatpush1.msra.mxu0 0.0
        %1377 = vmatprep.subr.mxu0 0.0
        %1378 = vmatpush1.msra.mxu0 0.0
        %1379 = vmatprep.subr.mxu0 0.0
        %1380 = vmatpush1.msra.mxu0 0.0
        %1381 = vmatprep.subr.mxu0 0.0
        %1382 = vmatpush1.msra.mxu0 0.0
        %1383 = vmatprep.subr.mxu0 0.0
        %1384 = vmatpush1.msra.mxu0 0.0
        %1385 = vmatprep.subr.mxu0 0.0
        %1386 = vmatpush1.msra.mxu0 0.0
        %1387 = vmatprep.subr.mxu0 0.0
        %1388 = vmatpush1.msra.mxu0 0.0
        %1389 = vmatprep.subr.mxu0 0.0
        %1390 = vmatpush1.msra.mxu0 0.0
        %1391 = vmatprep.subr.mxu0 0.0
        %1392 = vmatpush1.msra.mxu0 0.0
        %1393 = vmatprep.subr.mxu0 0.0
        %1394 = vmatpush1.msra.mxu0 0.0
        %1395 = vmatprep.subr.mxu0 0.0
        %1396 = vmatpush1.msra.mxu0 0.0
        %1397 = vmatprep.subr.mxu0 0.0
        %1398 = vmatpush1.msra.mxu0 0.0
        %1399 = vmatprep.subr.mxu0 0.0
        %1400 = vmatpush1.msra.mxu0 0.0
        %1401 = vmatprep.subr.mxu0 0.0
        %1402 = vmatpush1.msra.mxu0 0.0
        %1403 = vmatprep.mubr.f32.mxu0 0.0
        %1404 = vmatmul.mubr.f32.gmra.mrb[0].mxu0 %v982
        %v1405 = vpop.f32.mrb[0].mxu0
        %v1406 = vadd.f32 %v835, %v1405
        %v1407 = vpop.f32.mrb[0].mxu0
        %v1408 = vadd.f32 %v837, %v1407
        %1409 = vdwg.mxu0
        %1410 = vmatprep.subr.mxu0 %v392
        %1411 = vmatpush1.msra.mxu0 %v393
        %1412 = vmatprep.subr.mxu0 0.0
        %1413 = vmatpush1.msra.mxu0 0.0
        %1414 = vmatprep.subr.mxu0 0.0
        %1415 = vmatpush1.msra.mxu0 0.0
        %1416 = vmatprep.subr.mxu0 0.0
        %1417 = vmatpush1.msra.mxu0 0.0
        %1418 = vmatprep.subr.mxu0 0.0
        %1419 = vmatpush1.msra.mxu0 0.0
        %1420 = vmatprep.subr.mxu0 0.0
        %1421 = vmatpush1.msra.mxu0 0.0
        %1422 = vmatprep.subr.mxu0 0.0
        %1423 = vmatpush1.msra.mxu0 0.0
        %1424 = vmatprep.subr.mxu0 0.0
        %1425 = vmatpush1.msra.mxu0 0.0
        %1426 = vmatprep.subr.mxu0 0.0
        %1427 = vmatpush1.msra.mxu0 0.0
        %1428 = vmatprep.subr.mxu0 0.0
        %1429 = vmatpush1.msra.mxu0 0.0
        %1430 = vmatprep.subr.mxu0 0.0
        %1431 = vmatpush1.msra.mxu0 0.0
        %1432 = vmatprep.subr.mxu0 0.0
        %1433 = vmatpush1.msra.mxu0 0.0
        %1434 = vmatprep.subr.mxu0 0.0
        %1435 = vmatpush1.msra.mxu0 0.0
        %1436 = vmatprep.subr.mxu0 0.0
        %1437 = vmatpush1.msra.mxu0 0.0
        %1438 = vmatprep.subr.mxu0 0.0
        %1439 = vmatpush1.msra.mxu0 0.0
        %1440 = vmatprep.subr.mxu0 0.0
        %1441 = vmatpush1.msra.mxu0 0.0
        %1442 = vmatprep.subr.mxu0 0.0
        %1443 = vmatpush1.msra.mxu0 0.0
        %1444 = vmatprep.subr.mxu0 0.0
        %1445 = vmatpush1.msra.mxu0 0.0
        %1446 = vmatprep.subr.mxu0 0.0
        %1447 = vmatpush1.msra.mxu0 0.0
        %1448 = vmatprep.subr.mxu0 0.0
        %1449 = vmatpush1.msra.mxu0 0.0
        %1450 = vmatprep.subr.mxu0 0.0
        %1451 = vmatpush1.msra.mxu0 0.0
        %1452 = vmatprep.subr.mxu0 0.0
        %1453 = vmatpush1.msra.mxu0 0.0
        %1454 = vmatprep.subr.mxu0 0.0
        %1455 = vmatpush1.msra.mxu0 0.0
        %1456 = vmatprep.subr.mxu0 0.0
        %1457 = vmatpush1.msra.mxu0 0.0
        %1458 = vmatprep.subr.mxu0 0.0
        %1459 = vmatpush1.msra.mxu0 0.0
        %1460 = vmatprep.subr.mxu0 0.0
        %1461 = vmatpush1.msra.mxu0 0.0
        %1462 = vmatprep.subr.mxu0 0.0
        %1463 = vmatpush1.msra.mxu0 0.0
        %1464 = vmatprep.subr.mxu0 0.0
        %1465 = vmatpush1.msra.mxu0 0.0
        %1466 = vmatprep.subr.mxu0 0.0
        %1467 = vmatpush1.msra.mxu0 0.0
        %1468 = vmatprep.subr.mxu0 0.0
        %1469 = vmatpush1.msra.mxu0 0.0
        %1470 = vmatprep.subr.mxu0 0.0
        %1471 = vmatpush1.msra.mxu0 0.0
        %1472 = vmatprep.subr.mxu0 0.0
        %1473 = vmatpush1.msra.mxu0 0.0
        %1474 = vmatprep.mubr.f32.mxu0 0.0
        %1475 = vmatmul.mubr.f32.gmra.mrb[0].mxu0 %v982
        %v1476 = vpop.f32.mrb[0].mxu0
        %v1477 = vadd.f32 %v906, %v1476
        %v1478 = vpop.f32.mrb[0].mxu0
        %v1479 = vadd.f32 %v908, %v1478
        %1480 = vdwg.mxu0
        %1481 = vmatprep.subr.mxu0 %v390
        %1482 = vmatpush1.msra.mxu0 %v391
        %1483 = vmatprep.subr.mxu0 0.0
        %1484 = vmatpush1.msra.mxu0 0.0
        %1485 = vmatprep.subr.mxu0 0.0
        %1486 = vmatpush1.msra.mxu0 0.0
        %1487 = vmatprep.subr.mxu0 0.0
        %1488 = vmatpush1.msra.mxu0 0.0
        %1489 = vmatprep.subr.mxu0 0.0
        %1490 = vmatpush1.msra.mxu0 0.0
        %1491 = vmatprep.subr.mxu0 0.0
        %1492 = vmatpush1.msra.mxu0 0.0
        %1493 = vmatprep.subr.mxu0 0.0
        %1494 = vmatpush1.msra.mxu0 0.0
        %1495 = vmatprep.subr.mxu0 0.0
        %1496 = vmatpush1.msra.mxu0 0.0
        %1497 = vmatprep.subr.mxu0 0.0
        %1498 = vmatpush1.msra.mxu0 0.0
        %1499 = vmatprep.subr.mxu0 0.0
        %1500 = vmatpush1.msra.mxu0 0.0
        %1501 = vmatprep.subr.mxu0 0.0
        %1502 = vmatpush1.msra.mxu0 0.0
        %1503 = vmatprep.subr.mxu0 0.0
        %1504 = vmatpush1.msra.mxu0 0.0
        %1505 = vmatprep.subr.mxu0 0.0
        %1506 = vmatpush1.msra.mxu0 0.0
        %1507 = vmatprep.subr.mxu0 0.0
        %1508 = vmatpush1.msra.mxu0 0.0
        %1509 = vmatprep.subr.mxu0 0.0
        %1510 = vmatpush1.msra.mxu0 0.0
        %1511 = vmatprep.subr.mxu0 0.0
        %1512 = vmatpush1.msra.mxu0 0.0
        %1513 = vmatprep.subr.mxu0 0.0
        %1514 = vmatpush1.msra.mxu0 0.0
        %1515 = vmatprep.subr.mxu0 0.0
        %1516 = vmatpush1.msra.mxu0 0.0
        %1517 = vmatprep.subr.mxu0 0.0
        %1518 = vmatpush1.msra.mxu0 0.0
        %1519 = vmatprep.subr.mxu0 0.0
        %1520 = vmatpush1.msra.mxu0 0.0
        %1521 = vmatprep.subr.mxu0 0.0
        %1522 = vmatpush1.msra.mxu0 0.0
        %1523 = vmatprep.subr.mxu0 0.0
        %1524 = vmatpush1.msra.mxu0 0.0
        %1525 = vmatprep.subr.mxu0 0.0
        %1526 = vmatpush1.msra.mxu0 0.0
        %1527 = vmatprep.subr.mxu0 0.0
        %1528 = vmatpush1.msra.mxu0 0.0
        %1529 = vmatprep.subr.mxu0 0.0
        %1530 = vmatpush1.msra.mxu0 0.0
        %1531 = vmatprep.subr.mxu0 0.0
        %1532 = vmatpush1.msra.mxu0 0.0
        %1533 = vmatprep.subr.mxu0 0.0
        %1534 = vmatpush1.msra.mxu0 0.0
        %1535 = vmatprep.subr.mxu0 0.0
        %1536 = vmatpush1.msra.mxu0 0.0
        %1537 = vmatprep.subr.mxu0 0.0
        %1538 = vmatpush1.msra.mxu0 0.0
        %1539 = vmatprep.subr.mxu0 0.0
        %1540 = vmatpush1.msra.mxu0 0.0
        %1541 = vmatprep.subr.mxu0 0.0
        %1542 = vmatpush1.msra.mxu0 0.0
        %1543 = vmatprep.subr.mxu0 0.0
        %1544 = vmatpush1.msra.mxu0 0.0
        %1545 = vmatprep.mubr.f32.mxu0 0.0
        %1546 = vmatmul.mubr.f32.gmra.mrb[0].mxu0 %v982
        %v1547 = vpop.f32.mrb[0].mxu0
        %v1548 = vadd.f32 %v977, %v1547
        %v1549 = vpop.f32.mrb[0].mxu0
        %v1550 = vadd.f32 %v979, %v1549
        %1551 = vdwg.mxu0
        %s1552 = scalar_lea.vmem %s3, 48
        %v1553 = vld [vmem:[%s1552] sm:$0xff]
        %v1555 = vsel %vm409, %v1553, 0
        %1557 = vmatprep.subr.mxu0 %v402
        %1558 = vmatpush1.msra.mxu0 %v403
        %1559 = vmatprep.subr.mxu0 0.0
        %1560 = vmatpush1.msra.mxu0 0.0
        %1561 = vmatprep.subr.mxu0 0.0
        %1562 = vmatpush1.msra.mxu0 0.0
        %1563 = vmatprep.subr.mxu0 0.0
        %1564 = vmatpush1.msra.mxu0 0.0
        %1565 = vmatprep.subr.mxu0 0.0
        %1566 = vmatpush1.msra.mxu0 0.0
        %1567 = vmatprep.subr.mxu0 0.0
        %1568 = vmatpush1.msra.mxu0 0.0
        %1569 = vmatprep.subr.mxu0 0.0
        %1570 = vmatpush1.msra.mxu0 0.0
        %1571 = vmatprep.subr.mxu0 0.0
        %1572 = vmatpush1.msra.mxu0 0.0
        %1573 = vmatprep.subr.mxu0 0.0
        %1574 = vmatpush1.msra.mxu0 0.0
        %1575 = vmatprep.subr.mxu0 0.0
        %1576 = vmatpush1.msra.mxu0 0.0
        %1577 = vmatprep.subr.mxu0 0.0
        %1578 = vmatpush1.msra.mxu0 0.0
        %1579 = vmatprep.subr.mxu0 0.0
        %1580 = vmatpush1.msra.mxu0 0.0
        %1581 = vmatprep.subr.mxu0 0.0
        %1582 = vmatpush1.msra.mxu0 0.0
        %1583 = vmatprep.subr.mxu0 0.0
        %1584 = vmatpush1.msra.mxu0 0.0
        %1585 = vmatprep.subr.mxu0 0.0
        %1586 = vmatpush1.msra.mxu0 0.0
        %1587 = vmatprep.subr.mxu0 0.0
        %1588 = vmatpush1.msra.mxu0 0.0
        %1589 = vmatprep.subr.mxu0 0.0
        %1590 = vmatpush1.msra.mxu0 0.0
        %1591 = vmatprep.subr.mxu0 0.0
        %1592 = vmatpush1.msra.mxu0 0.0
        %1593 = vmatprep.subr.mxu0 0.0
        %1594 = vmatpush1.msra.mxu0 0.0
        %1595 = vmatprep.subr.mxu0 0.0
        %1596 = vmatpush1.msra.mxu0 0.0
        %1597 = vmatprep.subr.mxu0 0.0
        %1598 = vmatpush1.msra.mxu0 0.0
        %1599 = vmatprep.subr.mxu0 0.0
        %1600 = vmatpush1.msra.mxu0 0.0
        %1601 = vmatprep.subr.mxu0 0.0
        %1602 = vmatpush1.msra.mxu0 0.0
        %1603 = vmatprep.subr.mxu0 0.0
        %1604 = vmatpush1.msra.mxu0 0.0
        %1605 = vmatprep.subr.mxu0 0.0
        %1606 = vmatpush1.msra.mxu0 0.0
        %1607 = vmatprep.subr.mxu0 0.0
        %1608 = vmatpush1.msra.mxu0 0.0
        %1609 = vmatprep.subr.mxu0 0.0
        %1610 = vmatpush1.msra.mxu0 0.0
        %1611 = vmatprep.subr.mxu0 0.0
        %1612 = vmatpush1.msra.mxu0 0.0
        %1613 = vmatprep.subr.mxu0 0.0
        %1614 = vmatpush1.msra.mxu0 0.0
        %1615 = vmatprep.subr.mxu0 0.0
        %1616 = vmatpush1.msra.mxu0 0.0
        %1617 = vmatprep.subr.mxu0 0.0
        %1618 = vmatpush1.msra.mxu0 0.0
        %1619 = vmatprep.subr.mxu0 0.0
        %1620 = vmatpush1.msra.mxu0 0.0
        %1621 = vmatprep.mubr.f32.mxu0 0.0
        %1622 = vmatmul.mubr.f32.gmra.mrb[0].mxu0 %v1555
        %v1623 = vpop.f32.mrb[0].mxu0
        %v1624 = vadd.f32 0.0, %v1623
        %v1625 = vpop.f32.mrb[0].mxu0
        %v1626 = vadd.f32 0.0, %v1625
        %1627 = vdwg.mxu0
        %1628 = vmatprep.subr.mxu0 %v400
        %1629 = vmatpush1.msra.mxu0 %v401
        %1630 = vmatprep.subr.mxu0 0.0
        %1631 = vmatpush1.msra.mxu0 0.0
        %1632 = vmatprep.subr.mxu0 0.0
        %1633 = vmatpush1.msra.mxu0 0.0
        %1634 = vmatprep.subr.mxu0 0.0
        %1635 = vmatpush1.msra.mxu0 0.0
        %1636 = vmatprep.subr.mxu0 0.0
        %1637 = vmatpush1.msra.mxu0 0.0
        %1638 = vmatprep.subr.mxu0 0.0
        %1639 = vmatpush1.msra.mxu0 0.0
        %1640 = vmatprep.subr.mxu0 0.0
        %1641 = vmatpush1.msra.mxu0 0.0
        %1642 = vmatprep.subr.mxu0 0.0
        %1643 = vmatpush1.msra.mxu0 0.0
        %1644 = vmatprep.subr.mxu0 0.0
        %1645 = vmatpush1.msra.mxu0 0.0
        %1646 = vmatprep.subr.mxu0 0.0
        %1647 = vmatpush1.msra.mxu0 0.0
        %1648 = vmatprep.subr.mxu0 0.0
        %1649 = vmatpush1.msra.mxu0 0.0
        %1650 = vmatprep.subr.mxu0 0.0
        %1651 = vmatpush1.msra.mxu0 0.0
        %1652 = vmatprep.subr.mxu0 0.0
        %1653 = vmatpush1.msra.mxu0 0.0
        %1654 = vmatprep.subr.mxu0 0.0
        %1655 = vmatpush1.msra.mxu0 0.0
        %1656 = vmatprep.subr.mxu0 0.0
        %1657 = vmatpush1.msra.mxu0 0.0
        %1658 = vmatprep.subr.mxu0 0.0
        %1659 = vmatpush1.msra.mxu0 0.0
        %1660 = vmatprep.subr.mxu0 0.0
        %1661 = vmatpush1.msra.mxu0 0.0
        %1662 = vmatprep.subr.mxu0 0.0
        %1663 = vmatpush1.msra.mxu0 0.0
        %1664 = vmatprep.subr.mxu0 0.0
        %1665 = vmatpush1.msra.mxu0 0.0
        %1666 = vmatprep.subr.mxu0 0.0
        %1667 = vmatpush1.msra.mxu0 0.0
        %1668 = vmatprep.subr.mxu0 0.0
        %1669 = vmatpush1.msra.mxu0 0.0
        %1670 = vmatprep.subr.mxu0 0.0
        %1671 = vmatpush1.msra.mxu0 0.0
        %1672 = vmatprep.subr.mxu0 0.0
        %1673 = vmatpush1.msra.mxu0 0.0
        %1674 = vmatprep.subr.mxu0 0.0
        %1675 = vmatpush1.msra.mxu0 0.0
        %1676 = vmatprep.subr.mxu0 0.0
        %1677 = vmatpush1.msra.mxu0 0.0
        %1678 = vmatprep.subr.mxu0 0.0
        %1679 = vmatpush1.msra.mxu0 0.0
        %1680 = vmatprep.subr.mxu0 0.0
        %1681 = vmatpush1.msra.mxu0 0.0
        %1682 = vmatprep.subr.mxu0 0.0
        %1683 = vmatpush1.msra.mxu0 0.0
        %1684 = vmatprep.subr.mxu0 0.0
        %1685 = vmatpush1.msra.mxu0 0.0
        %1686 = vmatprep.subr.mxu0 0.0
        %1687 = vmatpush1.msra.mxu0 0.0
        %1688 = vmatprep.subr.mxu0 0.0
        %1689 = vmatpush1.msra.mxu0 0.0
        %1690 = vmatprep.subr.mxu0 0.0
        %1691 = vmatpush1.msra.mxu0 0.0
        %1692 = vmatprep.mubr.f32.mxu0 0.0
        %1693 = vmatmul.mubr.f32.gmra.mrb[0].mxu0 %v1555
        %v1694 = vpop.f32.mrb[0].mxu0
        %v1695 = vadd.f32 0.0, %v1694
        %v1696 = vpop.f32.mrb[0].mxu0
        %v1697 = vadd.f32 0.0, %v1696
        %1698 = vdwg.mxu0
        %1699 = vmatprep.subr.mxu0 %v398
        %1700 = vmatpush1.msra.mxu0 %v399
        %1701 = vmatprep.subr.mxu0 0.0
        %1702 = vmatpush1.msra.mxu0 0.0
        %1703 = vmatprep.subr.mxu0 0.0
        %1704 = vmatpush1.msra.mxu0 0.0
        %1705 = vmatprep.subr.mxu0 0.0
        %1706 = vmatpush1.msra.mxu0 0.0
        %1707 = vmatprep.subr.mxu0 0.0
        %1708 = vmatpush1.msra.mxu0 0.0
        %1709 = vmatprep.subr.mxu0 0.0
        %1710 = vmatpush1.msra.mxu0 0.0
        %1711 = vmatprep.subr.mxu0 0.0
        %1712 = vmatpush1.msra.mxu0 0.0
        %1713 = vmatprep.subr.mxu0 0.0
        %1714 = vmatpush1.msra.mxu0 0.0
        %1715 = vmatprep.subr.mxu0 0.0
        %1716 = vmatpush1.msra.mxu0 0.0
        %1717 = vmatprep.subr.mxu0 0.0
        %1718 = vmatpush1.msra.mxu0 0.0
        %1719 = vmatprep.subr.mxu0 0.0
        %1720 = vmatpush1.msra.mxu0 0.0
        %1721 = vmatprep.subr.mxu0 0.0
        %1722 = vmatpush1.msra.mxu0 0.0
        %1723 = vmatprep.subr.mxu0 0.0
        %1724 = vmatpush1.msra.mxu0 0.0
        %1725 = vmatprep.subr.mxu0 0.0
        %1726 = vmatpush1.msra.mxu0 0.0
        %1727 = vmatprep.subr.mxu0 0.0
        %1728 = vmatpush1.msra.mxu0 0.0
        %1729 = vmatprep.subr.mxu0 0.0
        %1730 = vmatpush1.msra.mxu0 0.0
        %1731 = vmatprep.subr.mxu0 0.0
        %1732 = vmatpush1.msra.mxu0 0.0
        %1733 = vmatprep.subr.mxu0 0.0
        %1734 = vmatpush1.msra.mxu0 0.0
        %1735 = vmatprep.subr.mxu0 0.0
        %1736 = vmatpush1.msra.mxu0 0.0
        %1737 = vmatprep.subr.mxu0 0.0
        %1738 = vmatpush1.msra.mxu0 0.0
        %1739 = vmatprep.subr.mxu0 0.0
        %1740 = vmatpush1.msra.mxu0 0.0
        %1741 = vmatprep.subr.mxu0 0.0
        %1742 = vmatpush1.msra.mxu0 0.0
        %1743 = vmatprep.subr.mxu0 0.0
        %1744 = vmatpush1.msra.mxu0 0.0
        %1745 = vmatprep.subr.mxu0 0.0
        %1746 = vmatpush1.msra.mxu0 0.0
        %1747 = vmatprep.subr.mxu0 0.0
        %1748 = vmatpush1.msra.mxu0 0.0
        %1749 = vmatprep.subr.mxu0 0.0
        %1750 = vmatpush1.msra.mxu0 0.0
        %1751 = vmatprep.subr.mxu0 0.0
        %1752 = vmatpush1.msra.mxu0 0.0
        %1753 = vmatprep.subr.mxu0 0.0
        %1754 = vmatpush1.msra.mxu0 0.0
        %1755 = vmatprep.subr.mxu0 0.0
        %1756 = vmatpush1.msra.mxu0 0.0
        %1757 = vmatprep.subr.mxu0 0.0
        %1758 = vmatpush1.msra.mxu0 0.0
        %1759 = vmatprep.subr.mxu0 0.0
        %1760 = vmatpush1.msra.mxu0 0.0
        %1761 = vmatprep.subr.mxu0 0.0
        %1762 = vmatpush1.msra.mxu0 0.0
        %1763 = vmatprep.mubr.f32.mxu0 0.0
        %1764 = vmatmul.mubr.f32.gmra.mrb[0].mxu0 %v1555
        %v1765 = vpop.f32.mrb[0].mxu0
        %v1766 = vadd.f32 0.0, %v1765
        %v1767 = vpop.f32.mrb[0].mxu0
        %v1768 = vadd.f32 0.0, %v1767
        %1769 = vdwg.mxu0
        %1770 = vmatprep.subr.mxu0 %v396
        %1771 = vmatpush1.msra.mxu0 %v397
        %1772 = vmatprep.subr.mxu0 0.0
        %1773 = vmatpush1.msra.mxu0 0.0
        %1774 = vmatprep.subr.mxu0 0.0
        %1775 = vmatpush1.msra.mxu0 0.0
        %1776 = vmatprep.subr.mxu0 0.0
        %1777 = vmatpush1.msra.mxu0 0.0
        %1778 = vmatprep.subr.mxu0 0.0
        %1779 = vmatpush1.msra.mxu0 0.0
        %1780 = vmatprep.subr.mxu0 0.0
        %1781 = vmatpush1.msra.mxu0 0.0
        %1782 = vmatprep.subr.mxu0 0.0
        %1783 = vmatpush1.msra.mxu0 0.0
        %1784 = vmatprep.subr.mxu0 0.0
        %1785 = vmatpush1.msra.mxu0 0.0
        %1786 = vmatprep.subr.mxu0 0.0
        %1787 = vmatpush1.msra.mxu0 0.0
        %1788 = vmatprep.subr.mxu0 0.0
        %1789 = vmatpush1.msra.mxu0 0.0
        %1790 = vmatprep.subr.mxu0 0.0
        %1791 = vmatpush1.msra.mxu0 0.0
        %1792 = vmatprep.subr.mxu0 0.0
        %1793 = vmatpush1.msra.mxu0 0.0
        %1794 = vmatprep.subr.mxu0 0.0
        %1795 = vmatpush1.msra.mxu0 0.0
        %1796 = vmatprep.subr.mxu0 0.0
        %1797 = vmatpush1.msra.mxu0 0.0
        %1798 = vmatprep.subr.mxu0 0.0
        %1799 = vmatpush1.msra.mxu0 0.0
        %1800 = vmatprep.subr.mxu0 0.0
        %1801 = vmatpush1.msra.mxu0 0.0
        %1802 = vmatprep.subr.mxu0 0.0
        %1803 = vmatpush1.msra.mxu0 0.0
        %1804 = vmatprep.subr.mxu0 0.0
        %1805 = vmatpush1.msra.mxu0 0.0
        %1806 = vmatprep.subr.mxu0 0.0
        %1807 = vmatpush1.msra.mxu0 0.0
        %1808 = vmatprep.subr.mxu0 0.0
        %1809 = vmatpush1.msra.mxu0 0.0
        %1810 = vmatprep.subr.mxu0 0.0
        %1811 = vmatpush1.msra.mxu0 0.0
        %1812 = vmatprep.subr.mxu0 0.0
        %1813 = vmatpush1.msra.mxu0 0.0
        %1814 = vmatprep.subr.mxu0 0.0
        %1815 = vmatpush1.msra.mxu0 0.0
        %1816 = vmatprep.subr.mxu0 0.0
        %1817 = vmatpush1.msra.mxu0 0.0
        %1818 = vmatprep.subr.mxu0 0.0
        %1819 = vmatpush1.msra.mxu0 0.0
        %1820 = vmatprep.subr.mxu0 0.0
        %1821 = vmatpush1.msra.mxu0 0.0
        %1822 = vmatprep.subr.mxu0 0.0
        %1823 = vmatpush1.msra.mxu0 0.0
        %1824 = vmatprep.subr.mxu0 0.0
        %1825 = vmatpush1.msra.mxu0 0.0
        %1826 = vmatprep.subr.mxu0 0.0
        %1827 = vmatpush1.msra.mxu0 0.0
        %1828 = vmatprep.subr.mxu0 0.0
        %1829 = vmatpush1.msra.mxu0 0.0
        %1830 = vmatprep.subr.mxu0 0.0
        %1831 = vmatpush1.msra.mxu0 0.0
        %1832 = vmatprep.subr.mxu0 0.0
        %1833 = vmatpush1.msra.mxu0 0.0
        %1834 = vmatprep.mubr.f32.mxu0 0.0
        %1835 = vmatmul.mubr.f32.gmra.mrb[0].mxu0 %v1555
        %v1836 = vpop.f32.mrb[0].mxu0
        %v1837 = vadd.f32 0.0, %v1836
        %v1838 = vpop.f32.mrb[0].mxu0
        %v1839 = vadd.f32 0.0, %v1838
        %1840 = vdwg.mxu0
        %1841 = vmatprep.subr.mxu0 %v394
        %1842 = vmatpush1.msra.mxu0 %v395
        %1843 = vmatprep.subr.mxu0 0.0
        %1844 = vmatpush1.msra.mxu0 0.0
        %1845 = vmatprep.subr.mxu0 0.0
        %1846 = vmatpush1.msra.mxu0 0.0
        %1847 = vmatprep.subr.mxu0 0.0
        %1848 = vmatpush1.msra.mxu0 0.0
        %1849 = vmatprep.subr.mxu0 0.0
        %1850 = vmatpush1.msra.mxu0 0.0
        %1851 = vmatprep.subr.mxu0 0.0
        %1852 = vmatpush1.msra.mxu0 0.0
        %1853 = vmatprep.subr.mxu0 0.0
        %1854 = vmatpush1.msra.mxu0 0.0
        %1855 = vmatprep.subr.mxu0 0.0
        %1856 = vmatpush1.msra.mxu0 0.0
        %1857 = vmatprep.subr.mxu0 0.0
        %1858 = vmatpush1.msra.mxu0 0.0
        %1859 = vmatprep.subr.mxu0 0.0
        %1860 = vmatpush1.msra.mxu0 0.0
        %1861 = vmatprep.subr.mxu0 0.0
        %1862 = vmatpush1.msra.mxu0 0.0
        %1863 = vmatprep.subr.mxu0 0.0
        %1864 = vmatpush1.msra.mxu0 0.0
        %1865 = vmatprep.subr.mxu0 0.0
        %1866 = vmatpush1.msra.mxu0 0.0
        %1867 = vmatprep.subr.mxu0 0.0
        %1868 = vmatpush1.msra.mxu0 0.0
        %1869 = vmatprep.subr.mxu0 0.0
        %1870 = vmatpush1.msra.mxu0 0.0
        %1871 = vmatprep.subr.mxu0 0.0
        %1872 = vmatpush1.msra.mxu0 0.0
        %1873 = vmatprep.subr.mxu0 0.0
        %1874 = vmatpush1.msra.mxu0 0.0
        %1875 = vmatprep.subr.mxu0 0.0
        %1876 = vmatpush1.msra.mxu0 0.0
        %1877 = vmatprep.subr.mxu0 0.0
        %1878 = vmatpush1.msra.mxu0 0.0
        %1879 = vmatprep.subr.mxu0 0.0
        %1880 = vmatpush1.msra.mxu0 0.0
        %1881 = vmatprep.subr.mxu0 0.0
        %1882 = vmatpush1.msra.mxu0 0.0
        %1883 = vmatprep.subr.mxu0 0.0
        %1884 = vmatpush1.msra.mxu0 0.0
        %1885 = vmatprep.subr.mxu0 0.0
        %1886 = vmatpush1.msra.mxu0 0.0
        %1887 = vmatprep.subr.mxu0 0.0
        %1888 = vmatpush1.msra.mxu0 0.0
        %1889 = vmatprep.subr.mxu0 0.0
        %1890 = vmatpush1.msra.mxu0 0.0
        %1891 = vmatprep.subr.mxu0 0.0
        %1892 = vmatpush1.msra.mxu0 0.0
        %1893 = vmatprep.subr.mxu0 0.0
        %1894 = vmatpush1.msra.mxu0 0.0
        %1895 = vmatprep.subr.mxu0 0.0
        %1896 = vmatpush1.msra.mxu0 0.0
        %1897 = vmatprep.subr.mxu0 0.0
        %1898 = vmatpush1.msra.mxu0 0.0
        %1899 = vmatprep.subr.mxu0 0.0
        %1900 = vmatpush1.msra.mxu0 0.0
        %1901 = vmatprep.subr.mxu0 0.0
        %1902 = vmatpush1.msra.mxu0 0.0
        %1903 = vmatprep.subr.mxu0 0.0
        %1904 = vmatpush1.msra.mxu0 0.0
        %1905 = vmatprep.mubr.f32.mxu0 0.0
        %1906 = vmatmul.mubr.f32.gmra.mrb[0].mxu0 %v1555
        %v1907 = vpop.f32.mrb[0].mxu0
        %v1908 = vadd.f32 0.0, %v1907
        %v1909 = vpop.f32.mrb[0].mxu0
        %v1910 = vadd.f32 0.0, %v1909
        %1911 = vdwg.mxu0
        %1912 = vmatprep.subr.mxu0 %v392
        %1913 = vmatpush1.msra.mxu0 %v393
        %1914 = vmatprep.subr.mxu0 0.0
        %1915 = vmatpush1.msra.mxu0 0.0
        %1916 = vmatprep.subr.mxu0 0.0
        %1917 = vmatpush1.msra.mxu0 0.0
        %1918 = vmatprep.subr.mxu0 0.0
        %1919 = vmatpush1.msra.mxu0 0.0
        %1920 = vmatprep.subr.mxu0 0.0
        %1921 = vmatpush1.msra.mxu0 0.0
        %1922 = vmatprep.subr.mxu0 0.0
        %1923 = vmatpush1.msra.mxu0 0.0
        %1924 = vmatprep.subr.mxu0 0.0
        %1925 = vmatpush1.msra.mxu0 0.0
        %1926 = vmatprep.subr.mxu0 0.0
        %1927 = vmatpush1.msra.mxu0 0.0
        %1928 = vmatprep.subr.mxu0 0.0
        %1929 = vmatpush1.msra.mxu0 0.0
        %1930 = vmatprep.subr.mxu0 0.0
        %1931 = vmatpush1.msra.mxu0 0.0
        %1932 = vmatprep.subr.mxu0 0.0
        %1933 = vmatpush1.msra.mxu0 0.0
        %1934 = vmatprep.subr.mxu0 0.0
        %1935 = vmatpush1.msra.mxu0 0.0
        %1936 = vmatprep.subr.mxu0 0.0
        %1937 = vmatpush1.msra.mxu0 0.0
        %1938 = vmatprep.subr.mxu0 0.0
        %1939 = vmatpush1.msra.mxu0 0.0
        %1940 = vmatprep.subr.mxu0 0.0
        %1941 = vmatpush1.msra.mxu0 0.0
        %1942 = vmatprep.subr.mxu0 0.0
        %1943 = vmatpush1.msra.mxu0 0.0
        %1944 = vmatprep.subr.mxu0 0.0
        %1945 = vmatpush1.msra.mxu0 0.0
        %1946 = vmatprep.subr.mxu0 0.0
        %1947 = vmatpush1.msra.mxu0 0.0
        %1948 = vmatprep.subr.mxu0 0.0
        %1949 = vmatpush1.msra.mxu0 0.0
        %1950 = vmatprep.subr.mxu0 0.0
        %1951 = vmatpush1.msra.mxu0 0.0
        %1952 = vmatprep.subr.mxu0 0.0
        %1953 = vmatpush1.msra.mxu0 0.0
        %1954 = vmatprep.subr.mxu0 0.0
        %1955 = vmatpush1.msra.mxu0 0.0
        %1956 = vmatprep.subr.mxu0 0.0
        %1957 = vmatpush1.msra.mxu0 0.0
        %1958 = vmatprep.subr.mxu0 0.0
        %1959 = vmatpush1.msra.mxu0 0.0
        %1960 = vmatprep.subr.mxu0 0.0
        %1961 = vmatpush1.msra.mxu0 0.0
        %1962 = vmatprep.subr.mxu0 0.0
        %1963 = vmatpush1.msra.mxu0 0.0
        %1964 = vmatprep.subr.mxu0 0.0
        %1965 = vmatpush1.msra.mxu0 0.0
        %1966 = vmatprep.subr.mxu0 0.0
        %1967 = vmatpush1.msra.mxu0 0.0
        %1968 = vmatprep.subr.mxu0 0.0
        %1969 = vmatpush1.msra.mxu0 0.0
        %1970 = vmatprep.subr.mxu0 0.0
        %1971 = vmatpush1.msra.mxu0 0.0
        %1972 = vmatprep.subr.mxu0 0.0
        %1973 = vmatpush1.msra.mxu0 0.0
        %1974 = vmatprep.subr.mxu0 0.0
        %1975 = vmatpush1.msra.mxu0 0.0
        %1976 = vmatprep.mubr.f32.mxu0 0.0
        %1977 = vmatmul.mubr.f32.gmra.mrb[0].mxu0 %v1555
        %v1978 = vpop.f32.mrb[0].mxu0
        %v1979 = vadd.f32 0.0, %v1978
        %v1980 = vpop.f32.mrb[0].mxu0
        %v1981 = vadd.f32 0.0, %v1980
        %1982 = vdwg.mxu0
        %1983 = vmatprep.subr.mxu0 %v390
        %1984 = vmatpush1.msra.mxu0 %v391
        %1985 = vmatprep.subr.mxu0 0.0
        %1986 = vmatpush1.msra.mxu0 0.0
        %1987 = vmatprep.subr.mxu0 0.0
        %1988 = vmatpush1.msra.mxu0 0.0
        %1989 = vmatprep.subr.mxu0 0.0
        %1990 = vmatpush1.msra.mxu0 0.0
        %1991 = vmatprep.subr.mxu0 0.0
        %1992 = vmatpush1.msra.mxu0 0.0
        %1993 = vmatprep.subr.mxu0 0.0
        %1994 = vmatpush1.msra.mxu0 0.0
        %1995 = vmatprep.subr.mxu0 0.0
        %1996 = vmatpush1.msra.mxu0 0.0
        %1997 = vmatprep.subr.mxu0 0.0
        %1998 = vmatpush1.msra.mxu0 0.0
        %1999 = vmatprep.subr.mxu0 0.0
        %2000 = vmatpush1.msra.mxu0 0.0
        %2001 = vmatprep.subr.mxu0 0.0
        %2002 = vmatpush1.msra.mxu0 0.0
        %2003 = vmatprep.subr.mxu0 0.0
        %2004 = vmatpush1.msra.mxu0 0.0
        %2005 = vmatprep.subr.mxu0 0.0
        %2006 = vmatpush1.msra.mxu0 0.0
        %2007 = vmatprep.subr.mxu0 0.0
        %2008 = vmatpush1.msra.mxu0 0.0
        %2009 = vmatprep.subr.mxu0 0.0
        %2010 = vmatpush1.msra.mxu0 0.0
        %2011 = vmatprep.subr.mxu0 0.0
        %2012 = vmatpush1.msra.mxu0 0.0
        %2013 = vmatprep.subr.mxu0 0.0
        %2014 = vmatpush1.msra.mxu0 0.0
        %2015 = vmatprep.subr.mxu0 0.0
        %2016 = vmatpush1.msra.mxu0 0.0
        %2017 = vmatprep.subr.mxu0 0.0
        %2018 = vmatpush1.msra.mxu0 0.0
        %2019 = vmatprep.subr.mxu0 0.0
        %2020 = vmatpush1.msra.mxu0 0.0
        %2021 = vmatprep.subr.mxu0 0.0
        %2022 = vmatpush1.msra.mxu0 0.0
        %2023 = vmatprep.subr.mxu0 0.0
        %2024 = vmatpush1.msra.mxu0 0.0
        %2025 = vmatprep.subr.mxu0 0.0
        %2026 = vmatpush1.msra.mxu0 0.0
        %2027 = vmatprep.subr.mxu0 0.0
        %2028 = vmatpush1.msra.mxu0 0.0
        %2029 = vmatprep.subr.mxu0 0.0
        %2030 = vmatpush1.msra.mxu0 0.0
        %2031 = vmatprep.subr.mxu0 0.0
        %2032 = vmatpush1.msra.mxu0 0.0
        %2033 = vmatprep.subr.mxu0 0.0
        %2034 = vmatpush1.msra.mxu0 0.0
        %2035 = vmatprep.subr.mxu0 0.0
        %2036 = vmatpush1.msra.mxu0 0.0
        %2037 = vmatprep.subr.mxu0 0.0
        %2038 = vmatpush1.msra.mxu0 0.0
        %2039 = vmatprep.subr.mxu0 0.0
        %2040 = vmatpush1.msra.mxu0 0.0
        %2041 = vmatprep.subr.mxu0 0.0
        %2042 = vmatpush1.msra.mxu0 0.0
        %2043 = vmatprep.subr.mxu0 0.0
        %2044 = vmatpush1.msra.mxu0 0.0
        %2045 = vmatprep.subr.mxu0 0.0
        %2046 = vmatpush1.msra.mxu0 0.0
        %2047 = vmatprep.mubr.f32.mxu0 0.0
        %2048 = vmatmul.mubr.f32.gmra.mrb[0].mxu0 %v1555
        %v2049 = vpop.f32.mrb[0].mxu0
        %v2050 = vadd.f32 0.0, %v2049
        %v2051 = vpop.f32.mrb[0].mxu0
        %v2052 = vadd.f32 0.0, %v2051
        %2053 = vdwg.mxu0
        %2054 = vmatprep.subr.mxu0 %v388
        %2055 = vmatpush1.msra.mxu0 %v389
        %2056 = vmatprep.subr.mxu0 0.0
        %2057 = vmatpush1.msra.mxu0 0.0
        %2058 = vmatprep.subr.mxu0 0.0
        %2059 = vmatpush1.msra.mxu0 0.0
        %2060 = vmatprep.subr.mxu0 0.0
        %2061 = vmatpush1.msra.mxu0 0.0
        %2062 = vmatprep.subr.mxu0 0.0
        %2063 = vmatpush1.msra.mxu0 0.0
        %2064 = vmatprep.subr.mxu0 0.0
        %2065 = vmatpush1.msra.mxu0 0.0
        %2066 = vmatprep.subr.mxu0 0.0
        %2067 = vmatpush1.msra.mxu0 0.0
        %2068 = vmatprep.subr.mxu0 0.0
        %2069 = vmatpush1.msra.mxu0 0.0
        %2070 = vmatprep.subr.mxu0 0.0
        %2071 = vmatpush1.msra.mxu0 0.0
        %2072 = vmatprep.subr.mxu0 0.0
        %2073 = vmatpush1.msra.mxu0 0.0
        %2074 = vmatprep.subr.mxu0 0.0
        %2075 = vmatpush1.msra.mxu0 0.0
        %2076 = vmatprep.subr.mxu0 0.0
        %2077 = vmatpush1.msra.mxu0 0.0
        %2078 = vmatprep.subr.mxu0 0.0
        %2079 = vmatpush1.msra.mxu0 0.0
        %2080 = vmatprep.subr.mxu0 0.0
        %2081 = vmatpush1.msra.mxu0 0.0
        %2082 = vmatprep.subr.mxu0 0.0
        %2083 = vmatpush1.msra.mxu0 0.0
        %2084 = vmatprep.subr.mxu0 0.0
        %2085 = vmatpush1.msra.mxu0 0.0
        %2086 = vmatprep.subr.mxu0 0.0
        %2087 = vmatpush1.msra.mxu0 0.0
        %2088 = vmatprep.subr.mxu0 0.0
        %2089 = vmatpush1.msra.mxu0 0.0
        %2090 = vmatprep.subr.mxu0 0.0
        %2091 = vmatpush1.msra.mxu0 0.0
        %2092 = vmatprep.subr.mxu0 0.0
        %2093 = vmatpush1.msra.mxu0 0.0
        %2094 = vmatprep.subr.mxu0 0.0
        %2095 = vmatpush1.msra.mxu0 0.0
        %2096 = vmatprep.subr.mxu0 0.0
        %2097 = vmatpush1.msra.mxu0 0.0
        %2098 = vmatprep.subr.mxu0 0.0
        %2099 = vmatpush1.msra.mxu0 0.0
        %2100 = vmatprep.subr.mxu0 0.0
        %2101 = vmatpush1.msra.mxu0 0.0
        %2102 = vmatprep.subr.mxu0 0.0
        %2103 = vmatpush1.msra.mxu0 0.0
        %2104 = vmatprep.subr.mxu0 0.0
        %2105 = vmatpush1.msra.mxu0 0.0
        %2106 = vmatprep.subr.mxu0 0.0
        %2107 = vmatpush1.msra.mxu0 0.0
        %2108 = vmatprep.subr.mxu0 0.0
        %2109 = vmatpush1.msra.mxu0 0.0
        %2110 = vmatprep.subr.mxu0 0.0
        %2111 = vmatpush1.msra.mxu0 0.0
        %2112 = vmatprep.subr.mxu0 0.0
        %2113 = vmatpush1.msra.mxu0 0.0
        %2114 = vmatprep.subr.mxu0 0.0
        %2115 = vmatpush1.msra.mxu0 0.0
        %2116 = vmatprep.subr.mxu0 0.0
        %2117 = vmatpush1.msra.mxu0 0.0
        %2118 = vmatprep.mubr.f32.mxu0 0.0
        %2119 = vmatmul.mubr.f32.gmra.mrb[0].mxu0 %v1555
        %v2120 = vpop.f32.mrb[0].mxu0
        %v2121 = vadd.f32 0.0, %v2120
        %v2122 = vpop.f32.mrb[0].mxu0
        %v2123 = vadd.f32 0.0, %v2122
        %2124 = vdwg.mxu0
        %v2125 = vadd.f32 %v1051, %v1624
        %v2126 = vadd.f32 %v1053, %v1626
        %v2127 = vadd.f32 %v1122, %v1695
        %v2128 = vadd.f32 %v1124, %v1697
        %v2129 = vadd.f32 %v1193, %v1766
        %v2130 = vadd.f32 %v1195, %v1768
        %v2131 = vadd.f32 %v1264, %v1837
        %v2132 = vadd.f32 %v1266, %v1839
        %v2133 = vadd.f32 %v1335, %v1908
        %v2134 = vadd.f32 %v1337, %v1910
        %v2135 = vadd.f32 %v1406, %v1979
        %v2136 = vadd.f32 %v1408, %v1981
        %v2137 = vadd.f32 %v1477, %v2050
        %v2138 = vadd.f32 %v1479, %v2052
        %v2139 = vadd.f32 %v1548, %v2121
        %v2140 = vadd.f32 %v1550, %v2123
        %s2141 = scalar_lea.vmem %s3, 8
        %v2142 = vld [vmem:[%s2141] sm:$0xff]
        %v2144 = vsel %vm409, %v2142, 0
        %2146 = vmatprep.subr.mxu0 %v332
        %2147 = vmatpush1.msra.mxu0 %v331
        %2148 = vmatprep.subr.mxu0 0.0
        %2149 = vmatpush1.msra.mxu0 0.0
        %2150 = vmatprep.subr.mxu0 0.0
        %2151 = vmatpush1.msra.mxu0 0.0
        %2152 = vmatprep.subr.mxu0 0.0
        %2153 = vmatpush1.msra.mxu0 0.0
        %2154 = vmatprep.subr.mxu0 0.0
        %2155 = vmatpush1.msra.mxu0 0.0
        %2156 = vmatprep.subr.mxu0 0.0
        %2157 = vmatpush1.msra.mxu0 0.0
        %2158 = vmatprep.subr.mxu0 0.0
        %2159 = vmatpush1.msra.mxu0 0.0
        %2160 = vmatprep.subr.mxu0 0.0
        %2161 = vmatpush1.msra.mxu0 0.0
        %2162 = vmatprep.subr.mxu0 0.0
        %2163 = vmatpush1.msra.mxu0 0.0
        %2164 = vmatprep.subr.mxu0 0.0
        %2165 = vmatpush1.msra.mxu0 0.0
        %2166 = vmatprep.subr.mxu0 0.0
        %2167 = vmatpush1.msra.mxu0 0.0
        %2168 = vmatprep.subr.mxu0 0.0
        %2169 = vmatpush1.msra.mxu0 0.0
        %2170 = vmatprep.subr.mxu0 0.0
        %2171 = vmatpush1.msra.mxu0 0.0
        %2172 = vmatprep.subr.mxu0 0.0
        %2173 = vmatpush1.msra.mxu0 0.0
        %2174 = vmatprep.subr.mxu0 0.0
        %2175 = vmatpush1.msra.mxu0 0.0
        %2176 = vmatprep.subr.mxu0 0.0
        %2177 = vmatpush1.msra.mxu0 0.0
        %2178 = vmatprep.subr.mxu0 0.0
        %2179 = vmatpush1.msra.mxu0 0.0
        %2180 = vmatprep.subr.mxu0 0.0
        %2181 = vmatpush1.msra.mxu0 0.0
        %2182 = vmatprep.subr.mxu0 0.0
        %2183 = vmatpush1.msra.mxu0 0.0
        %2184 = vmatprep.subr.mxu0 0.0
        %2185 = vmatpush1.msra.mxu0 0.0
        %2186 = vmatprep.subr.mxu0 0.0
        %2187 = vmatpush1.msra.mxu0 0.0
        %2188 = vmatprep.subr.mxu0 0.0
        %2189 = vmatpush1.msra.mxu0 0.0
        %2190 = vmatprep.subr.mxu0 0.0
        %2191 = vmatpush1.msra.mxu0 0.0
        %2192 = vmatprep.subr.mxu0 0.0
        %2193 = vmatpush1.msra.mxu0 0.0
        %2194 = vmatprep.subr.mxu0 0.0
        %2195 = vmatpush1.msra.mxu0 0.0
        %2196 = vmatprep.subr.mxu0 0.0
        %2197 = vmatpush1.msra.mxu0 0.0
        %2198 = vmatprep.subr.mxu0 0.0
        %2199 = vmatpush1.msra.mxu0 0.0
        %2200 = vmatprep.subr.mxu0 0.0
        %2201 = vmatpush1.msra.mxu0 0.0
        %2202 = vmatprep.subr.mxu0 0.0
        %2203 = vmatpush1.msra.mxu0 0.0
        %2204 = vmatprep.subr.mxu0 0.0
        %2205 = vmatpush1.msra.mxu0 0.0
        %2206 = vmatprep.subr.mxu0 0.0
        %2207 = vmatpush1.msra.mxu0 0.0
        %2208 = vmatprep.subr.mxu0 0.0
        %2209 = vmatpush1.msra.mxu0 0.0
        %2210 = vmatprep.mubr.f32.mxu0 0.0
        %2211 = vmatmul.mubr.f32.gmra.mrb[0].mxu0 %v2144
        %v2212 = vpop.f32.mrb[0].mxu0
        %v2213 = vadd.f32 0.0, %v2212
        %v2214 = vpop.f32.mrb[0].mxu0
        %v2215 = vadd.f32 0.0, %v2214
        %2216 = vdwg.mxu0
        %2217 = vmatprep.subr.mxu0 %v334
        %2218 = vmatpush1.msra.mxu0 %v333
        %2219 = vmatprep.subr.mxu0 0.0
        %2220 = vmatpush1.msra.mxu0 0.0
        %2221 = vmatprep.subr.mxu0 0.0
        %2222 = vmatpush1.msra.mxu0 0.0
        %2223 = vmatprep.subr.mxu0 0.0
        %2224 = vmatpush1.msra.mxu0 0.0
        %2225 = vmatprep.subr.mxu0 0.0
        %2226 = vmatpush1.msra.mxu0 0.0
        %2227 = vmatprep.subr.mxu0 0.0
        %2228 = vmatpush1.msra.mxu0 0.0
        %2229 = vmatprep.subr.mxu0 0.0
        %2230 = vmatpush1.msra.mxu0 0.0
        %2231 = vmatprep.subr.mxu0 0.0
        %2232 = vmatpush1.msra.mxu0 0.0
        %2233 = vmatprep.subr.mxu0 0.0
        %2234 = vmatpush1.msra.mxu0 0.0
        %2235 = vmatprep.subr.mxu0 0.0
        %2236 = vmatpush1.msra.mxu0 0.0
        %2237 = vmatprep.subr.mxu0 0.0
        %2238 = vmatpush1.msra.mxu0 0.0
        %2239 = vmatprep.subr.mxu0 0.0
        %2240 = vmatpush1.msra.mxu0 0.0
        %2241 = vmatprep.subr.mxu0 0.0
        %2242 = vmatpush1.msra.mxu0 0.0
        %2243 = vmatprep.subr.mxu0 0.0
        %2244 = vmatpush1.msra.mxu0 0.0
        %2245 = vmatprep.subr.mxu0 0.0
        %2246 = vmatpush1.msra.mxu0 0.0
        %2247 = vmatprep.subr.mxu0 0.0
        %2248 = vmatpush1.msra.mxu0 0.0
        %2249 = vmatprep.subr.mxu0 0.0
        %2250 = vmatpush1.msra.mxu0 0.0
        %2251 = vmatprep.subr.mxu0 0.0
        %2252 = vmatpush1.msra.mxu0 0.0
        %2253 = vmatprep.subr.mxu0 0.0
        %2254 = vmatpush1.msra.mxu0 0.0
        %2255 = vmatprep.subr.mxu0 0.0
        %2256 = vmatpush1.msra.mxu0 0.0
        %2257 = vmatprep.subr.mxu0 0.0
        %2258 = vmatpush1.msra.mxu0 0.0
        %2259 = vmatprep.subr.mxu0 0.0
        %2260 = vmatpush1.msra.mxu0 0.0
        %2261 = vmatprep.subr.mxu0 0.0
        %2262 = vmatpush1.msra.mxu0 0.0
        %2263 = vmatprep.subr.mxu0 0.0
        %2264 = vmatpush1.msra.mxu0 0.0
        %2265 = vmatprep.subr.mxu0 0.0
        %2266 = vmatpush1.msra.mxu0 0.0
        %2267 = vmatprep.subr.mxu0 0.0
        %2268 = vmatpush1.msra.mxu0 0.0
        %2269 = vmatprep.subr.mxu0 0.0
        %2270 = vmatpush1.msra.mxu0 0.0
        %2271 = vmatprep.subr.mxu0 0.0
        %2272 = vmatpush1.msra.mxu0 0.0
        %2273 = vmatprep.subr.mxu0 0.0
        %2274 = vmatpush1.msra.mxu0 0.0
        %2275 = vmatprep.subr.mxu0 0.0
        %2276 = vmatpush1.msra.mxu0 0.0
        %2277 = vmatprep.subr.mxu0 0.0
        %2278 = vmatpush1.msra.mxu0 0.0
        %2279 = vmatprep.subr.mxu0 0.0
        %2280 = vmatpush1.msra.mxu0 0.0
        %2281 = vmatprep.mubr.f32.mxu0 0.0
        %2282 = vmatmul.mubr.f32.gmra.mrb[0].mxu0 %v2144
        %v2283 = vpop.f32.mrb[0].mxu0
        %v2284 = vadd.f32 0.0, %v2283
        %v2285 = vpop.f32.mrb[0].mxu0
        %v2286 = vadd.f32 0.0, %v2285
        %2287 = vdwg.mxu0
        %2288 = vmatprep.subr.mxu0 %v336
        %2289 = vmatpush1.msra.mxu0 %v335
        %2290 = vmatprep.subr.mxu0 0.0
        %2291 = vmatpush1.msra.mxu0 0.0
        %2292 = vmatprep.subr.mxu0 0.0
        %2293 = vmatpush1.msra.mxu0 0.0
        %2294 = vmatprep.subr.mxu0 0.0
        %2295 = vmatpush1.msra.mxu0 0.0
        %2296 = vmatprep.subr.mxu0 0.0
        %2297 = vmatpush1.msra.mxu0 0.0
        %2298 = vmatprep.subr.mxu0 0.0
        %2299 = vmatpush1.msra.mxu0 0.0
        %2300 = vmatprep.subr.mxu0 0.0
        %2301 = vmatpush1.msra.mxu0 0.0
        %2302 = vmatprep.subr.mxu0 0.0
        %2303 = vmatpush1.msra.mxu0 0.0
        %2304 = vmatprep.subr.mxu0 0.0
        %2305 = vmatpush1.msra.mxu0 0.0
        %2306 = vmatprep.subr.mxu0 0.0
        %2307 = vmatpush1.msra.mxu0 0.0
        %2308 = vmatprep.subr.mxu0 0.0
        %2309 = vmatpush1.msra.mxu0 0.0
        %2310 = vmatprep.subr.mxu0 0.0
        %2311 = vmatpush1.msra.mxu0 0.0
        %2312 = vmatprep.subr.mxu0 0.0
        %2313 = vmatpush1.msra.mxu0 0.0
        %2314 = vmatprep.subr.mxu0 0.0
        %2315 = vmatpush1.msra.mxu0 0.0
        %2316 = vmatprep.subr.mxu0 0.0
        %2317 = vmatpush1.msra.mxu0 0.0
        %2318 = vmatprep.subr.mxu0 0.0
        %2319 = vmatpush1.msra.mxu0 0.0
        %2320 = vmatprep.subr.mxu0 0.0
        %2321 = vmatpush1.msra.mxu0 0.0
        %2322 = vmatprep.subr.mxu0 0.0
        %2323 = vmatpush1.msra.mxu0 0.0
        %2324 = vmatprep.subr.mxu0 0.0
        %2325 = vmatpush1.msra.mxu0 0.0
        %2326 = vmatprep.subr.mxu0 0.0
        %2327 = vmatpush1.msra.mxu0 0.0
        %2328 = vmatprep.subr.mxu0 0.0
        %2329 = vmatpush1.msra.mxu0 0.0
        %2330 = vmatprep.subr.mxu0 0.0
        %2331 = vmatpush1.msra.mxu0 0.0
        %2332 = vmatprep.subr.mxu0 0.0
        %2333 = vmatpush1.msra.mxu0 0.0
        %2334 = vmatprep.subr.mxu0 0.0
        %2335 = vmatpush1.msra.mxu0 0.0
        %2336 = vmatprep.subr.mxu0 0.0
        %2337 = vmatpush1.msra.mxu0 0.0
        %2338 = vmatprep.subr.mxu0 0.0
        %2339 = vmatpush1.msra.mxu0 0.0
        %2340 = vmatprep.subr.mxu0 0.0
        %2341 = vmatpush1.msra.mxu0 0.0
        %2342 = vmatprep.subr.mxu0 0.0
        %2343 = vmatpush1.msra.mxu0 0.0
        %2344 = vmatprep.subr.mxu0 0.0
        %2345 = vmatpush1.msra.mxu0 0.0
        %2346 = vmatprep.subr.mxu0 0.0
        %2347 = vmatpush1.msra.mxu0 0.0
        %2348 = vmatprep.subr.mxu0 0.0
        %2349 = vmatpush1.msra.mxu0 0.0
        %2350 = vmatprep.subr.mxu0 0.0
        %2351 = vmatpush1.msra.mxu0 0.0
        %2352 = vmatprep.mubr.f32.mxu0 0.0
        %2353 = vmatmul.mubr.f32.gmra.mrb[0].mxu0 %v2144
        %v2354 = vpop.f32.mrb[0].mxu0
        %v2355 = vadd.f32 0.0, %v2354
        %v2356 = vpop.f32.mrb[0].mxu0
        %v2357 = vadd.f32 0.0, %v2356
        %2358 = vdwg.mxu0
        %2359 = vmatprep.subr.mxu0 %v338
        %2360 = vmatpush1.msra.mxu0 %v337
        %2361 = vmatprep.subr.mxu0 0.0
        %2362 = vmatpush1.msra.mxu0 0.0
        %2363 = vmatprep.subr.mxu0 0.0
        %2364 = vmatpush1.msra.mxu0 0.0
        %2365 = vmatprep.subr.mxu0 0.0
        %2366 = vmatpush1.msra.mxu0 0.0
        %2367 = vmatprep.subr.mxu0 0.0
        %2368 = vmatpush1.msra.mxu0 0.0
        %2369 = vmatprep.subr.mxu0 0.0
        %2370 = vmatpush1.msra.mxu0 0.0
        %2371 = vmatprep.subr.mxu0 0.0
        %2372 = vmatpush1.msra.mxu0 0.0
        %2373 = vmatprep.subr.mxu0 0.0
        %2374 = vmatpush1.msra.mxu0 0.0
        %2375 = vmatprep.subr.mxu0 0.0
        %2376 = vmatpush1.msra.mxu0 0.0
        %2377 = vmatprep.subr.mxu0 0.0
        %2378 = vmatpush1.msra.mxu0 0.0
        %2379 = vmatprep.subr.mxu0 0.0
        %2380 = vmatpush1.msra.mxu0 0.0
        %2381 = vmatprep.subr.mxu0 0.0
        %2382 = vmatpush1.msra.mxu0 0.0
        %2383 = vmatprep.subr.mxu0 0.0
        %2384 = vmatpush1.msra.mxu0 0.0
        %2385 = vmatprep.subr.mxu0 0.0
        %2386 = vmatpush1.msra.mxu0 0.0
        %2387 = vmatprep.subr.mxu0 0.0
        %2388 = vmatpush1.msra.mxu0 0.0
        %2389 = vmatprep.subr.mxu0 0.0
        %2390 = vmatpush1.msra.mxu0 0.0
        %2391 = vmatprep.subr.mxu0 0.0
        %2392 = vmatpush1.msra.mxu0 0.0
        %2393 = vmatprep.subr.mxu0 0.0
        %2394 = vmatpush1.msra.mxu0 0.0
        %2395 = vmatprep.subr.mxu0 0.0
        %2396 = vmatpush1.msra.mxu0 0.0
        %2397 = vmatprep.subr.mxu0 0.0
        %2398 = vmatpush1.msra.mxu0 0.0
        %2399 = vmatprep.subr.mxu0 0.0
        %2400 = vmatpush1.msra.mxu0 0.0
        %2401 = vmatprep.subr.mxu0 0.0
        %2402 = vmatpush1.msra.mxu0 0.0
        %2403 = vmatprep.subr.mxu0 0.0
        %2404 = vmatpush1.msra.mxu0 0.0
        %2405 = vmatprep.subr.mxu0 0.0
        %2406 = vmatpush1.msra.mxu0 0.0
        %2407 = vmatprep.subr.mxu0 0.0
        %2408 = vmatpush1.msra.mxu0 0.0
        %2409 = vmatprep.subr.mxu0 0.0
        %2410 = vmatpush1.msra.mxu0 0.0
        %2411 = vmatprep.subr.mxu0 0.0
        %2412 = vmatpush1.msra.mxu0 0.0
        %2413 = vmatprep.subr.mxu0 0.0
        %2414 = vmatpush1.msra.mxu0 0.0
        %2415 = vmatprep.subr.mxu0 0.0
        %2416 = vmatpush1.msra.mxu0 0.0
        %2417 = vmatprep.subr.mxu0 0.0
        %2418 = vmatpush1.msra.mxu0 0.0
        %2419 = vmatprep.subr.mxu0 0.0
        %2420 = vmatpush1.msra.mxu0 0.0
        %2421 = vmatprep.subr.mxu0 0.0
        %2422 = vmatpush1.msra.mxu0 0.0
        %2423 = vmatprep.mubr.f32.mxu0 0.0
        %2424 = vmatmul.mubr.f32.gmra.mrb[0].mxu0 %v2144
        %v2425 = vpop.f32.mrb[0].mxu0
        %v2426 = vadd.f32 0.0, %v2425
        %v2427 = vpop.f32.mrb[0].mxu0
        %v2428 = vadd.f32 0.0, %v2427
        %2429 = vdwg.mxu0
        %2430 = vmatprep.subr.mxu0 %v340
        %2431 = vmatpush1.msra.mxu0 %v339
        %2432 = vmatprep.subr.mxu0 0.0
        %2433 = vmatpush1.msra.mxu0 0.0
        %2434 = vmatprep.subr.mxu0 0.0
        %2435 = vmatpush1.msra.mxu0 0.0
        %2436 = vmatprep.subr.mxu0 0.0
        %2437 = vmatpush1.msra.mxu0 0.0
        %2438 = vmatprep.subr.mxu0 0.0
        %2439 = vmatpush1.msra.mxu0 0.0
        %2440 = vmatprep.subr.mxu0 0.0
        %2441 = vmatpush1.msra.mxu0 0.0
        %2442 = vmatprep.subr.mxu0 0.0
        %2443 = vmatpush1.msra.mxu0 0.0
        %2444 = vmatprep.subr.mxu0 0.0
        %2445 = vmatpush1.msra.mxu0 0.0
        %2446 = vmatprep.subr.mxu0 0.0
        %2447 = vmatpush1.msra.mxu0 0.0
        %2448 = vmatprep.subr.mxu0 0.0
        %2449 = vmatpush1.msra.mxu0 0.0
        %2450 = vmatprep.subr.mxu0 0.0
        %2451 = vmatpush1.msra.mxu0 0.0
        %2452 = vmatprep.subr.mxu0 0.0
        %2453 = vmatpush1.msra.mxu0 0.0
        %2454 = vmatprep.subr.mxu0 0.0
        %2455 = vmatpush1.msra.mxu0 0.0
        %2456 = vmatprep.subr.mxu0 0.0
        %2457 = vmatpush1.msra.mxu0 0.0
        %2458 = vmatprep.subr.mxu0 0.0
        %2459 = vmatpush1.msra.mxu0 0.0
        %2460 = vmatprep.subr.mxu0 0.0
        %2461 = vmatpush1.msra.mxu0 0.0
        %2462 = vmatprep.subr.mxu0 0.0
        %2463 = vmatpush1.msra.mxu0 0.0
        %2464 = vmatprep.subr.mxu0 0.0
        %2465 = vmatpush1.msra.mxu0 0.0
        %2466 = vmatprep.subr.mxu0 0.0
        %2467 = vmatpush1.msra.mxu0 0.0
        %2468 = vmatprep.subr.mxu0 0.0
        %2469 = vmatpush1.msra.mxu0 0.0
        %2470 = vmatprep.subr.mxu0 0.0
        %2471 = vmatpush1.msra.mxu0 0.0
        %2472 = vmatprep.subr.mxu0 0.0
        %2473 = vmatpush1.msra.mxu0 0.0
        %2474 = vmatprep.subr.mxu0 0.0
        %2475 = vmatpush1.msra.mxu0 0.0
        %2476 = vmatprep.subr.mxu0 0.0
        %2477 = vmatpush1.msra.mxu0 0.0
        %2478 = vmatprep.subr.mxu0 0.0
        %2479 = vmatpush1.msra.mxu0 0.0
        %2480 = vmatprep.subr.mxu0 0.0
        %2481 = vmatpush1.msra.mxu0 0.0
        %2482 = vmatprep.subr.mxu0 0.0
        %2483 = vmatpush1.msra.mxu0 0.0
        %2484 = vmatprep.subr.mxu0 0.0
        %2485 = vmatpush1.msra.mxu0 0.0
        %2486 = vmatprep.subr.mxu0 0.0
        %2487 = vmatpush1.msra.mxu0 0.0
        %2488 = vmatprep.subr.mxu0 0.0
        %2489 = vmatpush1.msra.mxu0 0.0
        %2490 = vmatprep.subr.mxu0 0.0
        %2491 = vmatpush1.msra.mxu0 0.0
        %2492 = vmatprep.subr.mxu0 0.0
        %2493 = vmatpush1.msra.mxu0 0.0
        %2494 = vmatprep.mubr.f32.mxu0 0.0
        %2495 = vmatmul.mubr.f32.gmra.mrb[0].mxu0 %v2144
        %v2496 = vpop.f32.mrb[0].mxu0
        %v2497 = vadd.f32 0.0, %v2496
        %v2498 = vpop.f32.mrb[0].mxu0
        %v2499 = vadd.f32 0.0, %v2498
        %2500 = vdwg.mxu0
        %2501 = vmatprep.subr.mxu0 %v342
        %2502 = vmatpush1.msra.mxu0 %v341
        %2503 = vmatprep.subr.mxu0 0.0
        %2504 = vmatpush1.msra.mxu0 0.0
        %2505 = vmatprep.subr.mxu0 0.0
        %2506 = vmatpush1.msra.mxu0 0.0
        %2507 = vmatprep.subr.mxu0 0.0
        %2508 = vmatpush1.msra.mxu0 0.0
        %2509 = vmatprep.subr.mxu0 0.0
        %2510 = vmatpush1.msra.mxu0 0.0
        %2511 = vmatprep.subr.mxu0 0.0
        %2512 = vmatpush1.msra.mxu0 0.0
        %2513 = vmatprep.subr.mxu0 0.0
        %2514 = vmatpush1.msra.mxu0 0.0
        %2515 = vmatprep.subr.mxu0 0.0
        %2516 = vmatpush1.msra.mxu0 0.0
        %2517 = vmatprep.subr.mxu0 0.0
        %2518 = vmatpush1.msra.mxu0 0.0
        %2519 = vmatprep.subr.mxu0 0.0
        %2520 = vmatpush1.msra.mxu0 0.0
        %2521 = vmatprep.subr.mxu0 0.0
        %2522 = vmatpush1.msra.mxu0 0.0
        %2523 = vmatprep.subr.mxu0 0.0
        %2524 = vmatpush1.msra.mxu0 0.0
        %2525 = vmatprep.subr.mxu0 0.0
        %2526 = vmatpush1.msra.mxu0 0.0
        %2527 = vmatprep.subr.mxu0 0.0
        %2528 = vmatpush1.msra.mxu0 0.0
        %2529 = vmatprep.subr.mxu0 0.0
        %2530 = vmatpush1.msra.mxu0 0.0
        %2531 = vmatprep.subr.mxu0 0.0
        %2532 = vmatpush1.msra.mxu0 0.0
        %2533 = vmatprep.subr.mxu0 0.0
        %2534 = vmatpush1.msra.mxu0 0.0
        %2535 = vmatprep.subr.mxu0 0.0
        %2536 = vmatpush1.msra.mxu0 0.0
        %2537 = vmatprep.subr.mxu0 0.0
        %2538 = vmatpush1.msra.mxu0 0.0
        %2539 = vmatprep.subr.mxu0 0.0
        %2540 = vmatpush1.msra.mxu0 0.0
        %2541 = vmatprep.subr.mxu0 0.0
        %2542 = vmatpush1.msra.mxu0 0.0
        %2543 = vmatprep.subr.mxu0 0.0
        %2544 = vmatpush1.msra.mxu0 0.0
        %2545 = vmatprep.subr.mxu0 0.0
        %2546 = vmatpush1.msra.mxu0 0.0
        %2547 = vmatprep.subr.mxu0 0.0
        %2548 = vmatpush1.msra.mxu0 0.0
        %2549 = vmatprep.subr.mxu0 0.0
        %2550 = vmatpush1.msra.mxu0 0.0
        %2551 = vmatprep.subr.mxu0 0.0
        %2552 = vmatpush1.msra.mxu0 0.0
        %2553 = vmatprep.subr.mxu0 0.0
        %2554 = vmatpush1.msra.mxu0 0.0
        %2555 = vmatprep.subr.mxu0 0.0
        %2556 = vmatpush1.msra.mxu0 0.0
        %2557 = vmatprep.subr.mxu0 0.0
        %2558 = vmatpush1.msra.mxu0 0.0
        %2559 = vmatprep.subr.mxu0 0.0
        %2560 = vmatpush1.msra.mxu0 0.0
        %2561 = vmatprep.subr.mxu0 0.0
        %2562 = vmatpush1.msra.mxu0 0.0
        %2563 = vmatprep.subr.mxu0 0.0
        %2564 = vmatpush1.msra.mxu0 0.0
        %2565 = vmatprep.mubr.f32.mxu0 0.0
        %2566 = vmatmul.mubr.f32.gmra.mrb[0].mxu0 %v2144
        %v2567 = vpop.f32.mrb[0].mxu0
        %v2568 = vadd.f32 0.0, %v2567
        %v2569 = vpop.f32.mrb[0].mxu0
        %v2570 = vadd.f32 0.0, %v2569
        %2571 = vdwg.mxu0
        %2572 = vmatprep.subr.mxu0 %v344
        %2573 = vmatpush1.msra.mxu0 %v343
        %2574 = vmatprep.subr.mxu0 0.0
        %2575 = vmatpush1.msra.mxu0 0.0
        %2576 = vmatprep.subr.mxu0 0.0
        %2577 = vmatpush1.msra.mxu0 0.0
        %2578 = vmatprep.subr.mxu0 0.0
        %2579 = vmatpush1.msra.mxu0 0.0
        %2580 = vmatprep.subr.mxu0 0.0
        %2581 = vmatpush1.msra.mxu0 0.0
        %2582 = vmatprep.subr.mxu0 0.0
        %2583 = vmatpush1.msra.mxu0 0.0
        %2584 = vmatprep.subr.mxu0 0.0
        %2585 = vmatpush1.msra.mxu0 0.0
        %2586 = vmatprep.subr.mxu0 0.0
        %2587 = vmatpush1.msra.mxu0 0.0
        %2588 = vmatprep.subr.mxu0 0.0
        %2589 = vmatpush1.msra.mxu0 0.0
        %2590 = vmatprep.subr.mxu0 0.0
        %2591 = vmatpush1.msra.mxu0 0.0
        %2592 = vmatprep.subr.mxu0 0.0
        %2593 = vmatpush1.msra.mxu0 0.0
        %2594 = vmatprep.subr.mxu0 0.0
        %2595 = vmatpush1.msra.mxu0 0.0
        %2596 = vmatprep.subr.mxu0 0.0
        %2597 = vmatpush1.msra.mxu0 0.0
        %2598 = vmatprep.subr.mxu0 0.0
        %2599 = vmatpush1.msra.mxu0 0.0
        %2600 = vmatprep.subr.mxu0 0.0
        %2601 = vmatpush1.msra.mxu0 0.0
        %2602 = vmatprep.subr.mxu0 0.0
        %2603 = vmatpush1.msra.mxu0 0.0
        %2604 = vmatprep.subr.mxu0 0.0
        %2605 = vmatpush1.msra.mxu0 0.0
        %2606 = vmatprep.subr.mxu0 0.0
        %2607 = vmatpush1.msra.mxu0 0.0
        %2608 = vmatprep.subr.mxu0 0.0
        %2609 = vmatpush1.msra.mxu0 0.0
        %2610 = vmatprep.subr.mxu0 0.0
        %2611 = vmatpush1.msra.mxu0 0.0
        %2612 = vmatprep.subr.mxu0 0.0
        %2613 = vmatpush1.msra.mxu0 0.0
        %2614 = vmatprep.subr.mxu0 0.0
        %2615 = vmatpush1.msra.mxu0 0.0
        %2616 = vmatprep.subr.mxu0 0.0
        %2617 = vmatpush1.msra.mxu0 0.0
        %2618 = vmatprep.subr.mxu0 0.0
        %2619 = vmatpush1.msra.mxu0 0.0
        %2620 = vmatprep.subr.mxu0 0.0
        %2621 = vmatpush1.msra.mxu0 0.0
        %2622 = vmatprep.subr.mxu0 0.0
        %2623 = vmatpush1.msra.mxu0 0.0
        %2624 = vmatprep.subr.mxu0 0.0
        %2625 = vmatpush1.msra.mxu0 0.0
        %2626 = vmatprep.subr.mxu0 0.0
        %2627 = vmatpush1.msra.mxu0 0.0
        %2628 = vmatprep.subr.mxu0 0.0
        %2629 = vmatpush1.msra.mxu0 0.0
        %2630 = vmatprep.subr.mxu0 0.0
        %2631 = vmatpush1.msra.mxu0 0.0
        %2632 = vmatprep.subr.mxu0 0.0
        %2633 = vmatpush1.msra.mxu0 0.0
        %2634 = vmatprep.subr.mxu0 0.0
        %2635 = vmatpush1.msra.mxu0 0.0
        %2636 = vmatprep.mubr.f32.mxu0 0.0
        %2637 = vmatmul.mubr.f32.gmra.mrb[0].mxu0 %v2144
        %v2638 = vpop.f32.mrb[0].mxu0
        %v2639 = vadd.f32 0.0, %v2638
        %v2640 = vpop.f32.mrb[0].mxu0
        %v2641 = vadd.f32 0.0, %v2640
        %2642 = vdwg.mxu0
        %2643 = vmatprep.subr.mxu0 %v346
        %2644 = vmatpush1.msra.mxu0 %v345
        %2645 = vmatprep.subr.mxu0 0.0
        %2646 = vmatpush1.msra.mxu0 0.0
        %2647 = vmatprep.subr.mxu0 0.0
        %2648 = vmatpush1.msra.mxu0 0.0
        %2649 = vmatprep.subr.mxu0 0.0
        %2650 = vmatpush1.msra.mxu0 0.0
        %2651 = vmatprep.subr.mxu0 0.0
        %2652 = vmatpush1.msra.mxu0 0.0
        %2653 = vmatprep.subr.mxu0 0.0
        %2654 = vmatpush1.msra.mxu0 0.0
        %2655 = vmatprep.subr.mxu0 0.0
        %2656 = vmatpush1.msra.mxu0 0.0
        %2657 = vmatprep.subr.mxu0 0.0
        %2658 = vmatpush1.msra.mxu0 0.0
        %2659 = vmatprep.subr.mxu0 0.0
        %2660 = vmatpush1.msra.mxu0 0.0
        %2661 = vmatprep.subr.mxu0 0.0
        %2662 = vmatpush1.msra.mxu0 0.0
        %2663 = vmatprep.subr.mxu0 0.0
        %2664 = vmatpush1.msra.mxu0 0.0
        %2665 = vmatprep.subr.mxu0 0.0
        %2666 = vmatpush1.msra.mxu0 0.0
        %2667 = vmatprep.subr.mxu0 0.0
        %2668 = vmatpush1.msra.mxu0 0.0
        %2669 = vmatprep.subr.mxu0 0.0
        %2670 = vmatpush1.msra.mxu0 0.0
        %2671 = vmatprep.subr.mxu0 0.0
        %2672 = vmatpush1.msra.mxu0 0.0
        %2673 = vmatprep.subr.mxu0 0.0
        %2674 = vmatpush1.msra.mxu0 0.0
        %2675 = vmatprep.subr.mxu0 0.0
        %2676 = vmatpush1.msra.mxu0 0.0
        %2677 = vmatprep.subr.mxu0 0.0
        %2678 = vmatpush1.msra.mxu0 0.0
        %2679 = vmatprep.subr.mxu0 0.0
        %2680 = vmatpush1.msra.mxu0 0.0
        %2681 = vmatprep.subr.mxu0 0.0
        %2682 = vmatpush1.msra.mxu0 0.0
        %2683 = vmatprep.subr.mxu0 0.0
        %2684 = vmatpush1.msra.mxu0 0.0
        %2685 = vmatprep.subr.mxu0 0.0
        %2686 = vmatpush1.msra.mxu0 0.0
        %2687 = vmatprep.subr.mxu0 0.0
        %2688 = vmatpush1.msra.mxu0 0.0
        %2689 = vmatprep.subr.mxu0 0.0
        %2690 = vmatpush1.msra.mxu0 0.0
        %2691 = vmatprep.subr.mxu0 0.0
        %2692 = vmatpush1.msra.mxu0 0.0
        %2693 = vmatprep.subr.mxu0 0.0
        %2694 = vmatpush1.msra.mxu0 0.0
        %2695 = vmatprep.subr.mxu0 0.0
        %2696 = vmatpush1.msra.mxu0 0.0
        %2697 = vmatprep.subr.mxu0 0.0
        %2698 = vmatpush1.msra.mxu0 0.0
        %2699 = vmatprep.subr.mxu0 0.0
        %2700 = vmatpush1.msra.mxu0 0.0
        %2701 = vmatprep.subr.mxu0 0.0
        %2702 = vmatpush1.msra.mxu0 0.0
        %2703 = vmatprep.subr.mxu0 0.0
        %2704 = vmatpush1.msra.mxu0 0.0
        %2705 = vmatprep.subr.mxu0 0.0
        %2706 = vmatpush1.msra.mxu0 0.0
        %2707 = vmatprep.mubr.f32.mxu0 0.0
        %2708 = vmatmul.mubr.f32.gmra.mrb[0].mxu0 %v2144
        %v2709 = vpop.f32.mrb[0].mxu0
        %v2710 = vadd.f32 0.0, %v2709
        %v2711 = vpop.f32.mrb[0].mxu0
        %v2712 = vadd.f32 0.0, %v2711
        %2713 = vdwg.mxu0
        %v2714 = vadd.f32 %v2125, %v2213
        %v2715 = vadd.f32 %v2126, %v2215
        %v2716 = vadd.f32 %v2127, %v2284
        %v2717 = vadd.f32 %v2128, %v2286
        %v2718 = vadd.f32 %v2129, %v2355
        %v2719 = vadd.f32 %v2130, %v2357
        %v2720 = vadd.f32 %v2131, %v2426
        %v2721 = vadd.f32 %v2132, %v2428
        %v2722 = vadd.f32 %v2133, %v2497
        %v2723 = vadd.f32 %v2134, %v2499
        %v2724 = vadd.f32 %v2135, %v2568
        %v2725 = vadd.f32 %v2136, %v2570
        %v2726 = vadd.f32 %v2137, %v2639
        %v2727 = vadd.f32 %v2138, %v2641
        %v2728 = vadd.f32 %v2139, %v2710
        %v2729 = vadd.f32 %v2140, %v2712
        %s2730 = scalar_lea.vmem %s3, 32
        %v2731 = vld [vmem:[%s2730] sm:$0xff]
        %v2733 = vsel %vm409, %v2731, 0
        %2735 = vmatprep.subr.mxu0 %v333
        %2736 = vmatpush1.msra.mxu0 %v332
        %2737 = vmatprep.subr.mxu0 0.0
        %2738 = vmatpush1.msra.mxu0 0.0
        %2739 = vmatprep.subr.mxu0 0.0
        %2740 = vmatpush1.msra.mxu0 0.0
        %2741 = vmatprep.subr.mxu0 0.0
        %2742 = vmatpush1.msra.mxu0 0.0
        %2743 = vmatprep.subr.mxu0 0.0
        %2744 = vmatpush1.msra.mxu0 0.0
        %2745 = vmatprep.subr.mxu0 0.0
        %2746 = vmatpush1.msra.mxu0 0.0
        %2747 = vmatprep.subr.mxu0 0.0
        %2748 = vmatpush1.msra.mxu0 0.0
        %2749 = vmatprep.subr.mxu0 0.0
        %2750 = vmatpush1.msra.mxu0 0.0
        %2751 = vmatprep.subr.mxu0 0.0
        %2752 = vmatpush1.msra.mxu0 0.0
        %2753 = vmatprep.subr.mxu0 0.0
        %2754 = vmatpush1.msra.mxu0 0.0
        %2755 = vmatprep.subr.mxu0 0.0
        %2756 = vmatpush1.msra.mxu0 0.0
        %2757 = vmatprep.subr.mxu0 0.0
        %2758 = vmatpush1.msra.mxu0 0.0
        %2759 = vmatprep.subr.mxu0 0.0
        %2760 = vmatpush1.msra.mxu0 0.0
        %2761 = vmatprep.subr.mxu0 0.0
        %2762 = vmatpush1.msra.mxu0 0.0
        %2763 = vmatprep.subr.mxu0 0.0
        %2764 = vmatpush1.msra.mxu0 0.0
        %2765 = vmatprep.subr.mxu0 0.0
        %2766 = vmatpush1.msra.mxu0 0.0
        %2767 = vmatprep.subr.mxu0 0.0
        %2768 = vmatpush1.msra.mxu0 0.0
        %2769 = vmatprep.subr.mxu0 0.0
        %2770 = vmatpush1.msra.mxu0 0.0
        %2771 = vmatprep.subr.mxu0 0.0
        %2772 = vmatpush1.msra.mxu0 0.0
        %2773 = vmatprep.subr.mxu0 0.0
        %2774 = vmatpush1.msra.mxu0 0.0
        %2775 = vmatprep.subr.mxu0 0.0
        %2776 = vmatpush1.msra.mxu0 0.0
        %2777 = vmatprep.subr.mxu0 0.0
        %2778 = vmatpush1.msra.mxu0 0.0
        %2779 = vmatprep.subr.mxu0 0.0
        %2780 = vmatpush1.msra.mxu0 0.0
        %2781 = vmatprep.subr.mxu0 0.0
        %2782 = vmatpush1.msra.mxu0 0.0
        %2783 = vmatprep.subr.mxu0 0.0
        %2784 = vmatpush1.msra.mxu0 0.0
        %2785 = vmatprep.subr.mxu0 0.0
        %2786 = vmatpush1.msra.mxu0 0.0
        %2787 = vmatprep.subr.mxu0 0.0
        %2788 = vmatpush1.msra.mxu0 0.0
        %2789 = vmatprep.subr.mxu0 0.0
        %2790 = vmatpush1.msra.mxu0 0.0
        %2791 = vmatprep.subr.mxu0 0.0
        %2792 = vmatpush1.msra.mxu0 0.0
        %2793 = vmatprep.subr.mxu0 0.0
        %2794 = vmatpush1.msra.mxu0 0.0
        %2795 = vmatprep.subr.mxu0 0.0
        %2796 = vmatpush1.msra.mxu0 0.0
        %2797 = vmatprep.subr.mxu0 0.0
        %2798 = vmatpush1.msra.mxu0 0.0
        %2799 = vmatprep.mubr.f32.mxu0 0.0
        %2800 = vmatmul.mubr.f32.gmra.mrb[0].mxu0 %v2733
        %v2801 = vpop.f32.mrb[0].mxu0
        %v2802 = vadd.f32 0.0, %v2801
        %v2803 = vpop.f32.mrb[0].mxu0
        %v2804 = vadd.f32 0.0, %v2803
        %2805 = vdwg.mxu0
        %2806 = vmatprep.subr.mxu0 %v335
        %2807 = vmatpush1.msra.mxu0 %v334
        %2808 = vmatprep.subr.mxu0 0.0
        %2809 = vmatpush1.msra.mxu0 0.0
        %2810 = vmatprep.subr.mxu0 0.0
        %2811 = vmatpush1.msra.mxu0 0.0
        %2812 = vmatprep.subr.mxu0 0.0
        %2813 = vmatpush1.msra.mxu0 0.0
        %2814 = vmatprep.subr.mxu0 0.0
        %2815 = vmatpush1.msra.mxu0 0.0
        %2816 = vmatprep.subr.mxu0 0.0
        %2817 = vmatpush1.msra.mxu0 0.0
        %2818 = vmatprep.subr.mxu0 0.0
        %2819 = vmatpush1.msra.mxu0 0.0
        %2820 = vmatprep.subr.mxu0 0.0
        %2821 = vmatpush1.msra.mxu0 0.0
        %2822 = vmatprep.subr.mxu0 0.0
        %2823 = vmatpush1.msra.mxu0 0.0
        %2824 = vmatprep.subr.mxu0 0.0
        %2825 = vmatpush1.msra.mxu0 0.0
        %2826 = vmatprep.subr.mxu0 0.0
        %2827 = vmatpush1.msra.mxu0 0.0
        %2828 = vmatprep.subr.mxu0 0.0
        %2829 = vmatpush1.msra.mxu0 0.0
        %2830 = vmatprep.subr.mxu0 0.0
        %2831 = vmatpush1.msra.mxu0 0.0
        %2832 = vmatprep.subr.mxu0 0.0
        %2833 = vmatpush1.msra.mxu0 0.0
        %2834 = vmatprep.subr.mxu0 0.0
        %2835 = vmatpush1.msra.mxu0 0.0
        %2836 = vmatprep.subr.mxu0 0.0
        %2837 = vmatpush1.msra.mxu0 0.0
        %2838 = vmatprep.subr.mxu0 0.0
        %2839 = vmatpush1.msra.mxu0 0.0
        %2840 = vmatprep.subr.mxu0 0.0
        %2841 = vmatpush1.msra.mxu0 0.0
        %2842 = vmatprep.subr.mxu0 0.0
        %2843 = vmatpush1.msra.mxu0 0.0
        %2844 = vmatprep.subr.mxu0 0.0
        %2845 = vmatpush1.msra.mxu0 0.0
        %2846 = vmatprep.subr.mxu0 0.0
        %2847 = vmatpush1.msra.mxu0 0.0
        %2848 = vmatprep.subr.mxu0 0.0
        %2849 = vmatpush1.msra.mxu0 0.0
        %2850 = vmatprep.subr.mxu0 0.0
        %2851 = vmatpush1.msra.mxu0 0.0
        %2852 = vmatprep.subr.mxu0 0.0
        %2853 = vmatpush1.msra.mxu0 0.0
        %2854 = vmatprep.subr.mxu0 0.0
        %2855 = vmatpush1.msra.mxu0 0.0
        %2856 = vmatprep.subr.mxu0 0.0
        %2857 = vmatpush1.msra.mxu0 0.0
        %2858 = vmatprep.subr.mxu0 0.0
        %2859 = vmatpush1.msra.mxu0 0.0
        %2860 = vmatprep.subr.mxu0 0.0
        %2861 = vmatpush1.msra.mxu0 0.0
        %2862 = vmatprep.subr.mxu0 0.0
        %2863 = vmatpush1.msra.mxu0 0.0
        %2864 = vmatprep.subr.mxu0 0.0
        %2865 = vmatpush1.msra.mxu0 0.0
        %2866 = vmatprep.subr.mxu0 0.0
        %2867 = vmatpush1.msra.mxu0 0.0
        %2868 = vmatprep.subr.mxu0 0.0
        %2869 = vmatpush1.msra.mxu0 0.0
        %2870 = vmatprep.mubr.f32.mxu0 0.0
        %2871 = vmatmul.mubr.f32.gmra.mrb[0].mxu0 %v2733
        %v2872 = vpop.f32.mrb[0].mxu0
        %v2873 = vadd.f32 0.0, %v2872
        %v2874 = vpop.f32.mrb[0].mxu0
        %v2875 = vadd.f32 0.0, %v2874
        %2876 = vdwg.mxu0
        %2877 = vmatprep.subr.mxu0 %v337
        %2878 = vmatpush1.msra.mxu0 %v336
        %2879 = vmatprep.subr.mxu0 0.0
        %2880 = vmatpush1.msra.mxu0 0.0
        %2881 = vmatprep.subr.mxu0 0.0
        %2882 = vmatpush1.msra.mxu0 0.0
        %2883 = vmatprep.subr.mxu0 0.0
        %2884 = vmatpush1.msra.mxu0 0.0
        %2885 = vmatprep.subr.mxu0 0.0
        %2886 = vmatpush1.msra.mxu0 0.0
        %2887 = vmatprep.subr.mxu0 0.0
        %2888 = vmatpush1.msra.mxu0 0.0
        %2889 = vmatprep.subr.mxu0 0.0
        %2890 = vmatpush1.msra.mxu0 0.0
        %2891 = vmatprep.subr.mxu0 0.0
        %2892 = vmatpush1.msra.mxu0 0.0
        %2893 = vmatprep.subr.mxu0 0.0
        %2894 = vmatpush1.msra.mxu0 0.0
        %2895 = vmatprep.subr.mxu0 0.0
        %2896 = vmatpush1.msra.mxu0 0.0
        %2897 = vmatprep.subr.mxu0 0.0
        %2898 = vmatpush1.msra.mxu0 0.0
        %2899 = vmatprep.subr.mxu0 0.0
        %2900 = vmatpush1.msra.mxu0 0.0
        %2901 = vmatprep.subr.mxu0 0.0
        %2902 = vmatpush1.msra.mxu0 0.0
        %2903 = vmatprep.subr.mxu0 0.0
        %2904 = vmatpush1.msra.mxu0 0.0
        %2905 = vmatprep.subr.mxu0 0.0
        %2906 = vmatpush1.msra.mxu0 0.0
        %2907 = vmatprep.subr.mxu0 0.0
        %2908 = vmatpush1.msra.mxu0 0.0
        %2909 = vmatprep.subr.mxu0 0.0
        %2910 = vmatpush1.msra.mxu0 0.0
        %2911 = vmatprep.subr.mxu0 0.0
        %2912 = vmatpush1.msra.mxu0 0.0
        %2913 = vmatprep.subr.mxu0 0.0
        %2914 = vmatpush1.msra.mxu0 0.0
        %2915 = vmatprep.subr.mxu0 0.0
        %2916 = vmatpush1.msra.mxu0 0.0
        %2917 = vmatprep.subr.mxu0 0.0
        %2918 = vmatpush1.msra.mxu0 0.0
        %2919 = vmatprep.subr.mxu0 0.0
        %2920 = vmatpush1.msra.mxu0 0.0
        %2921 = vmatprep.subr.mxu0 0.0
        %2922 = vmatpush1.msra.mxu0 0.0
        %2923 = vmatprep.subr.mxu0 0.0
        %2924 = vmatpush1.msra.mxu0 0.0
        %2925 = vmatprep.subr.mxu0 0.0
        %2926 = vmatpush1.msra.mxu0 0.0
        %2927 = vmatprep.subr.mxu0 0.0
        %2928 = vmatpush1.msra.mxu0 0.0
        %2929 = vmatprep.subr.mxu0 0.0
        %2930 = vmatpush1.msra.mxu0 0.0
        %2931 = vmatprep.subr.mxu0 0.0
        %2932 = vmatpush1.msra.mxu0 0.0
        %2933 = vmatprep.subr.mxu0 0.0
        %2934 = vmatpush1.msra.mxu0 0.0
        %2935 = vmatprep.subr.mxu0 0.0
        %2936 = vmatpush1.msra.mxu0 0.0
        %2937 = vmatprep.subr.mxu0 0.0
        %2938 = vmatpush1.msra.mxu0 0.0
        %2939 = vmatprep.subr.mxu0 0.0
        %2940 = vmatpush1.msra.mxu0 0.0
        %2941 = vmatprep.mubr.f32.mxu0 0.0
        %2942 = vmatmul.mubr.f32.gmra.mrb[0].mxu0 %v2733
        %v2943 = vpop.f32.mrb[0].mxu0
        %v2944 = vadd.f32 0.0, %v2943
        %v2945 = vpop.f32.mrb[0].mxu0
        %v2946 = vadd.f32 0.0, %v2945
        %2947 = vdwg.mxu0
        %2948 = vmatprep.subr.mxu0 %v339
        %2949 = vmatpush1.msra.mxu0 %v338
        %2950 = vmatprep.subr.mxu0 0.0
        %2951 = vmatpush1.msra.mxu0 0.0
        %2952 = vmatprep.subr.mxu0 0.0
        %2953 = vmatpush1.msra.mxu0 0.0
        %2954 = vmatprep.subr.mxu0 0.0
        %2955 = vmatpush1.msra.mxu0 0.0
        %2956 = vmatprep.subr.mxu0 0.0
        %2957 = vmatpush1.msra.mxu0 0.0
        %2958 = vmatprep.subr.mxu0 0.0
        %2959 = vmatpush1.msra.mxu0 0.0
        %2960 = vmatprep.subr.mxu0 0.0
        %2961 = vmatpush1.msra.mxu0 0.0
        %2962 = vmatprep.subr.mxu0 0.0
        %2963 = vmatpush1.msra.mxu0 0.0
        %2964 = vmatprep.subr.mxu0 0.0
        %2965 = vmatpush1.msra.mxu0 0.0
        %2966 = vmatprep.subr.mxu0 0.0
        %2967 = vmatpush1.msra.mxu0 0.0
        %2968 = vmatprep.subr.mxu0 0.0
        %2969 = vmatpush1.msra.mxu0 0.0
        %2970 = vmatprep.subr.mxu0 0.0
        %2971 = vmatpush1.msra.mxu0 0.0
        %2972 = vmatprep.subr.mxu0 0.0
        %2973 = vmatpush1.msra.mxu0 0.0
        %2974 = vmatprep.subr.mxu0 0.0
        %2975 = vmatpush1.msra.mxu0 0.0
        %2976 = vmatprep.subr.mxu0 0.0
        %2977 = vmatpush1.msra.mxu0 0.0
        %2978 = vmatprep.subr.mxu0 0.0
        %2979 = vmatpush1.msra.mxu0 0.0
        %2980 = vmatprep.subr.mxu0 0.0
        %2981 = vmatpush1.msra.mxu0 0.0
        %2982 = vmatprep.subr.mxu0 0.0
        %2983 = vmatpush1.msra.mxu0 0.0
        %2984 = vmatprep.subr.mxu0 0.0
        %2985 = vmatpush1.msra.mxu0 0.0
        %2986 = vmatprep.subr.mxu0 0.0
        %2987 = vmatpush1.msra.mxu0 0.0
        %2988 = vmatprep.subr.mxu0 0.0
        %2989 = vmatpush1.msra.mxu0 0.0
        %2990 = vmatprep.subr.mxu0 0.0
        %2991 = vmatpush1.msra.mxu0 0.0
        %2992 = vmatprep.subr.mxu0 0.0
        %2993 = vmatpush1.msra.mxu0 0.0
        %2994 = vmatprep.subr.mxu0 0.0
        %2995 = vmatpush1.msra.mxu0 0.0
        %2996 = vmatprep.subr.mxu0 0.0
        %2997 = vmatpush1.msra.mxu0 0.0
        %2998 = vmatprep.subr.mxu0 0.0
        %2999 = vmatpush1.msra.mxu0 0.0
        %3000 = vmatprep.subr.mxu0 0.0
        %3001 = vmatpush1.msra.mxu0 0.0
        %3002 = vmatprep.subr.mxu0 0.0
        %3003 = vmatpush1.msra.mxu0 0.0
        %3004 = vmatprep.subr.mxu0 0.0
        %3005 = vmatpush1.msra.mxu0 0.0
        %3006 = vmatprep.subr.mxu0 0.0
        %3007 = vmatpush1.msra.mxu0 0.0
        %3008 = vmatprep.subr.mxu0 0.0
        %3009 = vmatpush1.msra.mxu0 0.0
        %3010 = vmatprep.subr.mxu0 0.0
        %3011 = vmatpush1.msra.mxu0 0.0
        %3012 = vmatprep.mubr.f32.mxu0 0.0
        %3013 = vmatmul.mubr.f32.gmra.mrb[0].mxu0 %v2733
        %v3014 = vpop.f32.mrb[0].mxu0
        %v3015 = vadd.f32 0.0, %v3014
        %v3016 = vpop.f32.mrb[0].mxu0
        %v3017 = vadd.f32 0.0, %v3016
        %3018 = vdwg.mxu0
        %3019 = vmatprep.subr.mxu0 %v341
        %3020 = vmatpush1.msra.mxu0 %v340
        %3021 = vmatprep.subr.mxu0 0.0
        %3022 = vmatpush1.msra.mxu0 0.0
        %3023 = vmatprep.subr.mxu0 0.0
        %3024 = vmatpush1.msra.mxu0 0.0
        %3025 = vmatprep.subr.mxu0 0.0
        %3026 = vmatpush1.msra.mxu0 0.0
        %3027 = vmatprep.subr.mxu0 0.0
        %3028 = vmatpush1.msra.mxu0 0.0
        %3029 = vmatprep.subr.mxu0 0.0
        %3030 = vmatpush1.msra.mxu0 0.0
        %3031 = vmatprep.subr.mxu0 0.0
        %3032 = vmatpush1.msra.mxu0 0.0
        %3033 = vmatprep.subr.mxu0 0.0
        %3034 = vmatpush1.msra.mxu0 0.0
        %3035 = vmatprep.subr.mxu0 0.0
        %3036 = vmatpush1.msra.mxu0 0.0
        %3037 = vmatprep.subr.mxu0 0.0
        %3038 = vmatpush1.msra.mxu0 0.0
        %3039 = vmatprep.subr.mxu0 0.0
        %3040 = vmatpush1.msra.mxu0 0.0
        %3041 = vmatprep.subr.mxu0 0.0
        %3042 = vmatpush1.msra.mxu0 0.0
        %3043 = vmatprep.subr.mxu0 0.0
        %3044 = vmatpush1.msra.mxu0 0.0
        %3045 = vmatprep.subr.mxu0 0.0
        %3046 = vmatpush1.msra.mxu0 0.0
        %3047 = vmatprep.subr.mxu0 0.0
        %3048 = vmatpush1.msra.mxu0 0.0
        %3049 = vmatprep.subr.mxu0 0.0
        %3050 = vmatpush1.msra.mxu0 0.0
        %3051 = vmatprep.subr.mxu0 0.0
        %3052 = vmatpush1.msra.mxu0 0.0
        %3053 = vmatprep.subr.mxu0 0.0
        %3054 = vmatpush1.msra.mxu0 0.0
        %3055 = vmatprep.subr.mxu0 0.0
        %3056 = vmatpush1.msra.mxu0 0.0
        %3057 = vmatprep.subr.mxu0 0.0
        %3058 = vmatpush1.msra.mxu0 0.0
        %3059 = vmatprep.subr.mxu0 0.0
        %3060 = vmatpush1.msra.mxu0 0.0
        %3061 = vmatprep.subr.mxu0 0.0
        %3062 = vmatpush1.msra.mxu0 0.0
        %3063 = vmatprep.subr.mxu0 0.0
        %3064 = vmatpush1.msra.mxu0 0.0
        %3065 = vmatprep.subr.mxu0 0.0
        %3066 = vmatpush1.msra.mxu0 0.0
        %3067 = vmatprep.subr.mxu0 0.0
        %3068 = vmatpush1.msra.mxu0 0.0
        %3069 = vmatprep.subr.mxu0 0.0
        %3070 = vmatpush1.msra.mxu0 0.0
        %3071 = vmatprep.subr.mxu0 0.0
        %3072 = vmatpush1.msra.mxu0 0.0
        %3073 = vmatprep.subr.mxu0 0.0
        %3074 = vmatpush1.msra.mxu0 0.0
        %3075 = vmatprep.subr.mxu0 0.0
        %3076 = vmatpush1.msra.mxu0 0.0
        %3077 = vmatprep.subr.mxu0 0.0
        %3078 = vmatpush1.msra.mxu0 0.0
        %3079 = vmatprep.subr.mxu0 0.0
        %3080 = vmatpush1.msra.mxu0 0.0
        %3081 = vmatprep.subr.mxu0 0.0
        %3082 = vmatpush1.msra.mxu0 0.0
        %3083 = vmatprep.mubr.f32.mxu0 0.0
        %3084 = vmatmul.mubr.f32.gmra.mrb[0].mxu0 %v2733
        %v3085 = vpop.f32.mrb[0].mxu0
        %v3086 = vadd.f32 0.0, %v3085
        %v3087 = vpop.f32.mrb[0].mxu0
        %v3088 = vadd.f32 0.0, %v3087
        %3089 = vdwg.mxu0
        %3090 = vmatprep.subr.mxu0 %v343
        %3091 = vmatpush1.msra.mxu0 %v342
        %3092 = vmatprep.subr.mxu0 0.0
        %3093 = vmatpush1.msra.mxu0 0.0
        %3094 = vmatprep.subr.mxu0 0.0
        %3095 = vmatpush1.msra.mxu0 0.0
        %3096 = vmatprep.subr.mxu0 0.0
        %3097 = vmatpush1.msra.mxu0 0.0
        %3098 = vmatprep.subr.mxu0 0.0
        %3099 = vmatpush1.msra.mxu0 0.0
        %3100 = vmatprep.subr.mxu0 0.0
        %3101 = vmatpush1.msra.mxu0 0.0
        %3102 = vmatprep.subr.mxu0 0.0
        %3103 = vmatpush1.msra.mxu0 0.0
        %3104 = vmatprep.subr.mxu0 0.0
        %3105 = vmatpush1.msra.mxu0 0.0
        %3106 = vmatprep.subr.mxu0 0.0
        %3107 = vmatpush1.msra.mxu0 0.0
        %3108 = vmatprep.subr.mxu0 0.0
        %3109 = vmatpush1.msra.mxu0 0.0
        %3110 = vmatprep.subr.mxu0 0.0
        %3111 = vmatpush1.msra.mxu0 0.0
        %3112 = vmatprep.subr.mxu0 0.0
        %3113 = vmatpush1.msra.mxu0 0.0
        %3114 = vmatprep.subr.mxu0 0.0
        %3115 = vmatpush1.msra.mxu0 0.0
        %3116 = vmatprep.subr.mxu0 0.0
        %3117 = vmatpush1.msra.mxu0 0.0
        %3118 = vmatprep.subr.mxu0 0.0
        %3119 = vmatpush1.msra.mxu0 0.0
        %3120 = vmatprep.subr.mxu0 0.0
        %3121 = vmatpush1.msra.mxu0 0.0
        %3122 = vmatprep.subr.mxu0 0.0
        %3123 = vmatpush1.msra.mxu0 0.0
        %3124 = vmatprep.subr.mxu0 0.0
        %3125 = vmatpush1.msra.mxu0 0.0
        %3126 = vmatprep.subr.mxu0 0.0
        %3127 = vmatpush1.msra.mxu0 0.0
        %3128 = vmatprep.subr.mxu0 0.0
        %3129 = vmatpush1.msra.mxu0 0.0
        %3130 = vmatprep.subr.mxu0 0.0
        %3131 = vmatpush1.msra.mxu0 0.0
        %3132 = vmatprep.subr.mxu0 0.0
        %3133 = vmatpush1.msra.mxu0 0.0
        %3134 = vmatprep.subr.mxu0 0.0
        %3135 = vmatpush1.msra.mxu0 0.0
        %3136 = vmatprep.subr.mxu0 0.0
        %3137 = vmatpush1.msra.mxu0 0.0
        %3138 = vmatprep.subr.mxu0 0.0
        %3139 = vmatpush1.msra.mxu0 0.0
        %3140 = vmatprep.subr.mxu0 0.0
        %3141 = vmatpush1.msra.mxu0 0.0
        %3142 = vmatprep.subr.mxu0 0.0
        %3143 = vmatpush1.msra.mxu0 0.0
        %3144 = vmatprep.subr.mxu0 0.0
        %3145 = vmatpush1.msra.mxu0 0.0
        %3146 = vmatprep.subr.mxu0 0.0
        %3147 = vmatpush1.msra.mxu0 0.0
        %3148 = vmatprep.subr.mxu0 0.0
        %3149 = vmatpush1.msra.mxu0 0.0
        %3150 = vmatprep.subr.mxu0 0.0
        %3151 = vmatpush1.msra.mxu0 0.0
        %3152 = vmatprep.subr.mxu0 0.0
        %3153 = vmatpush1.msra.mxu0 0.0
        %3154 = vmatprep.mubr.f32.mxu0 0.0
        %3155 = vmatmul.mubr.f32.gmra.mrb[0].mxu0 %v2733
        %v3156 = vpop.f32.mrb[0].mxu0
        %v3157 = vadd.f32 0.0, %v3156
        %v3158 = vpop.f32.mrb[0].mxu0
        %v3159 = vadd.f32 0.0, %v3158
        %3160 = vdwg.mxu0
        %3161 = vmatprep.subr.mxu0 %v345
        %3162 = vmatpush1.msra.mxu0 %v344
        %3163 = vmatprep.subr.mxu0 0.0
        %3164 = vmatpush1.msra.mxu0 0.0
        %3165 = vmatprep.subr.mxu0 0.0
        %3166 = vmatpush1.msra.mxu0 0.0
        %3167 = vmatprep.subr.mxu0 0.0
        %3168 = vmatpush1.msra.mxu0 0.0
        %3169 = vmatprep.subr.mxu0 0.0
        %3170 = vmatpush1.msra.mxu0 0.0
        %3171 = vmatprep.subr.mxu0 0.0
        %3172 = vmatpush1.msra.mxu0 0.0
        %3173 = vmatprep.subr.mxu0 0.0
        %3174 = vmatpush1.msra.mxu0 0.0
        %3175 = vmatprep.subr.mxu0 0.0
        %3176 = vmatpush1.msra.mxu0 0.0
        %3177 = vmatprep.subr.mxu0 0.0
        %3178 = vmatpush1.msra.mxu0 0.0
        %3179 = vmatprep.subr.mxu0 0.0
        %3180 = vmatpush1.msra.mxu0 0.0
        %3181 = vmatprep.subr.mxu0 0.0
        %3182 = vmatpush1.msra.mxu0 0.0
        %3183 = vmatprep.subr.mxu0 0.0
        %3184 = vmatpush1.msra.mxu0 0.0
        %3185 = vmatprep.subr.mxu0 0.0
        %3186 = vmatpush1.msra.mxu0 0.0
        %3187 = vmatprep.subr.mxu0 0.0
        %3188 = vmatpush1.msra.mxu0 0.0
        %3189 = vmatprep.subr.mxu0 0.0
        %3190 = vmatpush1.msra.mxu0 0.0
        %3191 = vmatprep.subr.mxu0 0.0
        %3192 = vmatpush1.msra.mxu0 0.0
        %3193 = vmatprep.subr.mxu0 0.0
        %3194 = vmatpush1.msra.mxu0 0.0
        %3195 = vmatprep.subr.mxu0 0.0
        %3196 = vmatpush1.msra.mxu0 0.0
        %3197 = vmatprep.subr.mxu0 0.0
        %3198 = vmatpush1.msra.mxu0 0.0
        %3199 = vmatprep.subr.mxu0 0.0
        %3200 = vmatpush1.msra.mxu0 0.0
        %3201 = vmatprep.subr.mxu0 0.0
        %3202 = vmatpush1.msra.mxu0 0.0
        %3203 = vmatprep.subr.mxu0 0.0
        %3204 = vmatpush1.msra.mxu0 0.0
        %3205 = vmatprep.subr.mxu0 0.0
        %3206 = vmatpush1.msra.mxu0 0.0
        %3207 = vmatprep.subr.mxu0 0.0
        %3208 = vmatpush1.msra.mxu0 0.0
        %3209 = vmatprep.subr.mxu0 0.0
        %3210 = vmatpush1.msra.mxu0 0.0
        %3211 = vmatprep.subr.mxu0 0.0
        %3212 = vmatpush1.msra.mxu0 0.0
        %3213 = vmatprep.subr.mxu0 0.0
        %3214 = vmatpush1.msra.mxu0 0.0
        %3215 = vmatprep.subr.mxu0 0.0
        %3216 = vmatpush1.msra.mxu0 0.0
        %3217 = vmatprep.subr.mxu0 0.0
        %3218 = vmatpush1.msra.mxu0 0.0
        %3219 = vmatprep.subr.mxu0 0.0
        %3220 = vmatpush1.msra.mxu0 0.0
        %3221 = vmatprep.subr.mxu0 0.0
        %3222 = vmatpush1.msra.mxu0 0.0
        %3223 = vmatprep.subr.mxu0 0.0
        %3224 = vmatpush1.msra.mxu0 0.0
        %3225 = vmatprep.mubr.f32.mxu0 0.0
        %3226 = vmatmul.mubr.f32.gmra.mrb[0].mxu0 %v2733
        %v3227 = vpop.f32.mrb[0].mxu0
        %v3228 = vadd.f32 0.0, %v3227
        %v3229 = vpop.f32.mrb[0].mxu0
        %v3230 = vadd.f32 0.0, %v3229
        %3231 = vdwg.mxu0
        %3232 = vmatprep.subr.mxu0 %v347
        %3233 = vmatpush1.msra.mxu0 %v346
        %3234 = vmatprep.subr.mxu0 0.0
        %3235 = vmatpush1.msra.mxu0 0.0
        %3236 = vmatprep.subr.mxu0 0.0
        %3237 = vmatpush1.msra.mxu0 0.0
        %3238 = vmatprep.subr.mxu0 0.0
        %3239 = vmatpush1.msra.mxu0 0.0
        %3240 = vmatprep.subr.mxu0 0.0
        %3241 = vmatpush1.msra.mxu0 0.0
        %3242 = vmatprep.subr.mxu0 0.0
        %3243 = vmatpush1.msra.mxu0 0.0
        %3244 = vmatprep.subr.mxu0 0.0
        %3245 = vmatpush1.msra.mxu0 0.0
        %3246 = vmatprep.subr.mxu0 0.0
        %3247 = vmatpush1.msra.mxu0 0.0
        %3248 = vmatprep.subr.mxu0 0.0
        %3249 = vmatpush1.msra.mxu0 0.0
        %3250 = vmatprep.subr.mxu0 0.0
        %3251 = vmatpush1.msra.mxu0 0.0
        %3252 = vmatprep.subr.mxu0 0.0
        %3253 = vmatpush1.msra.mxu0 0.0
        %3254 = vmatprep.subr.mxu0 0.0
        %3255 = vmatpush1.msra.mxu0 0.0
        %3256 = vmatprep.subr.mxu0 0.0
        %3257 = vmatpush1.msra.mxu0 0.0
        %3258 = vmatprep.subr.mxu0 0.0
        %3259 = vmatpush1.msra.mxu0 0.0
        %3260 = vmatprep.subr.mxu0 0.0
        %3261 = vmatpush1.msra.mxu0 0.0
        %3262 = vmatprep.subr.mxu0 0.0
        %3263 = vmatpush1.msra.mxu0 0.0
        %3264 = vmatprep.subr.mxu0 0.0
        %3265 = vmatpush1.msra.mxu0 0.0
        %3266 = vmatprep.subr.mxu0 0.0
        %3267 = vmatpush1.msra.mxu0 0.0
        %3268 = vmatprep.subr.mxu0 0.0
        %3269 = vmatpush1.msra.mxu0 0.0
        %3270 = vmatprep.subr.mxu0 0.0
        %3271 = vmatpush1.msra.mxu0 0.0
        %3272 = vmatprep.subr.mxu0 0.0
        %3273 = vmatpush1.msra.mxu0 0.0
        %3274 = vmatprep.subr.mxu0 0.0
        %3275 = vmatpush1.msra.mxu0 0.0
        %3276 = vmatprep.subr.mxu0 0.0
        %3277 = vmatpush1.msra.mxu0 0.0
        %3278 = vmatprep.subr.mxu0 0.0
        %3279 = vmatpush1.msra.mxu0 0.0
        %3280 = vmatprep.subr.mxu0 0.0
        %3281 = vmatpush1.msra.mxu0 0.0
        %3282 = vmatprep.subr.mxu0 0.0
        %3283 = vmatpush1.msra.mxu0 0.0
        %3284 = vmatprep.subr.mxu0 0.0
        %3285 = vmatpush1.msra.mxu0 0.0
        %3286 = vmatprep.subr.mxu0 0.0
        %3287 = vmatpush1.msra.mxu0 0.0
        %3288 = vmatprep.subr.mxu0 0.0
        %3289 = vmatpush1.msra.mxu0 0.0
        %3290 = vmatprep.subr.mxu0 0.0
        %3291 = vmatpush1.msra.mxu0 0.0
        %3292 = vmatprep.subr.mxu0 0.0
        %3293 = vmatpush1.msra.mxu0 0.0
        %3294 = vmatprep.subr.mxu0 0.0
        %3295 = vmatpush1.msra.mxu0 0.0
        %3296 = vmatprep.mubr.f32.mxu0 0.0
        %3297 = vmatmul.mubr.f32.gmra.mrb[0].mxu0 %v2733
        %v3298 = vpop.f32.mrb[0].mxu0
        %v3299 = vadd.f32 0.0, %v3298
        %v3300 = vpop.f32.mrb[0].mxu0
        %v3301 = vadd.f32 0.0, %v3300
        %3302 = vdwg.mxu0
        %v3303 = vadd.f32 %v2714, %v2802
        %v3304 = vadd.f32 %v2715, %v2804
        %v3305 = vadd.f32 %v2716, %v2873
        %v3306 = vadd.f32 %v2717, %v2875
        %v3307 = vadd.f32 %v2718, %v2944
        %v3308 = vadd.f32 %v2719, %v2946
        %v3309 = vadd.f32 %v2720, %v3015
        %v3310 = vadd.f32 %v2721, %v3017
        %v3311 = vadd.f32 %v2722, %v3086
        %v3312 = vadd.f32 %v2723, %v3088
        %v3313 = vadd.f32 %v2724, %v3157
        %v3314 = vadd.f32 %v2725, %v3159
        %v3315 = vadd.f32 %v2726, %v3228
        %v3316 = vadd.f32 %v2727, %v3230
        %v3317 = vadd.f32 %v2728, %v3299
        %v3318 = vadd.f32 %v2729, %v3301
        %s3319 = scalar_lea.vmem %s3, 56
        %v3320 = vld [vmem:[%s3319] sm:$0xff]
        %v3322 = vsel %vm409, %v3320, 0
        %3324 = vmatprep.subr.mxu0 %v334
        %3325 = vmatpush1.msra.mxu0 %v333
        %3326 = vmatprep.subr.mxu0 0.0
        %3327 = vmatpush1.msra.mxu0 0.0
        %3328 = vmatprep.subr.mxu0 0.0
        %3329 = vmatpush1.msra.mxu0 0.0
        %3330 = vmatprep.subr.mxu0 0.0
        %3331 = vmatpush1.msra.mxu0 0.0
        %3332 = vmatprep.subr.mxu0 0.0
        %3333 = vmatpush1.msra.mxu0 0.0
        %3334 = vmatprep.subr.mxu0 0.0
        %3335 = vmatpush1.msra.mxu0 0.0
        %3336 = vmatprep.subr.mxu0 0.0
        %3337 = vmatpush1.msra.mxu0 0.0
        %3338 = vmatprep.subr.mxu0 0.0
        %3339 = vmatpush1.msra.mxu0 0.0
        %3340 = vmatprep.subr.mxu0 0.0
        %3341 = vmatpush1.msra.mxu0 0.0
        %3342 = vmatprep.subr.mxu0 0.0
        %3343 = vmatpush1.msra.mxu0 0.0
        %3344 = vmatprep.subr.mxu0 0.0
        %3345 = vmatpush1.msra.mxu0 0.0
        %3346 = vmatprep.subr.mxu0 0.0
        %3347 = vmatpush1.msra.mxu0 0.0
        %3348 = vmatprep.subr.mxu0 0.0
        %3349 = vmatpush1.msra.mxu0 0.0
        %3350 = vmatprep.subr.mxu0 0.0
        %3351 = vmatpush1.msra.mxu0 0.0
        %3352 = vmatprep.subr.mxu0 0.0
        %3353 = vmatpush1.msra.mxu0 0.0
        %3354 = vmatprep.subr.mxu0 0.0
        %3355 = vmatpush1.msra.mxu0 0.0
        %3356 = vmatprep.subr.mxu0 0.0
        %3357 = vmatpush1.msra.mxu0 0.0
        %3358 = vmatprep.subr.mxu0 0.0
        %3359 = vmatpush1.msra.mxu0 0.0
        %3360 = vmatprep.subr.mxu0 0.0
        %3361 = vmatpush1.msra.mxu0 0.0
        %3362 = vmatprep.subr.mxu0 0.0
        %3363 = vmatpush1.msra.mxu0 0.0
        %3364 = vmatprep.subr.mxu0 0.0
        %3365 = vmatpush1.msra.mxu0 0.0
        %3366 = vmatprep.subr.mxu0 0.0
        %3367 = vmatpush1.msra.mxu0 0.0
        %3368 = vmatprep.subr.mxu0 0.0
        %3369 = vmatpush1.msra.mxu0 0.0
        %3370 = vmatprep.subr.mxu0 0.0
        %3371 = vmatpush1.msra.mxu0 0.0
        %3372 = vmatprep.subr.mxu0 0.0
        %3373 = vmatpush1.msra.mxu0 0.0
        %3374 = vmatprep.subr.mxu0 0.0
        %3375 = vmatpush1.msra.mxu0 0.0
        %3376 = vmatprep.subr.mxu0 0.0
        %3377 = vmatpush1.msra.mxu0 0.0
        %3378 = vmatprep.subr.mxu0 0.0
        %3379 = vmatpush1.msra.mxu0 0.0
        %3380 = vmatprep.subr.mxu0 0.0
        %3381 = vmatpush1.msra.mxu0 0.0
        %3382 = vmatprep.subr.mxu0 0.0
        %3383 = vmatpush1.msra.mxu0 0.0
        %3384 = vmatprep.subr.mxu0 0.0
        %3385 = vmatpush1.msra.mxu0 0.0
        %3386 = vmatprep.subr.mxu0 0.0
        %3387 = vmatpush1.msra.mxu0 0.0
        %3388 = vmatprep.mubr.f32.mxu0 0.0
        %3389 = vmatmul.mubr.f32.gmra.mrb[0].mxu0 %v3322
        %v3390 = vpop.f32.mrb[0].mxu0
        %v3391 = vadd.f32 0.0, %v3390
        %v3392 = vpop.f32.mrb[0].mxu0
        %v3393 = vadd.f32 0.0, %v3392
        %3394 = vdwg.mxu0
        %3395 = vmatprep.subr.mxu0 %v336
        %3396 = vmatpush1.msra.mxu0 %v335
        %3397 = vmatprep.subr.mxu0 0.0
        %3398 = vmatpush1.msra.mxu0 0.0
        %3399 = vmatprep.subr.mxu0 0.0
        %3400 = vmatpush1.msra.mxu0 0.0
        %3401 = vmatprep.subr.mxu0 0.0
        %3402 = vmatpush1.msra.mxu0 0.0
        %3403 = vmatprep.subr.mxu0 0.0
        %3404 = vmatpush1.msra.mxu0 0.0
        %3405 = vmatprep.subr.mxu0 0.0
        %3406 = vmatpush1.msra.mxu0 0.0
        %3407 = vmatprep.subr.mxu0 0.0
        %3408 = vmatpush1.msra.mxu0 0.0
        %3409 = vmatprep.subr.mxu0 0.0
        %3410 = vmatpush1.msra.mxu0 0.0
        %3411 = vmatprep.subr.mxu0 0.0
        %3412 = vmatpush1.msra.mxu0 0.0
        %3413 = vmatprep.subr.mxu0 0.0
        %3414 = vmatpush1.msra.mxu0 0.0
        %3415 = vmatprep.subr.mxu0 0.0
        %3416 = vmatpush1.msra.mxu0 0.0
        %3417 = vmatprep.subr.mxu0 0.0
        %3418 = vmatpush1.msra.mxu0 0.0
        %3419 = vmatprep.subr.mxu0 0.0
        %3420 = vmatpush1.msra.mxu0 0.0
        %3421 = vmatprep.subr.mxu0 0.0
        %3422 = vmatpush1.msra.mxu0 0.0
        %3423 = vmatprep.subr.mxu0 0.0
        %3424 = vmatpush1.msra.mxu0 0.0
        %3425 = vmatprep.subr.mxu0 0.0
        %3426 = vmatpush1.msra.mxu0 0.0
        %3427 = vmatprep.subr.mxu0 0.0
        %3428 = vmatpush1.msra.mxu0 0.0
        %3429 = vmatprep.subr.mxu0 0.0
        %3430 = vmatpush1.msra.mxu0 0.0
        %3431 = vmatprep.subr.mxu0 0.0
        %3432 = vmatpush1.msra.mxu0 0.0
        %3433 = vmatprep.subr.mxu0 0.0
        %3434 = vmatpush1.msra.mxu0 0.0
        %3435 = vmatprep.subr.mxu0 0.0
        %3436 = vmatpush1.msra.mxu0 0.0
        %3437 = vmatprep.subr.mxu0 0.0
        %3438 = vmatpush1.msra.mxu0 0.0
        %3439 = vmatprep.subr.mxu0 0.0
        %3440 = vmatpush1.msra.mxu0 0.0
        %3441 = vmatprep.subr.mxu0 0.0
        %3442 = vmatpush1.msra.mxu0 0.0
        %3443 = vmatprep.subr.mxu0 0.0
        %3444 = vmatpush1.msra.mxu0 0.0
        %3445 = vmatprep.subr.mxu0 0.0
        %3446 = vmatpush1.msra.mxu0 0.0
        %3447 = vmatprep.subr.mxu0 0.0
        %3448 = vmatpush1.msra.mxu0 0.0
        %3449 = vmatprep.subr.mxu0 0.0
        %3450 = vmatpush1.msra.mxu0 0.0
        %3451 = vmatprep.subr.mxu0 0.0
        %3452 = vmatpush1.msra.mxu0 0.0
        %3453 = vmatprep.subr.mxu0 0.0
        %3454 = vmatpush1.msra.mxu0 0.0
        %3455 = vmatprep.subr.mxu0 0.0
        %3456 = vmatpush1.msra.mxu0 0.0
        %3457 = vmatprep.subr.mxu0 0.0
        %3458 = vmatpush1.msra.mxu0 0.0
        %3459 = vmatprep.mubr.f32.mxu0 0.0
        %3460 = vmatmul.mubr.f32.gmra.mrb[0].mxu0 %v3322
        %v3461 = vpop.f32.mrb[0].mxu0
        %v3462 = vadd.f32 0.0, %v3461
        %v3463 = vpop.f32.mrb[0].mxu0
        %v3464 = vadd.f32 0.0, %v3463
        %3465 = vdwg.mxu0
        %3466 = vmatprep.subr.mxu0 %v338
        %3467 = vmatpush1.msra.mxu0 %v337
        %3468 = vmatprep.subr.mxu0 0.0
        %3469 = vmatpush1.msra.mxu0 0.0
        %3470 = vmatprep.subr.mxu0 0.0
        %3471 = vmatpush1.msra.mxu0 0.0
        %3472 = vmatprep.subr.mxu0 0.0
        %3473 = vmatpush1.msra.mxu0 0.0
        %3474 = vmatprep.subr.mxu0 0.0
        %3475 = vmatpush1.msra.mxu0 0.0
        %3476 = vmatprep.subr.mxu0 0.0
        %3477 = vmatpush1.msra.mxu0 0.0
        %3478 = vmatprep.subr.mxu0 0.0
        %3479 = vmatpush1.msra.mxu0 0.0
        %3480 = vmatprep.subr.mxu0 0.0
        %3481 = vmatpush1.msra.mxu0 0.0
        %3482 = vmatprep.subr.mxu0 0.0
        %3483 = vmatpush1.msra.mxu0 0.0
        %3484 = vmatprep.subr.mxu0 0.0
        %3485 = vmatpush1.msra.mxu0 0.0
        %3486 = vmatprep.subr.mxu0 0.0
        %3487 = vmatpush1.msra.mxu0 0.0
        %3488 = vmatprep.subr.mxu0 0.0
        %3489 = vmatpush1.msra.mxu0 0.0
        %3490 = vmatprep.subr.mxu0 0.0
        %3491 = vmatpush1.msra.mxu0 0.0
        %3492 = vmatprep.subr.mxu0 0.0
        %3493 = vmatpush1.msra.mxu0 0.0
        %3494 = vmatprep.subr.mxu0 0.0
        %3495 = vmatpush1.msra.mxu0 0.0
        %3496 = vmatprep.subr.mxu0 0.0
        %3497 = vmatpush1.msra.mxu0 0.0
        %3498 = vmatprep.subr.mxu0 0.0
        %3499 = vmatpush1.msra.mxu0 0.0
        %3500 = vmatprep.subr.mxu0 0.0
        %3501 = vmatpush1.msra.mxu0 0.0
        %3502 = vmatprep.subr.mxu0 0.0
        %3503 = vmatpush1.msra.mxu0 0.0
        %3504 = vmatprep.subr.mxu0 0.0
        %3505 = vmatpush1.msra.mxu0 0.0
        %3506 = vmatprep.subr.mxu0 0.0
        %3507 = vmatpush1.msra.mxu0 0.0
        %3508 = vmatprep.subr.mxu0 0.0
        %3509 = vmatpush1.msra.mxu0 0.0
        %3510 = vmatprep.subr.mxu0 0.0
        %3511 = vmatpush1.msra.mxu0 0.0
        %3512 = vmatprep.subr.mxu0 0.0
        %3513 = vmatpush1.msra.mxu0 0.0
        %3514 = vmatprep.subr.mxu0 0.0
        %3515 = vmatpush1.msra.mxu0 0.0
        %3516 = vmatprep.subr.mxu0 0.0
        %3517 = vmatpush1.msra.mxu0 0.0
        %3518 = vmatprep.subr.mxu0 0.0
        %3519 = vmatpush1.msra.mxu0 0.0
        %3520 = vmatprep.subr.mxu0 0.0
        %3521 = vmatpush1.msra.mxu0 0.0
        %3522 = vmatprep.subr.mxu0 0.0
        %3523 = vmatpush1.msra.mxu0 0.0
        %3524 = vmatprep.subr.mxu0 0.0
        %3525 = vmatpush1.msra.mxu0 0.0
        %3526 = vmatprep.subr.mxu0 0.0
        %3527 = vmatpush1.msra.mxu0 0.0
        %3528 = vmatprep.subr.mxu0 0.0
        %3529 = vmatpush1.msra.mxu0 0.0
        %3530 = vmatprep.mubr.f32.mxu0 0.0
        %3531 = vmatmul.mubr.f32.gmra.mrb[0].mxu0 %v3322
        %v3532 = vpop.f32.mrb[0].mxu0
        %v3533 = vadd.f32 0.0, %v3532
        %v3534 = vpop.f32.mrb[0].mxu0
        %v3535 = vadd.f32 0.0, %v3534
        %3536 = vdwg.mxu0
        %3537 = vmatprep.subr.mxu0 %v340
        %3538 = vmatpush1.msra.mxu0 %v339
        %3539 = vmatprep.subr.mxu0 0.0
        %3540 = vmatpush1.msra.mxu0 0.0
        %3541 = vmatprep.subr.mxu0 0.0
        %3542 = vmatpush1.msra.mxu0 0.0
        %3543 = vmatprep.subr.mxu0 0.0
        %3544 = vmatpush1.msra.mxu0 0.0
        %3545 = vmatprep.subr.mxu0 0.0
        %3546 = vmatpush1.msra.mxu0 0.0
        %3547 = vmatprep.subr.mxu0 0.0
        %3548 = vmatpush1.msra.mxu0 0.0
        %3549 = vmatprep.subr.mxu0 0.0
        %3550 = vmatpush1.msra.mxu0 0.0
        %3551 = vmatprep.subr.mxu0 0.0
        %3552 = vmatpush1.msra.mxu0 0.0
        %3553 = vmatprep.subr.mxu0 0.0
        %3554 = vmatpush1.msra.mxu0 0.0
        %3555 = vmatprep.subr.mxu0 0.0
        %3556 = vmatpush1.msra.mxu0 0.0
        %3557 = vmatprep.subr.mxu0 0.0
        %3558 = vmatpush1.msra.mxu0 0.0
        %3559 = vmatprep.subr.mxu0 0.0
        %3560 = vmatpush1.msra.mxu0 0.0
        %3561 = vmatprep.subr.mxu0 0.0
        %3562 = vmatpush1.msra.mxu0 0.0
        %3563 = vmatprep.subr.mxu0 0.0
        %3564 = vmatpush1.msra.mxu0 0.0
        %3565 = vmatprep.subr.mxu0 0.0
        %3566 = vmatpush1.msra.mxu0 0.0
        %3567 = vmatprep.subr.mxu0 0.0
        %3568 = vmatpush1.msra.mxu0 0.0
        %3569 = vmatprep.subr.mxu0 0.0
        %3570 = vmatpush1.msra.mxu0 0.0
        %3571 = vmatprep.subr.mxu0 0.0
        %3572 = vmatpush1.msra.mxu0 0.0
        %3573 = vmatprep.subr.mxu0 0.0
        %3574 = vmatpush1.msra.mxu0 0.0
        %3575 = vmatprep.subr.mxu0 0.0
        %3576 = vmatpush1.msra.mxu0 0.0
        %3577 = vmatprep.subr.mxu0 0.0
        %3578 = vmatpush1.msra.mxu0 0.0
        %3579 = vmatprep.subr.mxu0 0.0
        %3580 = vmatpush1.msra.mxu0 0.0
        %3581 = vmatprep.subr.mxu0 0.0
        %3582 = vmatpush1.msra.mxu0 0.0
        %3583 = vmatprep.subr.mxu0 0.0
        %3584 = vmatpush1.msra.mxu0 0.0
        %3585 = vmatprep.subr.mxu0 0.0
        %3586 = vmatpush1.msra.mxu0 0.0
        %3587 = vmatprep.subr.mxu0 0.0
        %3588 = vmatpush1.msra.mxu0 0.0
        %3589 = vmatprep.subr.mxu0 0.0
        %3590 = vmatpush1.msra.mxu0 0.0
        %3591 = vmatprep.subr.mxu0 0.0
        %3592 = vmatpush1.msra.mxu0 0.0
        %3593 = vmatprep.subr.mxu0 0.0
        %3594 = vmatpush1.msra.mxu0 0.0
        %3595 = vmatprep.subr.mxu0 0.0
        %3596 = vmatpush1.msra.mxu0 0.0
        %3597 = vmatprep.subr.mxu0 0.0
        %3598 = vmatpush1.msra.mxu0 0.0
        %3599 = vmatprep.subr.mxu0 0.0
        %3600 = vmatpush1.msra.mxu0 0.0
        %3601 = vmatprep.mubr.f32.mxu0 0.0
        %3602 = vmatmul.mubr.f32.gmra.mrb[0].mxu0 %v3322
        %v3603 = vpop.f32.mrb[0].mxu0
        %v3604 = vadd.f32 0.0, %v3603
        %v3605 = vpop.f32.mrb[0].mxu0
        %v3606 = vadd.f32 0.0, %v3605
        %3607 = vdwg.mxu0
        %3608 = vmatprep.subr.mxu0 %v342
        %3609 = vmatpush1.msra.mxu0 %v341
        %3610 = vmatprep.subr.mxu0 0.0
        %3611 = vmatpush1.msra.mxu0 0.0
        %3612 = vmatprep.subr.mxu0 0.0
        %3613 = vmatpush1.msra.mxu0 0.0
        %3614 = vmatprep.subr.mxu0 0.0
        %3615 = vmatpush1.msra.mxu0 0.0
        %3616 = vmatprep.subr.mxu0 0.0
        %3617 = vmatpush1.msra.mxu0 0.0
        %3618 = vmatprep.subr.mxu0 0.0
        %3619 = vmatpush1.msra.mxu0 0.0
        %3620 = vmatprep.subr.mxu0 0.0
        %3621 = vmatpush1.msra.mxu0 0.0
        %3622 = vmatprep.subr.mxu0 0.0
        %3623 = vmatpush1.msra.mxu0 0.0
        %3624 = vmatprep.subr.mxu0 0.0
        %3625 = vmatpush1.msra.mxu0 0.0
        %3626 = vmatprep.subr.mxu0 0.0
        %3627 = vmatpush1.msra.mxu0 0.0
        %3628 = vmatprep.subr.mxu0 0.0
        %3629 = vmatpush1.msra.mxu0 0.0
        %3630 = vmatprep.subr.mxu0 0.0
        %3631 = vmatpush1.msra.mxu0 0.0
        %3632 = vmatprep.subr.mxu0 0.0
        %3633 = vmatpush1.msra.mxu0 0.0
        %3634 = vmatprep.subr.mxu0 0.0
        %3635 = vmatpush1.msra.mxu0 0.0
        %3636 = vmatprep.subr.mxu0 0.0
        %3637 = vmatpush1.msra.mxu0 0.0
        %3638 = vmatprep.subr.mxu0 0.0
        %3639 = vmatpush1.msra.mxu0 0.0
        %3640 = vmatprep.subr.mxu0 0.0
        %3641 = vmatpush1.msra.mxu0 0.0
        %3642 = vmatprep.subr.mxu0 0.0
        %3643 = vmatpush1.msra.mxu0 0.0
        %3644 = vmatprep.subr.mxu0 0.0
        %3645 = vmatpush1.msra.mxu0 0.0
        %3646 = vmatprep.subr.mxu0 0.0
        %3647 = vmatpush1.msra.mxu0 0.0
        %3648 = vmatprep.subr.mxu0 0.0
        %3649 = vmatpush1.msra.mxu0 0.0
        %3650 = vmatprep.subr.mxu0 0.0
        %3651 = vmatpush1.msra.mxu0 0.0
        %3652 = vmatprep.subr.mxu0 0.0
        %3653 = vmatpush1.msra.mxu0 0.0
        %3654 = vmatprep.subr.mxu0 0.0
        %3655 = vmatpush1.msra.mxu0 0.0
        %3656 = vmatprep.subr.mxu0 0.0
        %3657 = vmatpush1.msra.mxu0 0.0
        %3658 = vmatprep.subr.mxu0 0.0
        %3659 = vmatpush1.msra.mxu0 0.0
        %3660 = vmatprep.subr.mxu0 0.0
        %3661 = vmatpush1.msra.mxu0 0.0
        %3662 = vmatprep.subr.mxu0 0.0
        %3663 = vmatpush1.msra.mxu0 0.0
        %3664 = vmatprep.subr.mxu0 0.0
        %3665 = vmatpush1.msra.mxu0 0.0
        %3666 = vmatprep.subr.mxu0 0.0
        %3667 = vmatpush1.msra.mxu0 0.0
        %3668 = vmatprep.subr.mxu0 0.0
        %3669 = vmatpush1.msra.mxu0 0.0
        %3670 = vmatprep.subr.mxu0 0.0
        %3671 = vmatpush1.msra.mxu0 0.0
        %3672 = vmatprep.mubr.f32.mxu0 0.0
        %3673 = vmatmul.mubr.f32.gmra.mrb[0].mxu0 %v3322
        %v3674 = vpop.f32.mrb[0].mxu0
        %v3675 = vadd.f32 0.0, %v3674
        %v3676 = vpop.f32.mrb[0].mxu0
        %v3677 = vadd.f32 0.0, %v3676
        %3678 = vdwg.mxu0
        %3679 = vmatprep.subr.mxu0 %v344
        %3680 = vmatpush1.msra.mxu0 %v343
        %3681 = vmatprep.subr.mxu0 0.0
        %3682 = vmatpush1.msra.mxu0 0.0
        %3683 = vmatprep.subr.mxu0 0.0
        %3684 = vmatpush1.msra.mxu0 0.0
        %3685 = vmatprep.subr.mxu0 0.0
        %3686 = vmatpush1.msra.mxu0 0.0
        %3687 = vmatprep.subr.mxu0 0.0
        %3688 = vmatpush1.msra.mxu0 0.0
        %3689 = vmatprep.subr.mxu0 0.0
        %3690 = vmatpush1.msra.mxu0 0.0
        %3691 = vmatprep.subr.mxu0 0.0
        %3692 = vmatpush1.msra.mxu0 0.0
        %3693 = vmatprep.subr.mxu0 0.0
        %3694 = vmatpush1.msra.mxu0 0.0
        %3695 = vmatprep.subr.mxu0 0.0
        %3696 = vmatpush1.msra.mxu0 0.0
        %3697 = vmatprep.subr.mxu0 0.0
        %3698 = vmatpush1.msra.mxu0 0.0
        %3699 = vmatprep.subr.mxu0 0.0
        %3700 = vmatpush1.msra.mxu0 0.0
        %3701 = vmatprep.subr.mxu0 0.0
        %3702 = vmatpush1.msra.mxu0 0.0
        %3703 = vmatprep.subr.mxu0 0.0
        %3704 = vmatpush1.msra.mxu0 0.0
        %3705 = vmatprep.subr.mxu0 0.0
        %3706 = vmatpush1.msra.mxu0 0.0
        %3707 = vmatprep.subr.mxu0 0.0
        %3708 = vmatpush1.msra.mxu0 0.0
        %3709 = vmatprep.subr.mxu0 0.0
        %3710 = vmatpush1.msra.mxu0 0.0
        %3711 = vmatprep.subr.mxu0 0.0
        %3712 = vmatpush1.msra.mxu0 0.0
        %3713 = vmatprep.subr.mxu0 0.0
        %3714 = vmatpush1.msra.mxu0 0.0
        %3715 = vmatprep.subr.mxu0 0.0
        %3716 = vmatpush1.msra.mxu0 0.0
        %3717 = vmatprep.subr.mxu0 0.0
        %3718 = vmatpush1.msra.mxu0 0.0
        %3719 = vmatprep.subr.mxu0 0.0
        %3720 = vmatpush1.msra.mxu0 0.0
        %3721 = vmatprep.subr.mxu0 0.0
        %3722 = vmatpush1.msra.mxu0 0.0
        %3723 = vmatprep.subr.mxu0 0.0
        %3724 = vmatpush1.msra.mxu0 0.0
        %3725 = vmatprep.subr.mxu0 0.0
        %3726 = vmatpush1.msra.mxu0 0.0
        %3727 = vmatprep.subr.mxu0 0.0
        %3728 = vmatpush1.msra.mxu0 0.0
        %3729 = vmatprep.subr.mxu0 0.0
        %3730 = vmatpush1.msra.mxu0 0.0
        %3731 = vmatprep.subr.mxu0 0.0
        %3732 = vmatpush1.msra.mxu0 0.0
        %3733 = vmatprep.subr.mxu0 0.0
        %3734 = vmatpush1.msra.mxu0 0.0
        %3735 = vmatprep.subr.mxu0 0.0
        %3736 = vmatpush1.msra.mxu0 0.0
        %3737 = vmatprep.subr.mxu0 0.0
        %3738 = vmatpush1.msra.mxu0 0.0
        %3739 = vmatprep.subr.mxu0 0.0
        %3740 = vmatpush1.msra.mxu0 0.0
        %3741 = vmatprep.subr.mxu0 0.0
        %3742 = vmatpush1.msra.mxu0 0.0
        %3743 = vmatprep.mubr.f32.mxu0 0.0
        %3744 = vmatmul.mubr.f32.gmra.mrb[0].mxu0 %v3322
        %v3745 = vpop.f32.mrb[0].mxu0
        %v3746 = vadd.f32 0.0, %v3745
        %v3747 = vpop.f32.mrb[0].mxu0
        %v3748 = vadd.f32 0.0, %v3747
        %3749 = vdwg.mxu0
        %3750 = vmatprep.subr.mxu0 %v346
        %3751 = vmatpush1.msra.mxu0 %v345
        %3752 = vmatprep.subr.mxu0 0.0
        %3753 = vmatpush1.msra.mxu0 0.0
        %3754 = vmatprep.subr.mxu0 0.0
        %3755 = vmatpush1.msra.mxu0 0.0
        %3756 = vmatprep.subr.mxu0 0.0
        %3757 = vmatpush1.msra.mxu0 0.0
        %3758 = vmatprep.subr.mxu0 0.0
        %3759 = vmatpush1.msra.mxu0 0.0
        %3760 = vmatprep.subr.mxu0 0.0
        %3761 = vmatpush1.msra.mxu0 0.0
        %3762 = vmatprep.subr.mxu0 0.0
        %3763 = vmatpush1.msra.mxu0 0.0
        %3764 = vmatprep.subr.mxu0 0.0
        %3765 = vmatpush1.msra.mxu0 0.0
        %3766 = vmatprep.subr.mxu0 0.0
        %3767 = vmatpush1.msra.mxu0 0.0
        %3768 = vmatprep.subr.mxu0 0.0
        %3769 = vmatpush1.msra.mxu0 0.0
        %3770 = vmatprep.subr.mxu0 0.0
        %3771 = vmatpush1.msra.mxu0 0.0
        %3772 = vmatprep.subr.mxu0 0.0
        %3773 = vmatpush1.msra.mxu0 0.0
        %3774 = vmatprep.subr.mxu0 0.0
        %3775 = vmatpush1.msra.mxu0 0.0
        %3776 = vmatprep.subr.mxu0 0.0
        %3777 = vmatpush1.msra.mxu0 0.0
        %3778 = vmatprep.subr.mxu0 0.0
        %3779 = vmatpush1.msra.mxu0 0.0
        %3780 = vmatprep.subr.mxu0 0.0
        %3781 = vmatpush1.msra.mxu0 0.0
        %3782 = vmatprep.subr.mxu0 0.0
        %3783 = vmatpush1.msra.mxu0 0.0
        %3784 = vmatprep.subr.mxu0 0.0
        %3785 = vmatpush1.msra.mxu0 0.0
        %3786 = vmatprep.subr.mxu0 0.0
        %3787 = vmatpush1.msra.mxu0 0.0
        %3788 = vmatprep.subr.mxu0 0.0
        %3789 = vmatpush1.msra.mxu0 0.0
        %3790 = vmatprep.subr.mxu0 0.0
        %3791 = vmatpush1.msra.mxu0 0.0
        %3792 = vmatprep.subr.mxu0 0.0
        %3793 = vmatpush1.msra.mxu0 0.0
        %3794 = vmatprep.subr.mxu0 0.0
        %3795 = vmatpush1.msra.mxu0 0.0
        %3796 = vmatprep.subr.mxu0 0.0
        %3797 = vmatpush1.msra.mxu0 0.0
        %3798 = vmatprep.subr.mxu0 0.0
        %3799 = vmatpush1.msra.mxu0 0.0
        %3800 = vmatprep.subr.mxu0 0.0
        %3801 = vmatpush1.msra.mxu0 0.0
        %3802 = vmatprep.subr.mxu0 0.0
        %3803 = vmatpush1.msra.mxu0 0.0
        %3804 = vmatprep.subr.mxu0 0.0
        %3805 = vmatpush1.msra.mxu0 0.0
        %3806 = vmatprep.subr.mxu0 0.0
        %3807 = vmatpush1.msra.mxu0 0.0
        %3808 = vmatprep.subr.mxu0 0.0
        %3809 = vmatpush1.msra.mxu0 0.0
        %3810 = vmatprep.subr.mxu0 0.0
        %3811 = vmatpush1.msra.mxu0 0.0
        %3812 = vmatprep.subr.mxu0 0.0
        %3813 = vmatpush1.msra.mxu0 0.0
        %3814 = vmatprep.mubr.f32.mxu0 0.0
        %3815 = vmatmul.mubr.f32.gmra.mrb[0].mxu0 %v3322
        %v3816 = vpop.f32.mrb[0].mxu0
        %v3817 = vadd.f32 0.0, %v3816
        %v3818 = vpop.f32.mrb[0].mxu0
        %v3819 = vadd.f32 0.0, %v3818
        %3820 = vdwg.mxu0
        %3821 = vmatprep.subr.mxu0 %v348
        %3822 = vmatpush1.msra.mxu0 %v347
        %3823 = vmatprep.subr.mxu0 0.0
        %3824 = vmatpush1.msra.mxu0 0.0
        %3825 = vmatprep.subr.mxu0 0.0
        %3826 = vmatpush1.msra.mxu0 0.0
        %3827 = vmatprep.subr.mxu0 0.0
        %3828 = vmatpush1.msra.mxu0 0.0
        %3829 = vmatprep.subr.mxu0 0.0
        %3830 = vmatpush1.msra.mxu0 0.0
        %3831 = vmatprep.subr.mxu0 0.0
        %3832 = vmatpush1.msra.mxu0 0.0
        %3833 = vmatprep.subr.mxu0 0.0
        %3834 = vmatpush1.msra.mxu0 0.0
        %3835 = vmatprep.subr.mxu0 0.0
        %3836 = vmatpush1.msra.mxu0 0.0
        %3837 = vmatprep.subr.mxu0 0.0
        %3838 = vmatpush1.msra.mxu0 0.0
        %3839 = vmatprep.subr.mxu0 0.0
        %3840 = vmatpush1.msra.mxu0 0.0
        %3841 = vmatprep.subr.mxu0 0.0
        %3842 = vmatpush1.msra.mxu0 0.0
        %3843 = vmatprep.subr.mxu0 0.0
        %3844 = vmatpush1.msra.mxu0 0.0
        %3845 = vmatprep.subr.mxu0 0.0
        %3846 = vmatpush1.msra.mxu0 0.0
        %3847 = vmatprep.subr.mxu0 0.0
        %3848 = vmatpush1.msra.mxu0 0.0
        %3849 = vmatprep.subr.mxu0 0.0
        %3850 = vmatpush1.msra.mxu0 0.0
        %3851 = vmatprep.subr.mxu0 0.0
        %3852 = vmatpush1.msra.mxu0 0.0
        %3853 = vmatprep.subr.mxu0 0.0
        %3854 = vmatpush1.msra.mxu0 0.0
        %3855 = vmatprep.subr.mxu0 0.0
        %3856 = vmatpush1.msra.mxu0 0.0
        %3857 = vmatprep.subr.mxu0 0.0
        %3858 = vmatpush1.msra.mxu0 0.0
        %3859 = vmatprep.subr.mxu0 0.0
        %3860 = vmatpush1.msra.mxu0 0.0
        %3861 = vmatprep.subr.mxu0 0.0
        %3862 = vmatpush1.msra.mxu0 0.0
        %3863 = vmatprep.subr.mxu0 0.0
        %3864 = vmatpush1.msra.mxu0 0.0
        %3865 = vmatprep.subr.mxu0 0.0
        %3866 = vmatpush1.msra.mxu0 0.0
        %3867 = vmatprep.subr.mxu0 0.0
        %3868 = vmatpush1.msra.mxu0 0.0
        %3869 = vmatprep.subr.mxu0 0.0
        %3870 = vmatpush1.msra.mxu0 0.0
        %3871 = vmatprep.subr.mxu0 0.0
        %3872 = vmatpush1.msra.mxu0 0.0
        %3873 = vmatprep.subr.mxu0 0.0
        %3874 = vmatpush1.msra.mxu0 0.0
        %3875 = vmatprep.subr.mxu0 0.0
        %3876 = vmatpush1.msra.mxu0 0.0
        %3877 = vmatprep.subr.mxu0 0.0
        %3878 = vmatpush1.msra.mxu0 0.0
        %3879 = vmatprep.subr.mxu0 0.0
        %3880 = vmatpush1.msra.mxu0 0.0
        %3881 = vmatprep.subr.mxu0 0.0
        %3882 = vmatpush1.msra.mxu0 0.0
        %3883 = vmatprep.subr.mxu0 0.0
        %3884 = vmatpush1.msra.mxu0 0.0
        %3885 = vmatprep.mubr.f32.mxu0 0.0
        %3886 = vmatmul.mubr.f32.gmra.mrb[0].mxu0 %v3322
        %v3887 = vpop.f32.mrb[0].mxu0
        %v3888 = vadd.f32 0.0, %v3887
        %v3889 = vpop.f32.mrb[0].mxu0
        %v3890 = vadd.f32 0.0, %v3889
        %3891 = vdwg.mxu0
        %v3892 = vadd.f32 %v3303, %v3391
        %v3893 = vadd.f32 %v3304, %v3393
        %v3894 = vadd.f32 %v3305, %v3462
        %v3895 = vadd.f32 %v3306, %v3464
        %v3896 = vadd.f32 %v3307, %v3533
        %v3897 = vadd.f32 %v3308, %v3535
        %v3898 = vadd.f32 %v3309, %v3604
        %v3899 = vadd.f32 %v3310, %v3606
        %v3900 = vadd.f32 %v3311, %v3675
        %v3901 = vadd.f32 %v3312, %v3677
        %v3902 = vadd.f32 %v3313, %v3746
        %v3903 = vadd.f32 %v3314, %v3748
        %v3904 = vadd.f32 %v3315, %v3817
        %v3905 = vadd.f32 %v3316, %v3819
        %v3906 = vadd.f32 %v3317, %v3888
        %v3907 = vadd.f32 %v3318, %v3890
        %3908 = vrot.lane.b32.xlu0 %v331, 127
        %v3909 = vpop.permute.xlu0 %3908
        %3910 = vrot.lane.b32.xlu0 %v332, 127
        %v3911 = vpop.permute.xlu0 %3910
        %3912 = vrot.lane.b32.xlu0 %v333, 127
        %v3913 = vpop.permute.xlu0 %3912
        %3914 = vrot.lane.b32.xlu0 %v334, 127
        %v3915 = vpop.permute.xlu0 %3914
        %3916 = vrot.lane.b32.xlu0 %v335, 127
        %v3917 = vpop.permute.xlu0 %3916
        %3918 = vrot.lane.b32.xlu0 %v336, 127
        %v3919 = vpop.permute.xlu0 %3918
        %3920 = vrot.lane.b32.xlu0 %v337, 127
        %v3921 = vpop.permute.xlu0 %3920
        %3922 = vrot.lane.b32.xlu0 %v338, 127
        %v3923 = vpop.permute.xlu0 %3922
        %3924 = vrot.lane.b32.xlu0 %v339, 127
        %v3925 = vpop.permute.xlu0 %3924
        %3926 = vrot.lane.b32.xlu0 %v340, 127
        %v3927 = vpop.permute.xlu0 %3926
        %3928 = vrot.lane.b32.xlu0 %v341, 127
        %v3929 = vpop.permute.xlu0 %3928
        %3930 = vrot.lane.b32.xlu0 %v342, 127
        %v3931 = vpop.permute.xlu0 %3930
        %3932 = vrot.lane.b32.xlu0 %v343, 127
        %v3933 = vpop.permute.xlu0 %3932
        %3934 = vrot.lane.b32.xlu0 %v344, 127
        %v3935 = vpop.permute.xlu0 %3934
        %3936 = vrot.lane.b32.xlu0 %v345, 127
        %v3937 = vpop.permute.xlu0 %3936
        %3938 = vrot.lane.b32.xlu0 %v346, 127
        %v3939 = vpop.permute.xlu0 %3938
        %3940 = vrot.lane.b32.xlu0 %v347, 127
        %v3941 = vpop.permute.xlu0 %3940
        %3942 = vrot.lane.b32.xlu0 %v348, 127
        %v3943 = vpop.permute.xlu0 %3942
        %vm3944 = vcmp.lt.s32.totalorder %v386, 127
        %v3945 = vsel %vm3944, %v3941, %v3943
        %v3946 = vsel %vm3944, %v3939, %v3941
        %v3947 = vsel %vm3944, %v3937, %v3939
        %v3948 = vsel %vm3944, %v3935, %v3937
        %v3949 = vsel %vm3944, %v3933, %v3935
        %v3950 = vsel %vm3944, %v3931, %v3933
        %v3951 = vsel %vm3944, %v3929, %v3931
        %v3952 = vsel %vm3944, %v3927, %v3929
        %v3953 = vsel %vm3944, %v3925, %v3927
        %v3954 = vsel %vm3944, %v3923, %v3925
        %v3955 = vsel %vm3944, %v3921, %v3923
        %v3956 = vsel %vm3944, %v3919, %v3921
        %v3957 = vsel %vm3944, %v3917, %v3919
        %v3958 = vsel %vm3944, %v3915, %v3917
        %v3959 = vsel %vm3944, %v3913, %v3915
        %v3960 = vsel %vm3944, %v3911, %v3913
        %v3961 = vsel %vm3944, %v3909, %v3911
        %v3962 = vsel %vm3944, %v3943, %v3909
        %s3963 = scalar_lea.vmem %s3, 16
        %v3964 = vld [vmem:[%s3963] sm:$0xff]
        %v3966 = vsel %vm409, %v3964, 0
        %3968 = vmatprep.subr.mxu0 %v3960
        %3969 = vmatpush1.msra.mxu0 %v3961
        %3970 = vmatprep.subr.mxu0 0.0
        %3971 = vmatpush1.msra.mxu0 0.0
        %3972 = vmatprep.subr.mxu0 0.0
        %3973 = vmatpush1.msra.mxu0 0.0
        %3974 = vmatprep.subr.mxu0 0.0
        %3975 = vmatpush1.msra.mxu0 0.0
        %3976 = vmatprep.subr.mxu0 0.0
        %3977 = vmatpush1.msra.mxu0 0.0
        %3978 = vmatprep.subr.mxu0 0.0
        %3979 = vmatpush1.msra.mxu0 0.0
        %3980 = vmatprep.subr.mxu0 0.0
        %3981 = vmatpush1.msra.mxu0 0.0
        %3982 = vmatprep.subr.mxu0 0.0
        %3983 = vmatpush1.msra.mxu0 0.0
        %3984 = vmatprep.subr.mxu0 0.0
        %3985 = vmatpush1.msra.mxu0 0.0
        %3986 = vmatprep.subr.mxu0 0.0
        %3987 = vmatpush1.msra.mxu0 0.0
        %3988 = vmatprep.subr.mxu0 0.0
        %3989 = vmatpush1.msra.mxu0 0.0
        %3990 = vmatprep.subr.mxu0 0.0
        %3991 = vmatpush1.msra.mxu0 0.0
        %3992 = vmatprep.subr.mxu0 0.0
        %3993 = vmatpush1.msra.mxu0 0.0
        %3994 = vmatprep.subr.mxu0 0.0
        %3995 = vmatpush1.msra.mxu0 0.0
        %3996 = vmatprep.subr.mxu0 0.0
        %3997 = vmatpush1.msra.mxu0 0.0
        %3998 = vmatprep.subr.mxu0 0.0
        %3999 = vmatpush1.msra.mxu0 0.0
        %4000 = vmatprep.subr.mxu0 0.0
        %4001 = vmatpush1.msra.mxu0 0.0
        %4002 = vmatprep.subr.mxu0 0.0
        %4003 = vmatpush1.msra.mxu0 0.0
        %4004 = vmatprep.subr.mxu0 0.0
        %4005 = vmatpush1.msra.mxu0 0.0
        %4006 = vmatprep.subr.mxu0 0.0
        %4007 = vmatpush1.msra.mxu0 0.0
        %4008 = vmatprep.subr.mxu0 0.0
        %4009 = vmatpush1.msra.mxu0 0.0
        %4010 = vmatprep.subr.mxu0 0.0
        %4011 = vmatpush1.msra.mxu0 0.0
        %4012 = vmatprep.subr.mxu0 0.0
        %4013 = vmatpush1.msra.mxu0 0.0
        %4014 = vmatprep.subr.mxu0 0.0
        %4015 = vmatpush1.msra.mxu0 0.0
        %4016 = vmatprep.subr.mxu0 0.0
        %4017 = vmatpush1.msra.mxu0 0.0
        %4018 = vmatprep.subr.mxu0 0.0
        %4019 = vmatpush1.msra.mxu0 0.0
        %4020 = vmatprep.subr.mxu0 0.0
        %4021 = vmatpush1.msra.mxu0 0.0
        %4022 = vmatprep.subr.mxu0 0.0
        %4023 = vmatpush1.msra.mxu0 0.0
        %4024 = vmatprep.subr.mxu0 0.0
        %4025 = vmatpush1.msra.mxu0 0.0
        %4026 = vmatprep.subr.mxu0 0.0
        %4027 = vmatpush1.msra.mxu0 0.0
        %4028 = vmatprep.subr.mxu0 0.0
        %4029 = vmatpush1.msra.mxu0 0.0
        %4030 = vmatprep.subr.mxu0 0.0
        %4031 = vmatpush1.msra.mxu0 0.0
        %4032 = vmatprep.mubr.f32.mxu0 0.0
        %4033 = vmatmul.mubr.f32.gmra.mrb[0].mxu0 %v3966
        %v4034 = vpop.f32.mrb[0].mxu0
        %v4035 = vadd.f32 0.0, %v4034
        %v4036 = vpop.f32.mrb[0].mxu0
        %v4037 = vadd.f32 0.0, %v4036
        %4038 = vdwg.mxu0
        %4039 = vmatprep.subr.mxu0 %v3958
        %4040 = vmatpush1.msra.mxu0 %v3959
        %4041 = vmatprep.subr.mxu0 0.0
        %4042 = vmatpush1.msra.mxu0 0.0
        %4043 = vmatprep.subr.mxu0 0.0
        %4044 = vmatpush1.msra.mxu0 0.0
        %4045 = vmatprep.subr.mxu0 0.0
        %4046 = vmatpush1.msra.mxu0 0.0
        %4047 = vmatprep.subr.mxu0 0.0
        %4048 = vmatpush1.msra.mxu0 0.0
        %4049 = vmatprep.subr.mxu0 0.0
        %4050 = vmatpush1.msra.mxu0 0.0
        %4051 = vmatprep.subr.mxu0 0.0
        %4052 = vmatpush1.msra.mxu0 0.0
        %4053 = vmatprep.subr.mxu0 0.0
        %4054 = vmatpush1.msra.mxu0 0.0
        %4055 = vmatprep.subr.mxu0 0.0
        %4056 = vmatpush1.msra.mxu0 0.0
        %4057 = vmatprep.subr.mxu0 0.0
        %4058 = vmatpush1.msra.mxu0 0.0
        %4059 = vmatprep.subr.mxu0 0.0
        %4060 = vmatpush1.msra.mxu0 0.0
        %4061 = vmatprep.subr.mxu0 0.0
        %4062 = vmatpush1.msra.mxu0 0.0
        %4063 = vmatprep.subr.mxu0 0.0
        %4064 = vmatpush1.msra.mxu0 0.0
        %4065 = vmatprep.subr.mxu0 0.0
        %4066 = vmatpush1.msra.mxu0 0.0
        %4067 = vmatprep.subr.mxu0 0.0
        %4068 = vmatpush1.msra.mxu0 0.0
        %4069 = vmatprep.subr.mxu0 0.0
        %4070 = vmatpush1.msra.mxu0 0.0
        %4071 = vmatprep.subr.mxu0 0.0
        %4072 = vmatpush1.msra.mxu0 0.0
        %4073 = vmatprep.subr.mxu0 0.0
        %4074 = vmatpush1.msra.mxu0 0.0
        %4075 = vmatprep.subr.mxu0 0.0
        %4076 = vmatpush1.msra.mxu0 0.0
        %4077 = vmatprep.subr.mxu0 0.0
        %4078 = vmatpush1.msra.mxu0 0.0
        %4079 = vmatprep.subr.mxu0 0.0
        %4080 = vmatpush1.msra.mxu0 0.0
        %4081 = vmatprep.subr.mxu0 0.0
        %4082 = vmatpush1.msra.mxu0 0.0
        %4083 = vmatprep.subr.mxu0 0.0
        %4084 = vmatpush1.msra.mxu0 0.0
        %4085 = vmatprep.subr.mxu0 0.0
        %4086 = vmatpush1.msra.mxu0 0.0
        %4087 = vmatprep.subr.mxu0 0.0
        %4088 = vmatpush1.msra.mxu0 0.0
        %4089 = vmatprep.subr.mxu0 0.0
        %4090 = vmatpush1.msra.mxu0 0.0
        %4091 = vmatprep.subr.mxu0 0.0
        %4092 = vmatpush1.msra.mxu0 0.0
        %4093 = vmatprep.subr.mxu0 0.0
        %4094 = vmatpush1.msra.mxu0 0.0
        %4095 = vmatprep.subr.mxu0 0.0
        %4096 = vmatpush1.msra.mxu0 0.0
        %4097 = vmatprep.subr.mxu0 0.0
        %4098 = vmatpush1.msra.mxu0 0.0
        %4099 = vmatprep.subr.mxu0 0.0
        %4100 = vmatpush1.msra.mxu0 0.0
        %4101 = vmatprep.subr.mxu0 0.0
        %4102 = vmatpush1.msra.mxu0 0.0
        %4103 = vmatprep.mubr.f32.mxu0 0.0
        %4104 = vmatmul.mubr.f32.gmra.mrb[0].mxu0 %v3966
        %v4105 = vpop.f32.mrb[0].mxu0
        %v4106 = vadd.f32 0.0, %v4105
        %v4107 = vpop.f32.mrb[0].mxu0
        %v4108 = vadd.f32 0.0, %v4107
        %4109 = vdwg.mxu0
        %4110 = vmatprep.subr.mxu0 %v3956
        %4111 = vmatpush1.msra.mxu0 %v3957
        %4112 = vmatprep.subr.mxu0 0.0
        %4113 = vmatpush1.msra.mxu0 0.0
        %4114 = vmatprep.subr.mxu0 0.0
        %4115 = vmatpush1.msra.mxu0 0.0
        %4116 = vmatprep.subr.mxu0 0.0
        %4117 = vmatpush1.msra.mxu0 0.0
        %4118 = vmatprep.subr.mxu0 0.0
        %4119 = vmatpush1.msra.mxu0 0.0
        %4120 = vmatprep.subr.mxu0 0.0
        %4121 = vmatpush1.msra.mxu0 0.0
        %4122 = vmatprep.subr.mxu0 0.0
        %4123 = vmatpush1.msra.mxu0 0.0
        %4124 = vmatprep.subr.mxu0 0.0
        %4125 = vmatpush1.msra.mxu0 0.0
        %4126 = vmatprep.subr.mxu0 0.0
        %4127 = vmatpush1.msra.mxu0 0.0
        %4128 = vmatprep.subr.mxu0 0.0
        %4129 = vmatpush1.msra.mxu0 0.0
        %4130 = vmatprep.subr.mxu0 0.0
        %4131 = vmatpush1.msra.mxu0 0.0
        %4132 = vmatprep.subr.mxu0 0.0
        %4133 = vmatpush1.msra.mxu0 0.0
        %4134 = vmatprep.subr.mxu0 0.0
        %4135 = vmatpush1.msra.mxu0 0.0
        %4136 = vmatprep.subr.mxu0 0.0
        %4137 = vmatpush1.msra.mxu0 0.0
        %4138 = vmatprep.subr.mxu0 0.0
        %4139 = vmatpush1.msra.mxu0 0.0
        %4140 = vmatprep.subr.mxu0 0.0
        %4141 = vmatpush1.msra.mxu0 0.0
        %4142 = vmatprep.subr.mxu0 0.0
        %4143 = vmatpush1.msra.mxu0 0.0
        %4144 = vmatprep.subr.mxu0 0.0
        %4145 = vmatpush1.msra.mxu0 0.0
        %4146 = vmatprep.subr.mxu0 0.0
        %4147 = vmatpush1.msra.mxu0 0.0
        %4148 = vmatprep.subr.mxu0 0.0
        %4149 = vmatpush1.msra.mxu0 0.0
        %4150 = vmatprep.subr.mxu0 0.0
        %4151 = vmatpush1.msra.mxu0 0.0
        %4152 = vmatprep.subr.mxu0 0.0
        %4153 = vmatpush1.msra.mxu0 0.0
        %4154 = vmatprep.subr.mxu0 0.0
        %4155 = vmatpush1.msra.mxu0 0.0
        %4156 = vmatprep.subr.mxu0 0.0
        %4157 = vmatpush1.msra.mxu0 0.0
        %4158 = vmatprep.subr.mxu0 0.0
        %4159 = vmatpush1.msra.mxu0 0.0
        %4160 = vmatprep.subr.mxu0 0.0
        %4161 = vmatpush1.msra.mxu0 0.0
        %4162 = vmatprep.subr.mxu0 0.0
        %4163 = vmatpush1.msra.mxu0 0.0
        %4164 = vmatprep.subr.mxu0 0.0
        %4165 = vmatpush1.msra.mxu0 0.0
        %4166 = vmatprep.subr.mxu0 0.0
        %4167 = vmatpush1.msra.mxu0 0.0
        %4168 = vmatprep.subr.mxu0 0.0
        %4169 = vmatpush1.msra.mxu0 0.0
        %4170 = vmatprep.subr.mxu0 0.0
        %4171 = vmatpush1.msra.mxu0 0.0
        %4172 = vmatprep.subr.mxu0 0.0
        %4173 = vmatpush1.msra.mxu0 0.0
        %4174 = vmatprep.mubr.f32.mxu0 0.0
        %4175 = vmatmul.mubr.f32.gmra.mrb[0].mxu0 %v3966
        %v4176 = vpop.f32.mrb[0].mxu0
        %v4177 = vadd.f32 0.0, %v4176
        %v4178 = vpop.f32.mrb[0].mxu0
        %v4179 = vadd.f32 0.0, %v4178
        %4180 = vdwg.mxu0
        %4181 = vmatprep.subr.mxu0 %v3954
        %4182 = vmatpush1.msra.mxu0 %v3955
        %4183 = vmatprep.subr.mxu0 0.0
        %4184 = vmatpush1.msra.mxu0 0.0
        %4185 = vmatprep.subr.mxu0 0.0
        %4186 = vmatpush1.msra.mxu0 0.0
        %4187 = vmatprep.subr.mxu0 0.0
        %4188 = vmatpush1.msra.mxu0 0.0
        %4189 = vmatprep.subr.mxu0 0.0
        %4190 = vmatpush1.msra.mxu0 0.0
        %4191 = vmatprep.subr.mxu0 0.0
        %4192 = vmatpush1.msra.mxu0 0.0
        %4193 = vmatprep.subr.mxu0 0.0
        %4194 = vmatpush1.msra.mxu0 0.0
        %4195 = vmatprep.subr.mxu0 0.0
        %4196 = vmatpush1.msra.mxu0 0.0
        %4197 = vmatprep.subr.mxu0 0.0
        %4198 = vmatpush1.msra.mxu0 0.0
        %4199 = vmatprep.subr.mxu0 0.0
        %4200 = vmatpush1.msra.mxu0 0.0
        %4201 = vmatprep.subr.mxu0 0.0
        %4202 = vmatpush1.msra.mxu0 0.0
        %4203 = vmatprep.subr.mxu0 0.0
        %4204 = vmatpush1.msra.mxu0 0.0
        %4205 = vmatprep.subr.mxu0 0.0
        %4206 = vmatpush1.msra.mxu0 0.0
        %4207 = vmatprep.subr.mxu0 0.0
        %4208 = vmatpush1.msra.mxu0 0.0
        %4209 = vmatprep.subr.mxu0 0.0
        %4210 = vmatpush1.msra.mxu0 0.0
        %4211 = vmatprep.subr.mxu0 0.0
        %4212 = vmatpush1.msra.mxu0 0.0
        %4213 = vmatprep.subr.mxu0 0.0
        %4214 = vmatpush1.msra.mxu0 0.0
        %4215 = vmatprep.subr.mxu0 0.0
        %4216 = vmatpush1.msra.mxu0 0.0
        %4217 = vmatprep.subr.mxu0 0.0
        %4218 = vmatpush1.msra.mxu0 0.0
        %4219 = vmatprep.subr.mxu0 0.0
        %4220 = vmatpush1.msra.mxu0 0.0
        %4221 = vmatprep.subr.mxu0 0.0
        %4222 = vmatpush1.msra.mxu0 0.0
        %4223 = vmatprep.subr.mxu0 0.0
        %4224 = vmatpush1.msra.mxu0 0.0
        %4225 = vmatprep.subr.mxu0 0.0
        %4226 = vmatpush1.msra.mxu0 0.0
        %4227 = vmatprep.subr.mxu0 0.0
        %4228 = vmatpush1.msra.mxu0 0.0
        %4229 = vmatprep.subr.mxu0 0.0
        %4230 = vmatpush1.msra.mxu0 0.0
        %4231 = vmatprep.subr.mxu0 0.0
        %4232 = vmatpush1.msra.mxu0 0.0
        %4233 = vmatprep.subr.mxu0 0.0
        %4234 = vmatpush1.msra.mxu0 0.0
        %4235 = vmatprep.subr.mxu0 0.0
        %4236 = vmatpush1.msra.mxu0 0.0
        %4237 = vmatprep.subr.mxu0 0.0
        %4238 = vmatpush1.msra.mxu0 0.0
        %4239 = vmatprep.subr.mxu0 0.0
        %4240 = vmatpush1.msra.mxu0 0.0
        %4241 = vmatprep.subr.mxu0 0.0
        %4242 = vmatpush1.msra.mxu0 0.0
        %4243 = vmatprep.subr.mxu0 0.0
        %4244 = vmatpush1.msra.mxu0 0.0
        %4245 = vmatprep.mubr.f32.mxu0 0.0
        %4246 = vmatmul.mubr.f32.gmra.mrb[0].mxu0 %v3966
        %v4247 = vpop.f32.mrb[0].mxu0
        %v4248 = vadd.f32 0.0, %v4247
        %v4249 = vpop.f32.mrb[0].mxu0
        %v4250 = vadd.f32 0.0, %v4249
        %4251 = vdwg.mxu0
        %4252 = vmatprep.subr.mxu0 %v3952
        %4253 = vmatpush1.msra.mxu0 %v3953
        %4254 = vmatprep.subr.mxu0 0.0
        %4255 = vmatpush1.msra.mxu0 0.0
        %4256 = vmatprep.subr.mxu0 0.0
        %4257 = vmatpush1.msra.mxu0 0.0
        %4258 = vmatprep.subr.mxu0 0.0
        %4259 = vmatpush1.msra.mxu0 0.0
        %4260 = vmatprep.subr.mxu0 0.0
        %4261 = vmatpush1.msra.mxu0 0.0
        %4262 = vmatprep.subr.mxu0 0.0
        %4263 = vmatpush1.msra.mxu0 0.0
        %4264 = vmatprep.subr.mxu0 0.0
        %4265 = vmatpush1.msra.mxu0 0.0
        %4266 = vmatprep.subr.mxu0 0.0
        %4267 = vmatpush1.msra.mxu0 0.0
        %4268 = vmatprep.subr.mxu0 0.0
        %4269 = vmatpush1.msra.mxu0 0.0
        %4270 = vmatprep.subr.mxu0 0.0
        %4271 = vmatpush1.msra.mxu0 0.0
        %4272 = vmatprep.subr.mxu0 0.0
        %4273 = vmatpush1.msra.mxu0 0.0
        %4274 = vmatprep.subr.mxu0 0.0
        %4275 = vmatpush1.msra.mxu0 0.0
        %4276 = vmatprep.subr.mxu0 0.0
        %4277 = vmatpush1.msra.mxu0 0.0
        %4278 = vmatprep.subr.mxu0 0.0
        %4279 = vmatpush1.msra.mxu0 0.0
        %4280 = vmatprep.subr.mxu0 0.0
        %4281 = vmatpush1.msra.mxu0 0.0
        %4282 = vmatprep.subr.mxu0 0.0
        %4283 = vmatpush1.msra.mxu0 0.0
        %4284 = vmatprep.subr.mxu0 0.0
        %4285 = vmatpush1.msra.mxu0 0.0
        %4286 = vmatprep.subr.mxu0 0.0
        %4287 = vmatpush1.msra.mxu0 0.0
        %4288 = vmatprep.subr.mxu0 0.0
        %4289 = vmatpush1.msra.mxu0 0.0
        %4290 = vmatprep.subr.mxu0 0.0
        %4291 = vmatpush1.msra.mxu0 0.0
        %4292 = vmatprep.subr.mxu0 0.0
        %4293 = vmatpush1.msra.mxu0 0.0
        %4294 = vmatprep.subr.mxu0 0.0
        %4295 = vmatpush1.msra.mxu0 0.0
        %4296 = vmatprep.subr.mxu0 0.0
        %4297 = vmatpush1.msra.mxu0 0.0
        %4298 = vmatprep.subr.mxu0 0.0
        %4299 = vmatpush1.msra.mxu0 0.0
        %4300 = vmatprep.subr.mxu0 0.0
        %4301 = vmatpush1.msra.mxu0 0.0
        %4302 = vmatprep.subr.mxu0 0.0
        %4303 = vmatpush1.msra.mxu0 0.0
        %4304 = vmatprep.subr.mxu0 0.0
        %4305 = vmatpush1.msra.mxu0 0.0
        %4306 = vmatprep.subr.mxu0 0.0
        %4307 = vmatpush1.msra.mxu0 0.0
        %4308 = vmatprep.subr.mxu0 0.0
        %4309 = vmatpush1.msra.mxu0 0.0
        %4310 = vmatprep.subr.mxu0 0.0
        %4311 = vmatpush1.msra.mxu0 0.0
        %4312 = vmatprep.subr.mxu0 0.0
        %4313 = vmatpush1.msra.mxu0 0.0
        %4314 = vmatprep.subr.mxu0 0.0
        %4315 = vmatpush1.msra.mxu0 0.0
        %4316 = vmatprep.mubr.f32.mxu0 0.0
        %4317 = vmatmul.mubr.f32.gmra.mrb[0].mxu0 %v3966
        %v4318 = vpop.f32.mrb[0].mxu0
        %v4319 = vadd.f32 0.0, %v4318
        %v4320 = vpop.f32.mrb[0].mxu0
        %v4321 = vadd.f32 0.0, %v4320
        %4322 = vdwg.mxu0
        %4323 = vmatprep.subr.mxu0 %v3950
        %4324 = vmatpush1.msra.mxu0 %v3951
        %4325 = vmatprep.subr.mxu0 0.0
        %4326 = vmatpush1.msra.mxu0 0.0
        %4327 = vmatprep.subr.mxu0 0.0
        %4328 = vmatpush1.msra.mxu0 0.0
        %4329 = vmatprep.subr.mxu0 0.0
        %4330 = vmatpush1.msra.mxu0 0.0
        %4331 = vmatprep.subr.mxu0 0.0
        %4332 = vmatpush1.msra.mxu0 0.0
        %4333 = vmatprep.subr.mxu0 0.0
        %4334 = vmatpush1.msra.mxu0 0.0
        %4335 = vmatprep.subr.mxu0 0.0
        %4336 = vmatpush1.msra.mxu0 0.0
        %4337 = vmatprep.subr.mxu0 0.0
        %4338 = vmatpush1.msra.mxu0 0.0
        %4339 = vmatprep.subr.mxu0 0.0
        %4340 = vmatpush1.msra.mxu0 0.0
        %4341 = vmatprep.subr.mxu0 0.0
        %4342 = vmatpush1.msra.mxu0 0.0
        %4343 = vmatprep.subr.mxu0 0.0
        %4344 = vmatpush1.msra.mxu0 0.0
        %4345 = vmatprep.subr.mxu0 0.0
        %4346 = vmatpush1.msra.mxu0 0.0
        %4347 = vmatprep.subr.mxu0 0.0
        %4348 = vmatpush1.msra.mxu0 0.0
        %4349 = vmatprep.subr.mxu0 0.0
        %4350 = vmatpush1.msra.mxu0 0.0
        %4351 = vmatprep.subr.mxu0 0.0
        %4352 = vmatpush1.msra.mxu0 0.0
        %4353 = vmatprep.subr.mxu0 0.0
        %4354 = vmatpush1.msra.mxu0 0.0
        %4355 = vmatprep.subr.mxu0 0.0
        %4356 = vmatpush1.msra.mxu0 0.0
        %4357 = vmatprep.subr.mxu0 0.0
        %4358 = vmatpush1.msra.mxu0 0.0
        %4359 = vmatprep.subr.mxu0 0.0
        %4360 = vmatpush1.msra.mxu0 0.0
        %4361 = vmatprep.subr.mxu0 0.0
        %4362 = vmatpush1.msra.mxu0 0.0
        %4363 = vmatprep.subr.mxu0 0.0
        %4364 = vmatpush1.msra.mxu0 0.0
        %4365 = vmatprep.subr.mxu0 0.0
        %4366 = vmatpush1.msra.mxu0 0.0
        %4367 = vmatprep.subr.mxu0 0.0
        %4368 = vmatpush1.msra.mxu0 0.0
        %4369 = vmatprep.subr.mxu0 0.0
        %4370 = vmatpush1.msra.mxu0 0.0
        %4371 = vmatprep.subr.mxu0 0.0
        %4372 = vmatpush1.msra.mxu0 0.0
        %4373 = vmatprep.subr.mxu0 0.0
        %4374 = vmatpush1.msra.mxu0 0.0
        %4375 = vmatprep.subr.mxu0 0.0
        %4376 = vmatpush1.msra.mxu0 0.0
        %4377 = vmatprep.subr.mxu0 0.0
        %4378 = vmatpush1.msra.mxu0 0.0
        %4379 = vmatprep.subr.mxu0 0.0
        %4380 = vmatpush1.msra.mxu0 0.0
        %4381 = vmatprep.subr.mxu0 0.0
        %4382 = vmatpush1.msra.mxu0 0.0
        %4383 = vmatprep.subr.mxu0 0.0
        %4384 = vmatpush1.msra.mxu0 0.0
        %4385 = vmatprep.subr.mxu0 0.0
        %4386 = vmatpush1.msra.mxu0 0.0
        %4387 = vmatprep.mubr.f32.mxu0 0.0
        %4388 = vmatmul.mubr.f32.gmra.mrb[0].mxu0 %v3966
        %v4389 = vpop.f32.mrb[0].mxu0
        %v4390 = vadd.f32 0.0, %v4389
        %v4391 = vpop.f32.mrb[0].mxu0
        %v4392 = vadd.f32 0.0, %v4391
        %4393 = vdwg.mxu0
        %4394 = vmatprep.subr.mxu0 %v3948
        %4395 = vmatpush1.msra.mxu0 %v3949
        %4396 = vmatprep.subr.mxu0 0.0
        %4397 = vmatpush1.msra.mxu0 0.0
        %4398 = vmatprep.subr.mxu0 0.0
        %4399 = vmatpush1.msra.mxu0 0.0
        %4400 = vmatprep.subr.mxu0 0.0
        %4401 = vmatpush1.msra.mxu0 0.0
        %4402 = vmatprep.subr.mxu0 0.0
        %4403 = vmatpush1.msra.mxu0 0.0
        %4404 = vmatprep.subr.mxu0 0.0
        %4405 = vmatpush1.msra.mxu0 0.0
        %4406 = vmatprep.subr.mxu0 0.0
        %4407 = vmatpush1.msra.mxu0 0.0
        %4408 = vmatprep.subr.mxu0 0.0
        %4409 = vmatpush1.msra.mxu0 0.0
        %4410 = vmatprep.subr.mxu0 0.0
        %4411 = vmatpush1.msra.mxu0 0.0
        %4412 = vmatprep.subr.mxu0 0.0
        %4413 = vmatpush1.msra.mxu0 0.0
        %4414 = vmatprep.subr.mxu0 0.0
        %4415 = vmatpush1.msra.mxu0 0.0
        %4416 = vmatprep.subr.mxu0 0.0
        %4417 = vmatpush1.msra.mxu0 0.0
        %4418 = vmatprep.subr.mxu0 0.0
        %4419 = vmatpush1.msra.mxu0 0.0
        %4420 = vmatprep.subr.mxu0 0.0
        %4421 = vmatpush1.msra.mxu0 0.0
        %4422 = vmatprep.subr.mxu0 0.0
        %4423 = vmatpush1.msra.mxu0 0.0
        %4424 = vmatprep.subr.mxu0 0.0
        %4425 = vmatpush1.msra.mxu0 0.0
        %4426 = vmatprep.subr.mxu0 0.0
        %4427 = vmatpush1.msra.mxu0 0.0
        %4428 = vmatprep.subr.mxu0 0.0
        %4429 = vmatpush1.msra.mxu0 0.0
        %4430 = vmatprep.subr.mxu0 0.0
        %4431 = vmatpush1.msra.mxu0 0.0
        %4432 = vmatprep.subr.mxu0 0.0
        %4433 = vmatpush1.msra.mxu0 0.0
        %4434 = vmatprep.subr.mxu0 0.0
        %4435 = vmatpush1.msra.mxu0 0.0
        %4436 = vmatprep.subr.mxu0 0.0
        %4437 = vmatpush1.msra.mxu0 0.0
        %4438 = vmatprep.subr.mxu0 0.0
        %4439 = vmatpush1.msra.mxu0 0.0
        %4440 = vmatprep.subr.mxu0 0.0
        %4441 = vmatpush1.msra.mxu0 0.0
        %4442 = vmatprep.subr.mxu0 0.0
        %4443 = vmatpush1.msra.mxu0 0.0
        %4444 = vmatprep.subr.mxu0 0.0
        %4445 = vmatpush1.msra.mxu0 0.0
        %4446 = vmatprep.subr.mxu0 0.0
        %4447 = vmatpush1.msra.mxu0 0.0
        %4448 = vmatprep.subr.mxu0 0.0
        %4449 = vmatpush1.msra.mxu0 0.0
        %4450 = vmatprep.subr.mxu0 0.0
        %4451 = vmatpush1.msra.mxu0 0.0
        %4452 = vmatprep.subr.mxu0 0.0
        %4453 = vmatpush1.msra.mxu0 0.0
        %4454 = vmatprep.subr.mxu0 0.0
        %4455 = vmatpush1.msra.mxu0 0.0
        %4456 = vmatprep.subr.mxu0 0.0
        %4457 = vmatpush1.msra.mxu0 0.0
        %4458 = vmatprep.mubr.f32.mxu0 0.0
        %4459 = vmatmul.mubr.f32.gmra.mrb[0].mxu0 %v3966
        %v4460 = vpop.f32.mrb[0].mxu0
        %v4461 = vadd.f32 0.0, %v4460
        %v4462 = vpop.f32.mrb[0].mxu0
        %v4463 = vadd.f32 0.0, %v4462
        %4464 = vdwg.mxu0
        %4465 = vmatprep.subr.mxu0 %v3946
        %4466 = vmatpush1.msra.mxu0 %v3947
        %4467 = vmatprep.subr.mxu0 0.0
        %4468 = vmatpush1.msra.mxu0 0.0
        %4469 = vmatprep.subr.mxu0 0.0
        %4470 = vmatpush1.msra.mxu0 0.0
        %4471 = vmatprep.subr.mxu0 0.0
        %4472 = vmatpush1.msra.mxu0 0.0
        %4473 = vmatprep.subr.mxu0 0.0
        %4474 = vmatpush1.msra.mxu0 0.0
        %4475 = vmatprep.subr.mxu0 0.0
        %4476 = vmatpush1.msra.mxu0 0.0
        %4477 = vmatprep.subr.mxu0 0.0
        %4478 = vmatpush1.msra.mxu0 0.0
        %4479 = vmatprep.subr.mxu0 0.0
        %4480 = vmatpush1.msra.mxu0 0.0
        %4481 = vmatprep.subr.mxu0 0.0
        %4482 = vmatpush1.msra.mxu0 0.0
        %4483 = vmatprep.subr.mxu0 0.0
        %4484 = vmatpush1.msra.mxu0 0.0
        %4485 = vmatprep.subr.mxu0 0.0
        %4486 = vmatpush1.msra.mxu0 0.0
        %4487 = vmatprep.subr.mxu0 0.0
        %4488 = vmatpush1.msra.mxu0 0.0
        %4489 = vmatprep.subr.mxu0 0.0
        %4490 = vmatpush1.msra.mxu0 0.0
        %4491 = vmatprep.subr.mxu0 0.0
        %4492 = vmatpush1.msra.mxu0 0.0
        %4493 = vmatprep.subr.mxu0 0.0
        %4494 = vmatpush1.msra.mxu0 0.0
        %4495 = vmatprep.subr.mxu0 0.0
        %4496 = vmatpush1.msra.mxu0 0.0
        %4497 = vmatprep.subr.mxu0 0.0
        %4498 = vmatpush1.msra.mxu0 0.0
        %4499 = vmatprep.subr.mxu0 0.0
        %4500 = vmatpush1.msra.mxu0 0.0
        %4501 = vmatprep.subr.mxu0 0.0
        %4502 = vmatpush1.msra.mxu0 0.0
        %4503 = vmatprep.subr.mxu0 0.0
        %4504 = vmatpush1.msra.mxu0 0.0
        %4505 = vmatprep.subr.mxu0 0.0
        %4506 = vmatpush1.msra.mxu0 0.0
        %4507 = vmatprep.subr.mxu0 0.0
        %4508 = vmatpush1.msra.mxu0 0.0
        %4509 = vmatprep.subr.mxu0 0.0
        %4510 = vmatpush1.msra.mxu0 0.0
        %4511 = vmatprep.subr.mxu0 0.0
        %4512 = vmatpush1.msra.mxu0 0.0
        %4513 = vmatprep.subr.mxu0 0.0
        %4514 = vmatpush1.msra.mxu0 0.0
        %4515 = vmatprep.subr.mxu0 0.0
        %4516 = vmatpush1.msra.mxu0 0.0
        %4517 = vmatprep.subr.mxu0 0.0
        %4518 = vmatpush1.msra.mxu0 0.0
        %4519 = vmatprep.subr.mxu0 0.0
        %4520 = vmatpush1.msra.mxu0 0.0
        %4521 = vmatprep.subr.mxu0 0.0
        %4522 = vmatpush1.msra.mxu0 0.0
        %4523 = vmatprep.subr.mxu0 0.0
        %4524 = vmatpush1.msra.mxu0 0.0
        %4525 = vmatprep.subr.mxu0 0.0
        %4526 = vmatpush1.msra.mxu0 0.0
        %4527 = vmatprep.subr.mxu0 0.0
        %4528 = vmatpush1.msra.mxu0 0.0
        %4529 = vmatprep.mubr.f32.mxu0 0.0
        %4530 = vmatmul.mubr.f32.gmra.mrb[0].mxu0 %v3966
        %v4531 = vpop.f32.mrb[0].mxu0
        %v4532 = vadd.f32 0.0, %v4531
        %v4533 = vpop.f32.mrb[0].mxu0
        %v4534 = vadd.f32 0.0, %v4533
        %4535 = vdwg.mxu0
        %v4536 = vadd.f32 %v3892, %v4035
        %v4537 = vadd.f32 %v3893, %v4037
        %v4538 = vadd.f32 %v3894, %v4106
        %v4539 = vadd.f32 %v3895, %v4108
        %v4540 = vadd.f32 %v3896, %v4177
        %v4541 = vadd.f32 %v3897, %v4179
        %v4542 = vadd.f32 %v3898, %v4248
        %v4543 = vadd.f32 %v3899, %v4250
        %v4544 = vadd.f32 %v3900, %v4319
        %v4545 = vadd.f32 %v3901, %v4321
        %v4546 = vadd.f32 %v3902, %v4390
        %v4547 = vadd.f32 %v3903, %v4392
        %v4548 = vadd.f32 %v3904, %v4461
        %v4549 = vadd.f32 %v3905, %v4463
        %v4550 = vadd.f32 %v3906, %v4532
        %v4551 = vadd.f32 %v3907, %v4534
        %s4552 = scalar_lea.vmem %s3, 40
        %v4553 = vld [vmem:[%s4552] sm:$0xff]
        %v4555 = vsel %vm409, %v4553, 0
        %4557 = vmatprep.subr.mxu0 %v3959
        %4558 = vmatpush1.msra.mxu0 %v3960
        %4559 = vmatprep.subr.mxu0 0.0
        %4560 = vmatpush1.msra.mxu0 0.0
        %4561 = vmatprep.subr.mxu0 0.0
        %4562 = vmatpush1.msra.mxu0 0.0
        %4563 = vmatprep.subr.mxu0 0.0
        %4564 = vmatpush1.msra.mxu0 0.0
        %4565 = vmatprep.subr.mxu0 0.0
        %4566 = vmatpush1.msra.mxu0 0.0
        %4567 = vmatprep.subr.mxu0 0.0
        %4568 = vmatpush1.msra.mxu0 0.0
        %4569 = vmatprep.subr.mxu0 0.0
        %4570 = vmatpush1.msra.mxu0 0.0
        %4571 = vmatprep.subr.mxu0 0.0
        %4572 = vmatpush1.msra.mxu0 0.0
        %4573 = vmatprep.subr.mxu0 0.0
        %4574 = vmatpush1.msra.mxu0 0.0
        %4575 = vmatprep.subr.mxu0 0.0
        %4576 = vmatpush1.msra.mxu0 0.0
        %4577 = vmatprep.subr.mxu0 0.0
        %4578 = vmatpush1.msra.mxu0 0.0
        %4579 = vmatprep.subr.mxu0 0.0
        %4580 = vmatpush1.msra.mxu0 0.0
        %4581 = vmatprep.subr.mxu0 0.0
        %4582 = vmatpush1.msra.mxu0 0.0
        %4583 = vmatprep.subr.mxu0 0.0
        %4584 = vmatpush1.msra.mxu0 0.0
        %4585 = vmatprep.subr.mxu0 0.0
        %4586 = vmatpush1.msra.mxu0 0.0
        %4587 = vmatprep.subr.mxu0 0.0
        %4588 = vmatpush1.msra.mxu0 0.0
        %4589 = vmatprep.subr.mxu0 0.0
        %4590 = vmatpush1.msra.mxu0 0.0
        %4591 = vmatprep.subr.mxu0 0.0
        %4592 = vmatpush1.msra.mxu0 0.0
        %4593 = vmatprep.subr.mxu0 0.0
        %4594 = vmatpush1.msra.mxu0 0.0
        %4595 = vmatprep.subr.mxu0 0.0
        %4596 = vmatpush1.msra.mxu0 0.0
        %4597 = vmatprep.subr.mxu0 0.0
        %4598 = vmatpush1.msra.mxu0 0.0
        %4599 = vmatprep.subr.mxu0 0.0
        %4600 = vmatpush1.msra.mxu0 0.0
        %4601 = vmatprep.subr.mxu0 0.0
        %4602 = vmatpush1.msra.mxu0 0.0
        %4603 = vmatprep.subr.mxu0 0.0
        %4604 = vmatpush1.msra.mxu0 0.0
        %4605 = vmatprep.subr.mxu0 0.0
        %4606 = vmatpush1.msra.mxu0 0.0
        %4607 = vmatprep.subr.mxu0 0.0
        %4608 = vmatpush1.msra.mxu0 0.0
        %4609 = vmatprep.subr.mxu0 0.0
        %4610 = vmatpush1.msra.mxu0 0.0
        %4611 = vmatprep.subr.mxu0 0.0
        %4612 = vmatpush1.msra.mxu0 0.0
        %4613 = vmatprep.subr.mxu0 0.0
        %4614 = vmatpush1.msra.mxu0 0.0
        %4615 = vmatprep.subr.mxu0 0.0
        %4616 = vmatpush1.msra.mxu0 0.0
        %4617 = vmatprep.subr.mxu0 0.0
        %4618 = vmatpush1.msra.mxu0 0.0
        %4619 = vmatprep.subr.mxu0 0.0
        %4620 = vmatpush1.msra.mxu0 0.0
        %4621 = vmatprep.mubr.f32.mxu0 0.0
        %4622 = vmatmul.mubr.f32.gmra.mrb[0].mxu0 %v4555
        %v4623 = vpop.f32.mrb[0].mxu0
        %v4624 = vadd.f32 0.0, %v4623
        %v4625 = vpop.f32.mrb[0].mxu0
        %v4626 = vadd.f32 0.0, %v4625
        %4627 = vdwg.mxu0
        %4628 = vmatprep.subr.mxu0 %v3957
        %4629 = vmatpush1.msra.mxu0 %v3958
        %4630 = vmatprep.subr.mxu0 0.0
        %4631 = vmatpush1.msra.mxu0 0.0
        %4632 = vmatprep.subr.mxu0 0.0
        %4633 = vmatpush1.msra.mxu0 0.0
        %4634 = vmatprep.subr.mxu0 0.0
        %4635 = vmatpush1.msra.mxu0 0.0
        %4636 = vmatprep.subr.mxu0 0.0
        %4637 = vmatpush1.msra.mxu0 0.0
        %4638 = vmatprep.subr.mxu0 0.0
        %4639 = vmatpush1.msra.mxu0 0.0
        %4640 = vmatprep.subr.mxu0 0.0
        %4641 = vmatpush1.msra.mxu0 0.0
        %4642 = vmatprep.subr.mxu0 0.0
        %4643 = vmatpush1.msra.mxu0 0.0
        %4644 = vmatprep.subr.mxu0 0.0
        %4645 = vmatpush1.msra.mxu0 0.0
        %4646 = vmatprep.subr.mxu0 0.0
        %4647 = vmatpush1.msra.mxu0 0.0
        %4648 = vmatprep.subr.mxu0 0.0
        %4649 = vmatpush1.msra.mxu0 0.0
        %4650 = vmatprep.subr.mxu0 0.0
        %4651 = vmatpush1.msra.mxu0 0.0
        %4652 = vmatprep.subr.mxu0 0.0
        %4653 = vmatpush1.msra.mxu0 0.0
        %4654 = vmatprep.subr.mxu0 0.0
        %4655 = vmatpush1.msra.mxu0 0.0
        %4656 = vmatprep.subr.mxu0 0.0
        %4657 = vmatpush1.msra.mxu0 0.0
        %4658 = vmatprep.subr.mxu0 0.0
        %4659 = vmatpush1.msra.mxu0 0.0
        %4660 = vmatprep.subr.mxu0 0.0
        %4661 = vmatpush1.msra.mxu0 0.0
        %4662 = vmatprep.subr.mxu0 0.0
        %4663 = vmatpush1.msra.mxu0 0.0
        %4664 = vmatprep.subr.mxu0 0.0
        %4665 = vmatpush1.msra.mxu0 0.0
        %4666 = vmatprep.subr.mxu0 0.0
        %4667 = vmatpush1.msra.mxu0 0.0
        %4668 = vmatprep.subr.mxu0 0.0
        %4669 = vmatpush1.msra.mxu0 0.0
        %4670 = vmatprep.subr.mxu0 0.0
        %4671 = vmatpush1.msra.mxu0 0.0
        %4672 = vmatprep.subr.mxu0 0.0
        %4673 = vmatpush1.msra.mxu0 0.0
        %4674 = vmatprep.subr.mxu0 0.0
        %4675 = vmatpush1.msra.mxu0 0.0
        %4676 = vmatprep.subr.mxu0 0.0
        %4677 = vmatpush1.msra.mxu0 0.0
        %4678 = vmatprep.subr.mxu0 0.0
        %4679 = vmatpush1.msra.mxu0 0.0
        %4680 = vmatprep.subr.mxu0 0.0
        %4681 = vmatpush1.msra.mxu0 0.0
        %4682 = vmatprep.subr.mxu0 0.0
        %4683 = vmatpush1.msra.mxu0 0.0
        %4684 = vmatprep.subr.mxu0 0.0
        %4685 = vmatpush1.msra.mxu0 0.0
        %4686 = vmatprep.subr.mxu0 0.0
        %4687 = vmatpush1.msra.mxu0 0.0
        %4688 = vmatprep.subr.mxu0 0.0
        %4689 = vmatpush1.msra.mxu0 0.0
        %4690 = vmatprep.subr.mxu0 0.0
        %4691 = vmatpush1.msra.mxu0 0.0
        %4692 = vmatprep.mubr.f32.mxu0 0.0
        %4693 = vmatmul.mubr.f32.gmra.mrb[0].mxu0 %v4555
        %v4694 = vpop.f32.mrb[0].mxu0
        %v4695 = vadd.f32 0.0, %v4694
        %v4696 = vpop.f32.mrb[0].mxu0
        %v4697 = vadd.f32 0.0, %v4696
        %4698 = vdwg.mxu0
        %4699 = vmatprep.subr.mxu0 %v3955
        %4700 = vmatpush1.msra.mxu0 %v3956
        %4701 = vmatprep.subr.mxu0 0.0
        %4702 = vmatpush1.msra.mxu0 0.0
        %4703 = vmatprep.subr.mxu0 0.0
        %4704 = vmatpush1.msra.mxu0 0.0
        %4705 = vmatprep.subr.mxu0 0.0
        %4706 = vmatpush1.msra.mxu0 0.0
        %4707 = vmatprep.subr.mxu0 0.0
        %4708 = vmatpush1.msra.mxu0 0.0
        %4709 = vmatprep.subr.mxu0 0.0
        %4710 = vmatpush1.msra.mxu0 0.0
        %4711 = vmatprep.subr.mxu0 0.0
        %4712 = vmatpush1.msra.mxu0 0.0
        %4713 = vmatprep.subr.mxu0 0.0
        %4714 = vmatpush1.msra.mxu0 0.0
        %4715 = vmatprep.subr.mxu0 0.0
        %4716 = vmatpush1.msra.mxu0 0.0
        %4717 = vmatprep.subr.mxu0 0.0
        %4718 = vmatpush1.msra.mxu0 0.0
        %4719 = vmatprep.subr.mxu0 0.0
        %4720 = vmatpush1.msra.mxu0 0.0
        %4721 = vmatprep.subr.mxu0 0.0
        %4722 = vmatpush1.msra.mxu0 0.0
        %4723 = vmatprep.subr.mxu0 0.0
        %4724 = vmatpush1.msra.mxu0 0.0
        %4725 = vmatprep.subr.mxu0 0.0
        %4726 = vmatpush1.msra.mxu0 0.0
        %4727 = vmatprep.subr.mxu0 0.0
        %4728 = vmatpush1.msra.mxu0 0.0
        %4729 = vmatprep.subr.mxu0 0.0
        %4730 = vmatpush1.msra.mxu0 0.0
        %4731 = vmatprep.subr.mxu0 0.0
        %4732 = vmatpush1.msra.mxu0 0.0
        %4733 = vmatprep.subr.mxu0 0.0
        %4734 = vmatpush1.msra.mxu0 0.0
        %4735 = vmatprep.subr.mxu0 0.0
        %4736 = vmatpush1.msra.mxu0 0.0
        %4737 = vmatprep.subr.mxu0 0.0
        %4738 = vmatpush1.msra.mxu0 0.0
        %4739 = vmatprep.subr.mxu0 0.0
        %4740 = vmatpush1.msra.mxu0 0.0
        %4741 = vmatprep.subr.mxu0 0.0
        %4742 = vmatpush1.msra.mxu0 0.0
        %4743 = vmatprep.subr.mxu0 0.0
        %4744 = vmatpush1.msra.mxu0 0.0
        %4745 = vmatprep.subr.mxu0 0.0
        %4746 = vmatpush1.msra.mxu0 0.0
        %4747 = vmatprep.subr.mxu0 0.0
        %4748 = vmatpush1.msra.mxu0 0.0
        %4749 = vmatprep.subr.mxu0 0.0
        %4750 = vmatpush1.msra.mxu0 0.0
        %4751 = vmatprep.subr.mxu0 0.0
        %4752 = vmatpush1.msra.mxu0 0.0
        %4753 = vmatprep.subr.mxu0 0.0
        %4754 = vmatpush1.msra.mxu0 0.0
        %4755 = vmatprep.subr.mxu0 0.0
        %4756 = vmatpush1.msra.mxu0 0.0
        %4757 = vmatprep.subr.mxu0 0.0
        %4758 = vmatpush1.msra.mxu0 0.0
        %4759 = vmatprep.subr.mxu0 0.0
        %4760 = vmatpush1.msra.mxu0 0.0
        %4761 = vmatprep.subr.mxu0 0.0
        %4762 = vmatpush1.msra.mxu0 0.0
        %4763 = vmatprep.mubr.f32.mxu0 0.0
        %4764 = vmatmul.mubr.f32.gmra.mrb[0].mxu0 %v4555
        %v4765 = vpop.f32.mrb[0].mxu0
        %v4766 = vadd.f32 0.0, %v4765
        %v4767 = vpop.f32.mrb[0].mxu0
        %v4768 = vadd.f32 0.0, %v4767
        %4769 = vdwg.mxu0
        %4770 = vmatprep.subr.mxu0 %v3953
        %4771 = vmatpush1.msra.mxu0 %v3954
        %4772 = vmatprep.subr.mxu0 0.0
        %4773 = vmatpush1.msra.mxu0 0.0
        %4774 = vmatprep.subr.mxu0 0.0
        %4775 = vmatpush1.msra.mxu0 0.0
        %4776 = vmatprep.subr.mxu0 0.0
        %4777 = vmatpush1.msra.mxu0 0.0
        %4778 = vmatprep.subr.mxu0 0.0
        %4779 = vmatpush1.msra.mxu0 0.0
        %4780 = vmatprep.subr.mxu0 0.0
        %4781 = vmatpush1.msra.mxu0 0.0
        %4782 = vmatprep.subr.mxu0 0.0
        %4783 = vmatpush1.msra.mxu0 0.0
        %4784 = vmatprep.subr.mxu0 0.0
        %4785 = vmatpush1.msra.mxu0 0.0
        %4786 = vmatprep.subr.mxu0 0.0
        %4787 = vmatpush1.msra.mxu0 0.0
        %4788 = vmatprep.subr.mxu0 0.0
        %4789 = vmatpush1.msra.mxu0 0.0
        %4790 = vmatprep.subr.mxu0 0.0
        %4791 = vmatpush1.msra.mxu0 0.0
        %4792 = vmatprep.subr.mxu0 0.0
        %4793 = vmatpush1.msra.mxu0 0.0
        %4794 = vmatprep.subr.mxu0 0.0
        %4795 = vmatpush1.msra.mxu0 0.0
        %4796 = vmatprep.subr.mxu0 0.0
        %4797 = vmatpush1.msra.mxu0 0.0
        %4798 = vmatprep.subr.mxu0 0.0
        %4799 = vmatpush1.msra.mxu0 0.0
        %4800 = vmatprep.subr.mxu0 0.0
        %4801 = vmatpush1.msra.mxu0 0.0
        %4802 = vmatprep.subr.mxu0 0.0
        %4803 = vmatpush1.msra.mxu0 0.0
        %4804 = vmatprep.subr.mxu0 0.0
        %4805 = vmatpush1.msra.mxu0 0.0
        %4806 = vmatprep.subr.mxu0 0.0
        %4807 = vmatpush1.msra.mxu0 0.0
        %4808 = vmatprep.subr.mxu0 0.0
        %4809 = vmatpush1.msra.mxu0 0.0
        %4810 = vmatprep.subr.mxu0 0.0
        %4811 = vmatpush1.msra.mxu0 0.0
        %4812 = vmatprep.subr.mxu0 0.0
        %4813 = vmatpush1.msra.mxu0 0.0
        %4814 = vmatprep.subr.mxu0 0.0
        %4815 = vmatpush1.msra.mxu0 0.0
        %4816 = vmatprep.subr.mxu0 0.0
        %4817 = vmatpush1.msra.mxu0 0.0
        %4818 = vmatprep.subr.mxu0 0.0
        %4819 = vmatpush1.msra.mxu0 0.0
        %4820 = vmatprep.subr.mxu0 0.0
        %4821 = vmatpush1.msra.mxu0 0.0
        %4822 = vmatprep.subr.mxu0 0.0
        %4823 = vmatpush1.msra.mxu0 0.0
        %4824 = vmatprep.subr.mxu0 0.0
        %4825 = vmatpush1.msra.mxu0 0.0
        %4826 = vmatprep.subr.mxu0 0.0
        %4827 = vmatpush1.msra.mxu0 0.0
        %4828 = vmatprep.subr.mxu0 0.0
        %4829 = vmatpush1.msra.mxu0 0.0
        %4830 = vmatprep.subr.mxu0 0.0
        %4831 = vmatpush1.msra.mxu0 0.0
        %4832 = vmatprep.subr.mxu0 0.0
        %4833 = vmatpush1.msra.mxu0 0.0
        %4834 = vmatprep.mubr.f32.mxu0 0.0
        %4835 = vmatmul.mubr.f32.gmra.mrb[0].mxu0 %v4555
        %v4836 = vpop.f32.mrb[0].mxu0
        %v4837 = vadd.f32 0.0, %v4836
        %v4838 = vpop.f32.mrb[0].mxu0
        %v4839 = vadd.f32 0.0, %v4838
        %4840 = vdwg.mxu0
        %4841 = vmatprep.subr.mxu0 %v3951
        %4842 = vmatpush1.msra.mxu0 %v3952
        %4843 = vmatprep.subr.mxu0 0.0
        %4844 = vmatpush1.msra.mxu0 0.0
        %4845 = vmatprep.subr.mxu0 0.0
        %4846 = vmatpush1.msra.mxu0 0.0
        %4847 = vmatprep.subr.mxu0 0.0
        %4848 = vmatpush1.msra.mxu0 0.0
        %4849 = vmatprep.subr.mxu0 0.0
        %4850 = vmatpush1.msra.mxu0 0.0
        %4851 = vmatprep.subr.mxu0 0.0
        %4852 = vmatpush1.msra.mxu0 0.0
        %4853 = vmatprep.subr.mxu0 0.0
        %4854 = vmatpush1.msra.mxu0 0.0
        %4855 = vmatprep.subr.mxu0 0.0
        %4856 = vmatpush1.msra.mxu0 0.0
        %4857 = vmatprep.subr.mxu0 0.0
        %4858 = vmatpush1.msra.mxu0 0.0
        %4859 = vmatprep.subr.mxu0 0.0
        %4860 = vmatpush1.msra.mxu0 0.0
        %4861 = vmatprep.subr.mxu0 0.0
        %4862 = vmatpush1.msra.mxu0 0.0
        %4863 = vmatprep.subr.mxu0 0.0
        %4864 = vmatpush1.msra.mxu0 0.0
        %4865 = vmatprep.subr.mxu0 0.0
        %4866 = vmatpush1.msra.mxu0 0.0
        %4867 = vmatprep.subr.mxu0 0.0
        %4868 = vmatpush1.msra.mxu0 0.0
        %4869 = vmatprep.subr.mxu0 0.0
        %4870 = vmatpush1.msra.mxu0 0.0
        %4871 = vmatprep.subr.mxu0 0.0
        %4872 = vmatpush1.msra.mxu0 0.0
        %4873 = vmatprep.subr.mxu0 0.0
        %4874 = vmatpush1.msra.mxu0 0.0
        %4875 = vmatprep.subr.mxu0 0.0
        %4876 = vmatpush1.msra.mxu0 0.0
        %4877 = vmatprep.subr.mxu0 0.0
        %4878 = vmatpush1.msra.mxu0 0.0
        %4879 = vmatprep.subr.mxu0 0.0
        %4880 = vmatpush1.msra.mxu0 0.0
        %4881 = vmatprep.subr.mxu0 0.0
        %4882 = vmatpush1.msra.mxu0 0.0
        %4883 = vmatprep.subr.mxu0 0.0
        %4884 = vmatpush1.msra.mxu0 0.0
        %4885 = vmatprep.subr.mxu0 0.0
        %4886 = vmatpush1.msra.mxu0 0.0
        %4887 = vmatprep.subr.mxu0 0.0
        %4888 = vmatpush1.msra.mxu0 0.0
        %4889 = vmatprep.subr.mxu0 0.0
        %4890 = vmatpush1.msra.mxu0 0.0
        %4891 = vmatprep.subr.mxu0 0.0
        %4892 = vmatpush1.msra.mxu0 0.0
        %4893 = vmatprep.subr.mxu0 0.0
        %4894 = vmatpush1.msra.mxu0 0.0
        %4895 = vmatprep.subr.mxu0 0.0
        %4896 = vmatpush1.msra.mxu0 0.0
        %4897 = vmatprep.subr.mxu0 0.0
        %4898 = vmatpush1.msra.mxu0 0.0
        %4899 = vmatprep.subr.mxu0 0.0
        %4900 = vmatpush1.msra.mxu0 0.0
        %4901 = vmatprep.subr.mxu0 0.0
        %4902 = vmatpush1.msra.mxu0 0.0
        %4903 = vmatprep.subr.mxu0 0.0
        %4904 = vmatpush1.msra.mxu0 0.0
        %4905 = vmatprep.mubr.f32.mxu0 0.0
        %4906 = vmatmul.mubr.f32.gmra.mrb[0].mxu0 %v4555
        %v4907 = vpop.f32.mrb[0].mxu0
        %v4908 = vadd.f32 0.0, %v4907
        %v4909 = vpop.f32.mrb[0].mxu0
        %v4910 = vadd.f32 0.0, %v4909
        %4911 = vdwg.mxu0
        %4912 = vmatprep.subr.mxu0 %v3949
        %4913 = vmatpush1.msra.mxu0 %v3950
        %4914 = vmatprep.subr.mxu0 0.0
        %4915 = vmatpush1.msra.mxu0 0.0
        %4916 = vmatprep.subr.mxu0 0.0
        %4917 = vmatpush1.msra.mxu0 0.0
        %4918 = vmatprep.subr.mxu0 0.0
        %4919 = vmatpush1.msra.mxu0 0.0
        %4920 = vmatprep.subr.mxu0 0.0
        %4921 = vmatpush1.msra.mxu0 0.0
        %4922 = vmatprep.subr.mxu0 0.0
        %4923 = vmatpush1.msra.mxu0 0.0
        %4924 = vmatprep.subr.mxu0 0.0
        %4925 = vmatpush1.msra.mxu0 0.0
        %4926 = vmatprep.subr.mxu0 0.0
        %4927 = vmatpush1.msra.mxu0 0.0
        %4928 = vmatprep.subr.mxu0 0.0
        %4929 = vmatpush1.msra.mxu0 0.0
        %4930 = vmatprep.subr.mxu0 0.0
        %4931 = vmatpush1.msra.mxu0 0.0
        %4932 = vmatprep.subr.mxu0 0.0
        %4933 = vmatpush1.msra.mxu0 0.0
        %4934 = vmatprep.subr.mxu0 0.0
        %4935 = vmatpush1.msra.mxu0 0.0
        %4936 = vmatprep.subr.mxu0 0.0
        %4937 = vmatpush1.msra.mxu0 0.0
        %4938 = vmatprep.subr.mxu0 0.0
        %4939 = vmatpush1.msra.mxu0 0.0
        %4940 = vmatprep.subr.mxu0 0.0
        %4941 = vmatpush1.msra.mxu0 0.0
        %4942 = vmatprep.subr.mxu0 0.0
        %4943 = vmatpush1.msra.mxu0 0.0
        %4944 = vmatprep.subr.mxu0 0.0
        %4945 = vmatpush1.msra.mxu0 0.0
        %4946 = vmatprep.subr.mxu0 0.0
        %4947 = vmatpush1.msra.mxu0 0.0
        %4948 = vmatprep.subr.mxu0 0.0
        %4949 = vmatpush1.msra.mxu0 0.0
        %4950 = vmatprep.subr.mxu0 0.0
        %4951 = vmatpush1.msra.mxu0 0.0
        %4952 = vmatprep.subr.mxu0 0.0
        %4953 = vmatpush1.msra.mxu0 0.0
        %4954 = vmatprep.subr.mxu0 0.0
        %4955 = vmatpush1.msra.mxu0 0.0
        %4956 = vmatprep.subr.mxu0 0.0
        %4957 = vmatpush1.msra.mxu0 0.0
        %4958 = vmatprep.subr.mxu0 0.0
        %4959 = vmatpush1.msra.mxu0 0.0
        %4960 = vmatprep.subr.mxu0 0.0
        %4961 = vmatpush1.msra.mxu0 0.0
        %4962 = vmatprep.subr.mxu0 0.0
        %4963 = vmatpush1.msra.mxu0 0.0
        %4964 = vmatprep.subr.mxu0 0.0
        %4965 = vmatpush1.msra.mxu0 0.0
        %4966 = vmatprep.subr.mxu0 0.0
        %4967 = vmatpush1.msra.mxu0 0.0
        %4968 = vmatprep.subr.mxu0 0.0
        %4969 = vmatpush1.msra.mxu0 0.0
        %4970 = vmatprep.subr.mxu0 0.0
        %4971 = vmatpush1.msra.mxu0 0.0
        %4972 = vmatprep.subr.mxu0 0.0
        %4973 = vmatpush1.msra.mxu0 0.0
        %4974 = vmatprep.subr.mxu0 0.0
        %4975 = vmatpush1.msra.mxu0 0.0
        %4976 = vmatprep.mubr.f32.mxu0 0.0
        %4977 = vmatmul.mubr.f32.gmra.mrb[0].mxu0 %v4555
        %v4978 = vpop.f32.mrb[0].mxu0
        %v4979 = vadd.f32 0.0, %v4978
        %v4980 = vpop.f32.mrb[0].mxu0
        %v4981 = vadd.f32 0.0, %v4980
        %4982 = vdwg.mxu0
        %4983 = vmatprep.subr.mxu0 %v3947
        %4984 = vmatpush1.msra.mxu0 %v3948
        %4985 = vmatprep.subr.mxu0 0.0
        %4986 = vmatpush1.msra.mxu0 0.0
        %4987 = vmatprep.subr.mxu0 0.0
        %4988 = vmatpush1.msra.mxu0 0.0
        %4989 = vmatprep.subr.mxu0 0.0
        %4990 = vmatpush1.msra.mxu0 0.0
        %4991 = vmatprep.subr.mxu0 0.0
        %4992 = vmatpush1.msra.mxu0 0.0
        %4993 = vmatprep.subr.mxu0 0.0
        %4994 = vmatpush1.msra.mxu0 0.0
        %4995 = vmatprep.subr.mxu0 0.0
        %4996 = vmatpush1.msra.mxu0 0.0
        %4997 = vmatprep.subr.mxu0 0.0
        %4998 = vmatpush1.msra.mxu0 0.0
        %4999 = vmatprep.subr.mxu0 0.0
        %5000 = vmatpush1.msra.mxu0 0.0
        %5001 = vmatprep.subr.mxu0 0.0
        %5002 = vmatpush1.msra.mxu0 0.0
        %5003 = vmatprep.subr.mxu0 0.0
        %5004 = vmatpush1.msra.mxu0 0.0
        %5005 = vmatprep.subr.mxu0 0.0
        %5006 = vmatpush1.msra.mxu0 0.0
        %5007 = vmatprep.subr.mxu0 0.0
        %5008 = vmatpush1.msra.mxu0 0.0
        %5009 = vmatprep.subr.mxu0 0.0
        %5010 = vmatpush1.msra.mxu0 0.0
        %5011 = vmatprep.subr.mxu0 0.0
        %5012 = vmatpush1.msra.mxu0 0.0
        %5013 = vmatprep.subr.mxu0 0.0
        %5014 = vmatpush1.msra.mxu0 0.0
        %5015 = vmatprep.subr.mxu0 0.0
        %5016 = vmatpush1.msra.mxu0 0.0
        %5017 = vmatprep.subr.mxu0 0.0
        %5018 = vmatpush1.msra.mxu0 0.0
        %5019 = vmatprep.subr.mxu0 0.0
        %5020 = vmatpush1.msra.mxu0 0.0
        %5021 = vmatprep.subr.mxu0 0.0
        %5022 = vmatpush1.msra.mxu0 0.0
        %5023 = vmatprep.subr.mxu0 0.0
        %5024 = vmatpush1.msra.mxu0 0.0
        %5025 = vmatprep.subr.mxu0 0.0
        %5026 = vmatpush1.msra.mxu0 0.0
        %5027 = vmatprep.subr.mxu0 0.0
        %5028 = vmatpush1.msra.mxu0 0.0
        %5029 = vmatprep.subr.mxu0 0.0
        %5030 = vmatpush1.msra.mxu0 0.0
        %5031 = vmatprep.subr.mxu0 0.0
        %5032 = vmatpush1.msra.mxu0 0.0
        %5033 = vmatprep.subr.mxu0 0.0
        %5034 = vmatpush1.msra.mxu0 0.0
        %5035 = vmatprep.subr.mxu0 0.0
        %5036 = vmatpush1.msra.mxu0 0.0
        %5037 = vmatprep.subr.mxu0 0.0
        %5038 = vmatpush1.msra.mxu0 0.0
        %5039 = vmatprep.subr.mxu0 0.0
        %5040 = vmatpush1.msra.mxu0 0.0
        %5041 = vmatprep.subr.mxu0 0.0
        %5042 = vmatpush1.msra.mxu0 0.0
        %5043 = vmatprep.subr.mxu0 0.0
        %5044 = vmatpush1.msra.mxu0 0.0
        %5045 = vmatprep.subr.mxu0 0.0
        %5046 = vmatpush1.msra.mxu0 0.0
        %5047 = vmatprep.mubr.f32.mxu0 0.0
        %5048 = vmatmul.mubr.f32.gmra.mrb[0].mxu0 %v4555
        %v5049 = vpop.f32.mrb[0].mxu0
        %v5050 = vadd.f32 0.0, %v5049
        %v5051 = vpop.f32.mrb[0].mxu0
        %v5052 = vadd.f32 0.0, %v5051
        %5053 = vdwg.mxu0
        %5054 = vmatprep.subr.mxu0 %v3945
        %5055 = vmatpush1.msra.mxu0 %v3946
        %5056 = vmatprep.subr.mxu0 0.0
        %5057 = vmatpush1.msra.mxu0 0.0
        %5058 = vmatprep.subr.mxu0 0.0
        %5059 = vmatpush1.msra.mxu0 0.0
        %5060 = vmatprep.subr.mxu0 0.0
        %5061 = vmatpush1.msra.mxu0 0.0
        %5062 = vmatprep.subr.mxu0 0.0
        %5063 = vmatpush1.msra.mxu0 0.0
        %5064 = vmatprep.subr.mxu0 0.0
        %5065 = vmatpush1.msra.mxu0 0.0
        %5066 = vmatprep.subr.mxu0 0.0
        %5067 = vmatpush1.msra.mxu0 0.0
        %5068 = vmatprep.subr.mxu0 0.0
        %5069 = vmatpush1.msra.mxu0 0.0
        %5070 = vmatprep.subr.mxu0 0.0
        %5071 = vmatpush1.msra.mxu0 0.0
        %5072 = vmatprep.subr.mxu0 0.0
        %5073 = vmatpush1.msra.mxu0 0.0
        %5074 = vmatprep.subr.mxu0 0.0
        %5075 = vmatpush1.msra.mxu0 0.0
        %5076 = vmatprep.subr.mxu0 0.0
        %5077 = vmatpush1.msra.mxu0 0.0
        %5078 = vmatprep.subr.mxu0 0.0
        %5079 = vmatpush1.msra.mxu0 0.0
        %5080 = vmatprep.subr.mxu0 0.0
        %5081 = vmatpush1.msra.mxu0 0.0
        %5082 = vmatprep.subr.mxu0 0.0
        %5083 = vmatpush1.msra.mxu0 0.0
        %5084 = vmatprep.subr.mxu0 0.0
        %5085 = vmatpush1.msra.mxu0 0.0
        %5086 = vmatprep.subr.mxu0 0.0
        %5087 = vmatpush1.msra.mxu0 0.0
        %5088 = vmatprep.subr.mxu0 0.0
        %5089 = vmatpush1.msra.mxu0 0.0
        %5090 = vmatprep.subr.mxu0 0.0
        %5091 = vmatpush1.msra.mxu0 0.0
        %5092 = vmatprep.subr.mxu0 0.0
        %5093 = vmatpush1.msra.mxu0 0.0
        %5094 = vmatprep.subr.mxu0 0.0
        %5095 = vmatpush1.msra.mxu0 0.0
        %5096 = vmatprep.subr.mxu0 0.0
        %5097 = vmatpush1.msra.mxu0 0.0
        %5098 = vmatprep.subr.mxu0 0.0
        %5099 = vmatpush1.msra.mxu0 0.0
        %5100 = vmatprep.subr.mxu0 0.0
        %5101 = vmatpush1.msra.mxu0 0.0
        %5102 = vmatprep.subr.mxu0 0.0
        %5103 = vmatpush1.msra.mxu0 0.0
        %5104 = vmatprep.subr.mxu0 0.0
        %5105 = vmatpush1.msra.mxu0 0.0
        %5106 = vmatprep.subr.mxu0 0.0
        %5107 = vmatpush1.msra.mxu0 0.0
        %5108 = vmatprep.subr.mxu0 0.0
        %5109 = vmatpush1.msra.mxu0 0.0
        %5110 = vmatprep.subr.mxu0 0.0
        %5111 = vmatpush1.msra.mxu0 0.0
        %5112 = vmatprep.subr.mxu0 0.0
        %5113 = vmatpush1.msra.mxu0 0.0
        %5114 = vmatprep.subr.mxu0 0.0
        %5115 = vmatpush1.msra.mxu0 0.0
        %5116 = vmatprep.subr.mxu0 0.0
        %5117 = vmatpush1.msra.mxu0 0.0
        %5118 = vmatprep.mubr.f32.mxu0 0.0
        %5119 = vmatmul.mubr.f32.gmra.mrb[0].mxu0 %v4555
        %v5120 = vpop.f32.mrb[0].mxu0
        %v5121 = vadd.f32 0.0, %v5120
        %v5122 = vpop.f32.mrb[0].mxu0
        %v5123 = vadd.f32 0.0, %v5122
        %5124 = vdwg.mxu0
        %v5125 = vadd.f32 %v4536, %v4624
        %v5126 = vadd.f32 %v4537, %v4626
        %v5127 = vadd.f32 %v4538, %v4695
        %v5128 = vadd.f32 %v4539, %v4697
        %v5129 = vadd.f32 %v4540, %v4766
        %v5130 = vadd.f32 %v4541, %v4768
        %v5131 = vadd.f32 %v4542, %v4837
        %v5132 = vadd.f32 %v4543, %v4839
        %v5133 = vadd.f32 %v4544, %v4908
        %v5134 = vadd.f32 %v4545, %v4910
        %v5135 = vadd.f32 %v4546, %v4979
        %v5136 = vadd.f32 %v4547, %v4981
        %v5137 = vadd.f32 %v4548, %v5050
        %v5138 = vadd.f32 %v4549, %v5052
        %v5139 = vadd.f32 %v4550, %v5121
        %v5140 = vadd.f32 %v4551, %v5123
        %s5141 = scalar_lea.vmem %s3, 64
        %v5142 = vld [vmem:[%s5141] sm:$0xff]
        %v5144 = vsel %vm409, %v5142, 0
        %5146 = vmatprep.subr.mxu0 %v3958
        %5147 = vmatpush1.msra.mxu0 %v3959
        %5148 = vmatprep.subr.mxu0 0.0
        %5149 = vmatpush1.msra.mxu0 0.0
        %5150 = vmatprep.subr.mxu0 0.0
        %5151 = vmatpush1.msra.mxu0 0.0
        %5152 = vmatprep.subr.mxu0 0.0
        %5153 = vmatpush1.msra.mxu0 0.0
        %5154 = vmatprep.subr.mxu0 0.0
        %5155 = vmatpush1.msra.mxu0 0.0
        %5156 = vmatprep.subr.mxu0 0.0
        %5157 = vmatpush1.msra.mxu0 0.0
        %5158 = vmatprep.subr.mxu0 0.0
        %5159 = vmatpush1.msra.mxu0 0.0
        %5160 = vmatprep.subr.mxu0 0.0
        %5161 = vmatpush1.msra.mxu0 0.0
        %5162 = vmatprep.subr.mxu0 0.0
        %5163 = vmatpush1.msra.mxu0 0.0
        %5164 = vmatprep.subr.mxu0 0.0
        %5165 = vmatpush1.msra.mxu0 0.0
        %5166 = vmatprep.subr.mxu0 0.0
        %5167 = vmatpush1.msra.mxu0 0.0
        %5168 = vmatprep.subr.mxu0 0.0
        %5169 = vmatpush1.msra.mxu0 0.0
        %5170 = vmatprep.subr.mxu0 0.0
        %5171 = vmatpush1.msra.mxu0 0.0
        %5172 = vmatprep.subr.mxu0 0.0
        %5173 = vmatpush1.msra.mxu0 0.0
        %5174 = vmatprep.subr.mxu0 0.0
        %5175 = vmatpush1.msra.mxu0 0.0
        %5176 = vmatprep.subr.mxu0 0.0
        %5177 = vmatpush1.msra.mxu0 0.0
        %5178 = vmatprep.subr.mxu0 0.0
        %5179 = vmatpush1.msra.mxu0 0.0
        %5180 = vmatprep.subr.mxu0 0.0
        %5181 = vmatpush1.msra.mxu0 0.0
        %5182 = vmatprep.subr.mxu0 0.0
        %5183 = vmatpush1.msra.mxu0 0.0
        %5184 = vmatprep.subr.mxu0 0.0
        %5185 = vmatpush1.msra.mxu0 0.0
        %5186 = vmatprep.subr.mxu0 0.0
        %5187 = vmatpush1.msra.mxu0 0.0
        %5188 = vmatprep.subr.mxu0 0.0
        %5189 = vmatpush1.msra.mxu0 0.0
        %5190 = vmatprep.subr.mxu0 0.0
        %5191 = vmatpush1.msra.mxu0 0.0
        %5192 = vmatprep.subr.mxu0 0.0
        %5193 = vmatpush1.msra.mxu0 0.0
        %5194 = vmatprep.subr.mxu0 0.0
        %5195 = vmatpush1.msra.mxu0 0.0
        %5196 = vmatprep.subr.mxu0 0.0
        %5197 = vmatpush1.msra.mxu0 0.0
        %5198 = vmatprep.subr.mxu0 0.0
        %5199 = vmatpush1.msra.mxu0 0.0
        %5200 = vmatprep.subr.mxu0 0.0
        %5201 = vmatpush1.msra.mxu0 0.0
        %5202 = vmatprep.subr.mxu0 0.0
        %5203 = vmatpush1.msra.mxu0 0.0
        %5204 = vmatprep.subr.mxu0 0.0
        %5205 = vmatpush1.msra.mxu0 0.0
        %5206 = vmatprep.subr.mxu0 0.0
        %5207 = vmatpush1.msra.mxu0 0.0
        %5208 = vmatprep.subr.mxu0 0.0
        %5209 = vmatpush1.msra.mxu0 0.0
        %5210 = vmatprep.mubr.f32.mxu0 0.0
        %5211 = vmatmul.mubr.f32.gmra.mrb[0].mxu0 %v5144
        %v5212 = vpop.f32.mrb[0].mxu0
        %v5213 = vadd.f32 0.0, %v5212
        %v5214 = vpop.f32.mrb[0].mxu0
        %v5215 = vadd.f32 0.0, %v5214
        %5216 = vdwg.mxu0
        %5217 = vmatprep.subr.mxu0 %v3956
        %5218 = vmatpush1.msra.mxu0 %v3957
        %5219 = vmatprep.subr.mxu0 0.0
        %5220 = vmatpush1.msra.mxu0 0.0
        %5221 = vmatprep.subr.mxu0 0.0
        %5222 = vmatpush1.msra.mxu0 0.0
        %5223 = vmatprep.subr.mxu0 0.0
        %5224 = vmatpush1.msra.mxu0 0.0
        %5225 = vmatprep.subr.mxu0 0.0
        %5226 = vmatpush1.msra.mxu0 0.0
        %5227 = vmatprep.subr.mxu0 0.0
        %5228 = vmatpush1.msra.mxu0 0.0
        %5229 = vmatprep.subr.mxu0 0.0
        %5230 = vmatpush1.msra.mxu0 0.0
        %5231 = vmatprep.subr.mxu0 0.0
        %5232 = vmatpush1.msra.mxu0 0.0
        %5233 = vmatprep.subr.mxu0 0.0
        %5234 = vmatpush1.msra.mxu0 0.0
        %5235 = vmatprep.subr.mxu0 0.0
        %5236 = vmatpush1.msra.mxu0 0.0
        %5237 = vmatprep.subr.mxu0 0.0
        %5238 = vmatpush1.msra.mxu0 0.0
        %5239 = vmatprep.subr.mxu0 0.0
        %5240 = vmatpush1.msra.mxu0 0.0
        %5241 = vmatprep.subr.mxu0 0.0
        %5242 = vmatpush1.msra.mxu0 0.0
        %5243 = vmatprep.subr.mxu0 0.0
        %5244 = vmatpush1.msra.mxu0 0.0
        %5245 = vmatprep.subr.mxu0 0.0
        %5246 = vmatpush1.msra.mxu0 0.0
        %5247 = vmatprep.subr.mxu0 0.0
        %5248 = vmatpush1.msra.mxu0 0.0
        %5249 = vmatprep.subr.mxu0 0.0
        %5250 = vmatpush1.msra.mxu0 0.0
        %5251 = vmatprep.subr.mxu0 0.0
        %5252 = vmatpush1.msra.mxu0 0.0
        %5253 = vmatprep.subr.mxu0 0.0
        %5254 = vmatpush1.msra.mxu0 0.0
        %5255 = vmatprep.subr.mxu0 0.0
        %5256 = vmatpush1.msra.mxu0 0.0
        %5257 = vmatprep.subr.mxu0 0.0
        %5258 = vmatpush1.msra.mxu0 0.0
        %5259 = vmatprep.subr.mxu0 0.0
        %5260 = vmatpush1.msra.mxu0 0.0
        %5261 = vmatprep.subr.mxu0 0.0
        %5262 = vmatpush1.msra.mxu0 0.0
        %5263 = vmatprep.subr.mxu0 0.0
        %5264 = vmatpush1.msra.mxu0 0.0
        %5265 = vmatprep.subr.mxu0 0.0
        %5266 = vmatpush1.msra.mxu0 0.0
        %5267 = vmatprep.subr.mxu0 0.0
        %5268 = vmatpush1.msra.mxu0 0.0
        %5269 = vmatprep.subr.mxu0 0.0
        %5270 = vmatpush1.msra.mxu0 0.0
        %5271 = vmatprep.subr.mxu0 0.0
        %5272 = vmatpush1.msra.mxu0 0.0
        %5273 = vmatprep.subr.mxu0 0.0
        %5274 = vmatpush1.msra.mxu0 0.0
        %5275 = vmatprep.subr.mxu0 0.0
        %5276 = vmatpush1.msra.mxu0 0.0
        %5277 = vmatprep.subr.mxu0 0.0
        %5278 = vmatpush1.msra.mxu0 0.0
        %5279 = vmatprep.subr.mxu0 0.0
        %5280 = vmatpush1.msra.mxu0 0.0
        %5281 = vmatprep.mubr.f32.mxu0 0.0
        %5282 = vmatmul.mubr.f32.gmra.mrb[0].mxu0 %v5144
        %v5283 = vpop.f32.mrb[0].mxu0
        %v5284 = vadd.f32 0.0, %v5283
        %v5285 = vpop.f32.mrb[0].mxu0
        %v5286 = vadd.f32 0.0, %v5285
        %5287 = vdwg.mxu0
        %5288 = vmatprep.subr.mxu0 %v3954
        %5289 = vmatpush1.msra.mxu0 %v3955
        %5290 = vmatprep.subr.mxu0 0.0
        %5291 = vmatpush1.msra.mxu0 0.0
        %5292 = vmatprep.subr.mxu0 0.0
        %5293 = vmatpush1.msra.mxu0 0.0
        %5294 = vmatprep.subr.mxu0 0.0
        %5295 = vmatpush1.msra.mxu0 0.0
        %5296 = vmatprep.subr.mxu0 0.0
        %5297 = vmatpush1.msra.mxu0 0.0
        %5298 = vmatprep.subr.mxu0 0.0
        %5299 = vmatpush1.msra.mxu0 0.0
        %5300 = vmatprep.subr.mxu0 0.0
        %5301 = vmatpush1.msra.mxu0 0.0
        %5302 = vmatprep.subr.mxu0 0.0
        %5303 = vmatpush1.msra.mxu0 0.0
        %5304 = vmatprep.subr.mxu0 0.0
        %5305 = vmatpush1.msra.mxu0 0.0
        %5306 = vmatprep.subr.mxu0 0.0
        %5307 = vmatpush1.msra.mxu0 0.0
        %5308 = vmatprep.subr.mxu0 0.0
        %5309 = vmatpush1.msra.mxu0 0.0
        %5310 = vmatprep.subr.mxu0 0.0
        %5311 = vmatpush1.msra.mxu0 0.0
        %5312 = vmatprep.subr.mxu0 0.0
        %5313 = vmatpush1.msra.mxu0 0.0
        %5314 = vmatprep.subr.mxu0 0.0
        %5315 = vmatpush1.msra.mxu0 0.0
        %5316 = vmatprep.subr.mxu0 0.0
        %5317 = vmatpush1.msra.mxu0 0.0
        %5318 = vmatprep.subr.mxu0 0.0
        %5319 = vmatpush1.msra.mxu0 0.0
        %5320 = vmatprep.subr.mxu0 0.0
        %5321 = vmatpush1.msra.mxu0 0.0
        %5322 = vmatprep.subr.mxu0 0.0
        %5323 = vmatpush1.msra.mxu0 0.0
        %5324 = vmatprep.subr.mxu0 0.0
        %5325 = vmatpush1.msra.mxu0 0.0
        %5326 = vmatprep.subr.mxu0 0.0
        %5327 = vmatpush1.msra.mxu0 0.0
        %5328 = vmatprep.subr.mxu0 0.0
        %5329 = vmatpush1.msra.mxu0 0.0
        %5330 = vmatprep.subr.mxu0 0.0
        %5331 = vmatpush1.msra.mxu0 0.0
        %5332 = vmatprep.subr.mxu0 0.0
        %5333 = vmatpush1.msra.mxu0 0.0
        %5334 = vmatprep.subr.mxu0 0.0
        %5335 = vmatpush1.msra.mxu0 0.0
        %5336 = vmatprep.subr.mxu0 0.0
        %5337 = vmatpush1.msra.mxu0 0.0
        %5338 = vmatprep.subr.mxu0 0.0
        %5339 = vmatpush1.msra.mxu0 0.0
        %5340 = vmatprep.subr.mxu0 0.0
        %5341 = vmatpush1.msra.mxu0 0.0
        %5342 = vmatprep.subr.mxu0 0.0
        %5343 = vmatpush1.msra.mxu0 0.0
        %5344 = vmatprep.subr.mxu0 0.0
        %5345 = vmatpush1.msra.mxu0 0.0
        %5346 = vmatprep.subr.mxu0 0.0
        %5347 = vmatpush1.msra.mxu0 0.0
        %5348 = vmatprep.subr.mxu0 0.0
        %5349 = vmatpush1.msra.mxu0 0.0
        %5350 = vmatprep.subr.mxu0 0.0
        %5351 = vmatpush1.msra.mxu0 0.0
        %5352 = vmatprep.mubr.f32.mxu0 0.0
        %5353 = vmatmul.mubr.f32.gmra.mrb[0].mxu0 %v5144
        %v5354 = vpop.f32.mrb[0].mxu0
        %v5355 = vadd.f32 0.0, %v5354
        %v5356 = vpop.f32.mrb[0].mxu0
        %v5357 = vadd.f32 0.0, %v5356
        %5358 = vdwg.mxu0
        %5359 = vmatprep.subr.mxu0 %v3952
        %5360 = vmatpush1.msra.mxu0 %v3953
        %5361 = vmatprep.subr.mxu0 0.0
        %5362 = vmatpush1.msra.mxu0 0.0
        %5363 = vmatprep.subr.mxu0 0.0
        %5364 = vmatpush1.msra.mxu0 0.0
        %5365 = vmatprep.subr.mxu0 0.0
        %5366 = vmatpush1.msra.mxu0 0.0
        %5367 = vmatprep.subr.mxu0 0.0
        %5368 = vmatpush1.msra.mxu0 0.0
        %5369 = vmatprep.subr.mxu0 0.0
        %5370 = vmatpush1.msra.mxu0 0.0
        %5371 = vmatprep.subr.mxu0 0.0
        %5372 = vmatpush1.msra.mxu0 0.0
        %5373 = vmatprep.subr.mxu0 0.0
        %5374 = vmatpush1.msra.mxu0 0.0
        %5375 = vmatprep.subr.mxu0 0.0
        %5376 = vmatpush1.msra.mxu0 0.0
        %5377 = vmatprep.subr.mxu0 0.0
        %5378 = vmatpush1.msra.mxu0 0.0
        %5379 = vmatprep.subr.mxu0 0.0
        %5380 = vmatpush1.msra.mxu0 0.0
        %5381 = vmatprep.subr.mxu0 0.0
        %5382 = vmatpush1.msra.mxu0 0.0
        %5383 = vmatprep.subr.mxu0 0.0
        %5384 = vmatpush1.msra.mxu0 0.0
        %5385 = vmatprep.subr.mxu0 0.0
        %5386 = vmatpush1.msra.mxu0 0.0
        %5387 = vmatprep.subr.mxu0 0.0
        %5388 = vmatpush1.msra.mxu0 0.0
        %5389 = vmatprep.subr.mxu0 0.0
        %5390 = vmatpush1.msra.mxu0 0.0
        %5391 = vmatprep.subr.mxu0 0.0
        %5392 = vmatpush1.msra.mxu0 0.0
        %5393 = vmatprep.subr.mxu0 0.0
        %5394 = vmatpush1.msra.mxu0 0.0
        %5395 = vmatprep.subr.mxu0 0.0
        %5396 = vmatpush1.msra.mxu0 0.0
        %5397 = vmatprep.subr.mxu0 0.0
        %5398 = vmatpush1.msra.mxu0 0.0
        %5399 = vmatprep.subr.mxu0 0.0
        %5400 = vmatpush1.msra.mxu0 0.0
        %5401 = vmatprep.subr.mxu0 0.0
        %5402 = vmatpush1.msra.mxu0 0.0
        %5403 = vmatprep.subr.mxu0 0.0
        %5404 = vmatpush1.msra.mxu0 0.0
        %5405 = vmatprep.subr.mxu0 0.0
        %5406 = vmatpush1.msra.mxu0 0.0
        %5407 = vmatprep.subr.mxu0 0.0
        %5408 = vmatpush1.msra.mxu0 0.0
        %5409 = vmatprep.subr.mxu0 0.0
        %5410 = vmatpush1.msra.mxu0 0.0
        %5411 = vmatprep.subr.mxu0 0.0
        %5412 = vmatpush1.msra.mxu0 0.0
        %5413 = vmatprep.subr.mxu0 0.0
        %5414 = vmatpush1.msra.mxu0 0.0
        %5415 = vmatprep.subr.mxu0 0.0
        %5416 = vmatpush1.msra.mxu0 0.0
        %5417 = vmatprep.subr.mxu0 0.0
        %5418 = vmatpush1.msra.mxu0 0.0
        %5419 = vmatprep.subr.mxu0 0.0
        %5420 = vmatpush1.msra.mxu0 0.0
        %5421 = vmatprep.subr.mxu0 0.0
        %5422 = vmatpush1.msra.mxu0 0.0
        %5423 = vmatprep.mubr.f32.mxu0 0.0
        %5424 = vmatmul.mubr.f32.gmra.mrb[0].mxu0 %v5144
        %v5425 = vpop.f32.mrb[0].mxu0
        %v5426 = vadd.f32 0.0, %v5425
        %v5427 = vpop.f32.mrb[0].mxu0
        %v5428 = vadd.f32 0.0, %v5427
        %5429 = vdwg.mxu0
        %5430 = vmatprep.subr.mxu0 %v3950
        %5431 = vmatpush1.msra.mxu0 %v3951
        %5432 = vmatprep.subr.mxu0 0.0
        %5433 = vmatpush1.msra.mxu0 0.0
        %5434 = vmatprep.subr.mxu0 0.0
        %5435 = vmatpush1.msra.mxu0 0.0
        %5436 = vmatprep.subr.mxu0 0.0
        %5437 = vmatpush1.msra.mxu0 0.0
        %5438 = vmatprep.subr.mxu0 0.0
        %5439 = vmatpush1.msra.mxu0 0.0
        %5440 = vmatprep.subr.mxu0 0.0
        %5441 = vmatpush1.msra.mxu0 0.0
        %5442 = vmatprep.subr.mxu0 0.0
        %5443 = vmatpush1.msra.mxu0 0.0
        %5444 = vmatprep.subr.mxu0 0.0
        %5445 = vmatpush1.msra.mxu0 0.0
        %5446 = vmatprep.subr.mxu0 0.0
        %5447 = vmatpush1.msra.mxu0 0.0
        %5448 = vmatprep.subr.mxu0 0.0
        %5449 = vmatpush1.msra.mxu0 0.0
        %5450 = vmatprep.subr.mxu0 0.0
        %5451 = vmatpush1.msra.mxu0 0.0
        %5452 = vmatprep.subr.mxu0 0.0
        %5453 = vmatpush1.msra.mxu0 0.0
        %5454 = vmatprep.subr.mxu0 0.0
        %5455 = vmatpush1.msra.mxu0 0.0
        %5456 = vmatprep.subr.mxu0 0.0
        %5457 = vmatpush1.msra.mxu0 0.0
        %5458 = vmatprep.subr.mxu0 0.0
        %5459 = vmatpush1.msra.mxu0 0.0
        %5460 = vmatprep.subr.mxu0 0.0
        %5461 = vmatpush1.msra.mxu0 0.0
        %5462 = vmatprep.subr.mxu0 0.0
        %5463 = vmatpush1.msra.mxu0 0.0
        %5464 = vmatprep.subr.mxu0 0.0
        %5465 = vmatpush1.msra.mxu0 0.0
        %5466 = vmatprep.subr.mxu0 0.0
        %5467 = vmatpush1.msra.mxu0 0.0
        %5468 = vmatprep.subr.mxu0 0.0
        %5469 = vmatpush1.msra.mxu0 0.0
        %5470 = vmatprep.subr.mxu0 0.0
        %5471 = vmatpush1.msra.mxu0 0.0
        %5472 = vmatprep.subr.mxu0 0.0
        %5473 = vmatpush1.msra.mxu0 0.0
        %5474 = vmatprep.subr.mxu0 0.0
        %5475 = vmatpush1.msra.mxu0 0.0
        %5476 = vmatprep.subr.mxu0 0.0
        %5477 = vmatpush1.msra.mxu0 0.0
        %5478 = vmatprep.subr.mxu0 0.0
        %5479 = vmatpush1.msra.mxu0 0.0
        %5480 = vmatprep.subr.mxu0 0.0
        %5481 = vmatpush1.msra.mxu0 0.0
        %5482 = vmatprep.subr.mxu0 0.0
        %5483 = vmatpush1.msra.mxu0 0.0
        %5484 = vmatprep.subr.mxu0 0.0
        %5485 = vmatpush1.msra.mxu0 0.0
        %5486 = vmatprep.subr.mxu0 0.0
        %5487 = vmatpush1.msra.mxu0 0.0
        %5488 = vmatprep.subr.mxu0 0.0
        %5489 = vmatpush1.msra.mxu0 0.0
        %5490 = vmatprep.subr.mxu0 0.0
        %5491 = vmatpush1.msra.mxu0 0.0
        %5492 = vmatprep.subr.mxu0 0.0
        %5493 = vmatpush1.msra.mxu0 0.0
        %5494 = vmatprep.mubr.f32.mxu0 0.0
        %5495 = vmatmul.mubr.f32.gmra.mrb[0].mxu0 %v5144
        %v5496 = vpop.f32.mrb[0].mxu0
        %v5497 = vadd.f32 0.0, %v5496
        %v5498 = vpop.f32.mrb[0].mxu0
        %v5499 = vadd.f32 0.0, %v5498
        %5500 = vdwg.mxu0
        %5501 = vmatprep.subr.mxu0 %v3948
        %5502 = vmatpush1.msra.mxu0 %v3949
        %5503 = vmatprep.subr.mxu0 0.0
        %5504 = vmatpush1.msra.mxu0 0.0
        %5505 = vmatprep.subr.mxu0 0.0
        %5506 = vmatpush1.msra.mxu0 0.0
        %5507 = vmatprep.subr.mxu0 0.0
        %5508 = vmatpush1.msra.mxu0 0.0
        %5509 = vmatprep.subr.mxu0 0.0
        %5510 = vmatpush1.msra.mxu0 0.0
        %5511 = vmatprep.subr.mxu0 0.0
        %5512 = vmatpush1.msra.mxu0 0.0
        %5513 = vmatprep.subr.mxu0 0.0
        %5514 = vmatpush1.msra.mxu0 0.0
        %5515 = vmatprep.subr.mxu0 0.0
        %5516 = vmatpush1.msra.mxu0 0.0
        %5517 = vmatprep.subr.mxu0 0.0
        %5518 = vmatpush1.msra.mxu0 0.0
        %5519 = vmatprep.subr.mxu0 0.0
        %5520 = vmatpush1.msra.mxu0 0.0
        %5521 = vmatprep.subr.mxu0 0.0
        %5522 = vmatpush1.msra.mxu0 0.0
        %5523 = vmatprep.subr.mxu0 0.0
        %5524 = vmatpush1.msra.mxu0 0.0
        %5525 = vmatprep.subr.mxu0 0.0
        %5526 = vmatpush1.msra.mxu0 0.0
        %5527 = vmatprep.subr.mxu0 0.0
        %5528 = vmatpush1.msra.mxu0 0.0
        %5529 = vmatprep.subr.mxu0 0.0
        %5530 = vmatpush1.msra.mxu0 0.0
        %5531 = vmatprep.subr.mxu0 0.0
        %5532 = vmatpush1.msra.mxu0 0.0
        %5533 = vmatprep.subr.mxu0 0.0
        %5534 = vmatpush1.msra.mxu0 0.0
        %5535 = vmatprep.subr.mxu0 0.0
        %5536 = vmatpush1.msra.mxu0 0.0
        %5537 = vmatprep.subr.mxu0 0.0
        %5538 = vmatpush1.msra.mxu0 0.0
        %5539 = vmatprep.subr.mxu0 0.0
        %5540 = vmatpush1.msra.mxu0 0.0
        %5541 = vmatprep.subr.mxu0 0.0
        %5542 = vmatpush1.msra.mxu0 0.0
        %5543 = vmatprep.subr.mxu0 0.0
        %5544 = vmatpush1.msra.mxu0 0.0
        %5545 = vmatprep.subr.mxu0 0.0
        %5546 = vmatpush1.msra.mxu0 0.0
        %5547 = vmatprep.subr.mxu0 0.0
        %5548 = vmatpush1.msra.mxu0 0.0
        %5549 = vmatprep.subr.mxu0 0.0
        %5550 = vmatpush1.msra.mxu0 0.0
        %5551 = vmatprep.subr.mxu0 0.0
        %5552 = vmatpush1.msra.mxu0 0.0
        %5553 = vmatprep.subr.mxu0 0.0
        %5554 = vmatpush1.msra.mxu0 0.0
        %5555 = vmatprep.subr.mxu0 0.0
        %5556 = vmatpush1.msra.mxu0 0.0
        %5557 = vmatprep.subr.mxu0 0.0
        %5558 = vmatpush1.msra.mxu0 0.0
        %5559 = vmatprep.subr.mxu0 0.0
        %5560 = vmatpush1.msra.mxu0 0.0
        %5561 = vmatprep.subr.mxu0 0.0
        %5562 = vmatpush1.msra.mxu0 0.0
        %5563 = vmatprep.subr.mxu0 0.0
        %5564 = vmatpush1.msra.mxu0 0.0
        %5565 = vmatprep.mubr.f32.mxu0 0.0
        %5566 = vmatmul.mubr.f32.gmra.mrb[0].mxu0 %v5144
        %v5567 = vpop.f32.mrb[0].mxu0
        %v5568 = vadd.f32 0.0, %v5567
        %v5569 = vpop.f32.mrb[0].mxu0
        %v5570 = vadd.f32 0.0, %v5569
        %5571 = vdwg.mxu0
        %5572 = vmatprep.subr.mxu0 %v3946
        %5573 = vmatpush1.msra.mxu0 %v3947
        %5574 = vmatprep.subr.mxu0 0.0
        %5575 = vmatpush1.msra.mxu0 0.0
        %5576 = vmatprep.subr.mxu0 0.0
        %5577 = vmatpush1.msra.mxu0 0.0
        %5578 = vmatprep.subr.mxu0 0.0
        %5579 = vmatpush1.msra.mxu0 0.0
        %5580 = vmatprep.subr.mxu0 0.0
        %5581 = vmatpush1.msra.mxu0 0.0
        %5582 = vmatprep.subr.mxu0 0.0
        %5583 = vmatpush1.msra.mxu0 0.0
        %5584 = vmatprep.subr.mxu0 0.0
        %5585 = vmatpush1.msra.mxu0 0.0
        %5586 = vmatprep.subr.mxu0 0.0
        %5587 = vmatpush1.msra.mxu0 0.0
        %5588 = vmatprep.subr.mxu0 0.0
        %5589 = vmatpush1.msra.mxu0 0.0
        %5590 = vmatprep.subr.mxu0 0.0
        %5591 = vmatpush1.msra.mxu0 0.0
        %5592 = vmatprep.subr.mxu0 0.0
        %5593 = vmatpush1.msra.mxu0 0.0
        %5594 = vmatprep.subr.mxu0 0.0
        %5595 = vmatpush1.msra.mxu0 0.0
        %5596 = vmatprep.subr.mxu0 0.0
        %5597 = vmatpush1.msra.mxu0 0.0
        %5598 = vmatprep.subr.mxu0 0.0
        %5599 = vmatpush1.msra.mxu0 0.0
        %5600 = vmatprep.subr.mxu0 0.0
        %5601 = vmatpush1.msra.mxu0 0.0
        %5602 = vmatprep.subr.mxu0 0.0
        %5603 = vmatpush1.msra.mxu0 0.0
        %5604 = vmatprep.subr.mxu0 0.0
        %5605 = vmatpush1.msra.mxu0 0.0
        %5606 = vmatprep.subr.mxu0 0.0
        %5607 = vmatpush1.msra.mxu0 0.0
        %5608 = vmatprep.subr.mxu0 0.0
        %5609 = vmatpush1.msra.mxu0 0.0
        %5610 = vmatprep.subr.mxu0 0.0
        %5611 = vmatpush1.msra.mxu0 0.0
        %5612 = vmatprep.subr.mxu0 0.0
        %5613 = vmatpush1.msra.mxu0 0.0
        %5614 = vmatprep.subr.mxu0 0.0
        %5615 = vmatpush1.msra.mxu0 0.0
        %5616 = vmatprep.subr.mxu0 0.0
        %5617 = vmatpush1.msra.mxu0 0.0
        %5618 = vmatprep.subr.mxu0 0.0
        %5619 = vmatpush1.msra.mxu0 0.0
        %5620 = vmatprep.subr.mxu0 0.0
        %5621 = vmatpush1.msra.mxu0 0.0
        %5622 = vmatprep.subr.mxu0 0.0
        %5623 = vmatpush1.msra.mxu0 0.0
        %5624 = vmatprep.subr.mxu0 0.0
        %5625 = vmatpush1.msra.mxu0 0.0
        %5626 = vmatprep.subr.mxu0 0.0
        %5627 = vmatpush1.msra.mxu0 0.0
        %5628 = vmatprep.subr.mxu0 0.0
        %5629 = vmatpush1.msra.mxu0 0.0
        %5630 = vmatprep.subr.mxu0 0.0
        %5631 = vmatpush1.msra.mxu0 0.0
        %5632 = vmatprep.subr.mxu0 0.0
        %5633 = vmatpush1.msra.mxu0 0.0
        %5634 = vmatprep.subr.mxu0 0.0
        %5635 = vmatpush1.msra.mxu0 0.0
        %5636 = vmatprep.mubr.f32.mxu0 0.0
        %5637 = vmatmul.mubr.f32.gmra.mrb[0].mxu0 %v5144
        %v5638 = vpop.f32.mrb[0].mxu0
        %v5639 = vadd.f32 0.0, %v5638
        %v5640 = vpop.f32.mrb[0].mxu0
        %v5641 = vadd.f32 0.0, %v5640
        %5642 = vdwg.mxu0
        %5643 = vmatprep.subr.mxu0 %v3962
        %5644 = vmatpush1.msra.mxu0 %v3945
        %5645 = vmatprep.subr.mxu0 0.0
        %5646 = vmatpush1.msra.mxu0 0.0
        %5647 = vmatprep.subr.mxu0 0.0
        %5648 = vmatpush1.msra.mxu0 0.0
        %5649 = vmatprep.subr.mxu0 0.0
        %5650 = vmatpush1.msra.mxu0 0.0
        %5651 = vmatprep.subr.mxu0 0.0
        %5652 = vmatpush1.msra.mxu0 0.0
        %5653 = vmatprep.subr.mxu0 0.0
        %5654 = vmatpush1.msra.mxu0 0.0
        %5655 = vmatprep.subr.mxu0 0.0
        %5656 = vmatpush1.msra.mxu0 0.0
        %5657 = vmatprep.subr.mxu0 0.0
        %5658 = vmatpush1.msra.mxu0 0.0
        %5659 = vmatprep.subr.mxu0 0.0
        %5660 = vmatpush1.msra.mxu0 0.0
        %5661 = vmatprep.subr.mxu0 0.0
        %5662 = vmatpush1.msra.mxu0 0.0
        %5663 = vmatprep.subr.mxu0 0.0
        %5664 = vmatpush1.msra.mxu0 0.0
        %5665 = vmatprep.subr.mxu0 0.0
        %5666 = vmatpush1.msra.mxu0 0.0
        %5667 = vmatprep.subr.mxu0 0.0
        %5668 = vmatpush1.msra.mxu0 0.0
        %5669 = vmatprep.subr.mxu0 0.0
        %5670 = vmatpush1.msra.mxu0 0.0
        %5671 = vmatprep.subr.mxu0 0.0
        %5672 = vmatpush1.msra.mxu0 0.0
        %5673 = vmatprep.subr.mxu0 0.0
        %5674 = vmatpush1.msra.mxu0 0.0
        %5675 = vmatprep.subr.mxu0 0.0
        %5676 = vmatpush1.msra.mxu0 0.0
        %5677 = vmatprep.subr.mxu0 0.0
        %5678 = vmatpush1.msra.mxu0 0.0
        %5679 = vmatprep.subr.mxu0 0.0
        %5680 = vmatpush1.msra.mxu0 0.0
        %5681 = vmatprep.subr.mxu0 0.0
        %5682 = vmatpush1.msra.mxu0 0.0
        %5683 = vmatprep.subr.mxu0 0.0
        %5684 = vmatpush1.msra.mxu0 0.0
        %5685 = vmatprep.subr.mxu0 0.0
        %5686 = vmatpush1.msra.mxu0 0.0
        %5687 = vmatprep.subr.mxu0 0.0
        %5688 = vmatpush1.msra.mxu0 0.0
        %5689 = vmatprep.subr.mxu0 0.0
        %5690 = vmatpush1.msra.mxu0 0.0
        %5691 = vmatprep.subr.mxu0 0.0
        %5692 = vmatpush1.msra.mxu0 0.0
        %5693 = vmatprep.subr.mxu0 0.0
        %5694 = vmatpush1.msra.mxu0 0.0
        %5695 = vmatprep.subr.mxu0 0.0
        %5696 = vmatpush1.msra.mxu0 0.0
        %5697 = vmatprep.subr.mxu0 0.0
        %5698 = vmatpush1.msra.mxu0 0.0
        %5699 = vmatprep.subr.mxu0 0.0
        %5700 = vmatpush1.msra.mxu0 0.0
        %5701 = vmatprep.subr.mxu0 0.0
        %5702 = vmatpush1.msra.mxu0 0.0
        %5703 = vmatprep.subr.mxu0 0.0
        %5704 = vmatpush1.msra.mxu0 0.0
        %5705 = vmatprep.subr.mxu0 0.0
        %5706 = vmatpush1.msra.mxu0 0.0
        %5707 = vmatprep.mubr.f32.mxu0 0.0
        %5708 = vmatmul.mubr.f32.gmra.mrb[0].mxu0 %v5144
        %v5709 = vpop.f32.mrb[0].mxu0
        %v5710 = vadd.f32 0.0, %v5709
        %v5711 = vpop.f32.mrb[0].mxu0
        %v5712 = vadd.f32 0.0, %v5711
        %5713 = vdwg.mxu0
        %v5714 = vadd.f32 %v5125, %v5213
        %v5715 = vadd.f32 %v5126, %v5215
        %v5716 = vadd.f32 %v5127, %v5284
        %v5717 = vadd.f32 %v5128, %v5286
        %v5718 = vadd.f32 %v5129, %v5355
        %v5719 = vadd.f32 %v5130, %v5357
        %v5720 = vadd.f32 %v5131, %v5426
        %v5721 = vadd.f32 %v5132, %v5428
        %v5722 = vadd.f32 %v5133, %v5497
        %v5723 = vadd.f32 %v5134, %v5499
        %v5724 = vadd.f32 %v5135, %v5568
        %v5725 = vadd.f32 %v5136, %v5570
        %v5726 = vadd.f32 %v5137, %v5639
        %v5727 = vadd.f32 %v5138, %v5641
        %v5728 = vadd.f32 %v5139, %v5710
        %v5729 = vadd.f32 %v5140, %v5712
        %v5730 = vld [vmem:[%s4] sm:$0xff]
        %5732 = vset.pattern.permute.xlu0 0
        %5733 = vperm.xlu0 %5732, %v5730
        %v5734 = vpop.permute.xlu0 %5733
        %v5736 = vadd.f32 %v5714, %v5734
        %v5737 = vadd.f32 %v5715, %v5734
        %v5738 = vadd.f32 %v5716, %v5734
        %v5739 = vadd.f32 %v5717, %v5734
        %v5740 = vadd.f32 %v5718, %v5734
        %v5741 = vadd.f32 %v5719, %v5734
        %v5742 = vadd.f32 %v5720, %v5734
        %v5743 = vadd.f32 %v5721, %v5734
        %v5744 = vadd.f32 %v5722, %v5734
        %v5745 = vadd.f32 %v5723, %v5734
        %v5746 = vadd.f32 %v5724, %v5734
        %v5747 = vadd.f32 %v5725, %v5734
        %v5748 = vadd.f32 %v5726, %v5734
        %v5749 = vadd.f32 %v5727, %v5734
        %v5750 = vadd.f32 %v5728, %v5734
        %v5751 = vadd.f32 %v5729, %v5734
        %vm5752 = vcmp.ge.f32.partialorder %v5736, 0.0
        %vm5753 = vcmp.ge.f32.partialorder %v5737, 0.0
        %vm5754 = vcmp.ge.f32.partialorder %v5738, 0.0
        %vm5755 = vcmp.ge.f32.partialorder %v5739, 0.0
        %vm5756 = vcmp.ge.f32.partialorder %v5740, 0.0
        %vm5757 = vcmp.ge.f32.partialorder %v5741, 0.0
        %vm5758 = vcmp.ge.f32.partialorder %v5742, 0.0
        %vm5759 = vcmp.ge.f32.partialorder %v5743, 0.0
        %vm5760 = vcmp.ge.f32.partialorder %v5744, 0.0
        %vm5761 = vcmp.ge.f32.partialorder %v5745, 0.0
        %vm5762 = vcmp.ge.f32.partialorder %v5746, 0.0
        %vm5763 = vcmp.ge.f32.partialorder %v5747, 0.0
        %vm5764 = vcmp.ge.f32.partialorder %v5748, 0.0
        %vm5765 = vcmp.ge.f32.partialorder %v5749, 0.0
        %vm5766 = vcmp.ge.f32.partialorder %v5750, 0.0
        %vm5767 = vcmp.ge.f32.partialorder %v5751, 0.0
        %v5768 = vmul.f32 %v5736, 0.01
        %v5769 = vmul.f32 %v5737, 0.01
        %v5770 = vmul.f32 %v5738, 0.01
        %v5771 = vmul.f32 %v5739, 0.01
        %v5772 = vmul.f32 %v5740, 0.01
        %v5773 = vmul.f32 %v5741, 0.01
        %v5774 = vmul.f32 %v5742, 0.01
        %v5775 = vmul.f32 %v5743, 0.01
        %v5776 = vmul.f32 %v5744, 0.01
        %v5777 = vmul.f32 %v5745, 0.01
        %v5778 = vmul.f32 %v5746, 0.01
        %v5779 = vmul.f32 %v5747, 0.01
        %v5780 = vmul.f32 %v5748, 0.01
        %v5781 = vmul.f32 %v5749, 0.01
        %v5782 = vmul.f32 %v5750, 0.01
        %v5783 = vmul.f32 %v5751, 0.01
        %v5784 = vsel %vm5752, %v5736, %v5768
        %v5785 = vsel %vm5753, %v5737, %v5769
        %v5786 = vsel %vm5754, %v5738, %v5770
        %v5787 = vsel %vm5755, %v5739, %v5771
        %v5788 = vsel %vm5756, %v5740, %v5772
        %v5789 = vsel %vm5757, %v5741, %v5773
        %v5790 = vsel %vm5758, %v5742, %v5774
        %v5791 = vsel %vm5759, %v5743, %v5775
        %v5792 = vsel %vm5760, %v5744, %v5776
        %v5793 = vsel %vm5761, %v5745, %v5777
        %v5794 = vsel %vm5762, %v5746, %v5778
        %v5795 = vsel %vm5763, %v5747, %v5779
        %v5796 = vsel %vm5764, %v5748, %v5780
        %v5797 = vsel %vm5765, %v5749, %v5781
        %v5798 = vsel %vm5766, %v5750, %v5782
        %v5799 = vsel %vm5767, %v5751, %v5783
        %v5800 = vld [vmem:[%s5] sm:$0xff]
        %v5801 = vld [vmem:[%s6] sm:$0xff]
        %5803 = vset.pattern.permute.xlu0 0
        %5804 = vperm.xlu0 %5803, %v5801
        %v5805 = vpop.permute.xlu0 %5804
        %v5808 = vsel %vm409, %v5800, 0
        %5810 = vmatprep.subr.mxu0 %v5785
        %5811 = vmatpush1.msra.mxu0 %v5784
        %5812 = vmatprep.subr.mxu0 0.0
        %5813 = vmatpush1.msra.mxu0 0.0
        %5814 = vmatprep.subr.mxu0 0.0
        %5815 = vmatpush1.msra.mxu0 0.0
        %5816 = vmatprep.subr.mxu0 0.0
        %5817 = vmatpush1.msra.mxu0 0.0
        %5818 = vmatprep.subr.mxu0 0.0
        %5819 = vmatpush1.msra.mxu0 0.0
        %5820 = vmatprep.subr.mxu0 0.0
        %5821 = vmatpush1.msra.mxu0 0.0
        %5822 = vmatprep.subr.mxu0 0.0
        %5823 = vmatpush1.msra.mxu0 0.0
        %5824 = vmatprep.subr.mxu0 0.0
        %5825 = vmatpush1.msra.mxu0 0.0
        %5826 = vmatprep.subr.mxu0 0.0
        %5827 = vmatpush1.msra.mxu0 0.0
        %5828 = vmatprep.subr.mxu0 0.0
        %5829 = vmatpush1.msra.mxu0 0.0
        %5830 = vmatprep.subr.mxu0 0.0
        %5831 = vmatpush1.msra.mxu0 0.0
        %5832 = vmatprep.subr.mxu0 0.0
        %5833 = vmatpush1.msra.mxu0 0.0
        %5834 = vmatprep.subr.mxu0 0.0
        %5835 = vmatpush1.msra.mxu0 0.0
        %5836 = vmatprep.subr.mxu0 0.0
        %5837 = vmatpush1.msra.mxu0 0.0
        %5838 = vmatprep.subr.mxu0 0.0
        %5839 = vmatpush1.msra.mxu0 0.0
        %5840 = vmatprep.subr.mxu0 0.0
        %5841 = vmatpush1.msra.mxu0 0.0
        %5842 = vmatprep.subr.mxu0 0.0
        %5843 = vmatpush1.msra.mxu0 0.0
        %5844 = vmatprep.subr.mxu0 0.0
        %5845 = vmatpush1.msra.mxu0 0.0
        %5846 = vmatprep.subr.mxu0 0.0
        %5847 = vmatpush1.msra.mxu0 0.0
        %5848 = vmatprep.subr.mxu0 0.0
        %5849 = vmatpush1.msra.mxu0 0.0
        %5850 = vmatprep.subr.mxu0 0.0
        %5851 = vmatpush1.msra.mxu0 0.0
        %5852 = vmatprep.subr.mxu0 0.0
        %5853 = vmatpush1.msra.mxu0 0.0
        %5854 = vmatprep.subr.mxu0 0.0
        %5855 = vmatpush1.msra.mxu0 0.0
        %5856 = vmatprep.subr.mxu0 0.0
        %5857 = vmatpush1.msra.mxu0 0.0
        %5858 = vmatprep.subr.mxu0 0.0
        %5859 = vmatpush1.msra.mxu0 0.0
        %5860 = vmatprep.subr.mxu0 0.0
        %5861 = vmatpush1.msra.mxu0 0.0
        %5862 = vmatprep.subr.mxu0 0.0
        %5863 = vmatpush1.msra.mxu0 0.0
        %5864 = vmatprep.subr.mxu0 0.0
        %5865 = vmatpush1.msra.mxu0 0.0
        %5866 = vmatprep.subr.mxu0 0.0
        %5867 = vmatpush1.msra.mxu0 0.0
        %5868 = vmatprep.subr.mxu0 0.0
        %5869 = vmatpush1.msra.mxu0 0.0
        %5870 = vmatprep.subr.mxu0 0.0
        %5871 = vmatpush1.msra.mxu0 0.0
        %5872 = vmatprep.subr.mxu0 0.0
        %5873 = vmatpush1.msra.mxu0 0.0
        %5874 = vmatprep.mubr.f32.mxu0 0.0
        %5875 = vmatmul.mubr.f32.gmra.mrb[0].mxu0 %v5808
        %v5876 = vpop.f32.mrb[0].mxu0
        %v5877 = vadd.f32 %v5805, %v5876
        %v5878 = vpop.f32.mrb[0].mxu0
        %v5879 = vadd.f32 %v5805, %v5878
        %5880 = vdwg.mxu0
        %5881 = vmatprep.subr.mxu0 %v5787
        %5882 = vmatpush1.msra.mxu0 %v5786
        %5883 = vmatprep.subr.mxu0 0.0
        %5884 = vmatpush1.msra.mxu0 0.0
        %5885 = vmatprep.subr.mxu0 0.0
        %5886 = vmatpush1.msra.mxu0 0.0
        %5887 = vmatprep.subr.mxu0 0.0
        %5888 = vmatpush1.msra.mxu0 0.0
        %5889 = vmatprep.subr.mxu0 0.0
        %5890 = vmatpush1.msra.mxu0 0.0
        %5891 = vmatprep.subr.mxu0 0.0
        %5892 = vmatpush1.msra.mxu0 0.0
        %5893 = vmatprep.subr.mxu0 0.0
        %5894 = vmatpush1.msra.mxu0 0.0
        %5895 = vmatprep.subr.mxu0 0.0
        %5896 = vmatpush1.msra.mxu0 0.0
        %5897 = vmatprep.subr.mxu0 0.0
        %5898 = vmatpush1.msra.mxu0 0.0
        %5899 = vmatprep.subr.mxu0 0.0
        %5900 = vmatpush1.msra.mxu0 0.0
        %5901 = vmatprep.subr.mxu0 0.0
        %5902 = vmatpush1.msra.mxu0 0.0
        %5903 = vmatprep.subr.mxu0 0.0
        %5904 = vmatpush1.msra.mxu0 0.0
        %5905 = vmatprep.subr.mxu0 0.0
        %5906 = vmatpush1.msra.mxu0 0.0
        %5907 = vmatprep.subr.mxu0 0.0
        %5908 = vmatpush1.msra.mxu0 0.0
        %5909 = vmatprep.subr.mxu0 0.0
        %5910 = vmatpush1.msra.mxu0 0.0
        %5911 = vmatprep.subr.mxu0 0.0
        %5912 = vmatpush1.msra.mxu0 0.0
        %5913 = vmatprep.subr.mxu0 0.0
        %5914 = vmatpush1.msra.mxu0 0.0
        %5915 = vmatprep.subr.mxu0 0.0
        %5916 = vmatpush1.msra.mxu0 0.0
        %5917 = vmatprep.subr.mxu0 0.0
        %5918 = vmatpush1.msra.mxu0 0.0
        %5919 = vmatprep.subr.mxu0 0.0
        %5920 = vmatpush1.msra.mxu0 0.0
        %5921 = vmatprep.subr.mxu0 0.0
        %5922 = vmatpush1.msra.mxu0 0.0
        %5923 = vmatprep.subr.mxu0 0.0
        %5924 = vmatpush1.msra.mxu0 0.0
        %5925 = vmatprep.subr.mxu0 0.0
        %5926 = vmatpush1.msra.mxu0 0.0
        %5927 = vmatprep.subr.mxu0 0.0
        %5928 = vmatpush1.msra.mxu0 0.0
        %5929 = vmatprep.subr.mxu0 0.0
        %5930 = vmatpush1.msra.mxu0 0.0
        %5931 = vmatprep.subr.mxu0 0.0
        %5932 = vmatpush1.msra.mxu0 0.0
        %5933 = vmatprep.subr.mxu0 0.0
        %5934 = vmatpush1.msra.mxu0 0.0
        %5935 = vmatprep.subr.mxu0 0.0
        %5936 = vmatpush1.msra.mxu0 0.0
        %5937 = vmatprep.subr.mxu0 0.0
        %5938 = vmatpush1.msra.mxu0 0.0
        %5939 = vmatprep.subr.mxu0 0.0
        %5940 = vmatpush1.msra.mxu0 0.0
        %5941 = vmatprep.subr.mxu0 0.0
        %5942 = vmatpush1.msra.mxu0 0.0
        %5943 = vmatprep.subr.mxu0 0.0
        %5944 = vmatpush1.msra.mxu0 0.0
        %5945 = vmatprep.mubr.f32.mxu0 0.0
        %5946 = vmatmul.mubr.f32.gmra.mrb[0].mxu0 %v5808
        %v5947 = vpop.f32.mrb[0].mxu0
        %v5948 = vadd.f32 %v5805, %v5947
        %v5949 = vpop.f32.mrb[0].mxu0
        %v5950 = vadd.f32 %v5805, %v5949
        %5951 = vdwg.mxu0
        %5952 = vmatprep.subr.mxu0 %v5789
        %5953 = vmatpush1.msra.mxu0 %v5788
        %5954 = vmatprep.subr.mxu0 0.0
        %5955 = vmatpush1.msra.mxu0 0.0
        %5956 = vmatprep.subr.mxu0 0.0
        %5957 = vmatpush1.msra.mxu0 0.0
        %5958 = vmatprep.subr.mxu0 0.0
        %5959 = vmatpush1.msra.mxu0 0.0
        %5960 = vmatprep.subr.mxu0 0.0
        %5961 = vmatpush1.msra.mxu0 0.0
        %5962 = vmatprep.subr.mxu0 0.0
        %5963 = vmatpush1.msra.mxu0 0.0
        %5964 = vmatprep.subr.mxu0 0.0
        %5965 = vmatpush1.msra.mxu0 0.0
        %5966 = vmatprep.subr.mxu0 0.0
        %5967 = vmatpush1.msra.mxu0 0.0
        %5968 = vmatprep.subr.mxu0 0.0
        %5969 = vmatpush1.msra.mxu0 0.0
        %5970 = vmatprep.subr.mxu0 0.0
        %5971 = vmatpush1.msra.mxu0 0.0
        %5972 = vmatprep.subr.mxu0 0.0
        %5973 = vmatpush1.msra.mxu0 0.0
        %5974 = vmatprep.subr.mxu0 0.0
        %5975 = vmatpush1.msra.mxu0 0.0
        %5976 = vmatprep.subr.mxu0 0.0
        %5977 = vmatpush1.msra.mxu0 0.0
        %5978 = vmatprep.subr.mxu0 0.0
        %5979 = vmatpush1.msra.mxu0 0.0
        %5980 = vmatprep.subr.mxu0 0.0
        %5981 = vmatpush1.msra.mxu0 0.0
        %5982 = vmatprep.subr.mxu0 0.0
        %5983 = vmatpush1.msra.mxu0 0.0
        %5984 = vmatprep.subr.mxu0 0.0
        %5985 = vmatpush1.msra.mxu0 0.0
        %5986 = vmatprep.subr.mxu0 0.0
        %5987 = vmatpush1.msra.mxu0 0.0
        %5988 = vmatprep.subr.mxu0 0.0
        %5989 = vmatpush1.msra.mxu0 0.0
        %5990 = vmatprep.subr.mxu0 0.0
        %5991 = vmatpush1.msra.mxu0 0.0
        %5992 = vmatprep.subr.mxu0 0.0
        %5993 = vmatpush1.msra.mxu0 0.0
        %5994 = vmatprep.subr.mxu0 0.0
        %5995 = vmatpush1.msra.mxu0 0.0
        %5996 = vmatprep.subr.mxu0 0.0
        %5997 = vmatpush1.msra.mxu0 0.0
        %5998 = vmatprep.subr.mxu0 0.0
        %5999 = vmatpush1.msra.mxu0 0.0
        %6000 = vmatprep.subr.mxu0 0.0
        %6001 = vmatpush1.msra.mxu0 0.0
        %6002 = vmatprep.subr.mxu0 0.0
        %6003 = vmatpush1.msra.mxu0 0.0
        %6004 = vmatprep.subr.mxu0 0.0
        %6005 = vmatpush1.msra.mxu0 0.0
        %6006 = vmatprep.subr.mxu0 0.0
        %6007 = vmatpush1.msra.mxu0 0.0
        %6008 = vmatprep.subr.mxu0 0.0
        %6009 = vmatpush1.msra.mxu0 0.0
        %6010 = vmatprep.subr.mxu0 0.0
        %6011 = vmatpush1.msra.mxu0 0.0
        %6012 = vmatprep.subr.mxu0 0.0
        %6013 = vmatpush1.msra.mxu0 0.0
        %6014 = vmatprep.subr.mxu0 0.0
        %6015 = vmatpush1.msra.mxu0 0.0
        %6016 = vmatprep.mubr.f32.mxu0 0.0
        %6017 = vmatmul.mubr.f32.gmra.mrb[0].mxu0 %v5808
        %v6018 = vpop.f32.mrb[0].mxu0
        %v6019 = vadd.f32 %v5805, %v6018
        %v6020 = vpop.f32.mrb[0].mxu0
        %v6021 = vadd.f32 %v5805, %v6020
        %6022 = vdwg.mxu0
        %6023 = vmatprep.subr.mxu0 %v5791
        %6024 = vmatpush1.msra.mxu0 %v5790
        %6025 = vmatprep.subr.mxu0 0.0
        %6026 = vmatpush1.msra.mxu0 0.0
        %6027 = vmatprep.subr.mxu0 0.0
        %6028 = vmatpush1.msra.mxu0 0.0
        %6029 = vmatprep.subr.mxu0 0.0
        %6030 = vmatpush1.msra.mxu0 0.0
        %6031 = vmatprep.subr.mxu0 0.0
        %6032 = vmatpush1.msra.mxu0 0.0
        %6033 = vmatprep.subr.mxu0 0.0
        %6034 = vmatpush1.msra.mxu0 0.0
        %6035 = vmatprep.subr.mxu0 0.0
        %6036 = vmatpush1.msra.mxu0 0.0
        %6037 = vmatprep.subr.mxu0 0.0
        %6038 = vmatpush1.msra.mxu0 0.0
        %6039 = vmatprep.subr.mxu0 0.0
        %6040 = vmatpush1.msra.mxu0 0.0
        %6041 = vmatprep.subr.mxu0 0.0
        %6042 = vmatpush1.msra.mxu0 0.0
        %6043 = vmatprep.subr.mxu0 0.0
        %6044 = vmatpush1.msra.mxu0 0.0
        %6045 = vmatprep.subr.mxu0 0.0
        %6046 = vmatpush1.msra.mxu0 0.0
        %6047 = vmatprep.subr.mxu0 0.0
        %6048 = vmatpush1.msra.mxu0 0.0
        %6049 = vmatprep.subr.mxu0 0.0
        %6050 = vmatpush1.msra.mxu0 0.0
        %6051 = vmatprep.subr.mxu0 0.0
        %6052 = vmatpush1.msra.mxu0 0.0
        %6053 = vmatprep.subr.mxu0 0.0
        %6054 = vmatpush1.msra.mxu0 0.0
        %6055 = vmatprep.subr.mxu0 0.0
        %6056 = vmatpush1.msra.mxu0 0.0
        %6057 = vmatprep.subr.mxu0 0.0
        %6058 = vmatpush1.msra.mxu0 0.0
        %6059 = vmatprep.subr.mxu0 0.0
        %6060 = vmatpush1.msra.mxu0 0.0
        %6061 = vmatprep.subr.mxu0 0.0
        %6062 = vmatpush1.msra.mxu0 0.0
        %6063 = vmatprep.subr.mxu0 0.0
        %6064 = vmatpush1.msra.mxu0 0.0
        %6065 = vmatprep.subr.mxu0 0.0
        %6066 = vmatpush1.msra.mxu0 0.0
        %6067 = vmatprep.subr.mxu0 0.0
        %6068 = vmatpush1.msra.mxu0 0.0
        %6069 = vmatprep.subr.mxu0 0.0
        %6070 = vmatpush1.msra.mxu0 0.0
        %6071 = vmatprep.subr.mxu0 0.0
        %6072 = vmatpush1.msra.mxu0 0.0
        %6073 = vmatprep.subr.mxu0 0.0
        %6074 = vmatpush1.msra.mxu0 0.0
        %6075 = vmatprep.subr.mxu0 0.0
        %6076 = vmatpush1.msra.mxu0 0.0
        %6077 = vmatprep.subr.mxu0 0.0
        %6078 = vmatpush1.msra.mxu0 0.0
        %6079 = vmatprep.subr.mxu0 0.0
        %6080 = vmatpush1.msra.mxu0 0.0
        %6081 = vmatprep.subr.mxu0 0.0
        %6082 = vmatpush1.msra.mxu0 0.0
        %6083 = vmatprep.subr.mxu0 0.0
        %6084 = vmatpush1.msra.mxu0 0.0
        %6085 = vmatprep.subr.mxu0 0.0
        %6086 = vmatpush1.msra.mxu0 0.0
        %6087 = vmatprep.mubr.f32.mxu0 0.0
        %6088 = vmatmul.mubr.f32.gmra.mrb[0].mxu0 %v5808
        %v6089 = vpop.f32.mrb[0].mxu0
        %v6090 = vadd.f32 %v5805, %v6089
        %v6091 = vpop.f32.mrb[0].mxu0
        %v6092 = vadd.f32 %v5805, %v6091
        %6093 = vdwg.mxu0
        %6094 = vmatprep.subr.mxu0 %v5793
        %6095 = vmatpush1.msra.mxu0 %v5792
        %6096 = vmatprep.subr.mxu0 0.0
        %6097 = vmatpush1.msra.mxu0 0.0
        %6098 = vmatprep.subr.mxu0 0.0
        %6099 = vmatpush1.msra.mxu0 0.0
        %6100 = vmatprep.subr.mxu0 0.0
        %6101 = vmatpush1.msra.mxu0 0.0
        %6102 = vmatprep.subr.mxu0 0.0
        %6103 = vmatpush1.msra.mxu0 0.0
        %6104 = vmatprep.subr.mxu0 0.0
        %6105 = vmatpush1.msra.mxu0 0.0
        %6106 = vmatprep.subr.mxu0 0.0
        %6107 = vmatpush1.msra.mxu0 0.0
        %6108 = vmatprep.subr.mxu0 0.0
        %6109 = vmatpush1.msra.mxu0 0.0
        %6110 = vmatprep.subr.mxu0 0.0
        %6111 = vmatpush1.msra.mxu0 0.0
        %6112 = vmatprep.subr.mxu0 0.0
        %6113 = vmatpush1.msra.mxu0 0.0
        %6114 = vmatprep.subr.mxu0 0.0
        %6115 = vmatpush1.msra.mxu0 0.0
        %6116 = vmatprep.subr.mxu0 0.0
        %6117 = vmatpush1.msra.mxu0 0.0
        %6118 = vmatprep.subr.mxu0 0.0
        %6119 = vmatpush1.msra.mxu0 0.0
        %6120 = vmatprep.subr.mxu0 0.0
        %6121 = vmatpush1.msra.mxu0 0.0
        %6122 = vmatprep.subr.mxu0 0.0
        %6123 = vmatpush1.msra.mxu0 0.0
        %6124 = vmatprep.subr.mxu0 0.0
        %6125 = vmatpush1.msra.mxu0 0.0
        %6126 = vmatprep.subr.mxu0 0.0
        %6127 = vmatpush1.msra.mxu0 0.0
        %6128 = vmatprep.subr.mxu0 0.0
        %6129 = vmatpush1.msra.mxu0 0.0
        %6130 = vmatprep.subr.mxu0 0.0
        %6131 = vmatpush1.msra.mxu0 0.0
        %6132 = vmatprep.subr.mxu0 0.0
        %6133 = vmatpush1.msra.mxu0 0.0
        %6134 = vmatprep.subr.mxu0 0.0
        %6135 = vmatpush1.msra.mxu0 0.0
        %6136 = vmatprep.subr.mxu0 0.0
        %6137 = vmatpush1.msra.mxu0 0.0
        %6138 = vmatprep.subr.mxu0 0.0
        %6139 = vmatpush1.msra.mxu0 0.0
        %6140 = vmatprep.subr.mxu0 0.0
        %6141 = vmatpush1.msra.mxu0 0.0
        %6142 = vmatprep.subr.mxu0 0.0
        %6143 = vmatpush1.msra.mxu0 0.0
        %6144 = vmatprep.subr.mxu0 0.0
        %6145 = vmatpush1.msra.mxu0 0.0
        %6146 = vmatprep.subr.mxu0 0.0
        %6147 = vmatpush1.msra.mxu0 0.0
        %6148 = vmatprep.subr.mxu0 0.0
        %6149 = vmatpush1.msra.mxu0 0.0
        %6150 = vmatprep.subr.mxu0 0.0
        %6151 = vmatpush1.msra.mxu0 0.0
        %6152 = vmatprep.subr.mxu0 0.0
        %6153 = vmatpush1.msra.mxu0 0.0
        %6154 = vmatprep.subr.mxu0 0.0
        %6155 = vmatpush1.msra.mxu0 0.0
        %6156 = vmatprep.subr.mxu0 0.0
        %6157 = vmatpush1.msra.mxu0 0.0
        %6158 = vmatprep.mubr.f32.mxu0 0.0
        %6159 = vmatmul.mubr.f32.gmra.mrb[0].mxu0 %v5808
        %v6160 = vpop.f32.mrb[0].mxu0
        %v6161 = vadd.f32 %v5805, %v6160
        %v6162 = vpop.f32.mrb[0].mxu0
        %v6163 = vadd.f32 %v5805, %v6162
        %6164 = vdwg.mxu0
        %6165 = vmatprep.subr.mxu0 %v5795
        %6166 = vmatpush1.msra.mxu0 %v5794
        %6167 = vmatprep.subr.mxu0 0.0
        %6168 = vmatpush1.msra.mxu0 0.0
        %6169 = vmatprep.subr.mxu0 0.0
        %6170 = vmatpush1.msra.mxu0 0.0
        %6171 = vmatprep.subr.mxu0 0.0
        %6172 = vmatpush1.msra.mxu0 0.0
        %6173 = vmatprep.subr.mxu0 0.0
        %6174 = vmatpush1.msra.mxu0 0.0
        %6175 = vmatprep.subr.mxu0 0.0
        %6176 = vmatpush1.msra.mxu0 0.0
        %6177 = vmatprep.subr.mxu0 0.0
        %6178 = vmatpush1.msra.mxu0 0.0
        %6179 = vmatprep.subr.mxu0 0.0
        %6180 = vmatpush1.msra.mxu0 0.0
        %6181 = vmatprep.subr.mxu0 0.0
        %6182 = vmatpush1.msra.mxu0 0.0
        %6183 = vmatprep.subr.mxu0 0.0
        %6184 = vmatpush1.msra.mxu0 0.0
        %6185 = vmatprep.subr.mxu0 0.0
        %6186 = vmatpush1.msra.mxu0 0.0
        %6187 = vmatprep.subr.mxu0 0.0
        %6188 = vmatpush1.msra.mxu0 0.0
        %6189 = vmatprep.subr.mxu0 0.0
        %6190 = vmatpush1.msra.mxu0 0.0
        %6191 = vmatprep.subr.mxu0 0.0
        %6192 = vmatpush1.msra.mxu0 0.0
        %6193 = vmatprep.subr.mxu0 0.0
        %6194 = vmatpush1.msra.mxu0 0.0
        %6195 = vmatprep.subr.mxu0 0.0
        %6196 = vmatpush1.msra.mxu0 0.0
        %6197 = vmatprep.subr.mxu0 0.0
        %6198 = vmatpush1.msra.mxu0 0.0
        %6199 = vmatprep.subr.mxu0 0.0
        %6200 = vmatpush1.msra.mxu0 0.0
        %6201 = vmatprep.subr.mxu0 0.0
        %6202 = vmatpush1.msra.mxu0 0.0
        %6203 = vmatprep.subr.mxu0 0.0
        %6204 = vmatpush1.msra.mxu0 0.0
        %6205 = vmatprep.subr.mxu0 0.0
        %6206 = vmatpush1.msra.mxu0 0.0
        %6207 = vmatprep.subr.mxu0 0.0
        %6208 = vmatpush1.msra.mxu0 0.0
        %6209 = vmatprep.subr.mxu0 0.0
        %6210 = vmatpush1.msra.mxu0 0.0
        %6211 = vmatprep.subr.mxu0 0.0
        %6212 = vmatpush1.msra.mxu0 0.0
        %6213 = vmatprep.subr.mxu0 0.0
        %6214 = vmatpush1.msra.mxu0 0.0
        %6215 = vmatprep.subr.mxu0 0.0
        %6216 = vmatpush1.msra.mxu0 0.0
        %6217 = vmatprep.subr.mxu0 0.0
        %6218 = vmatpush1.msra.mxu0 0.0
        %6219 = vmatprep.subr.mxu0 0.0
        %6220 = vmatpush1.msra.mxu0 0.0
        %6221 = vmatprep.subr.mxu0 0.0
        %6222 = vmatpush1.msra.mxu0 0.0
        %6223 = vmatprep.subr.mxu0 0.0
        %6224 = vmatpush1.msra.mxu0 0.0
        %6225 = vmatprep.subr.mxu0 0.0
        %6226 = vmatpush1.msra.mxu0 0.0
        %6227 = vmatprep.subr.mxu0 0.0
        %6228 = vmatpush1.msra.mxu0 0.0
        %6229 = vmatprep.mubr.f32.mxu0 0.0
        %6230 = vmatmul.mubr.f32.gmra.mrb[0].mxu0 %v5808
        %v6231 = vpop.f32.mrb[0].mxu0
        %v6232 = vadd.f32 %v5805, %v6231
        %v6233 = vpop.f32.mrb[0].mxu0
        %v6234 = vadd.f32 %v5805, %v6233
        %6235 = vdwg.mxu0
        %6236 = vmatprep.subr.mxu0 %v5797
        %6237 = vmatpush1.msra.mxu0 %v5796
        %6238 = vmatprep.subr.mxu0 0.0
        %6239 = vmatpush1.msra.mxu0 0.0
        %6240 = vmatprep.subr.mxu0 0.0
        %6241 = vmatpush1.msra.mxu0 0.0
        %6242 = vmatprep.subr.mxu0 0.0
        %6243 = vmatpush1.msra.mxu0 0.0
        %6244 = vmatprep.subr.mxu0 0.0
        %6245 = vmatpush1.msra.mxu0 0.0
        %6246 = vmatprep.subr.mxu0 0.0
        %6247 = vmatpush1.msra.mxu0 0.0
        %6248 = vmatprep.subr.mxu0 0.0
        %6249 = vmatpush1.msra.mxu0 0.0
        %6250 = vmatprep.subr.mxu0 0.0
        %6251 = vmatpush1.msra.mxu0 0.0
        %6252 = vmatprep.subr.mxu0 0.0
        %6253 = vmatpush1.msra.mxu0 0.0
        %6254 = vmatprep.subr.mxu0 0.0
        %6255 = vmatpush1.msra.mxu0 0.0
        %6256 = vmatprep.subr.mxu0 0.0
        %6257 = vmatpush1.msra.mxu0 0.0
        %6258 = vmatprep.subr.mxu0 0.0
        %6259 = vmatpush1.msra.mxu0 0.0
        %6260 = vmatprep.subr.mxu0 0.0
        %6261 = vmatpush1.msra.mxu0 0.0
        %6262 = vmatprep.subr.mxu0 0.0
        %6263 = vmatpush1.msra.mxu0 0.0
        %6264 = vmatprep.subr.mxu0 0.0
        %6265 = vmatpush1.msra.mxu0 0.0
        %6266 = vmatprep.subr.mxu0 0.0
        %6267 = vmatpush1.msra.mxu0 0.0
        %6268 = vmatprep.subr.mxu0 0.0
        %6269 = vmatpush1.msra.mxu0 0.0
        %6270 = vmatprep.subr.mxu0 0.0
        %6271 = vmatpush1.msra.mxu0 0.0
        %6272 = vmatprep.subr.mxu0 0.0
        %6273 = vmatpush1.msra.mxu0 0.0
        %6274 = vmatprep.subr.mxu0 0.0
        %6275 = vmatpush1.msra.mxu0 0.0
        %6276 = vmatprep.subr.mxu0 0.0
        %6277 = vmatpush1.msra.mxu0 0.0
        %6278 = vmatprep.subr.mxu0 0.0
        %6279 = vmatpush1.msra.mxu0 0.0
        %6280 = vmatprep.subr.mxu0 0.0
        %6281 = vmatpush1.msra.mxu0 0.0
        %6282 = vmatprep.subr.mxu0 0.0
        %6283 = vmatpush1.msra.mxu0 0.0
        %6284 = vmatprep.subr.mxu0 0.0
        %6285 = vmatpush1.msra.mxu0 0.0
        %6286 = vmatprep.subr.mxu0 0.0
        %6287 = vmatpush1.msra.mxu0 0.0
        %6288 = vmatprep.subr.mxu0 0.0
        %6289 = vmatpush1.msra.mxu0 0.0
        %6290 = vmatprep.subr.mxu0 0.0
        %6291 = vmatpush1.msra.mxu0 0.0
        %6292 = vmatprep.subr.mxu0 0.0
        %6293 = vmatpush1.msra.mxu0 0.0
        %6294 = vmatprep.subr.mxu0 0.0
        %6295 = vmatpush1.msra.mxu0 0.0
        %6296 = vmatprep.subr.mxu0 0.0
        %6297 = vmatpush1.msra.mxu0 0.0
        %6298 = vmatprep.subr.mxu0 0.0
        %6299 = vmatpush1.msra.mxu0 0.0
        %6300 = vmatprep.mubr.f32.mxu0 0.0
        %6301 = vmatmul.mubr.f32.gmra.mrb[0].mxu0 %v5808
        %v6302 = vpop.f32.mrb[0].mxu0
        %v6303 = vadd.f32 %v5805, %v6302
        %v6304 = vpop.f32.mrb[0].mxu0
        %v6305 = vadd.f32 %v5805, %v6304
        %6306 = vdwg.mxu0
        %6307 = vmatprep.subr.mxu0 %v5799
        %6308 = vmatpush1.msra.mxu0 %v5798
        %6309 = vmatprep.subr.mxu0 0.0
        %6310 = vmatpush1.msra.mxu0 0.0
        %6311 = vmatprep.subr.mxu0 0.0
        %6312 = vmatpush1.msra.mxu0 0.0
        %6313 = vmatprep.subr.mxu0 0.0
        %6314 = vmatpush1.msra.mxu0 0.0
        %6315 = vmatprep.subr.mxu0 0.0
        %6316 = vmatpush1.msra.mxu0 0.0
        %6317 = vmatprep.subr.mxu0 0.0
        %6318 = vmatpush1.msra.mxu0 0.0
        %6319 = vmatprep.subr.mxu0 0.0
        %6320 = vmatpush1.msra.mxu0 0.0
        %6321 = vmatprep.subr.mxu0 0.0
        %6322 = vmatpush1.msra.mxu0 0.0
        %6323 = vmatprep.subr.mxu0 0.0
        %6324 = vmatpush1.msra.mxu0 0.0
        %6325 = vmatprep.subr.mxu0 0.0
        %6326 = vmatpush1.msra.mxu0 0.0
        %6327 = vmatprep.subr.mxu0 0.0
        %6328 = vmatpush1.msra.mxu0 0.0
        %6329 = vmatprep.subr.mxu0 0.0
        %6330 = vmatpush1.msra.mxu0 0.0
        %6331 = vmatprep.subr.mxu0 0.0
        %6332 = vmatpush1.msra.mxu0 0.0
        %6333 = vmatprep.subr.mxu0 0.0
        %6334 = vmatpush1.msra.mxu0 0.0
        %6335 = vmatprep.subr.mxu0 0.0
        %6336 = vmatpush1.msra.mxu0 0.0
        %6337 = vmatprep.subr.mxu0 0.0
        %6338 = vmatpush1.msra.mxu0 0.0
        %6339 = vmatprep.subr.mxu0 0.0
        %6340 = vmatpush1.msra.mxu0 0.0
        %6341 = vmatprep.subr.mxu0 0.0
        %6342 = vmatpush1.msra.mxu0 0.0
        %6343 = vmatprep.subr.mxu0 0.0
        %6344 = vmatpush1.msra.mxu0 0.0
        %6345 = vmatprep.subr.mxu0 0.0
        %6346 = vmatpush1.msra.mxu0 0.0
        %6347 = vmatprep.subr.mxu0 0.0
        %6348 = vmatpush1.msra.mxu0 0.0
        %6349 = vmatprep.subr.mxu0 0.0
        %6350 = vmatpush1.msra.mxu0 0.0
        %6351 = vmatprep.subr.mxu0 0.0
        %6352 = vmatpush1.msra.mxu0 0.0
        %6353 = vmatprep.subr.mxu0 0.0
        %6354 = vmatpush1.msra.mxu0 0.0
        %6355 = vmatprep.subr.mxu0 0.0
        %6356 = vmatpush1.msra.mxu0 0.0
        %6357 = vmatprep.subr.mxu0 0.0
        %6358 = vmatpush1.msra.mxu0 0.0
        %6359 = vmatprep.subr.mxu0 0.0
        %6360 = vmatpush1.msra.mxu0 0.0
        %6361 = vmatprep.subr.mxu0 0.0
        %6362 = vmatpush1.msra.mxu0 0.0
        %6363 = vmatprep.subr.mxu0 0.0
        %6364 = vmatpush1.msra.mxu0 0.0
        %6365 = vmatprep.subr.mxu0 0.0
        %6366 = vmatpush1.msra.mxu0 0.0
        %6367 = vmatprep.subr.mxu0 0.0
        %6368 = vmatpush1.msra.mxu0 0.0
        %6369 = vmatprep.subr.mxu0 0.0
        %6370 = vmatpush1.msra.mxu0 0.0
        %6371 = vmatprep.mubr.f32.mxu0 0.0
        %6372 = vmatmul.mubr.f32.gmra.mrb[0].mxu0 %v5808
        %v6373 = vpop.f32.mrb[0].mxu0
        %v6374 = vadd.f32 %v5805, %v6373
        %v6375 = vpop.f32.mrb[0].mxu0
        %v6376 = vadd.f32 %v5805, %v6375
        %6377 = vdwg.mxu0
        %6378 = vst [vmem:[%s320] sm:$0xff] %v5877
        %6379 = vst [vmem:[%s320 + $0x8] sm:$0xff] %v5879
        %6380 = vst [vmem:[%s320 + $0x10] sm:$0xff] %v5948
        %6381 = vst [vmem:[%s320 + $0x18] sm:$0xff] %v5950
        %6382 = vst [vmem:[%s320 + $0x20] sm:$0xff] %v6019
        %6383 = vst [vmem:[%s320 + $0x28] sm:$0xff] %v6021
        %6384 = vst [vmem:[%s320 + $0x30] sm:$0xff] %v6090
        %6385 = vst [vmem:[%s320 + $0x38] sm:$0xff] %v6092
        %6386 = vst [vmem:[%s320 + $0x40] sm:$0xff] %v6161
        %6387 = vst [vmem:[%s320 + $0x48] sm:$0xff] %v6163
        %6388 = vst [vmem:[%s320 + $0x50] sm:$0xff] %v6232
        %6389 = vst [vmem:[%s320 + $0x58] sm:$0xff] %v6234
        %6390 = vst [vmem:[%s320 + $0x60] sm:$0xff] %v6303
        %6391 = vst [vmem:[%s320 + $0x68] sm:$0xff] %v6305
        %6392 = vst [vmem:[%s320 + $0x70] sm:$0xff] %v6374
        %6393 = vst [vmem:[%s320 + $0x78] sm:$0xff] %v6376
        %s6394 = sand.u32 %s194, 1
        %s6395 = scalar_lea.sflag [#allocation4], %s6394
        %s6396 = sand.u32 %s194, 1
        %s6397 = smul.addr %s6396, 128
        %s6398 = scalar_lea.vmem [#allocation5], %s6397
        // Predicated region
        $region53: #{tpu_custom_call.1} parent=47 // pred_check
          %p6399 = pneg %p204
        $region54: #{tpu_custom_call.1} parent=47 // pred_check_branch
          %6401 = sbr.rel (%p6399) target = $region56
        $region55: #{tpu_custom_call.1} parent=47 // pred_region
          %s6402 = smul.u32 16, %s24
          %s6404 = ssub.s32 2048, 2048
          %6405 = vsyncadd %s6395, %s6404
          %s6406 = smul.addr %s6402, 128
          %s6407 = scalar_lea.hbm %s7, %s6406
          %s6409 = sshll.u32 %s6398, 4
          %s6410 = int_to_ptr.vmem [resolvable:$true] %s6409
          %6412 = dma.vmem_to_hbm [thread:$0]  %s6410, 2048, %s6407, %s6395
        $region56: #{tpu_custom_call.1} parent=47 // pred_fallthru
          _
      $region48: #{tpu_custom_call.1} parent=5 // pred_fallthru
        _
      %p6413 = scmp.le.s32.totalorder 2, %s19
      // Predicated region
      $region57: #{tpu_custom_call.1} parent=5 // pred_check
        %p6414 = pneg %p6413
      $region58: #{tpu_custom_call.1} parent=5 // pred_check_branch
        %6416 = sbr.rel (%p6414) target = $region60
      $region59: #{tpu_custom_call.1} parent=5 // pred_region
        %s6417 = ssub.s32 %s19, 2
        // Predicated region
        $region61: #{tpu_custom_call.1} parent=59 // pred_check
          %p6418 = pneg %p210
        $region62: #{tpu_custom_call.1} parent=59 // pred_check_branch
          %6420 = sbr.rel (%p6418) target = $region64
        $region63: #{tpu_custom_call.1} parent=59 // pred_region
          %s6421 = sand.u32 %s195, 1
          %s6422 = scalar_lea.sflag [#allocation4], %s6421
          %s6423 = sand.u32 %s195, 1
          %s6424 = smul.addr %s6423, 128
          %s6425 = scalar_lea.vmem [#allocation5], %s6424
          %6426 = dma.done %s6422, 2048
        $region64: #{tpu_custom_call.1} parent=59 // pred_fallthru
          _
      $region60: #{tpu_custom_call.1} parent=5 // pred_fallthru
        _
    $region6: #{tpu_custom_call.1} parent=1 // loop_footer
      %s23 = sadd.s32 1, %s19
    $region7: #{tpu_custom_call.1} parent=1 // loop_footer_branch
      %18 = sbr.rel target = $region3
    $region8: #{tpu_custom_call.1} parent=1 // loop_exit
      _
    %6427 = vsyncpa [#allocation3], 1
    %s6428 = scalar_lea.sflag [#allocation3], 1
    %6429 = vsyncpa %s6428, 1
    %6430 = vsyncpa [#allocation4], 1
    %s6431 = scalar_lea.sflag [#allocation4], 1
    %6432 = vsyncpa %s6431, 1

</llo_original>
